<compile_context>
chip_gen: v7x
topology: tpu7x:2x2x1
jax: 0.10.0
libtpu: 0.0.40
codegen_flags: <defaults>
</compile_context>

<pallas_src>
import functools

import numpy as np

import jax
import jax.numpy as jnp
from jax.experimental import pallas as pl
from jax.experimental.pallas import tpu as pltpu

# Matmul-operand dtype (accumulation is always f32).  Set to jnp.float32 for
# bit-for-bit f32 matmuls; bf16 halves the HBM/VMEM traffic of the expanded
# conv weights and feeds the MXU at full rate on v6e/v7x.
MATMUL_DTYPE = jnp.bfloat16


# ---------------------------------------------------------------------------
# Fused kernel: one grid step == one batch element; everything stays in VMEM.
# ---------------------------------------------------------------------------
def _block_kernel(x_ref,
                  c1w_ref, c1b_ref, c2w_ref, c2b_ref,
                  m1w_ref, m1b_ref, m3w_ref, m3b_ref, m5w_ref, m5b_ref,
                  f1w_ref, f1b_ref, f2w_ref, f2b_ref,
                  pool_ref, bcast_ref,
                  out_ref,
                  xpad_ref,
                  *, H, W, C, P):
    WC = W * C
    WPC = (W + 2 * P) * C

    def set_padded(img):
        """Write `img` (H, W*C) f32 into the shared zero-padded scratch (pad = P)."""
        zlr = jnp.zeros((H, P * C), jnp.float32)
        ztb = jnp.zeros((P, WPC), jnp.float32)
        mid = jnp.concatenate([zlr, img, zlr], axis=1)          # (H, WPC)
        xpad_ref[...] = jnp.concatenate([ztb, mid, ztb], axis=0)

    def conv(wb_ref, bias_ref, relu):
        """KxK 'same' conv of the image currently held in xpad_ref.

        wb_ref holds banded weights (K, WPC, WC): K matmuls with a deep (WPC)
        contraction replace K*K shallow-(C) ones; no per-tap slices/reshapes.
        """
        K = wb_ref.shape[0]
        off = P - K // 2
        acc = jnp.zeros((H, WC), jnp.float32)
        for ky in range(K):
            slab = xpad_ref[off + ky:off + ky + H, :].astype(wb_ref.dtype)
            acc = acc + jnp.dot(slab, wb_ref[ky],
                                preferred_element_type=jnp.float32)
        acc = acc + bias_ref[...]                               # (1, WC) broadcast
        if relu:
            acc = jnp.maximum(acc, 0.0)
        return acc                                              # (H, WC) f32

    x = x_ref[0].astype(jnp.float32)                            # (H, WC)

    # res1 = relu(conv1(x)) + x
    set_padded(x)
    res1 = conv(c1w_ref, c1b_ref, relu=True) + x
    # res2 = conv2(res1)
    set_padded(res1)
    res2 = conv(c2w_ref, c2b_ref, relu=False)

    # MultiscaleChannelAttention branches share one padded copy of res2 (pad = 3).
    set_padded(res2)
    a1 = conv(m1w_ref, m1b_ref, relu=True)                      # 3x3
    a3 = conv(m3w_ref, m3b_ref, relu=True)                      # 5x5
    a5 = conv(m5w_ref, m5b_ref, relu=True)                      # 7x7

    # Global average pool of the three branches + batched channel-MLP.
    colsum = jnp.concatenate(
        [jnp.sum(a1, axis=0, keepdims=True),
         jnp.sum(a3, axis=0, keepdims=True),
         jnp.sum(a5, axis=0, keepdims=True)], axis=0)           # (3, WC)
    pooled = jnp.dot(colsum, pool_ref[...],
                     preferred_element_type=jnp.float32) * (1.0 / (H * W))  # (3, C)
    h = jnp.dot(pooled, f1w_ref[...], preferred_element_type=jnp.float32)
    h = jnp.maximum(h + f1b_ref[...], 0.0)                      # (3, C//8)
    z = jnp.dot(h, f2w_ref[...], preferred_element_type=jnp.float32) + f2b_ref[...]
    cw = 1.0 / (1.0 + jnp.exp(-z))                              # sigmoid, (3, C)
    cw_flat = jnp.dot(cw, bcast_ref[...],
                      preferred_element_type=jnp.float32)       # (3, WC)

    attn = a1 * cw_flat[0:1, :] + a3 * cw_flat[1:2, :] + a5 * cw_flat[2:3, :]
    out_ref[...] = (attn + x)[None].astype(out_ref.dtype)


# ---------------------------------------------------------------------------
# Parameter pre-processing (done once, outside the kernel / hot path).
# ---------------------------------------------------------------------------
def _band_conv_weights(w_hwio, W, P, dtype):
    """Expand HWIO conv weights (K, K, Cin, Cout) into banded matmul weights.

    Result (K, (W+2P)*C, W*C):  out[y, xo*C+co] = sum_ky  slab_ky @ band[ky]
    where slab_ky is row (P - K//2 + ky + y) of the P-padded, lane-flattened image.
    """
    K = w_hwio.shape[0]
    C = w_hwio.shape[2]
    off = P - K // 2
    Wp = W + 2 * P
    xf = jnp.arange(Wp)[:, None]                 # padded-input pixel index
    xo = jnp.arange(W)[None, :]                  # output pixel index
    kx = xf - xo - off                           # tap index, (Wp, W)
    valid = (kx >= 0) & (kx < K)
    g = w_hwio[:, jnp.clip(kx, 0, K - 1), :, :]  # (K, Wp, W, Cin, Cout)
    g = jnp.where(valid[None, :, :, None, None], g, 0.0)
    g = jnp.transpose(g, (0, 1, 3, 2, 4))        # (K, Wp, Cin, W, Cout)
    return g.reshape(K, Wp * C, W * C).astype(dtype)


def prepare_block_params(params, W):
    """One-time re-layout of raw Block parameters for the fused kernel."""
    C = params["c1_b"].shape[-1]
    P = max(params["c1_w"].shape[0] // 2, params["c2_w"].shape[0] // 2, 3)

    def bias_flat(b):                            # (1, C) -> (1, W*C), lane-dense
        return jnp.tile(b.astype(jnp.float32), (1, W))

    eye = jnp.eye(C, dtype=jnp.float32)
    return {
        "c1_w": _band_conv_weights(params["c1_w"], W, P, MATMUL_DTYPE),
        "c1_b": bias_flat(params["c1_b"]),
        "c2_w": _band_conv_weights(params["c2_w"], W, P, MATMUL_DTYPE),
        "c2_b": bias_flat(params["c2_b"]),
        "m1_w": _band_conv_weights(params["m1_w"], W, P, MATMUL_DTYPE),
        "m1_b": bias_flat(params["m1_b"]),
        "m3_w": _band_conv_weights(params["m3_w"], W, P, MATMUL_DTYPE),
        "m3_b": bias_flat(params["m3_b"]),
        "m5_w": _band_conv_weights(params["m5_w"], W, P, MATMUL_DTYPE),
        "m5_b": bias_flat(params["m5_b"]),
        "f1_w": params["f1_w"].astype(jnp.float32),
        "f1_b": params["f1_b"].astype(jnp.float32),
        "f2_w": params["f2_w"].astype(jnp.float32),
        "f2_b": params["f2_b"].astype(jnp.float32),
        # (W*C, C): per-channel sum over pixels;  (C, W*C): broadcast back to lanes.
        "pool": jnp.tile(eye, (W, 1)),
        "bcast": jnp.tile(eye, (1, W)),
    }


# ---------------------------------------------------------------------------
# Wrapper: one fused pallas_call for the whole Block.
# ---------------------------------------------------------------------------
def block_forward(x, prepared):
    """Block.forward.  x: (B, H, W, C) channel-last; returns (B, H, W, C)."""
    B, H, W, C = x.shape
    WC = W * C
    WPC = prepared["c1_w"].shape[1]
    P = (WPC // C - W) // 2

    x_flat = x.reshape(B, H, WC)                 # lane-dense activation layout

    def rep(a):                                  # whole array, same block every step
        zeros = (0,) * a.ndim
        return pl.BlockSpec(a.shape, lambda i: zeros)

    ins = [x_flat,
           prepared["c1_w"], prepared["c1_b"],
           prepared["c2_w"], prepared["c2_b"],
           prepared["m1_w"], prepared["m1_b"],
           prepared["m3_w"], prepared["m3_b"],
           prepared["m5_w"], prepared["m5_b"],
           prepared["f1_w"], prepared["f1_b"],
           prepared["f2_w"], prepared["f2_b"],
           prepared["pool"], prepared["bcast"]]

    in_specs = [pl.BlockSpec((1, H, WC), lambda i: (i, 0, 0))]
    in_specs += [rep(a) for a in ins[1:]]

    out = pl.pallas_call(
        functools.partial(_block_kernel, H=H, W=W, C=C, P=P),
        grid=(B,),
        in_specs=in_specs,
        out_specs=pl.BlockSpec((1, H, WC), lambda i: (i, 0, 0)),
        out_shape=jax.ShapeDtypeStruct((B, H, WC), x.dtype),
        scratch_shapes=[pltpu.VMEM((H + 2 * P, WPC), jnp.float32)],
        compiler_params=pltpu.CompilerParams(
            dimension_semantics=("parallel",),   # batch across TensorCores (v7x)
            vmem_limit_bytes=32 * 1024 * 1024),
    )(*ins)
    return out.reshape(B, H, W, C)


# ---------------------------------------------------------------------------
# Pure-JAX reference (for correctness checking) and parameter init.
# ---------------------------------------------------------------------------
def reference_block_forward(x, params):
    def conv(v, w, b):
        y = jax.lax.conv_general_dilated(
            v, w, window_strides=(1, 1), padding="SAME",
            dimension_numbers=("NHWC", "HWIO", "NHWC"),
            precision=jax.lax.Precision.HIGHEST)
        return y + b.reshape(1, 1, 1, -1)

    res = jnp.maximum(conv(x, params["c1_w"], params["c1_b"]), 0.0) + x
    res = conv(res, params["c2_w"], params["c2_b"])

    a1 = jnp.maximum(conv(res, params["m1_w"], params["m1_b"]), 0.0)
    a3 = jnp.maximum(conv(res, params["m3_w"], params["m3_b"]), 0.0)
    a5 = jnp.maximum(conv(res, params["m5_w"], params["m5_b"]), 0.0)

    def channel_weights(a):
        pooled = a.mean(axis=(1, 2))                                  # (B, C)
        h = jnp.maximum(pooled @ params["f1_w"] + params["f1_b"], 0.0)
        return jax.nn.sigmoid(h @ params["f2_w"] + params["f2_b"])    # (B, C)

    w1 = channel_weights(a1)[:, None, None, :]
    w3 = channel_weights(a3)[:, None, None, :]
    w5 = channel_weights(a5)[:, None, None, :]
    return a1 * w1 + a3 * w3 + a5 * w5 + x


def init_params(key, dim, kernel_size):
    ks = jax.random.split(key, 16)

    def w(k, shape, scale=0.1):
        return jax.random.normal(k, shape, jnp.float32) * scale

    cr = dim // 8
    return {
        # Block convs: conv(dim, dim, kernel_size) with "same" padding
        "c1_w": w(ks[0], (kernel_size, kernel_size, dim, dim)),
        "c1_b": w(ks[1], (1, dim)),
        "c2_w": w(ks[2], (kernel_size, kernel_size, dim, dim)),
        "c2_b": w(ks[3], (1, dim)),
        # MultiscaleChannelAttention convs (3x3 / 5x5 / 7x7)
        "m1_w": w(ks[4], (3, 3, dim, dim)),
        "m1_b": w(ks[5], (1, dim)),
        "m3_w": w(ks[6], (5, 5, dim, dim)),
        "m3_b": w(ks[7], (1, dim)),
        "m5_w": w(ks[8], (7, 7, dim, dim)),
        "m5_b": w(ks[9], (1, dim)),
        # fc1: dim -> dim//8, fc2: dim//8 -> dim   (stored as (in, out))
        "f1_w": w(ks[10], (dim, cr)),
        "f1_b": w(ks[11], (1, cr)),
        "f2_w": w(ks[12], (cr, dim)),
        "f2_b": w(ks[13], (1, dim)),
    }


if __name__ == "__main__":
    B, H, W, dim = 2, 16, 16, 16
    kernel_size = 3  # Block's `conv(dim, dim, kernel_size)` with same padding

    key = jax.random.PRNGKey(0)
    kx_, kp_ = jax.random.split(key)
    x = jax.random.normal(kx_, (B, H, W, dim), jnp.float32)  # NHWC (== PyTorch NCHW)
    params = init_params(kp_, dim, kernel_size)

    prepared = prepare_block_params(params, W)          # one-time weight re-layout
    out = jax.jit(block_forward)(x, prepared)
    jax.block_until_ready(out)
    assert out.shape == (B, H, W, dim)

    # Correctness check against a plain-XLA reference (loose tolerance when the
    # matmul operands are bf16; exact-ish when MATMUL_DTYPE == float32).
    ref = reference_block_forward(x, params)
    if MATMUL_DTYPE == jnp.bfloat16:
        rtol, atol = 5e-2, 2e-1
    else:
        rtol, atol = 1e-4, 1e-4
    np.testing.assert_allclose(np.asarray(out), np.asarray(ref), rtol=rtol, atol=atol)

    print("KERNEL_OK")
</pallas_src>

<mosaic_0001>
module attributes {stable_mosaic.version = 11 : i64} {
  func.func @_block_kernel(%arg0: i32, %arg1: memref<1x16x256xf32, #tpu.memory_space<vmem>>, %arg2: memref<3x352x256xbf16, #tpu.memory_space<vmem>>, %arg3: memref<1x256xf32, #tpu.memory_space<vmem>>, %arg4: memref<3x352x256xbf16, #tpu.memory_space<vmem>>, %arg5: memref<1x256xf32, #tpu.memory_space<vmem>>, %arg6: memref<3x352x256xbf16, #tpu.memory_space<vmem>>, %arg7: memref<1x256xf32, #tpu.memory_space<vmem>>, %arg8: memref<5x352x256xbf16, #tpu.memory_space<vmem>>, %arg9: memref<1x256xf32, #tpu.memory_space<vmem>>, %arg10: memref<7x352x256xbf16, #tpu.memory_space<vmem>>, %arg11: memref<1x256xf32, #tpu.memory_space<vmem>>, %arg12: memref<16x2xf32, #tpu.memory_space<vmem>>, %arg13: memref<1x2xf32, #tpu.memory_space<vmem>>, %arg14: memref<2x16xf32, #tpu.memory_space<vmem>>, %arg15: memref<1x16xf32, #tpu.memory_space<vmem>>, %arg16: memref<256x16xf32, #tpu.memory_space<vmem>>, %arg17: memref<16x256xf32, #tpu.memory_space<vmem>>, %arg18: memref<1x16x256xf32, #tpu.memory_space<vmem>>, %arg19: memref<22x352xf32, #tpu.memory_space<vmem>>) attributes {dimension_semantics = [#tpu.dimension_semantics<parallel>], iteration_bounds = array<i64: 2>, scalar_prefetch = 0 : i64, scratch_operands = 1 : i64, tpu.core_type = #tpu.core_type<tc>, window_params = [{transform_indices = @transform_0, window_bounds = array<i64: 1, 16, 256>}, {pipeline_mode = #tpu.pipeline_mode<synchronous>, transform_indices = @transform_1, window_bounds = array<i64: 3, 352, 256>}, {pipeline_mode = #tpu.pipeline_mode<synchronous>, transform_indices = @transform_2, window_bounds = array<i64: 1, 256>}, {pipeline_mode = #tpu.pipeline_mode<synchronous>, transform_indices = @transform_3, window_bounds = array<i64: 3, 352, 256>}, {pipeline_mode = #tpu.pipeline_mode<synchronous>, transform_indices = @transform_4, window_bounds = array<i64: 1, 256>}, {pipeline_mode = #tpu.pipeline_mode<synchronous>, transform_indices = @transform_5, window_bounds = array<i64: 3, 352, 256>}, {pipeline_mode = #tpu.pipeline_mode<synchronous>, transform_indices = @transform_6, window_bounds = array<i64: 1, 256>}, {pipeline_mode = #tpu.pipeline_mode<synchronous>, transform_indices = @transform_7, window_bounds = array<i64: 5, 352, 256>}, {pipeline_mode = #tpu.pipeline_mode<synchronous>, transform_indices = @transform_8, window_bounds = array<i64: 1, 256>}, {pipeline_mode = #tpu.pipeline_mode<synchronous>, transform_indices = @transform_9, window_bounds = array<i64: 7, 352, 256>}, {pipeline_mode = #tpu.pipeline_mode<synchronous>, transform_indices = @transform_10, window_bounds = array<i64: 1, 256>}, {pipeline_mode = #tpu.pipeline_mode<synchronous>, transform_indices = @transform_11, window_bounds = array<i64: 16, 2>}, {pipeline_mode = #tpu.pipeline_mode<synchronous>, transform_indices = @transform_12, window_bounds = array<i64: 1, 2>}, {pipeline_mode = #tpu.pipeline_mode<synchronous>, transform_indices = @transform_13, window_bounds = array<i64: 2, 16>}, {pipeline_mode = #tpu.pipeline_mode<synchronous>, transform_indices = @transform_14, window_bounds = array<i64: 1, 16>}, {pipeline_mode = #tpu.pipeline_mode<synchronous>, transform_indices = @transform_15, window_bounds = array<i64: 256, 16>}, {pipeline_mode = #tpu.pipeline_mode<synchronous>, transform_indices = @transform_16, window_bounds = array<i64: 16, 256>}, {transform_indices = @transform_17, window_bounds = array<i64: 1, 16, 256>}]} {
    %c0 = arith.constant 0 : index
    %c0_0 = arith.constant 0 : index
    %c0_1 = arith.constant 0 : index
    %0 = vector.load %arg1[%c0, %c0_0, %c0_1] : memref<1x16x256xf32, #tpu.memory_space<vmem>>, vector<1x16x256xf32>
    %1 = vector.shape_cast %0 : vector<1x16x256xf32> to vector<16x256xf32>
    %cst = arith.constant 0.000000e+00 : f32
    %2 = vector.broadcast %cst : f32 to vector<16x48xf32>
    %cst_2 = arith.constant 0.000000e+00 : f32
    %3 = vector.broadcast %cst_2 : f32 to vector<3x352xf32>
    %4 = tpu.concatenate %2, %1, %2 in 1 : vector<16x48xf32>, vector<16x256xf32>, vector<16x48xf32> -> vector<16x352xf32>
    %5 = tpu.concatenate %3, %4, %3 in 0 : vector<3x352xf32>, vector<16x352xf32>, vector<3x352xf32> -> vector<22x352xf32>
    %c0_3 = arith.constant 0 : index
    %c0_4 = arith.constant 0 : index
    %6 = vector.load %arg19[%c0_3, %c0_4] : memref<22x352xf32, #tpu.memory_space<vmem>>, vector<22x352xf32>
    tpu.vector_store %arg19[%c0_3, %c0_4], %5 {strides = array<i32>} : memref<22x352xf32, #tpu.memory_space<vmem>>, vector<22x352xf32>,
    %cst_5 = arith.constant 0.000000e+00 : f32
    %7 = vector.broadcast %cst_5 : f32 to vector<16x256xf32>
    %c2 = arith.constant 2 : index
    %c0_6 = arith.constant 0 : index
    %8 = vector.load %arg19[%c2, %c0_6] : memref<22x352xf32, #tpu.memory_space<vmem>>, vector<16x352xf32>
    %9 = arith.truncf %8 : vector<16x352xf32> to vector<16x352xbf16>
    %c0_7 = arith.constant 0 : index
    %c0_8 = arith.constant 0 : index
    %c0_9 = arith.constant 0 : index
    %10 = vector.load %arg2[%c0_7, %c0_8, %c0_9] : memref<3x352x256xbf16, #tpu.memory_space<vmem>>, vector<1x352x256xbf16>
    %11 = vector.shape_cast %10 : vector<1x352x256xbf16> to vector<352x256xbf16>
    %cst_10 = arith.constant dense<0.000000e+00> : vector<16x256xf32>
    %12 = tpu.matmul %9, %11, %cst_10 {dimension_numbers = #tpu.dot_dimension_numbers<[1], [0], [0], [1], [0, 0, 1, 1], [], []>} : vector<16x352xbf16>, vector<352x256xbf16>, vector<16x256xf32> -> vector<16x256xf32>
    %13 = arith.addf %7, %12 : vector<16x256xf32>
    %c3 = arith.constant 3 : index
    %c0_11 = arith.constant 0 : index
    %14 = vector.load %arg19[%c3, %c0_11] : memref<22x352xf32, #tpu.memory_space<vmem>>, vector<16x352xf32>
    %15 = arith.truncf %14 : vector<16x352xf32> to vector<16x352xbf16>
    %c1 = arith.constant 1 : index
    %c0_12 = arith.constant 0 : index
    %c0_13 = arith.constant 0 : index
    %16 = vector.load %arg2[%c1, %c0_12, %c0_13] : memref<3x352x256xbf16, #tpu.memory_space<vmem>>, vector<1x352x256xbf16>
    %17 = vector.shape_cast %16 : vector<1x352x256xbf16> to vector<352x256xbf16>
    %cst_14 = arith.constant dense<0.000000e+00> : vector<16x256xf32>
    %18 = tpu.matmul %15, %17, %cst_14 {dimension_numbers = #tpu.dot_dimension_numbers<[1], [0], [0], [1], [0, 0, 1, 1], [], []>} : vector<16x352xbf16>, vector<352x256xbf16>, vector<16x256xf32> -> vector<16x256xf32>
    %19 = arith.addf %13, %18 : vector<16x256xf32>
    %c4 = arith.constant 4 : index
    %c0_15 = arith.constant 0 : index
    %20 = vector.load %arg19[%c4, %c0_15] : memref<22x352xf32, #tpu.memory_space<vmem>>, vector<16x352xf32>
    %21 = arith.truncf %20 : vector<16x352xf32> to vector<16x352xbf16>
    %c2_16 = arith.constant 2 : index
    %c0_17 = arith.constant 0 : index
    %c0_18 = arith.constant 0 : index
    %22 = vector.load %arg2[%c2_16, %c0_17, %c0_18] : memref<3x352x256xbf16, #tpu.memory_space<vmem>>, vector<1x352x256xbf16>
    %23 = vector.shape_cast %22 : vector<1x352x256xbf16> to vector<352x256xbf16>
    %cst_19 = arith.constant dense<0.000000e+00> : vector<16x256xf32>
    %24 = tpu.matmul %21, %23, %cst_19 {dimension_numbers = #tpu.dot_dimension_numbers<[1], [0], [0], [1], [0, 0, 1, 1], [], []>} : vector<16x352xbf16>, vector<352x256xbf16>, vector<16x256xf32> -> vector<16x256xf32>
    %25 = arith.addf %19, %24 : vector<16x256xf32>
    %c0_20 = arith.constant 0 : index
    %c0_21 = arith.constant 0 : index
    %26 = vector.load %arg3[%c0_20, %c0_21] : memref<1x256xf32, #tpu.memory_space<vmem>>, vector<1x256xf32>
    %27 = vector.broadcast %26 : vector<1x256xf32> to vector<16x256xf32>
    %28 = arith.addf %25, %27 : vector<16x256xf32>
    %cst_22 = arith.constant 0.000000e+00 : f32
    %29 = vector.broadcast %cst_22 : f32 to vector<16x256xf32>
    %30 = arith.maximumf %28, %29 : vector<16x256xf32>
    %31 = arith.addf %30, %1 : vector<16x256xf32>
    %cst_23 = arith.constant 0.000000e+00 : f32
    %32 = vector.broadcast %cst_23 : f32 to vector<16x48xf32>
    %cst_24 = arith.constant 0.000000e+00 : f32
    %33 = vector.broadcast %cst_24 : f32 to vector<3x352xf32>
    %34 = tpu.concatenate %32, %31, %32 in 1 : vector<16x48xf32>, vector<16x256xf32>, vector<16x48xf32> -> vector<16x352xf32>
    %35 = tpu.concatenate %33, %34, %33 in 0 : vector<3x352xf32>, vector<16x352xf32>, vector<3x352xf32> -> vector<22x352xf32>
    %c0_25 = arith.constant 0 : index
    %c0_26 = arith.constant 0 : index
    %36 = vector.load %arg19[%c0_25, %c0_26] : memref<22x352xf32, #tpu.memory_space<vmem>>, vector<22x352xf32>
    tpu.vector_store %arg19[%c0_25, %c0_26], %35 {strides = array<i32>} : memref<22x352xf32, #tpu.memory_space<vmem>>, vector<22x352xf32>,
    %cst_27 = arith.constant 0.000000e+00 : f32
    %37 = vector.broadcast %cst_27 : f32 to vector<16x256xf32>
    %c2_28 = arith.constant 2 : index
    %c0_29 = arith.constant 0 : index
    %38 = vector.load %arg19[%c2_28, %c0_29] : memref<22x352xf32, #tpu.memory_space<vmem>>, vector<16x352xf32>
    %39 = arith.truncf %38 : vector<16x352xf32> to vector<16x352xbf16>
    %c0_30 = arith.constant 0 : index
    %c0_31 = arith.constant 0 : index
    %c0_32 = arith.constant 0 : index
    %40 = vector.load %arg4[%c0_30, %c0_31, %c0_32] : memref<3x352x256xbf16, #tpu.memory_space<vmem>>, vector<1x352x256xbf16>
    %41 = vector.shape_cast %40 : vector<1x352x256xbf16> to vector<352x256xbf16>
    %cst_33 = arith.constant dense<0.000000e+00> : vector<16x256xf32>
    %42 = tpu.matmul %39, %41, %cst_33 {dimension_numbers = #tpu.dot_dimension_numbers<[1], [0], [0], [1], [0, 0, 1, 1], [], []>} : vector<16x352xbf16>, vector<352x256xbf16>, vector<16x256xf32> -> vector<16x256xf32>
    %43 = arith.addf %37, %42 : vector<16x256xf32>
    %c3_34 = arith.constant 3 : index
    %c0_35 = arith.constant 0 : index
    %44 = vector.load %arg19[%c3_34, %c0_35] : memref<22x352xf32, #tpu.memory_space<vmem>>, vector<16x352xf32>
    %45 = arith.truncf %44 : vector<16x352xf32> to vector<16x352xbf16>
    %c1_36 = arith.constant 1 : index
    %c0_37 = arith.constant 0 : index
    %c0_38 = arith.constant 0 : index
    %46 = vector.load %arg4[%c1_36, %c0_37, %c0_38] : memref<3x352x256xbf16, #tpu.memory_space<vmem>>, vector<1x352x256xbf16>
    %47 = vector.shape_cast %46 : vector<1x352x256xbf16> to vector<352x256xbf16>
    %cst_39 = arith.constant dense<0.000000e+00> : vector<16x256xf32>
    %48 = tpu.matmul %45, %47, %cst_39 {dimension_numbers = #tpu.dot_dimension_numbers<[1], [0], [0], [1], [0, 0, 1, 1], [], []>} : vector<16x352xbf16>, vector<352x256xbf16>, vector<16x256xf32> -> vector<16x256xf32>
    %49 = arith.addf %43, %48 : vector<16x256xf32>
    %c4_40 = arith.constant 4 : index
    %c0_41 = arith.constant 0 : index
    %50 = vector.load %arg19[%c4_40, %c0_41] : memref<22x352xf32, #tpu.memory_space<vmem>>, vector<16x352xf32>
    %51 = arith.truncf %50 : vector<16x352xf32> to vector<16x352xbf16>
    %c2_42 = arith.constant 2 : index
    %c0_43 = arith.constant 0 : index
    %c0_44 = arith.constant 0 : index
    %52 = vector.load %arg4[%c2_42, %c0_43, %c0_44] : memref<3x352x256xbf16, #tpu.memory_space<vmem>>, vector<1x352x256xbf16>
    %53 = vector.shape_cast %52 : vector<1x352x256xbf16> to vector<352x256xbf16>
    %cst_45 = arith.constant dense<0.000000e+00> : vector<16x256xf32>
    %54 = tpu.matmul %51, %53, %cst_45 {dimension_numbers = #tpu.dot_dimension_numbers<[1], [0], [0], [1], [0, 0, 1, 1], [], []>} : vector<16x352xbf16>, vector<352x256xbf16>, vector<16x256xf32> -> vector<16x256xf32>
    %55 = arith.addf %49, %54 : vector<16x256xf32>
    %c0_46 = arith.constant 0 : index
    %c0_47 = arith.constant 0 : index
    %56 = vector.load %arg5[%c0_46, %c0_47] : memref<1x256xf32, #tpu.memory_space<vmem>>, vector<1x256xf32>
    %57 = vector.broadcast %56 : vector<1x256xf32> to vector<16x256xf32>
    %58 = arith.addf %55, %57 : vector<16x256xf32>
    %cst_48 = arith.constant 0.000000e+00 : f32
    %59 = vector.broadcast %cst_48 : f32 to vector<16x48xf32>
    %cst_49 = arith.constant 0.000000e+00 : f32
    %60 = vector.broadcast %cst_49 : f32 to vector<3x352xf32>
    %61 = tpu.concatenate %59, %58, %59 in 1 : vector<16x48xf32>, vector<16x256xf32>, vector<16x48xf32> -> vector<16x352xf32>
    %62 = tpu.concatenate %60, %61, %60 in 0 : vector<3x352xf32>, vector<16x352xf32>, vector<3x352xf32> -> vector<22x352xf32>
    %c0_50 = arith.constant 0 : index
    %c0_51 = arith.constant 0 : index
    %63 = vector.load %arg19[%c0_50, %c0_51] : memref<22x352xf32, #tpu.memory_space<vmem>>, vector<22x352xf32>
    tpu.vector_store %arg19[%c0_50, %c0_51], %62 {strides = array<i32>} : memref<22x352xf32, #tpu.memory_space<vmem>>, vector<22x352xf32>,
    %cst_52 = arith.constant 0.000000e+00 : f32
    %64 = vector.broadcast %cst_52 : f32 to vector<16x256xf32>
    %c2_53 = arith.constant 2 : index
    %c0_54 = arith.constant 0 : index
    %65 = vector.load %arg19[%c2_53, %c0_54] : memref<22x352xf32, #tpu.memory_space<vmem>>, vector<16x352xf32>
    %66 = arith.truncf %65 : vector<16x352xf32> to vector<16x352xbf16>
    %c0_55 = arith.constant 0 : index
    %c0_56 = arith.constant 0 : index
    %c0_57 = arith.constant 0 : index
    %67 = vector.load %arg6[%c0_55, %c0_56, %c0_57] : memref<3x352x256xbf16, #tpu.memory_space<vmem>>, vector<1x352x256xbf16>
    %68 = vector.shape_cast %67 : vector<1x352x256xbf16> to vector<352x256xbf16>
    %cst_58 = arith.constant dense<0.000000e+00> : vector<16x256xf32>
    %69 = tpu.matmul %66, %68, %cst_58 {dimension_numbers = #tpu.dot_dimension_numbers<[1], [0], [0], [1], [0, 0, 1, 1], [], []>} : vector<16x352xbf16>, vector<352x256xbf16>, vector<16x256xf32> -> vector<16x256xf32>
    %70 = arith.addf %64, %69 : vector<16x256xf32>
    %c3_59 = arith.constant 3 : index
    %c0_60 = arith.constant 0 : index
    %71 = vector.load %arg19[%c3_59, %c0_60] : memref<22x352xf32, #tpu.memory_space<vmem>>, vector<16x352xf32>
    %72 = arith.truncf %71 : vector<16x352xf32> to vector<16x352xbf16>
    %c1_61 = arith.constant 1 : index
    %c0_62 = arith.constant 0 : index
    %c0_63 = arith.constant 0 : index
    %73 = vector.load %arg6[%c1_61, %c0_62, %c0_63] : memref<3x352x256xbf16, #tpu.memory_space<vmem>>, vector<1x352x256xbf16>
    %74 = vector.shape_cast %73 : vector<1x352x256xbf16> to vector<352x256xbf16>
    %cst_64 = arith.constant dense<0.000000e+00> : vector<16x256xf32>
    %75 = tpu.matmul %72, %74, %cst_64 {dimension_numbers = #tpu.dot_dimension_numbers<[1], [0], [0], [1], [0, 0, 1, 1], [], []>} : vector<16x352xbf16>, vector<352x256xbf16>, vector<16x256xf32> -> vector<16x256xf32>
    %76 = arith.addf %70, %75 : vector<16x256xf32>
    %c4_65 = arith.constant 4 : index
    %c0_66 = arith.constant 0 : index
    %77 = vector.load %arg19[%c4_65, %c0_66] : memref<22x352xf32, #tpu.memory_space<vmem>>, vector<16x352xf32>
    %78 = arith.truncf %77 : vector<16x352xf32> to vector<16x352xbf16>
    %c2_67 = arith.constant 2 : index
    %c0_68 = arith.constant 0 : index
    %c0_69 = arith.constant 0 : index
    %79 = vector.load %arg6[%c2_67, %c0_68, %c0_69] : memref<3x352x256xbf16, #tpu.memory_space<vmem>>, vector<1x352x256xbf16>
    %80 = vector.shape_cast %79 : vector<1x352x256xbf16> to vector<352x256xbf16>
    %cst_70 = arith.constant dense<0.000000e+00> : vector<16x256xf32>
    %81 = tpu.matmul %78, %80, %cst_70 {dimension_numbers = #tpu.dot_dimension_numbers<[1], [0], [0], [1], [0, 0, 1, 1], [], []>} : vector<16x352xbf16>, vector<352x256xbf16>, vector<16x256xf32> -> vector<16x256xf32>
    %82 = arith.addf %76, %81 : vector<16x256xf32>
    %c0_71 = arith.constant 0 : index
    %c0_72 = arith.constant 0 : index
    %83 = vector.load %arg7[%c0_71, %c0_72] : memref<1x256xf32, #tpu.memory_space<vmem>>, vector<1x256xf32>
    %84 = vector.broadcast %83 : vector<1x256xf32> to vector<16x256xf32>
    %85 = arith.addf %82, %84 : vector<16x256xf32>
    %cst_73 = arith.constant 0.000000e+00 : f32
    %86 = vector.broadcast %cst_73 : f32 to vector<16x256xf32>
    %87 = arith.maximumf %85, %86 : vector<16x256xf32>
    %cst_74 = arith.constant 0.000000e+00 : f32
    %88 = vector.broadcast %cst_74 : f32 to vector<16x256xf32>
    %c1_75 = arith.constant 1 : index
    %c0_76 = arith.constant 0 : index
    %89 = vector.load %arg19[%c1_75, %c0_76] : memref<22x352xf32, #tpu.memory_space<vmem>>, vector<16x352xf32>
    %90 = arith.truncf %89 : vector<16x352xf32> to vector<16x352xbf16>
    %c0_77 = arith.constant 0 : index
    %c0_78 = arith.constant 0 : index
    %c0_79 = arith.constant 0 : index
    %91 = vector.load %arg8[%c0_77, %c0_78, %c0_79] : memref<5x352x256xbf16, #tpu.memory_space<vmem>>, vector<1x352x256xbf16>
    %92 = vector.shape_cast %91 : vector<1x352x256xbf16> to vector<352x256xbf16>
    %cst_80 = arith.constant dense<0.000000e+00> : vector<16x256xf32>
    %93 = tpu.matmul %90, %92, %cst_80 {dimension_numbers = #tpu.dot_dimension_numbers<[1], [0], [0], [1], [0, 0, 1, 1], [], []>} : vector<16x352xbf16>, vector<352x256xbf16>, vector<16x256xf32> -> vector<16x256xf32>
    %94 = arith.addf %88, %93 : vector<16x256xf32>
    %c2_81 = arith.constant 2 : index
    %c0_82 = arith.constant 0 : index
    %95 = vector.load %arg19[%c2_81, %c0_82] : memref<22x352xf32, #tpu.memory_space<vmem>>, vector<16x352xf32>
    %96 = arith.truncf %95 : vector<16x352xf32> to vector<16x352xbf16>
    %c1_83 = arith.constant 1 : index
    %c0_84 = arith.constant 0 : index
    %c0_85 = arith.constant 0 : index
    %97 = vector.load %arg8[%c1_83, %c0_84, %c0_85] : memref<5x352x256xbf16, #tpu.memory_space<vmem>>, vector<1x352x256xbf16>
    %98 = vector.shape_cast %97 : vector<1x352x256xbf16> to vector<352x256xbf16>
    %cst_86 = arith.constant dense<0.000000e+00> : vector<16x256xf32>
    %99 = tpu.matmul %96, %98, %cst_86 {dimension_numbers = #tpu.dot_dimension_numbers<[1], [0], [0], [1], [0, 0, 1, 1], [], []>} : vector<16x352xbf16>, vector<352x256xbf16>, vector<16x256xf32> -> vector<16x256xf32>
    %100 = arith.addf %94, %99 : vector<16x256xf32>
    %c3_87 = arith.constant 3 : index
    %c0_88 = arith.constant 0 : index
    %101 = vector.load %arg19[%c3_87, %c0_88] : memref<22x352xf32, #tpu.memory_space<vmem>>, vector<16x352xf32>
    %102 = arith.truncf %101 : vector<16x352xf32> to vector<16x352xbf16>
    %c2_89 = arith.constant 2 : index
    %c0_90 = arith.constant 0 : index
    %c0_91 = arith.constant 0 : index
    %103 = vector.load %arg8[%c2_89, %c0_90, %c0_91] : memref<5x352x256xbf16, #tpu.memory_space<vmem>>, vector<1x352x256xbf16>
    %104 = vector.shape_cast %103 : vector<1x352x256xbf16> to vector<352x256xbf16>
    %cst_92 = arith.constant dense<0.000000e+00> : vector<16x256xf32>
    %105 = tpu.matmul %102, %104, %cst_92 {dimension_numbers = #tpu.dot_dimension_numbers<[1], [0], [0], [1], [0, 0, 1, 1], [], []>} : vector<16x352xbf16>, vector<352x256xbf16>, vector<16x256xf32> -> vector<16x256xf32>
    %106 = arith.addf %100, %105 : vector<16x256xf32>
    %c4_93 = arith.constant 4 : index
    %c0_94 = arith.constant 0 : index
    %107 = vector.load %arg19[%c4_93, %c0_94] : memref<22x352xf32, #tpu.memory_space<vmem>>, vector<16x352xf32>
    %108 = arith.truncf %107 : vector<16x352xf32> to vector<16x352xbf16>
    %c3_95 = arith.constant 3 : index
    %c0_96 = arith.constant 0 : index
    %c0_97 = arith.constant 0 : index
    %109 = vector.load %arg8[%c3_95, %c0_96, %c0_97] : memref<5x352x256xbf16, #tpu.memory_space<vmem>>, vector<1x352x256xbf16>
    %110 = vector.shape_cast %109 : vector<1x352x256xbf16> to vector<352x256xbf16>
    %cst_98 = arith.constant dense<0.000000e+00> : vector<16x256xf32>
    %111 = tpu.matmul %108, %110, %cst_98 {dimension_numbers = #tpu.dot_dimension_numbers<[1], [0], [0], [1], [0, 0, 1, 1], [], []>} : vector<16x352xbf16>, vector<352x256xbf16>, vector<16x256xf32> -> vector<16x256xf32>
    %112 = arith.addf %106, %111 : vector<16x256xf32>
    %c5 = arith.constant 5 : index
    %c0_99 = arith.constant 0 : index
    %113 = vector.load %arg19[%c5, %c0_99] : memref<22x352xf32, #tpu.memory_space<vmem>>, vector<16x352xf32>
    %114 = arith.truncf %113 : vector<16x352xf32> to vector<16x352xbf16>
    %c4_100 = arith.constant 4 : index
    %c0_101 = arith.constant 0 : index
    %c0_102 = arith.constant 0 : index
    %115 = vector.load %arg8[%c4_100, %c0_101, %c0_102] : memref<5x352x256xbf16, #tpu.memory_space<vmem>>, vector<1x352x256xbf16>
    %116 = vector.shape_cast %115 : vector<1x352x256xbf16> to vector<352x256xbf16>
    %cst_103 = arith.constant dense<0.000000e+00> : vector<16x256xf32>
    %117 = tpu.matmul %114, %116, %cst_103 {dimension_numbers = #tpu.dot_dimension_numbers<[1], [0], [0], [1], [0, 0, 1, 1], [], []>} : vector<16x352xbf16>, vector<352x256xbf16>, vector<16x256xf32> -> vector<16x256xf32>
    %118 = arith.addf %112, %117 : vector<16x256xf32>
    %c0_104 = arith.constant 0 : index
    %c0_105 = arith.constant 0 : index
    %119 = vector.load %arg9[%c0_104, %c0_105] : memref<1x256xf32, #tpu.memory_space<vmem>>, vector<1x256xf32>
    %120 = vector.broadcast %119 : vector<1x256xf32> to vector<16x256xf32>
    %121 = arith.addf %118, %120 : vector<16x256xf32>
    %cst_106 = arith.constant 0.000000e+00 : f32
    %122 = vector.broadcast %cst_106 : f32 to vector<16x256xf32>
    %123 = arith.maximumf %121, %122 : vector<16x256xf32>
    %cst_107 = arith.constant 0.000000e+00 : f32
    %124 = vector.broadcast %cst_107 : f32 to vector<16x256xf32>
    %c0_108 = arith.constant 0 : index
    %c0_109 = arith.constant 0 : index
    %125 = vector.load %arg19[%c0_108, %c0_109] : memref<22x352xf32, #tpu.memory_space<vmem>>, vector<16x352xf32>
    %126 = arith.truncf %125 : vector<16x352xf32> to vector<16x352xbf16>
    %c0_110 = arith.constant 0 : index
    %c0_111 = arith.constant 0 : index
    %c0_112 = arith.constant 0 : index
    %127 = vector.load %arg10[%c0_110, %c0_111, %c0_112] : memref<7x352x256xbf16, #tpu.memory_space<vmem>>, vector<1x352x256xbf16>
    %128 = vector.shape_cast %127 : vector<1x352x256xbf16> to vector<352x256xbf16>
    %cst_113 = arith.constant dense<0.000000e+00> : vector<16x256xf32>
    %129 = tpu.matmul %126, %128, %cst_113 {dimension_numbers = #tpu.dot_dimension_numbers<[1], [0], [0], [1], [0, 0, 1, 1], [], []>} : vector<16x352xbf16>, vector<352x256xbf16>, vector<16x256xf32> -> vector<16x256xf32>
    %130 = arith.addf %124, %129 : vector<16x256xf32>
    %c1_114 = arith.constant 1 : index
    %c0_115 = arith.constant 0 : index
    %131 = vector.load %arg19[%c1_114, %c0_115] : memref<22x352xf32, #tpu.memory_space<vmem>>, vector<16x352xf32>
    %132 = arith.truncf %131 : vector<16x352xf32> to vector<16x352xbf16>
    %c1_116 = arith.constant 1 : index
    %c0_117 = arith.constant 0 : index
    %c0_118 = arith.constant 0 : index
    %133 = vector.load %arg10[%c1_116, %c0_117, %c0_118] : memref<7x352x256xbf16, #tpu.memory_space<vmem>>, vector<1x352x256xbf16>
    %134 = vector.shape_cast %133 : vector<1x352x256xbf16> to vector<352x256xbf16>
    %cst_119 = arith.constant dense<0.000000e+00> : vector<16x256xf32>
    %135 = tpu.matmul %132, %134, %cst_119 {dimension_numbers = #tpu.dot_dimension_numbers<[1], [0], [0], [1], [0, 0, 1, 1], [], []>} : vector<16x352xbf16>, vector<352x256xbf16>, vector<16x256xf32> -> vector<16x256xf32>
    %136 = arith.addf %130, %135 : vector<16x256xf32>
    %c2_120 = arith.constant 2 : index
    %c0_121 = arith.constant 0 : index
    %137 = vector.load %arg19[%c2_120, %c0_121] : memref<22x352xf32, #tpu.memory_space<vmem>>, vector<16x352xf32>
    %138 = arith.truncf %137 : vector<16x352xf32> to vector<16x352xbf16>
    %c2_122 = arith.constant 2 : index
    %c0_123 = arith.constant 0 : index
    %c0_124 = arith.constant 0 : index
    %139 = vector.load %arg10[%c2_122, %c0_123, %c0_124] : memref<7x352x256xbf16, #tpu.memory_space<vmem>>, vector<1x352x256xbf16>
    %140 = vector.shape_cast %139 : vector<1x352x256xbf16> to vector<352x256xbf16>
    %cst_125 = arith.constant dense<0.000000e+00> : vector<16x256xf32>
    %141 = tpu.matmul %138, %140, %cst_125 {dimension_numbers = #tpu.dot_dimension_numbers<[1], [0], [0], [1], [0, 0, 1, 1], [], []>} : vector<16x352xbf16>, vector<352x256xbf16>, vector<16x256xf32> -> vector<16x256xf32>
    %142 = arith.addf %136, %141 : vector<16x256xf32>
    %c3_126 = arith.constant 3 : index
    %c0_127 = arith.constant 0 : index
    %143 = vector.load %arg19[%c3_126, %c0_127] : memref<22x352xf32, #tpu.memory_space<vmem>>, vector<16x352xf32>
    %144 = arith.truncf %143 : vector<16x352xf32> to vector<16x352xbf16>
    %c3_128 = arith.constant 3 : index
    %c0_129 = arith.constant 0 : index
    %c0_130 = arith.constant 0 : index
    %145 = vector.load %arg10[%c3_128, %c0_129, %c0_130] : memref<7x352x256xbf16, #tpu.memory_space<vmem>>, vector<1x352x256xbf16>
    %146 = vector.shape_cast %145 : vector<1x352x256xbf16> to vector<352x256xbf16>
    %cst_131 = arith.constant dense<0.000000e+00> : vector<16x256xf32>
    %147 = tpu.matmul %144, %146, %cst_131 {dimension_numbers = #tpu.dot_dimension_numbers<[1], [0], [0], [1], [0, 0, 1, 1], [], []>} : vector<16x352xbf16>, vector<352x256xbf16>, vector<16x256xf32> -> vector<16x256xf32>
    %148 = arith.addf %142, %147 : vector<16x256xf32>
    %c4_132 = arith.constant 4 : index
    %c0_133 = arith.constant 0 : index
    %149 = vector.load %arg19[%c4_132, %c0_133] : memref<22x352xf32, #tpu.memory_space<vmem>>, vector<16x352xf32>
    %150 = arith.truncf %149 : vector<16x352xf32> to vector<16x352xbf16>
    %c4_134 = arith.constant 4 : index
    %c0_135 = arith.constant 0 : index
    %c0_136 = arith.constant 0 : index
    %151 = vector.load %arg10[%c4_134, %c0_135, %c0_136] : memref<7x352x256xbf16, #tpu.memory_space<vmem>>, vector<1x352x256xbf16>
    %152 = vector.shape_cast %151 : vector<1x352x256xbf16> to vector<352x256xbf16>
    %cst_137 = arith.constant dense<0.000000e+00> : vector<16x256xf32>
    %153 = tpu.matmul %150, %152, %cst_137 {dimension_numbers = #tpu.dot_dimension_numbers<[1], [0], [0], [1], [0, 0, 1, 1], [], []>} : vector<16x352xbf16>, vector<352x256xbf16>, vector<16x256xf32> -> vector<16x256xf32>
    %154 = arith.addf %148, %153 : vector<16x256xf32>
    %c5_138 = arith.constant 5 : index
    %c0_139 = arith.constant 0 : index
    %155 = vector.load %arg19[%c5_138, %c0_139] : memref<22x352xf32, #tpu.memory_space<vmem>>, vector<16x352xf32>
    %156 = arith.truncf %155 : vector<16x352xf32> to vector<16x352xbf16>
    %c5_140 = arith.constant 5 : index
    %c0_141 = arith.constant 0 : index
    %c0_142 = arith.constant 0 : index
    %157 = vector.load %arg10[%c5_140, %c0_141, %c0_142] : memref<7x352x256xbf16, #tpu.memory_space<vmem>>, vector<1x352x256xbf16>
    %158 = vector.shape_cast %157 : vector<1x352x256xbf16> to vector<352x256xbf16>
    %cst_143 = arith.constant dense<0.000000e+00> : vector<16x256xf32>
    %159 = tpu.matmul %156, %158, %cst_143 {dimension_numbers = #tpu.dot_dimension_numbers<[1], [0], [0], [1], [0, 0, 1, 1], [], []>} : vector<16x352xbf16>, vector<352x256xbf16>, vector<16x256xf32> -> vector<16x256xf32>
    %160 = arith.addf %154, %159 : vector<16x256xf32>
    %c6 = arith.constant 6 : index
    %c0_144 = arith.constant 0 : index
    %161 = vector.load %arg19[%c6, %c0_144] : memref<22x352xf32, #tpu.memory_space<vmem>>, vector<16x352xf32>
    %162 = arith.truncf %161 : vector<16x352xf32> to vector<16x352xbf16>
    %c6_145 = arith.constant 6 : index
    %c0_146 = arith.constant 0 : index
    %c0_147 = arith.constant 0 : index
    %163 = vector.load %arg10[%c6_145, %c0_146, %c0_147] : memref<7x352x256xbf16, #tpu.memory_space<vmem>>, vector<1x352x256xbf16>
    %164 = vector.shape_cast %163 : vector<1x352x256xbf16> to vector<352x256xbf16>
    %cst_148 = arith.constant dense<0.000000e+00> : vector<16x256xf32>
    %165 = tpu.matmul %162, %164, %cst_148 {dimension_numbers = #tpu.dot_dimension_numbers<[1], [0], [0], [1], [0, 0, 1, 1], [], []>} : vector<16x352xbf16>, vector<352x256xbf16>, vector<16x256xf32> -> vector<16x256xf32>
    %166 = arith.addf %160, %165 : vector<16x256xf32>
    %c0_149 = arith.constant 0 : index
    %c0_150 = arith.constant 0 : index
    %167 = vector.load %arg11[%c0_149, %c0_150] : memref<1x256xf32, #tpu.memory_space<vmem>>, vector<1x256xf32>
    %168 = vector.broadcast %167 : vector<1x256xf32> to vector<16x256xf32>
    %169 = arith.addf %166, %168 : vector<16x256xf32>
    %cst_151 = arith.constant 0.000000e+00 : f32
    %170 = vector.broadcast %cst_151 : f32 to vector<16x256xf32>
    %171 = arith.maximumf %169, %170 : vector<16x256xf32>
    %cst_152 = arith.constant dense<0.000000e+00> : vector<256xf32>
    %172 = vector.multi_reduction <add>, %87, %cst_152 [0] : vector<16x256xf32> to vector<256xf32>
    %173 = vector.shape_cast %172 : vector<256xf32> to vector<1x256xf32>
    %cst_153 = arith.constant dense<0.000000e+00> : vector<256xf32>
    %174 = vector.multi_reduction <add>, %123, %cst_153 [0] : vector<16x256xf32> to vector<256xf32>
    %175 = vector.shape_cast %174 : vector<256xf32> to vector<1x256xf32>
    %cst_154 = arith.constant dense<0.000000e+00> : vector<256xf32>
    %176 = vector.multi_reduction <add>, %171, %cst_154 [0] : vector<16x256xf32> to vector<256xf32>
    %177 = vector.shape_cast %176 : vector<256xf32> to vector<1x256xf32>
    %178 = tpu.concatenate %173, %175, %177 in 0 : vector<1x256xf32>, vector<1x256xf32>, vector<1x256xf32> -> vector<3x256xf32>
    %c0_155 = arith.constant 0 : index
    %c0_156 = arith.constant 0 : index
    %179 = vector.load %arg16[%c0_155, %c0_156] : memref<256x16xf32, #tpu.memory_space<vmem>>, vector<256x16xf32>
    %cst_157 = arith.constant dense<0.000000e+00> : vector<3x16xf32>
    %180 = tpu.matmul %178, %179, %cst_157 {dimension_numbers = #tpu.dot_dimension_numbers<[1], [0], [0], [1], [0, 0, 1, 1], [], []>} : vector<3x256xf32>, vector<256x16xf32>, vector<3x16xf32> -> vector<3x16xf32>
    %cst_158 = arith.constant 3.906250e-03 : f32
    %181 = vector.broadcast %cst_158 : f32 to vector<3x16xf32>
    %182 = arith.mulf %180, %181 : vector<3x16xf32>
    %c0_159 = arith.constant 0 : index
    %c0_160 = arith.constant 0 : index
    %183 = vector.load %arg12[%c0_159, %c0_160] : memref<16x2xf32, #tpu.memory_space<vmem>>, vector<16x2xf32>
    %cst_161 = arith.constant dense<0.000000e+00> : vector<3x2xf32>
    %184 = tpu.matmul %182, %183, %cst_161 {dimension_numbers = #tpu.dot_dimension_numbers<[1], [0], [0], [1], [0, 0, 1, 1], [], []>} : vector<3x16xf32>, vector<16x2xf32>, vector<3x2xf32> -> vector<3x2xf32>
    %c0_162 = arith.constant 0 : index
    %c0_163 = arith.constant 0 : index
    %185 = vector.load %arg13[%c0_162, %c0_163] : memref<1x2xf32, #tpu.memory_space<vmem>>, vector<1x2xf32>
    %186 = vector.broadcast %185 : vector<1x2xf32> to vector<3x2xf32>
    %187 = arith.addf %184, %186 : vector<3x2xf32>
    %cst_164 = arith.constant 0.000000e+00 : f32
    %188 = vector.broadcast %cst_164 : f32 to vector<3x2xf32>
    %189 = arith.maximumf %187, %188 : vector<3x2xf32>
    %c0_165 = arith.constant 0 : index
    %c0_166 = arith.constant 0 : index
    %190 = vector.load %arg14[%c0_165, %c0_166] : memref<2x16xf32, #tpu.memory_space<vmem>>, vector<2x16xf32>
    %cst_167 = arith.constant dense<0.000000e+00> : vector<3x16xf32>
    %191 = tpu.matmul %189, %190, %cst_167 {dimension_numbers = #tpu.dot_dimension_numbers<[1], [0], [0], [1], [0, 0, 1, 1], [], []>} : vector<3x2xf32>, vector<2x16xf32>, vector<3x16xf32> -> vector<3x16xf32>
    %c0_168 = arith.constant 0 : index
    %c0_169 = arith.constant 0 : index
    %192 = vector.load %arg15[%c0_168, %c0_169] : memref<1x16xf32, #tpu.memory_space<vmem>>, vector<1x16xf32>
    %193 = vector.broadcast %192 : vector<1x16xf32> to vector<3x16xf32>
    %194 = arith.addf %191, %193 : vector<3x16xf32>
    %cst_170 = arith.constant 0.000000e+00 : f32
    %195 = vector.broadcast %cst_170 : f32 to vector<3x16xf32>
    %196 = arith.subf %195, %194 : vector<3x16xf32>
    %197 = math.exp %196 : vector<3x16xf32>
    %cst_171 = arith.constant 1.000000e+00 : f32
    %198 = vector.broadcast %cst_171 : f32 to vector<3x16xf32>
    %199 = arith.addf %198, %197 : vector<3x16xf32>
    %cst_172 = arith.constant 1.000000e+00 : f32
    %200 = vector.broadcast %cst_172 : f32 to vector<3x16xf32>
    %201 = arith.divf %200, %199 : vector<3x16xf32>
    %c0_173 = arith.constant 0 : index
    %c0_174 = arith.constant 0 : index
    %202 = vector.load %arg17[%c0_173, %c0_174] : memref<16x256xf32, #tpu.memory_space<vmem>>, vector<16x256xf32>
    %cst_175 = arith.constant dense<0.000000e+00> : vector<3x256xf32>
    %203 = tpu.matmul %201, %202, %cst_175 {dimension_numbers = #tpu.dot_dimension_numbers<[1], [0], [0], [1], [0, 0, 1, 1], [], []>} : vector<3x16xf32>, vector<16x256xf32>, vector<3x256xf32> -> vector<3x256xf32>
    %204 = vector.extract_strided_slice %203 {offsets = [0, 0], sizes = [1, 256], strides = [1, 1]} : vector<3x256xf32> to vector<1x256xf32>
    %205 = vector.broadcast %204 : vector<1x256xf32> to vector<16x256xf32>
    %206 = arith.mulf %87, %205 : vector<16x256xf32>
    %207 = vector.extract_strided_slice %203 {offsets = [1, 0], sizes = [1, 256], strides = [1, 1]} : vector<3x256xf32> to vector<1x256xf32>
    %208 = vector.broadcast %207 : vector<1x256xf32> to vector<16x256xf32>
    %209 = arith.mulf %123, %208 : vector<16x256xf32>
    %210 = arith.addf %206, %209 : vector<16x256xf32>
    %211 = vector.extract_strided_slice %203 {offsets = [2, 0], sizes = [1, 256], strides = [1, 1]} : vector<3x256xf32> to vector<1x256xf32>
    %212 = vector.broadcast %211 : vector<1x256xf32> to vector<16x256xf32>
    %213 = arith.mulf %171, %212 : vector<16x256xf32>
    %214 = arith.addf %210, %213 : vector<16x256xf32>
    %215 = arith.addf %214, %1 : vector<16x256xf32>
    %216 = vector.shape_cast %215 : vector<16x256xf32> to vector<1x16x256xf32>
    %c0_176 = arith.constant 0 : index
    %c0_177 = arith.constant 0 : index
    %c0_178 = arith.constant 0 : index
    %217 = vector.load %arg18[%c0_176, %c0_177, %c0_178] : memref<1x16x256xf32, #tpu.memory_space<vmem>>, vector<1x16x256xf32>
    tpu.vector_store %arg18[%c0_176, %c0_177, %c0_178], %216 {strides = array<i32>} : memref<1x16x256xf32, #tpu.memory_space<vmem>>, vector<1x16x256xf32>,
    return
  }
  func.func @transform_0(%arg0: i32) -> (i32, i32, i32) {
    %c0_i32 = arith.constant 0 : i32
    %c0_i32_0 = arith.constant 0 : i32
    %c0_i32_1 = arith.constant 0 : i32
    return %arg0, %c0_i32, %c0_i32_0 : i32, i32, i32
  }
  func.func @transform_1(%arg0: i32) -> (i32, i32, i32) {
    %c0_i32 = arith.constant 0 : i32
    %c0_i32_0 = arith.constant 0 : i32
    %c0_i32_1 = arith.constant 0 : i32
    %c0_i32_2 = arith.constant 0 : i32
    return %c0_i32, %c0_i32_0, %c0_i32_1 : i32, i32, i32
  }
  func.func @transform_2(%arg0: i32) -> (i32, i32) {
    %c0_i32 = arith.constant 0 : i32
    %c0_i32_0 = arith.constant 0 : i32
    %c0_i32_1 = arith.constant 0 : i32
    return %c0_i32, %c0_i32_0 : i32, i32
  }
  func.func @transform_3(%arg0: i32) -> (i32, i32, i32) {
    %c0_i32 = arith.constant 0 : i32
    %c0_i32_0 = arith.constant 0 : i32
    %c0_i32_1 = arith.constant 0 : i32
    %c0_i32_2 = arith.constant 0 : i32
    return %c0_i32, %c0_i32_0, %c0_i32_1 : i32, i32, i32
  }
  func.func @transform_4(%arg0: i32) -> (i32, i32) {
    %c0_i32 = arith.constant 0 : i32
    %c0_i32_0 = arith.constant 0 : i32
    %c0_i32_1 = arith.constant 0 : i32
    return %c0_i32, %c0_i32_0 : i32, i32
  }
  func.func @transform_5(%arg0: i32) -> (i32, i32, i32) {
    %c0_i32 = arith.constant 0 : i32
    %c0_i32_0 = arith.constant 0 : i32
    %c0_i32_1 = arith.constant 0 : i32
    %c0_i32_2 = arith.constant 0 : i32
    return %c0_i32, %c0_i32_0, %c0_i32_1 : i32, i32, i32
  }
  func.func @transform_6(%arg0: i32) -> (i32, i32) {
    %c0_i32 = arith.constant 0 : i32
    %c0_i32_0 = arith.constant 0 : i32
    %c0_i32_1 = arith.constant 0 : i32
    return %c0_i32, %c0_i32_0 : i32, i32
  }
  func.func @transform_7(%arg0: i32) -> (i32, i32, i32) {
    %c0_i32 = arith.constant 0 : i32
    %c0_i32_0 = arith.constant 0 : i32
    %c0_i32_1 = arith.constant 0 : i32
    %c0_i32_2 = arith.constant 0 : i32
    return %c0_i32, %c0_i32_0, %c0_i32_1 : i32, i32, i32
  }
  func.func @transform_8(%arg0: i32) -> (i32, i32) {
    %c0_i32 = arith.constant 0 : i32
    %c0_i32_0 = arith.constant 0 : i32
    %c0_i32_1 = arith.constant 0 : i32
    return %c0_i32, %c0_i32_0 : i32, i32
  }
  func.func @transform_9(%arg0: i32) -> (i32, i32, i32) {
    %c0_i32 = arith.constant 0 : i32
    %c0_i32_0 = arith.constant 0 : i32
    %c0_i32_1 = arith.constant 0 : i32
    %c0_i32_2 = arith.constant 0 : i32
    return %c0_i32, %c0_i32_0, %c0_i32_1 : i32, i32, i32
  }
  func.func @transform_10(%arg0: i32) -> (i32, i32) {
    %c0_i32 = arith.constant 0 : i32
    %c0_i32_0 = arith.constant 0 : i32
    %c0_i32_1 = arith.constant 0 : i32
    return %c0_i32, %c0_i32_0 : i32, i32
  }
  func.func @transform_11(%arg0: i32) -> (i32, i32) {
    %c0_i32 = arith.constant 0 : i32
    %c0_i32_0 = arith.constant 0 : i32
    %c0_i32_1 = arith.constant 0 : i32
    return %c0_i32, %c0_i32_0 : i32, i32
  }
  func.func @transform_12(%arg0: i32) -> (i32, i32) {
    %c0_i32 = arith.constant 0 : i32
    %c0_i32_0 = arith.constant 0 : i32
    %c0_i32_1 = arith.constant 0 : i32
    return %c0_i32, %c0_i32_0 : i32, i32
  }
  func.func @transform_13(%arg0: i32) -> (i32, i32) {
    %c0_i32 = arith.constant 0 : i32
    %c0_i32_0 = arith.constant 0 : i32
    %c0_i32_1 = arith.constant 0 : i32
    return %c0_i32, %c0_i32_0 : i32, i32
  }
  func.func @transform_14(%arg0: i32) -> (i32, i32) {
    %c0_i32 = arith.constant 0 : i32
    %c0_i32_0 = arith.constant 0 : i32
    %c0_i32_1 = arith.constant 0 : i32
    return %c0_i32, %c0_i32_0 : i32, i32
  }
  func.func @transform_15(%arg0: i32) -> (i32, i32) {
    %c0_i32 = arith.constant 0 : i32
    %c0_i32_0 = arith.constant 0 : i32
    %c0_i32_1 = arith.constant 0 : i32
    return %c0_i32, %c0_i32_0 : i32, i32
  }
  func.func @transform_16(%arg0: i32) -> (i32, i32) {
    %c0_i32 = arith.constant 0 : i32
    %c0_i32_0 = arith.constant 0 : i32
    %c0_i32_1 = arith.constant 0 : i32
    return %c0_i32, %c0_i32_0 : i32, i32
  }
  func.func @transform_17(%arg0: i32) -> (i32, i32, i32) {
    %c0_i32 = arith.constant 0 : i32
    %c0_i32_0 = arith.constant 0 : i32
    %c0_i32_1 = arith.constant 0 : i32
    return %arg0, %c0_i32, %c0_i32_0 : i32, i32, i32
  }
}

</mosaic_0001>

<llo_original>
// kernel: block_forward.1
$region0: #{block_forward.1}
  #allocation0 [shape = 'u32[]', space=smem, size = 0x4, offset = 0x4, fixed_abs, tag = 'smem constant byte address 0x4 - core index']
  #allocation1 [shape = 'u32[144,128]{1,0:T(1,128)}', space=vmem, size = 0x12000, scoped, tag = 'internal scratch']
  #allocation2 [shape = 'f32[22,352]{1,0:T(8,128)}', space=vmem, size = 0x9000, scoped, tag = 'scratch operand']
  %s0 = inlined_call_operand.vmem [shape: f32[2,16,256], index: 0, kind: input, shape index: {}]
  %s1 = inlined_call_operand.hbm [shape: bf16[3,352,256], index: 1, kind: input, shape index: {}]
  %s2 = inlined_call_operand.hbm [shape: f32[1,256], index: 2, kind: input, shape index: {}]
  %s3 = inlined_call_operand.hbm [shape: bf16[3,352,256], index: 3, kind: input, shape index: {}]
  %s4 = inlined_call_operand.hbm [shape: f32[1,256], index: 4, kind: input, shape index: {}]
  %s5 = inlined_call_operand.hbm [shape: bf16[3,352,256], index: 5, kind: input, shape index: {}]
  %s6 = inlined_call_operand.hbm [shape: f32[1,256], index: 6, kind: input, shape index: {}]
  %s7 = inlined_call_operand.hbm [shape: bf16[5,352,256], index: 7, kind: input, shape index: {}]
  %s8 = inlined_call_operand.hbm [shape: f32[1,256], index: 8, kind: input, shape index: {}]
  %s9 = inlined_call_operand.hbm [shape: bf16[7,352,256], index: 9, kind: input, shape index: {}]
  %s10 = inlined_call_operand.hbm [shape: f32[1,256], index: 10, kind: input, shape index: {}]
  %s11 = inlined_call_operand.vmem [shape: f32[16,2], index: 11, kind: input, shape index: {}]
  %s12 = inlined_call_operand.hbm [shape: f32[1,2], index: 12, kind: input, shape index: {}]
  %s13 = inlined_call_operand.hbm [shape: f32[2,16], index: 13, kind: input, shape index: {}]
  %s14 = inlined_call_operand.hbm [shape: f32[1,16], index: 14, kind: input, shape index: {}]
  %s15 = inlined_call_operand.vmem [shape: f32[256,16], index: 15, kind: input, shape index: {}]
  %s16 = inlined_call_operand.hbm [shape: f32[16,256], index: 16, kind: input, shape index: {}]
  %s17 = inlined_call_operand.vmem [shape: f32[2,16,256], index: 17, kind: output, shape index: {}]
  %s18 = sld [smem:[#allocation0]]
  $region157: #{block_forward.1} parent=0
    _
  %s20 = ssub.s32 1, %s18
  %s21 = scalar_select 0, %s20, %s18
  $region1: #{block_forward.1} parent=0
    #allocation3 [shape = 'u8[540672]{0}', space=vmem, size = 0x84000, scoped, tag = 'input window, operand 1, single buffered']
    #allocation4 [shape = 's32[2]{0}', space=sflag, size = 0x8, scoped, tag = 'scoped memory for block_forward.1']
    #allocation5 [shape = 'u8[1024]{0}', space=vmem, size = 0x400, scoped, tag = 'input window, operand 2, single buffered']
    #allocation6 [shape = 's32[1]{0}', space=sflag, size = 0x4, scoped, tag = 'scoped memory for block_forward.1']
    #allocation7 [shape = 'u8[540672]{0}', space=vmem, size = 0x84000, scoped, tag = 'input window, operand 3, single buffered']
    #allocation8 [shape = 'u8[1024]{0}', space=vmem, size = 0x400, scoped, tag = 'input window, operand 4, single buffered']
    #allocation9 [shape = 's32[1]{0}', space=sflag, size = 0x4, scoped, tag = 'scoped memory for block_forward.1']
    #allocation10 [shape = 'u8[540672]{0}', space=vmem, size = 0x84000, scoped, tag = 'input window, operand 5, single buffered']
    #allocation11 [shape = 'u8[1024]{0}', space=vmem, size = 0x400, scoped, tag = 'input window, operand 6, single buffered']
    #allocation12 [shape = 's32[1]{0}', space=sflag, size = 0x4, scoped, tag = 'scoped memory for block_forward.1']
    #allocation13 [shape = 'u8[901120]{0}', space=vmem, size = 0xdc000, scoped, tag = 'input window, operand 7, single buffered']
    #allocation14 [shape = 'u8[1024]{0}', space=vmem, size = 0x400, scoped, tag = 'input window, operand 8, single buffered']
    #allocation15 [shape = 's32[1]{0}', space=sflag, size = 0x4, scoped, tag = 'scoped memory for block_forward.1']
    #allocation16 [shape = 'u8[1261568]{0}', space=vmem, size = 0x134000, scoped, tag = 'input window, operand 9, single buffered']
    #allocation17 [shape = 'u8[1024]{0}', space=vmem, size = 0x400, scoped, tag = 'input window, operand 10, single buffered']
    #allocation18 [shape = 's32[1]{0}', space=sflag, size = 0x4, scoped, tag = 'scoped memory for block_forward.1']
    #allocation19 [shape = 'u8[512]{0}', space=vmem, size = 0x400, scoped, tag = 'input window, operand 12, single buffered']
    #allocation20 [shape = 'u8[1024]{0}', space=vmem, size = 0x400, scoped, tag = 'input window, operand 13, single buffered']
    #allocation21 [shape = 's32[1]{0}', space=sflag, size = 0x4, scoped, tag = 'scoped memory for block_forward.1']
    #allocation22 [shape = 'u8[512]{0}', space=vmem, size = 0x400, scoped, tag = 'input window, operand 14, single buffered']
    #allocation23 [shape = 'u8[16384]{0}', space=vmem, size = 0x4000, scoped, tag = 'input window, operand 16, single buffered']
    #allocation24 [shape = 's32[1]{0}', space=sflag, size = 0x4, scoped, tag = 'scoped memory for block_forward.1']
    %22 = vsyncpa [#allocation4], 0
    %23 = vsyncpa [#allocation6], 0
    %24 = vsyncpa [#allocation9], 0
    %25 = vsyncpa [#allocation12], 0
    %26 = vsyncpa [#allocation15], 0
    %27 = vsyncpa [#allocation18], 0
    %28 = vsyncpa [#allocation21], 0
    %29 = vsyncpa [#allocation24], 0
    loop: start=0, step=1, limit=4
    $region2: #{block_forward.1} parent=1 // loop_pre_header
      _
    $region3: #{block_forward.1} parent=1 // loop_header
      %s31 = sphi 0, %s35
      %p32 = scmp.ge.s32.totalorder %s31, 4
      %s41 = sphi 0, %s43
      %s44 = sphi 0, %s41
      %s45 = sphi 0, %s44
      %s61 = sphi 0, %s45
      %s65 = sphi 0, %s65
      %s67 = sphi 0, %s65
      %s68 = sphi 0, %s67
      %s82 = sphi 0, %s68
      %s86 = sphi 0, %s86
      %s88 = sphi 0, %s86
      %s89 = sphi 0, %s88
      %s103 = sphi 0, %s89
      %s107 = sphi 0, %s107
      %s109 = sphi 0, %s107
      %s110 = sphi 0, %s109
      %s124 = sphi 0, %s110
      %s128 = sphi 0, %s128
      %s130 = sphi 0, %s128
      %s131 = sphi 0, %s130
      %s145 = sphi 0, %s131
      %s149 = sphi 0, %s149
      %s151 = sphi 0, %s149
      %s152 = sphi 0, %s151
      %s166 = sphi 0, %s152
      %s170 = sphi 0, %s170
      %s172 = sphi 0, %s170
      %s173 = sphi 0, %s172
      %s187 = sphi 0, %s173
      %s191 = sphi 0, %s191
      %s193 = sphi 0, %s191
      %s194 = sphi 0, %s193
      %s208 = sphi 0, %s194
      %s212 = sphi 0, %s212
      %s214 = sphi 0, %s212
      %s215 = sphi 0, %s214
      %s229 = sphi 0, %s215
      %s233 = sphi 0, %s233
      %s235 = sphi 0, %s233
      %s236 = sphi 0, %s235
      %s250 = sphi 0, %s236
      %s254 = sphi 0, %s254
      %s256 = sphi 0, %s254
      %s257 = sphi 0, %s256
      %s271 = sphi 0, %s257
      %s275 = sphi 0, %s275
      %s277 = sphi 0, %s275
      %s278 = sphi 0, %s277
      %s292 = sphi 0, %s278
      %s296 = sphi 0, %s296
      %s298 = sphi 0, %s296
      %s299 = sphi 0, %s298
      %s313 = sphi 0, %s299
      %s317 = sphi 0, %s317
      %s319 = sphi 0, %s317
      %s320 = sphi 0, %s319
      %s334 = sphi 0, %s320
      %s338 = sphi 0, %s338
      %s340 = sphi 0, %s338
      %s341 = sphi 0, %s340
      %s355 = sphi 0, %s341
      %s359 = sphi 0, %s359
      %s361 = sphi 0, %s359
      %s362 = sphi 0, %s361
      %s376 = sphi 0, %s362
      %s380 = sphi 0, %s380
      %s382 = sphi 0, %s380
      %s383 = sphi 0, %s382
      %s397 = sphi 0, %s383
      %s403 = sphi 0, %s405
      %s406 = sphi 0, %s403
      %s407 = sphi 0, %s406
      %s423 = sphi 0, %s407
    $region4: #{block_forward.1} parent=1 // loop_header_branch
      %34 = sbr.rel (%p32) target = $region8
    $region5: #{block_forward.1} parent=1 // loop_body
      %s36 = ssub.s32 %s31, 1
      %s37 = ssub.s32 %s31, 2
      %s38 = sadd.s32 %s31, 1
      %s39 = ssub.s32 %s31, %s38
      %p40 = scmp.eq.s32.totalorder %s39, 0
      %s42 = sadd.s32 %s41, 1
      %s43 = scalar_select %p40, %s41, %s42
      %p46 = pneg %p40
      %p47 = scmp.eq.s32.totalorder %s31, 1
      %p48 = por %p46, %p47
      %p49 = scmp.ne.s32.totalorder %s41, %s44
      %p50 = scmp.eq.s32.totalorder %s31, 0
      %p51 = por %p49, %p50
      %p52 = scmp.ne.s32.totalorder %s41, %s44
      %p53 = scmp.eq.s32.totalorder %s36, 1
      %p54 = por %p52, %p53
      %p55 = scmp.ne.s32.totalorder %s44, %s45
      %p56 = scmp.eq.s32.totalorder %s36, 0
      %p57 = por %p55, %p56
      %p58 = scmp.ne.s32.totalorder %s44, %s45
      %p59 = scmp.eq.s32.totalorder %s37, 1
      %p60 = por %p58, %p59
      %p62 = scmp.ne.s32.totalorder %s45, %s61
      %p63 = scmp.eq.s32.totalorder %s37, 0
      %p64 = por %p62, %p63
      %s66 = sadd.s32 %s65, 1
      %p69 = scmp.eq.s32.totalorder %s31, 1
      %p70 = scmp.ne.s32.totalorder %s65, %s67
      %p71 = scmp.eq.s32.totalorder %s31, 0
      %p72 = por %p70, %p71
      %p73 = scmp.ne.s32.totalorder %s65, %s67
      %p74 = scmp.eq.s32.totalorder %s36, 1
      %p75 = por %p73, %p74
      %p76 = scmp.ne.s32.totalorder %s67, %s68
      %p77 = scmp.eq.s32.totalorder %s36, 0
      %p78 = por %p76, %p77
      %p79 = scmp.ne.s32.totalorder %s67, %s68
      %p80 = scmp.eq.s32.totalorder %s37, 1
      %p81 = por %p79, %p80
      %p83 = scmp.ne.s32.totalorder %s68, %s82
      %p84 = scmp.eq.s32.totalorder %s37, 0
      %p85 = por %p83, %p84
      %s87 = sadd.s32 %s86, 1
      %p90 = scmp.eq.s32.totalorder %s31, 1
      %p91 = scmp.ne.s32.totalorder %s86, %s88
      %p92 = scmp.eq.s32.totalorder %s31, 0
      %p93 = por %p91, %p92
      %p94 = scmp.ne.s32.totalorder %s86, %s88
      %p95 = scmp.eq.s32.totalorder %s36, 1
      %p96 = por %p94, %p95
      %p97 = scmp.ne.s32.totalorder %s88, %s89
      %p98 = scmp.eq.s32.totalorder %s36, 0
      %p99 = por %p97, %p98
      %p100 = scmp.ne.s32.totalorder %s88, %s89
      %p101 = scmp.eq.s32.totalorder %s37, 1
      %p102 = por %p100, %p101
      %p104 = scmp.ne.s32.totalorder %s89, %s103
      %p105 = scmp.eq.s32.totalorder %s37, 0
      %p106 = por %p104, %p105
      %s108 = sadd.s32 %s107, 1
      %p111 = scmp.eq.s32.totalorder %s31, 1
      %p112 = scmp.ne.s32.totalorder %s107, %s109
      %p113 = scmp.eq.s32.totalorder %s31, 0
      %p114 = por %p112, %p113
      %p115 = scmp.ne.s32.totalorder %s107, %s109
      %p116 = scmp.eq.s32.totalorder %s36, 1
      %p117 = por %p115, %p116
      %p118 = scmp.ne.s32.totalorder %s109, %s110
      %p119 = scmp.eq.s32.totalorder %s36, 0
      %p120 = por %p118, %p119
      %p121 = scmp.ne.s32.totalorder %s109, %s110
      %p122 = scmp.eq.s32.totalorder %s37, 1
      %p123 = por %p121, %p122
      %p125 = scmp.ne.s32.totalorder %s110, %s124
      %p126 = scmp.eq.s32.totalorder %s37, 0
      %p127 = por %p125, %p126
      %s129 = sadd.s32 %s128, 1
      %p132 = scmp.eq.s32.totalorder %s31, 1
      %p133 = scmp.ne.s32.totalorder %s128, %s130
      %p134 = scmp.eq.s32.totalorder %s31, 0
      %p135 = por %p133, %p134
      %p136 = scmp.ne.s32.totalorder %s128, %s130
      %p137 = scmp.eq.s32.totalorder %s36, 1
      %p138 = por %p136, %p137
      %p139 = scmp.ne.s32.totalorder %s130, %s131
      %p140 = scmp.eq.s32.totalorder %s36, 0
      %p141 = por %p139, %p140
      %p142 = scmp.ne.s32.totalorder %s130, %s131
      %p143 = scmp.eq.s32.totalorder %s37, 1
      %p144 = por %p142, %p143
      %p146 = scmp.ne.s32.totalorder %s131, %s145
      %p147 = scmp.eq.s32.totalorder %s37, 0
      %p148 = por %p146, %p147
      %s150 = sadd.s32 %s149, 1
      %p153 = scmp.eq.s32.totalorder %s31, 1
      %p154 = scmp.ne.s32.totalorder %s149, %s151
      %p155 = scmp.eq.s32.totalorder %s31, 0
      %p156 = por %p154, %p155
      %p157 = scmp.ne.s32.totalorder %s149, %s151
      %p158 = scmp.eq.s32.totalorder %s36, 1
      %p159 = por %p157, %p158
      %p160 = scmp.ne.s32.totalorder %s151, %s152
      %p161 = scmp.eq.s32.totalorder %s36, 0
      %p162 = por %p160, %p161
      %p163 = scmp.ne.s32.totalorder %s151, %s152
      %p164 = scmp.eq.s32.totalorder %s37, 1
      %p165 = por %p163, %p164
      %p167 = scmp.ne.s32.totalorder %s152, %s166
      %p168 = scmp.eq.s32.totalorder %s37, 0
      %p169 = por %p167, %p168
      %s171 = sadd.s32 %s170, 1
      %p174 = scmp.eq.s32.totalorder %s31, 1
      %p175 = scmp.ne.s32.totalorder %s170, %s172
      %p176 = scmp.eq.s32.totalorder %s31, 0
      %p177 = por %p175, %p176
      %p178 = scmp.ne.s32.totalorder %s170, %s172
      %p179 = scmp.eq.s32.totalorder %s36, 1
      %p180 = por %p178, %p179
      %p181 = scmp.ne.s32.totalorder %s172, %s173
      %p182 = scmp.eq.s32.totalorder %s36, 0
      %p183 = por %p181, %p182
      %p184 = scmp.ne.s32.totalorder %s172, %s173
      %p185 = scmp.eq.s32.totalorder %s37, 1
      %p186 = por %p184, %p185
      %p188 = scmp.ne.s32.totalorder %s173, %s187
      %p189 = scmp.eq.s32.totalorder %s37, 0
      %p190 = por %p188, %p189
      %s192 = sadd.s32 %s191, 1
      %p195 = scmp.eq.s32.totalorder %s31, 1
      %p196 = scmp.ne.s32.totalorder %s191, %s193
      %p197 = scmp.eq.s32.totalorder %s31, 0
      %p198 = por %p196, %p197
      %p199 = scmp.ne.s32.totalorder %s191, %s193
      %p200 = scmp.eq.s32.totalorder %s36, 1
      %p201 = por %p199, %p200
      %p202 = scmp.ne.s32.totalorder %s193, %s194
      %p203 = scmp.eq.s32.totalorder %s36, 0
      %p204 = por %p202, %p203
      %p205 = scmp.ne.s32.totalorder %s193, %s194
      %p206 = scmp.eq.s32.totalorder %s37, 1
      %p207 = por %p205, %p206
      %p209 = scmp.ne.s32.totalorder %s194, %s208
      %p210 = scmp.eq.s32.totalorder %s37, 0
      %p211 = por %p209, %p210
      %s213 = sadd.s32 %s212, 1
      %p216 = scmp.eq.s32.totalorder %s31, 1
      %p217 = scmp.ne.s32.totalorder %s212, %s214
      %p218 = scmp.eq.s32.totalorder %s31, 0
      %p219 = por %p217, %p218
      %p220 = scmp.ne.s32.totalorder %s212, %s214
      %p221 = scmp.eq.s32.totalorder %s36, 1
      %p222 = por %p220, %p221
      %p223 = scmp.ne.s32.totalorder %s214, %s215
      %p224 = scmp.eq.s32.totalorder %s36, 0
      %p225 = por %p223, %p224
      %p226 = scmp.ne.s32.totalorder %s214, %s215
      %p227 = scmp.eq.s32.totalorder %s37, 1
      %p228 = por %p226, %p227
      %p230 = scmp.ne.s32.totalorder %s215, %s229
      %p231 = scmp.eq.s32.totalorder %s37, 0
      %p232 = por %p230, %p231
      %s234 = sadd.s32 %s233, 1
      %p237 = scmp.eq.s32.totalorder %s31, 1
      %p238 = scmp.ne.s32.totalorder %s233, %s235
      %p239 = scmp.eq.s32.totalorder %s31, 0
      %p240 = por %p238, %p239
      %p241 = scmp.ne.s32.totalorder %s233, %s235
      %p242 = scmp.eq.s32.totalorder %s36, 1
      %p243 = por %p241, %p242
      %p244 = scmp.ne.s32.totalorder %s235, %s236
      %p245 = scmp.eq.s32.totalorder %s36, 0
      %p246 = por %p244, %p245
      %p247 = scmp.ne.s32.totalorder %s235, %s236
      %p248 = scmp.eq.s32.totalorder %s37, 1
      %p249 = por %p247, %p248
      %p251 = scmp.ne.s32.totalorder %s236, %s250
      %p252 = scmp.eq.s32.totalorder %s37, 0
      %p253 = por %p251, %p252
      %s255 = sadd.s32 %s254, 1
      %p258 = scmp.eq.s32.totalorder %s31, 1
      %p259 = scmp.ne.s32.totalorder %s254, %s256
      %p260 = scmp.eq.s32.totalorder %s31, 0
      %p261 = por %p259, %p260
      %p262 = scmp.ne.s32.totalorder %s254, %s256
      %p263 = scmp.eq.s32.totalorder %s36, 1
      %p264 = por %p262, %p263
      %p265 = scmp.ne.s32.totalorder %s256, %s257
      %p266 = scmp.eq.s32.totalorder %s36, 0
      %p267 = por %p265, %p266
      %p268 = scmp.ne.s32.totalorder %s256, %s257
      %p269 = scmp.eq.s32.totalorder %s37, 1
      %p270 = por %p268, %p269
      %p272 = scmp.ne.s32.totalorder %s257, %s271
      %p273 = scmp.eq.s32.totalorder %s37, 0
      %p274 = por %p272, %p273
      %s276 = sadd.s32 %s275, 1
      %p279 = scmp.eq.s32.totalorder %s31, 1
      %p280 = scmp.ne.s32.totalorder %s275, %s277
      %p281 = scmp.eq.s32.totalorder %s31, 0
      %p282 = por %p280, %p281
      %p283 = scmp.ne.s32.totalorder %s275, %s277
      %p284 = scmp.eq.s32.totalorder %s36, 1
      %p285 = por %p283, %p284
      %p286 = scmp.ne.s32.totalorder %s277, %s278
      %p287 = scmp.eq.s32.totalorder %s36, 0
      %p288 = por %p286, %p287
      %p289 = scmp.ne.s32.totalorder %s277, %s278
      %p290 = scmp.eq.s32.totalorder %s37, 1
      %p291 = por %p289, %p290
      %p293 = scmp.ne.s32.totalorder %s278, %s292
      %p294 = scmp.eq.s32.totalorder %s37, 0
      %p295 = por %p293, %p294
      %s297 = sadd.s32 %s296, 1
      %p300 = scmp.eq.s32.totalorder %s31, 1
      %p301 = scmp.ne.s32.totalorder %s296, %s298
      %p302 = scmp.eq.s32.totalorder %s31, 0
      %p303 = por %p301, %p302
      %p304 = scmp.ne.s32.totalorder %s296, %s298
      %p305 = scmp.eq.s32.totalorder %s36, 1
      %p306 = por %p304, %p305
      %p307 = scmp.ne.s32.totalorder %s298, %s299
      %p308 = scmp.eq.s32.totalorder %s36, 0
      %p309 = por %p307, %p308
      %p310 = scmp.ne.s32.totalorder %s298, %s299
      %p311 = scmp.eq.s32.totalorder %s37, 1
      %p312 = por %p310, %p311
      %p314 = scmp.ne.s32.totalorder %s299, %s313
      %p315 = scmp.eq.s32.totalorder %s37, 0
      %p316 = por %p314, %p315
      %s318 = sadd.s32 %s317, 1
      %p321 = scmp.eq.s32.totalorder %s31, 1
      %p322 = scmp.ne.s32.totalorder %s317, %s319
      %p323 = scmp.eq.s32.totalorder %s31, 0
      %p324 = por %p322, %p323
      %p325 = scmp.ne.s32.totalorder %s317, %s319
      %p326 = scmp.eq.s32.totalorder %s36, 1
      %p327 = por %p325, %p326
      %p328 = scmp.ne.s32.totalorder %s319, %s320
      %p329 = scmp.eq.s32.totalorder %s36, 0
      %p330 = por %p328, %p329
      %p331 = scmp.ne.s32.totalorder %s319, %s320
      %p332 = scmp.eq.s32.totalorder %s37, 1
      %p333 = por %p331, %p332
      %p335 = scmp.ne.s32.totalorder %s320, %s334
      %p336 = scmp.eq.s32.totalorder %s37, 0
      %p337 = por %p335, %p336
      %s339 = sadd.s32 %s338, 1
      %p342 = scmp.eq.s32.totalorder %s31, 1
      %p343 = scmp.ne.s32.totalorder %s338, %s340
      %p344 = scmp.eq.s32.totalorder %s31, 0
      %p345 = por %p343, %p344
      %p346 = scmp.ne.s32.totalorder %s338, %s340
      %p347 = scmp.eq.s32.totalorder %s36, 1
      %p348 = por %p346, %p347
      %p349 = scmp.ne.s32.totalorder %s340, %s341
      %p350 = scmp.eq.s32.totalorder %s36, 0
      %p351 = por %p349, %p350
      %p352 = scmp.ne.s32.totalorder %s340, %s341
      %p353 = scmp.eq.s32.totalorder %s37, 1
      %p354 = por %p352, %p353
      %p356 = scmp.ne.s32.totalorder %s341, %s355
      %p357 = scmp.eq.s32.totalorder %s37, 0
      %p358 = por %p356, %p357
      %s360 = sadd.s32 %s359, 1
      %p363 = scmp.eq.s32.totalorder %s31, 1
      %p364 = scmp.ne.s32.totalorder %s359, %s361
      %p365 = scmp.eq.s32.totalorder %s31, 0
      %p366 = por %p364, %p365
      %p367 = scmp.ne.s32.totalorder %s359, %s361
      %p368 = scmp.eq.s32.totalorder %s36, 1
      %p369 = por %p367, %p368
      %p370 = scmp.ne.s32.totalorder %s361, %s362
      %p371 = scmp.eq.s32.totalorder %s36, 0
      %p372 = por %p370, %p371
      %p373 = scmp.ne.s32.totalorder %s361, %s362
      %p374 = scmp.eq.s32.totalorder %s37, 1
      %p375 = por %p373, %p374
      %p377 = scmp.ne.s32.totalorder %s362, %s376
      %p378 = scmp.eq.s32.totalorder %s37, 0
      %p379 = por %p377, %p378
      %s381 = sadd.s32 %s380, 1
      %p384 = scmp.eq.s32.totalorder %s31, 1
      %p385 = scmp.ne.s32.totalorder %s380, %s382
      %p386 = scmp.eq.s32.totalorder %s31, 0
      %p387 = por %p385, %p386
      %p388 = scmp.ne.s32.totalorder %s380, %s382
      %p389 = scmp.eq.s32.totalorder %s36, 1
      %p390 = por %p388, %p389
      %p391 = scmp.ne.s32.totalorder %s382, %s383
      %p392 = scmp.eq.s32.totalorder %s36, 0
      %p393 = por %p391, %p392
      %p394 = scmp.ne.s32.totalorder %s382, %s383
      %p395 = scmp.eq.s32.totalorder %s37, 1
      %p396 = por %p394, %p395
      %p398 = scmp.ne.s32.totalorder %s383, %s397
      %p399 = scmp.eq.s32.totalorder %s37, 0
      %p400 = por %p398, %p399
      %s401 = ssub.s32 %s31, %s38
      %p402 = scmp.eq.s32.totalorder %s401, 0
      %s404 = sadd.s32 %s403, 1
      %s405 = scalar_select %p402, %s403, %s404
      %p408 = pneg %p402
      %p409 = scmp.eq.s32.totalorder %s31, 1
      %p410 = por %p408, %p409
      %p411 = scmp.ne.s32.totalorder %s403, %s406
      %p412 = scmp.eq.s32.totalorder %s31, 0
      %p413 = por %p411, %p412
      %p414 = scmp.ne.s32.totalorder %s403, %s406
      %p415 = scmp.eq.s32.totalorder %s36, 1
      %p416 = por %p414, %p415
      %p417 = scmp.ne.s32.totalorder %s406, %s407
      %p418 = scmp.eq.s32.totalorder %s36, 0
      %p419 = por %p417, %p418
      %p420 = scmp.ne.s32.totalorder %s406, %s407
      %p421 = scmp.eq.s32.totalorder %s37, 1
      %p422 = por %p420, %p421
      %p424 = scmp.ne.s32.totalorder %s407, %s423
      %p425 = scmp.eq.s32.totalorder %s37, 0
      %p426 = por %p424, %p425
      %p427 = scmp.le.s32.totalorder 1, %s31
      %p428 = scmp.lt.s32.totalorder %s31, 3
      %p429 = pnand %p427, %p428
      %p430 = pneg %p429
      // Predicated region
      $region9: #{block_forward.1} parent=5 // pred_check
        _
      $region10: #{block_forward.1} parent=5 // pred_check_branch
        %432 = sbr.rel (%p429) target = $region12
      $region11: #{block_forward.1} parent=5 // pred_region
        %s433 = ssub.s32 %s31, 1
        // Predicated region
        $region13: #{block_forward.1} parent=11 // pred_check
          %p434 = pneg %p78
        $region14: #{block_forward.1} parent=11 // pred_check_branch
          %436 = sbr.rel (%p434) target = $region16
        $region15: #{block_forward.1} parent=11 // pred_region
          %s438 = ssub.s32 16896, 16896
          %439 = vsyncadd [#allocation4], %s438
          %s440 = sshll.u32 [#allocation3], 4
          %s441 = int_to_ptr.vmem [resolvable:$true] %s440
          %446 = dma.hbm_to_vmem [thread:$0]  %s1, 16896, %s441, [#allocation4], 128, 128, 8
        $region16: #{block_forward.1} parent=11 // pred_fallthru
          _
        // Predicated region
        $region17: #{block_forward.1} parent=11 // pred_check
          %p447 = pneg %p99
        $region18: #{block_forward.1} parent=11 // pred_check_branch
          %449 = sbr.rel (%p447) target = $region20
        $region19: #{block_forward.1} parent=11 // pred_region
          %s451 = ssub.s32 32, 32
          %452 = vsyncadd [#allocation6], %s451
          %s454 = sshll.u32 [#allocation5], 4
          %s455 = int_to_ptr.vmem [resolvable:$true] %s454
          %457 = dma.hbm_to_vmem [thread:$0]  %s2, 32, %s455, [#allocation6]
        $region20: #{block_forward.1} parent=11 // pred_fallthru
          _
        // Predicated region
        $region21: #{block_forward.1} parent=11 // pred_check
          %p458 = pneg %p120
        $region22: #{block_forward.1} parent=11 // pred_check_branch
          %460 = sbr.rel (%p458) target = $region24
        $region23: #{block_forward.1} parent=11 // pred_region
          %s462 = ssub.s32 16896, 16896
          %463 = vsyncadd [#allocation6], %s462
          %s464 = sshll.u32 [#allocation7], 4
          %s465 = int_to_ptr.vmem [resolvable:$true] %s464
          %470 = dma.hbm_to_vmem [thread:$0]  %s3, 16896, %s465, [#allocation6], 128, 128, 8
        $region24: #{block_forward.1} parent=11 // pred_fallthru
          _
        // Predicated region
        $region25: #{block_forward.1} parent=11 // pred_check
          %p471 = pneg %p141
        $region26: #{block_forward.1} parent=11 // pred_check_branch
          %473 = sbr.rel (%p471) target = $region28
        $region27: #{block_forward.1} parent=11 // pred_region
          %s475 = ssub.s32 32, 32
          %476 = vsyncadd [#allocation9], %s475
          %s478 = sshll.u32 [#allocation8], 4
          %s479 = int_to_ptr.vmem [resolvable:$true] %s478
          %481 = dma.hbm_to_vmem [thread:$0]  %s4, 32, %s479, [#allocation9]
        $region28: #{block_forward.1} parent=11 // pred_fallthru
          _
        // Predicated region
        $region29: #{block_forward.1} parent=11 // pred_check
          %p482 = pneg %p162
        $region30: #{block_forward.1} parent=11 // pred_check_branch
          %484 = sbr.rel (%p482) target = $region32
        $region31: #{block_forward.1} parent=11 // pred_region
          %s486 = ssub.s32 16896, 16896
          %487 = vsyncadd [#allocation9], %s486
          %s488 = sshll.u32 [#allocation10], 4
          %s489 = int_to_ptr.vmem [resolvable:$true] %s488
          %494 = dma.hbm_to_vmem [thread:$0]  %s5, 16896, %s489, [#allocation9], 128, 128, 8
        $region32: #{block_forward.1} parent=11 // pred_fallthru
          _
        // Predicated region
        $region33: #{block_forward.1} parent=11 // pred_check
          %p495 = pneg %p183
        $region34: #{block_forward.1} parent=11 // pred_check_branch
          %497 = sbr.rel (%p495) target = $region36
        $region35: #{block_forward.1} parent=11 // pred_region
          %s499 = ssub.s32 32, 32
          %500 = vsyncadd [#allocation12], %s499
          %s502 = sshll.u32 [#allocation11], 4
          %s503 = int_to_ptr.vmem [resolvable:$true] %s502
          %505 = dma.hbm_to_vmem [thread:$0]  %s6, 32, %s503, [#allocation12]
        $region36: #{block_forward.1} parent=11 // pred_fallthru
          _
        // Predicated region
        $region37: #{block_forward.1} parent=11 // pred_check
          %p506 = pneg %p204
        $region38: #{block_forward.1} parent=11 // pred_check_branch
          %508 = sbr.rel (%p506) target = $region40
        $region39: #{block_forward.1} parent=11 // pred_region
          %s510 = ssub.s32 28160, 28160
          %511 = vsyncadd [#allocation12], %s510
          %s512 = sshll.u32 [#allocation13], 4
          %s513 = int_to_ptr.vmem [resolvable:$true] %s512
          %518 = dma.hbm_to_vmem [thread:$0]  %s7, 28160, %s513, [#allocation12], 128, 128, 8
        $region40: #{block_forward.1} parent=11 // pred_fallthru
          _
        // Predicated region
        $region41: #{block_forward.1} parent=11 // pred_check
          %p519 = pneg %p225
        $region42: #{block_forward.1} parent=11 // pred_check_branch
          %521 = sbr.rel (%p519) target = $region44
        $region43: #{block_forward.1} parent=11 // pred_region
          %s523 = ssub.s32 32, 32
          %524 = vsyncadd [#allocation15], %s523
          %s526 = sshll.u32 [#allocation14], 4
          %s527 = int_to_ptr.vmem [resolvable:$true] %s526
          %529 = dma.hbm_to_vmem [thread:$0]  %s8, 32, %s527, [#allocation15]
        $region44: #{block_forward.1} parent=11 // pred_fallthru
          _
        // Predicated region
        $region45: #{block_forward.1} parent=11 // pred_check
          %p530 = pneg %p246
        $region46: #{block_forward.1} parent=11 // pred_check_branch
          %532 = sbr.rel (%p530) target = $region48
        $region47: #{block_forward.1} parent=11 // pred_region
          %s534 = ssub.s32 39424, 39424
          %535 = vsyncadd [#allocation15], %s534
          %s536 = sshll.u32 [#allocation16], 4
          %s537 = int_to_ptr.vmem [resolvable:$true] %s536
          %542 = dma.hbm_to_vmem [thread:$0]  %s9, 39424, %s537, [#allocation15], 128, 128, 8
        $region48: #{block_forward.1} parent=11 // pred_fallthru
          _
        // Predicated region
        $region49: #{block_forward.1} parent=11 // pred_check
          %p543 = pneg %p267
        $region50: #{block_forward.1} parent=11 // pred_check_branch
          %545 = sbr.rel (%p543) target = $region52
        $region51: #{block_forward.1} parent=11 // pred_region
          %s547 = ssub.s32 32, 32
          %548 = vsyncadd [#allocation18], %s547
          %s550 = sshll.u32 [#allocation17], 4
          %s551 = int_to_ptr.vmem [resolvable:$true] %s550
          %553 = dma.hbm_to_vmem [thread:$0]  %s10, 32, %s551, [#allocation18]
        $region52: #{block_forward.1} parent=11 // pred_fallthru
          _
        // Predicated region
        $region53: #{block_forward.1} parent=11 // pred_check
          %p554 = pneg %p288
        $region54: #{block_forward.1} parent=11 // pred_check_branch
          %556 = sbr.rel (%p554) target = $region56
        $region55: #{block_forward.1} parent=11 // pred_region
          _
        $region56: #{block_forward.1} parent=11 // pred_fallthru
          _
        // Predicated region
        $region57: #{block_forward.1} parent=11 // pred_check
          %p557 = pneg %p309
        $region58: #{block_forward.1} parent=11 // pred_check_branch
          %559 = sbr.rel (%p557) target = $region60
        $region59: #{block_forward.1} parent=11 // pred_region
          %s561 = ssub.s32 16, 16
          %562 = vsyncadd [#allocation18], %s561
          %s564 = sshll.u32 [#allocation19], 4
          %s565 = int_to_ptr.vmem [resolvable:$true] %s564
          %567 = dma.hbm_to_vmem [thread:$0]  %s12, 16, %s565, [#allocation18]
        $region60: #{block_forward.1} parent=11 // pred_fallthru
          _
        // Predicated region
        $region61: #{block_forward.1} parent=11 // pred_check
          %p568 = pneg %p330
        $region62: #{block_forward.1} parent=11 // pred_check_branch
          %570 = sbr.rel (%p568) target = $region64
        $region63: #{block_forward.1} parent=11 // pred_region
          %s572 = ssub.s32 32, 32
          %573 = vsyncadd [#allocation21], %s572
          %s575 = sshll.u32 [#allocation20], 4
          %s576 = int_to_ptr.vmem [resolvable:$true] %s575
          %578 = dma.hbm_to_vmem [thread:$0]  %s13, 32, %s576, [#allocation21]
        $region64: #{block_forward.1} parent=11 // pred_fallthru
          _
        // Predicated region
        $region65: #{block_forward.1} parent=11 // pred_check
          %p579 = pneg %p351
        $region66: #{block_forward.1} parent=11 // pred_check_branch
          %581 = sbr.rel (%p579) target = $region68
        $region67: #{block_forward.1} parent=11 // pred_region
          %s583 = ssub.s32 16, 16
          %584 = vsyncadd [#allocation21], %s583
          %s586 = sshll.u32 [#allocation22], 4
          %s587 = int_to_ptr.vmem [resolvable:$true] %s586
          %589 = dma.hbm_to_vmem [thread:$0]  %s14, 16, %s587, [#allocation21]
        $region68: #{block_forward.1} parent=11 // pred_fallthru
          _
        // Predicated region
        $region69: #{block_forward.1} parent=11 // pred_check
          %p590 = pneg %p372
        $region70: #{block_forward.1} parent=11 // pred_check_branch
          %592 = sbr.rel (%p590) target = $region72
        $region71: #{block_forward.1} parent=11 // pred_region
          _
        $region72: #{block_forward.1} parent=11 // pred_fallthru
          _
        // Predicated region
        $region73: #{block_forward.1} parent=11 // pred_check
          %p593 = pneg %p393
        $region74: #{block_forward.1} parent=11 // pred_check_branch
          %595 = sbr.rel (%p593) target = $region76
        $region75: #{block_forward.1} parent=11 // pred_region
          %s597 = ssub.s32 512, 512
          %598 = vsyncadd [#allocation24], %s597
          %s599 = sshll.u32 [#allocation23], 4
          %s600 = int_to_ptr.vmem [resolvable:$true] %s599
          %605 = dma.hbm_to_vmem [thread:$0]  %s16, 512, %s600, [#allocation24], 256, 256, 16
        $region76: #{block_forward.1} parent=11 // pred_fallthru
          _
      $region12: #{block_forward.1} parent=5 // pred_fallthru
        _
      %p606 = scmp.lt.s32.totalorder %s31, 2
      // Predicated region
      $region77: #{block_forward.1} parent=5 // pred_check
        %p607 = pneg %p606
      $region78: #{block_forward.1} parent=5 // pred_check_branch
        %609 = sbr.rel (%p607) target = $region80
      $region79: #{block_forward.1} parent=5 // pred_region
        // Predicated region
        $region81: #{block_forward.1} parent=79 // pred_check
          %p610 = pneg %p51
        $region82: #{block_forward.1} parent=79 // pred_check_branch
          %612 = sbr.rel (%p610) target = $region84
        $region83: #{block_forward.1} parent=79 // pred_region
          %p613 = scmp.lt.s32.totalorder %s31, 1
          %s614 = scalar_select %p613, %s31, 1
          %s615 = smul.addr %s614, 4
          %s616 = smul.addr %s615, 8
          %s617 = scalar_lea.vmem %s0, %s616
        $region84: #{block_forward.1} parent=79 // pred_fallthru
          _
      $region80: #{block_forward.1} parent=5 // pred_fallthru
        _
      %p618 = scmp.le.s32.totalorder 1, %s31
      %p619 = scmp.lt.s32.totalorder %s31, 3
      %p620 = pnand %p618, %p619
      %p621 = pneg %p620
      // Predicated region
      $region85: #{block_forward.1} parent=5 // pred_check
        _
      $region86: #{block_forward.1} parent=5 // pred_check_branch
        %623 = sbr.rel (%p620) target = $region88
      $region87: #{block_forward.1} parent=5 // pred_region
        %s624 = ssub.s32 %s31, 1
        // Predicated region
        $region89: #{block_forward.1} parent=87 // pred_check
          %p625 = pneg %p78
        $region90: #{block_forward.1} parent=87 // pred_check_branch
          %627 = sbr.rel (%p625) target = $region92
        $region91: #{block_forward.1} parent=87 // pred_region
          %628 = dma.done [#allocation4], 16896
        $region92: #{block_forward.1} parent=87 // pred_fallthru
          _
        // Predicated region
        $region93: #{block_forward.1} parent=87 // pred_check
          %p629 = pneg %p99
        $region94: #{block_forward.1} parent=87 // pred_check_branch
          %631 = sbr.rel (%p629) target = $region96
        $region95: #{block_forward.1} parent=87 // pred_region
          %632 = dma.done [#allocation6], 32
        $region96: #{block_forward.1} parent=87 // pred_fallthru
          _
        // Predicated region
        $region97: #{block_forward.1} parent=87 // pred_check
          %p633 = pneg %p120
        $region98: #{block_forward.1} parent=87 // pred_check_branch
          %635 = sbr.rel (%p633) target = $region100
        $region99: #{block_forward.1} parent=87 // pred_region
          %636 = dma.done [#allocation6], 16896
        $region100: #{block_forward.1} parent=87 // pred_fallthru
          _
        // Predicated region
        $region101: #{block_forward.1} parent=87 // pred_check
          %p637 = pneg %p141
        $region102: #{block_forward.1} parent=87 // pred_check_branch
          %639 = sbr.rel (%p637) target = $region104
        $region103: #{block_forward.1} parent=87 // pred_region
          %640 = dma.done [#allocation9], 32
        $region104: #{block_forward.1} parent=87 // pred_fallthru
          _
        // Predicated region
        $region105: #{block_forward.1} parent=87 // pred_check
          %p641 = pneg %p162
        $region106: #{block_forward.1} parent=87 // pred_check_branch
          %643 = sbr.rel (%p641) target = $region108
        $region107: #{block_forward.1} parent=87 // pred_region
          %644 = dma.done [#allocation9], 16896
        $region108: #{block_forward.1} parent=87 // pred_fallthru
          _
        // Predicated region
        $region109: #{block_forward.1} parent=87 // pred_check
          %p645 = pneg %p183
        $region110: #{block_forward.1} parent=87 // pred_check_branch
          %647 = sbr.rel (%p645) target = $region112
        $region111: #{block_forward.1} parent=87 // pred_region
          %648 = dma.done [#allocation12], 32
        $region112: #{block_forward.1} parent=87 // pred_fallthru
          _
        // Predicated region
        $region113: #{block_forward.1} parent=87 // pred_check
          %p649 = pneg %p204
        $region114: #{block_forward.1} parent=87 // pred_check_branch
          %651 = sbr.rel (%p649) target = $region116
        $region115: #{block_forward.1} parent=87 // pred_region
          %652 = dma.done [#allocation12], 28160
        $region116: #{block_forward.1} parent=87 // pred_fallthru
          _
        // Predicated region
        $region117: #{block_forward.1} parent=87 // pred_check
          %p653 = pneg %p225
        $region118: #{block_forward.1} parent=87 // pred_check_branch
          %655 = sbr.rel (%p653) target = $region120
        $region119: #{block_forward.1} parent=87 // pred_region
          %656 = dma.done [#allocation15], 32
        $region120: #{block_forward.1} parent=87 // pred_fallthru
          _
        // Predicated region
        $region121: #{block_forward.1} parent=87 // pred_check
          %p657 = pneg %p246
        $region122: #{block_forward.1} parent=87 // pred_check_branch
          %659 = sbr.rel (%p657) target = $region124
        $region123: #{block_forward.1} parent=87 // pred_region
          %660 = dma.done [#allocation15], 39424
        $region124: #{block_forward.1} parent=87 // pred_fallthru
          _
        // Predicated region
        $region125: #{block_forward.1} parent=87 // pred_check
          %p661 = pneg %p267
        $region126: #{block_forward.1} parent=87 // pred_check_branch
          %663 = sbr.rel (%p661) target = $region128
        $region127: #{block_forward.1} parent=87 // pred_region
          %664 = dma.done [#allocation18], 32
        $region128: #{block_forward.1} parent=87 // pred_fallthru
          _
        // Predicated region
        $region129: #{block_forward.1} parent=87 // pred_check
          %p665 = pneg %p309
        $region130: #{block_forward.1} parent=87 // pred_check_branch
          %667 = sbr.rel (%p665) target = $region132
        $region131: #{block_forward.1} parent=87 // pred_region
          %668 = dma.done [#allocation18], 16
        $region132: #{block_forward.1} parent=87 // pred_fallthru
          _
        // Predicated region
        $region133: #{block_forward.1} parent=87 // pred_check
          %p669 = pneg %p330
        $region134: #{block_forward.1} parent=87 // pred_check_branch
          %671 = sbr.rel (%p669) target = $region136
        $region135: #{block_forward.1} parent=87 // pred_region
          %672 = dma.done [#allocation21], 32
        $region136: #{block_forward.1} parent=87 // pred_fallthru
          _
        // Predicated region
        $region137: #{block_forward.1} parent=87 // pred_check
          %p673 = pneg %p351
        $region138: #{block_forward.1} parent=87 // pred_check_branch
          %675 = sbr.rel (%p673) target = $region140
        $region139: #{block_forward.1} parent=87 // pred_region
          %676 = dma.done [#allocation21], 16
        $region140: #{block_forward.1} parent=87 // pred_fallthru
          _
        // Predicated region
        $region141: #{block_forward.1} parent=87 // pred_check
          %p677 = pneg %p393
        $region142: #{block_forward.1} parent=87 // pred_check_branch
          %679 = sbr.rel (%p677) target = $region144
        $region143: #{block_forward.1} parent=87 // pred_region
          %680 = dma.done [#allocation24], 512
        $region144: #{block_forward.1} parent=87 // pred_fallthru
          _
        %p681 = scmp.lt.s32.totalorder %s36, 1
        %s682 = scalar_select %p681, %s36, 1
        %s683 = smul.addr %s682, 4
        %s684 = smul.addr %s683, 8
        %s685 = scalar_lea.vmem %s0, %s684
        %p686 = pneg %p57
        %p687 = pneg %p54
        %p688 = pneg %p78
        %p689 = pneg %p75
        %p690 = pneg %p99
        %p691 = pneg %p96
        %p692 = pneg %p120
        %p693 = pneg %p117
        %p694 = pneg %p141
        %p695 = pneg %p138
        %p696 = pneg %p162
        %p697 = pneg %p159
        %p698 = pneg %p183
        %p699 = pneg %p180
        %p700 = pneg %p204
        %p701 = pneg %p201
        %p702 = pneg %p225
        %p703 = pneg %p222
        %p704 = pneg %p246
        %p705 = pneg %p243
        %p706 = pneg %p267
        %p707 = pneg %p264
        %p708 = pneg %p288
        %p709 = pneg %p285
        %p710 = pneg %p309
        %p711 = pneg %p306
        %p712 = pneg %p330
        %p713 = pneg %p327
        %p714 = pneg %p351
        %p715 = pneg %p348
        %p716 = pneg %p372
        %p717 = pneg %p369
        %p718 = pneg %p393
        %p719 = pneg %p390
        %p720 = pneg %p419
        %p721 = pneg %p416
        %p722 = scmp.lt.s32.totalorder %s36, 1
        %s723 = scalar_select %p722, %s36, 1
        %s724 = smul.addr %s723, 4
        %s725 = smul.addr %s724, 8
        %s726 = scalar_lea.vmem %s17, %s725
        %p727 = scmp.lt.s32.totalorder %s36, 1
        %s728 = scalar_select %p727, %s36, 1
        %s729 = smul.addr %s728, 4
        %s730 = smul.addr %s729, 8
        %s731 = scalar_lea.vmem %s0, %s730
        %p732 = scmp.lt.s32.totalorder %s36, 1
        %s733 = scalar_select %p732, %s36, 1
        %s734 = smul.addr %s733, 4
        %s735 = smul.addr %s734, 8
        %s736 = scalar_lea.vmem %s17, %s735
        %v738 = vld [vmem:[%s731] sm:$0xff]
        %v739 = vld [vmem:[%s731 + $0x8] sm:$0xff]
        %v740 = vld [vmem:[%s731 + $0x10] sm:$0xff]
        %v741 = vld [vmem:[%s731 + $0x18] sm:$0xff]
        %746 = vrot.lane.b32.xlu0 %v738, 48
        %v747 = vpop.permute.xlu0 %746
        %748 = vrot.lane.b32.xlu0 %v739, 48
        %v749 = vpop.permute.xlu0 %748
        %750 = vrot.lane.b32.xlu0 %v740, 48
        %v751 = vpop.permute.xlu0 %750
        %752 = vrot.lane.b32.xlu0 %v741, 48
        %v753 = vpop.permute.xlu0 %752
        %vm754 = vcmask 392192
        %v755 = vsel %vm754, %v747, %v749
        %v756 = vsel %vm754, %v751, %v753
        %v761 = vsel %vm754, 0.0, %v747
        %v762 = vsel %vm754, 0.0, %v751
        %v763 = vsel %vm754, %v749, 0.0
        %v764 = vsel %vm754, %v753, 0.0
        %vm769 = vcmask 1042432
        %v770 = vrot.slane %v761, 5
        %v771 = vrot.slane %v755, 5
        %v772 = vrot.slane %v763, 5
        %v773 = vrot.slane %v762, 5
        %v774 = vsel %vm769, %v770, %v773
        %v775 = vrot.slane %v756, 5
        %v776 = vsel %vm769, %v771, %v775
        %v777 = vrot.slane %v764, 5
        %v778 = vsel %vm769, %v772, %v777
        %v788 = vsel %vm769, 0.0, %v770
        %v789 = vsel %vm769, 0.0, %v771
        %v790 = vsel %vm769, 0.0, %v772
        %v791 = vsel %vm769, %v773, 0.0
        %v792 = vsel %vm769, %v775, 0.0
        %v793 = vsel %vm769, %v777, 0.0
        %794 = vst [vmem:[#allocation2] sm:$0xff] %v788
        %795 = vst [vmem:[#allocation2 + $0x8] sm:$0xff] %v789
        %vm796 = vcmask 785408
        %797 = vst.msk [vmem:[#allocation2 + $0x10] sm:$0xff] %vm796, %v790
        %798 = vst [vmem:[#allocation2 + $0x18] sm:$0xff] %v774
        %799 = vst [vmem:[#allocation2 + $0x20] sm:$0xff] %v776
        %800 = vst.msk [vmem:[#allocation2 + $0x28] sm:$0xff] %vm796, %v778
        %801 = vst [vmem:[#allocation2 + $0x30] sm:$0x3f] %v791
        %802 = vst [vmem:[#allocation2 + $0x38] sm:$0x3f] %v792
        %vm803 = vcmask 783360
        %804 = vst.msk [vmem:[#allocation2 + $0x40] sm:$0x3f] %vm803, %v793
        %v805 = vld [vmem:[#allocation2] sm:$0xfc]
        %v806 = vld [vmem:[#allocation2 + $0x8] sm:$0xfc]
        %v807 = vld [vmem:[#allocation2 + $0x10] sm:$0xfc]
        %v808 = vld [vmem:[#allocation2 + $0x18] sm:$0xff]
        %v809 = vld [vmem:[#allocation2 + $0x20] sm:$0xff]
        %v810 = vld [vmem:[#allocation2 + $0x28] sm:$0xff]
        %v811 = vld [vmem:[#allocation2 + $0x30] sm:$0x3]
        %v812 = vld [vmem:[#allocation2 + $0x38] sm:$0x3]
        %v813 = vld [vmem:[#allocation2 + $0x40] sm:$0x3]
        %v814 = vpack.c.bf16 %v808, %v805
        %v815 = vpack.c.bf16 %v809, %v806
        %v816 = vpack.c.bf16 %v810, %v807
        %v817 = vpack.c.bf16 %v811, %v811
        %v818 = vpack.c.bf16 %v812, %v812
        %v819 = vpack.c.bf16 %v813, %v813
        %v820 = vld [vmem:[#allocation3] sm:$0xff]
        %v821 = vld [vmem:[#allocation3 + $0x8] sm:$0xff]
        %v822 = vld [vmem:[#allocation3 + $0x10] sm:$0xff]
        %v823 = vld [vmem:[#allocation3 + $0x18] sm:$0xff]
        %v824 = vld [vmem:[#allocation3 + $0x20] sm:$0xff]
        %v825 = vld [vmem:[#allocation3 + $0x28] sm:$0xff]
        %v826 = vld [vmem:[#allocation3 + $0x30] sm:$0xff]
        %v827 = vld [vmem:[#allocation3 + $0x38] sm:$0xff]
        %v828 = vld [vmem:[#allocation3 + $0x40] sm:$0xff]
        %v829 = vld [vmem:[#allocation3 + $0x48] sm:$0xff]
        %v830 = vld [vmem:[#allocation3 + $0x50] sm:$0xff]
        %v831 = vld [vmem:[#allocation3 + $0x58] sm:$0xff]
        %v832 = vld [vmem:[#allocation3 + $0x60] sm:$0xff]
        %v833 = vld [vmem:[#allocation3 + $0x68] sm:$0xff]
        %v834 = vld [vmem:[#allocation3 + $0x70] sm:$0xff]
        %v835 = vld [vmem:[#allocation3 + $0x78] sm:$0xff]
        %v836 = vld [vmem:[#allocation3 + $0x80] sm:$0xff]
        %v837 = vld [vmem:[#allocation3 + $0x88] sm:$0xff]
        %v838 = vld [vmem:[#allocation3 + $0x90] sm:$0xff]
        %v839 = vld [vmem:[#allocation3 + $0x98] sm:$0xff]
        %v840 = vld [vmem:[#allocation3 + $0xa0] sm:$0xff]
        %v841 = vld [vmem:[#allocation3 + $0xa8] sm:$0xff]
        %v842 = vld [vmem:[#allocation3 + $0xb0] sm:$0xff]
        %v843 = vld [vmem:[#allocation3 + $0xb8] sm:$0xff]
        %v844 = vld [vmem:[#allocation3 + $0xc0] sm:$0xff]
        %v845 = vld [vmem:[#allocation3 + $0xc8] sm:$0xff]
        %v846 = vld [vmem:[#allocation3 + $0xd0] sm:$0xff]
        %v847 = vld [vmem:[#allocation3 + $0xd8] sm:$0xff]
        %v848 = vld [vmem:[#allocation3 + $0xe0] sm:$0xff]
        %v849 = vld [vmem:[#allocation3 + $0xe8] sm:$0xff]
        %v850 = vld [vmem:[#allocation3 + $0xf0] sm:$0xff]
        %v851 = vld [vmem:[#allocation3 + $0xf8] sm:$0xff]
        %v852 = vld [vmem:[#allocation3 + $0x100] sm:$0xff]
        %v853 = vld [vmem:[#allocation3 + $0x108] sm:$0xff]
        %v854 = vld [vmem:[#allocation3 + $0x110] sm:$0xff]
        %v855 = vld [vmem:[#allocation3 + $0x118] sm:$0xff]
        %v856 = vld [vmem:[#allocation3 + $0x120] sm:$0xff]
        %v857 = vld [vmem:[#allocation3 + $0x128] sm:$0xff]
        %v858 = vld [vmem:[#allocation3 + $0x130] sm:$0xff]
        %v859 = vld [vmem:[#allocation3 + $0x138] sm:$0xff]
        %v860 = vld [vmem:[#allocation3 + $0x140] sm:$0xff]
        %v861 = vld [vmem:[#allocation3 + $0x148] sm:$0xff]
        %v862 = vld [vmem:[#allocation3 + $0x150] sm:$0xff]
        %v863 = vld [vmem:[#allocation3 + $0x158] sm:$0xff]
        %v864 = vld [vmem:[#allocation2] sm:$0xf8]
        %v865 = vld [vmem:[#allocation2 + $0x8] sm:$0xf8]
        %v866 = vld [vmem:[#allocation2 + $0x10] sm:$0xf8]
        %v867 = vld [vmem:[#allocation2 + $0x30] sm:$0x7]
        %v868 = vld [vmem:[#allocation2 + $0x38] sm:$0x7]
        %v869 = vld [vmem:[#allocation2 + $0x40] sm:$0x7]
        %v870 = vpack.c.bf16 %v808, %v864
        %v871 = vpack.c.bf16 %v809, %v865
        %v872 = vpack.c.bf16 %v810, %v866
        %v873 = vpack.c.bf16 %v867, %v867
        %v874 = vpack.c.bf16 %v868, %v868
        %v875 = vpack.c.bf16 %v869, %v869
        %s876 = scalar_lea.vmem [#allocation3], 352
        %v877 = vld [vmem:[%s876] sm:$0xff]
        %v878 = vld [vmem:[%s876 + $0x8] sm:$0xff]
        %v879 = vld [vmem:[%s876 + $0x10] sm:$0xff]
        %v880 = vld [vmem:[%s876 + $0x18] sm:$0xff]
        %v881 = vld [vmem:[%s876 + $0x20] sm:$0xff]
        %v882 = vld [vmem:[%s876 + $0x28] sm:$0xff]
        %v883 = vld [vmem:[%s876 + $0x30] sm:$0xff]
        %v884 = vld [vmem:[%s876 + $0x38] sm:$0xff]
        %v885 = vld [vmem:[%s876 + $0x40] sm:$0xff]
        %v886 = vld [vmem:[%s876 + $0x48] sm:$0xff]
        %v887 = vld [vmem:[%s876 + $0x50] sm:$0xff]
        %v888 = vld [vmem:[%s876 + $0x58] sm:$0xff]
        %v889 = vld [vmem:[%s876 + $0x60] sm:$0xff]
        %v890 = vld [vmem:[%s876 + $0x68] sm:$0xff]
        %v891 = vld [vmem:[%s876 + $0x70] sm:$0xff]
        %v892 = vld [vmem:[%s876 + $0x78] sm:$0xff]
        %v893 = vld [vmem:[%s876 + $0x80] sm:$0xff]
        %v894 = vld [vmem:[%s876 + $0x88] sm:$0xff]
        %v895 = vld [vmem:[%s876 + $0x90] sm:$0xff]
        %v896 = vld [vmem:[%s876 + $0x98] sm:$0xff]
        %v897 = vld [vmem:[%s876 + $0xa0] sm:$0xff]
        %v898 = vld [vmem:[%s876 + $0xa8] sm:$0xff]
        %v899 = vld [vmem:[%s876 + $0xb0] sm:$0xff]
        %v900 = vld [vmem:[%s876 + $0xb8] sm:$0xff]
        %v901 = vld [vmem:[%s876 + $0xc0] sm:$0xff]
        %v902 = vld [vmem:[%s876 + $0xc8] sm:$0xff]
        %v903 = vld [vmem:[%s876 + $0xd0] sm:$0xff]
        %v904 = vld [vmem:[%s876 + $0xd8] sm:$0xff]
        %v905 = vld [vmem:[%s876 + $0xe0] sm:$0xff]
        %v906 = vld [vmem:[%s876 + $0xe8] sm:$0xff]
        %v907 = vld [vmem:[%s876 + $0xf0] sm:$0xff]
        %v908 = vld [vmem:[%s876 + $0xf8] sm:$0xff]
        %v909 = vld [vmem:[%s876 + $0x100] sm:$0xff]
        %v910 = vld [vmem:[%s876 + $0x108] sm:$0xff]
        %v911 = vld [vmem:[%s876 + $0x110] sm:$0xff]
        %v912 = vld [vmem:[%s876 + $0x118] sm:$0xff]
        %v913 = vld [vmem:[%s876 + $0x120] sm:$0xff]
        %v914 = vld [vmem:[%s876 + $0x128] sm:$0xff]
        %v915 = vld [vmem:[%s876 + $0x130] sm:$0xff]
        %v916 = vld [vmem:[%s876 + $0x138] sm:$0xff]
        %v917 = vld [vmem:[%s876 + $0x140] sm:$0xff]
        %v918 = vld [vmem:[%s876 + $0x148] sm:$0xff]
        %v919 = vld [vmem:[%s876 + $0x150] sm:$0xff]
        %v920 = vld [vmem:[%s876 + $0x158] sm:$0xff]
        %vm921 = vsmask.f32 6400
        %v923 = vshrl.u32 %v870, 16
        %v925 = vrot.slane %v923, 1
        %v926 = vshll.u32 %v870, 16
        %v928 = vrot.slane %v926, 2
        %v929 = vor.u32 %v925, %v928
        %v931 = vshrl.u32 %v873, 16
        %v933 = vrot.slane %v931, 1
        %v934 = vshll.u32 %v873, 16
        %v936 = vrot.slane %v934, 2
        %v937 = vor.u32 %v933, %v936
        %v938 = vsel %vm921, %v929, %v937
        %v940 = vshrl.u32 %v871, 16
        %v942 = vrot.slane %v940, 1
        %v943 = vshll.u32 %v871, 16
        %v945 = vrot.slane %v943, 2
        %v946 = vor.u32 %v942, %v945
        %v948 = vshrl.u32 %v874, 16
        %v950 = vrot.slane %v948, 1
        %v951 = vshll.u32 %v874, 16
        %v953 = vrot.slane %v951, 2
        %v954 = vor.u32 %v950, %v953
        %v955 = vsel %vm921, %v946, %v954
        %v957 = vshrl.u32 %v872, 16
        %v959 = vrot.slane %v957, 1
        %v960 = vshll.u32 %v872, 16
        %v962 = vrot.slane %v960, 2
        %v963 = vor.u32 %v959, %v962
        %v965 = vshrl.u32 %v875, 16
        %v967 = vrot.slane %v965, 1
        %v968 = vshll.u32 %v875, 16
        %v970 = vrot.slane %v968, 2
        %v971 = vor.u32 %v967, %v970
        %v972 = vsel %vm921, %v963, %v971
        %v1019 = vunpack.c.l.b16 %v877
        %v1020 = vunpack.c.h.b16 %v877
        %v1021 = vunpack.c.l.b16 %v878
        %v1022 = vunpack.c.h.b16 %v878
        %v1023 = vunpack.c.l.b16 %v879
        %v1024 = vunpack.c.h.b16 %v879
        %v1025 = vunpack.c.l.b16 %v880
        %v1026 = vunpack.c.h.b16 %v880
        %v1027 = vunpack.c.l.b16 %v881
        %v1028 = vunpack.c.h.b16 %v881
        %v1029 = vunpack.c.l.b16 %v882
        %v1030 = vunpack.c.h.b16 %v882
        %v1031 = vunpack.c.l.b16 %v883
        %v1032 = vunpack.c.h.b16 %v883
        %v1033 = vunpack.c.l.b16 %v884
        %v1034 = vunpack.c.h.b16 %v884
        %v1035 = vunpack.c.l.b16 %v885
        %v1036 = vunpack.c.h.b16 %v885
        %v1037 = vunpack.c.l.b16 %v886
        %v1038 = vunpack.c.h.b16 %v886
        %v1039 = vunpack.c.l.b16 %v887
        %v1040 = vunpack.c.h.b16 %v887
        %v1041 = vunpack.c.l.b16 %v888
        %v1042 = vunpack.c.h.b16 %v888
        %v1043 = vunpack.c.l.b16 %v889
        %v1044 = vunpack.c.h.b16 %v889
        %v1045 = vunpack.c.l.b16 %v890
        %v1046 = vunpack.c.h.b16 %v890
        %v1047 = vunpack.c.l.b16 %v891
        %v1048 = vunpack.c.h.b16 %v891
        %v1049 = vunpack.c.l.b16 %v892
        %v1050 = vunpack.c.h.b16 %v892
        %v1051 = vunpack.c.l.b16 %v893
        %v1052 = vunpack.c.h.b16 %v893
        %v1053 = vunpack.c.l.b16 %v894
        %v1054 = vunpack.c.h.b16 %v894
        %v1055 = vunpack.c.l.b16 %v895
        %v1056 = vunpack.c.h.b16 %v895
        %v1057 = vunpack.c.l.b16 %v896
        %v1058 = vunpack.c.h.b16 %v896
        %v1059 = vunpack.c.l.b16 %v897
        %v1060 = vunpack.c.h.b16 %v897
        %v1061 = vunpack.c.l.b16 %v898
        %v1062 = vunpack.c.h.b16 %v898
        %v1063 = vunpack.c.l.b16 %v899
        %v1064 = vunpack.c.h.b16 %v899
        %v1065 = vunpack.c.l.b16 %v900
        %v1066 = vunpack.c.h.b16 %v900
        %v1067 = vunpack.c.l.b16 %v901
        %v1068 = vunpack.c.h.b16 %v901
        %v1069 = vunpack.c.l.b16 %v902
        %v1070 = vunpack.c.h.b16 %v902
        %v1071 = vunpack.c.l.b16 %v903
        %v1072 = vunpack.c.h.b16 %v903
        %v1073 = vunpack.c.l.b16 %v904
        %v1074 = vunpack.c.h.b16 %v904
        %v1075 = vunpack.c.l.b16 %v905
        %v1076 = vunpack.c.h.b16 %v905
        %v1077 = vunpack.c.l.b16 %v906
        %v1078 = vunpack.c.h.b16 %v906
        %v1079 = vunpack.c.l.b16 %v907
        %v1080 = vunpack.c.h.b16 %v907
        %v1081 = vunpack.c.l.b16 %v908
        %v1082 = vunpack.c.h.b16 %v908
        %v1083 = vunpack.c.l.b16 %v909
        %v1084 = vunpack.c.h.b16 %v909
        %v1085 = vunpack.c.l.b16 %v910
        %v1086 = vunpack.c.h.b16 %v910
        %v1087 = vunpack.c.l.b16 %v911
        %v1088 = vunpack.c.h.b16 %v911
        %v1089 = vunpack.c.l.b16 %v912
        %v1090 = vunpack.c.h.b16 %v912
        %v1091 = vunpack.c.l.b16 %v913
        %v1092 = vunpack.c.h.b16 %v913
        %v1093 = vunpack.c.l.b16 %v914
        %v1094 = vunpack.c.h.b16 %v914
        %v1095 = vunpack.c.l.b16 %v915
        %v1096 = vunpack.c.h.b16 %v915
        %v1097 = vunpack.c.l.b16 %v916
        %v1098 = vunpack.c.h.b16 %v916
        %v1099 = vunpack.c.l.b16 %v917
        %v1100 = vunpack.c.h.b16 %v917
        %v1101 = vunpack.c.l.b16 %v918
        %v1102 = vunpack.c.h.b16 %v918
        %v1103 = vunpack.c.l.b16 %v919
        %v1104 = vunpack.c.h.b16 %v919
        %v1105 = vunpack.c.l.b16 %v920
        %v1106 = vunpack.c.h.b16 %v920
        %v1107 = vpack.c.b16 %v1021, %v1019
        %v1108 = vpack.c.b16 %v1022, %v1020
        %v1109 = vpack.c.b16 %v1025, %v1023
        %v1110 = vpack.c.b16 %v1026, %v1024
        %v1111 = vpack.c.b16 %v1029, %v1027
        %v1112 = vpack.c.b16 %v1030, %v1028
        %v1113 = vpack.c.b16 %v1033, %v1031
        %v1114 = vpack.c.b16 %v1034, %v1032
        %v1115 = vpack.c.b16 %v1037, %v1035
        %v1116 = vpack.c.b16 %v1038, %v1036
        %v1117 = vpack.c.b16 %v1041, %v1039
        %v1118 = vpack.c.b16 %v1042, %v1040
        %v1119 = vpack.c.b16 %v1045, %v1043
        %v1120 = vpack.c.b16 %v1046, %v1044
        %v1121 = vpack.c.b16 %v1049, %v1047
        %v1122 = vpack.c.b16 %v1050, %v1048
        %v1123 = vpack.c.b16 %v1053, %v1051
        %v1124 = vpack.c.b16 %v1054, %v1052
        %v1125 = vpack.c.b16 %v1057, %v1055
        %v1126 = vpack.c.b16 %v1058, %v1056
        %v1127 = vpack.c.b16 %v1061, %v1059
        %v1128 = vpack.c.b16 %v1062, %v1060
        %v1129 = vpack.c.b16 %v1065, %v1063
        %v1130 = vpack.c.b16 %v1066, %v1064
        %v1131 = vpack.c.b16 %v1069, %v1067
        %v1132 = vpack.c.b16 %v1070, %v1068
        %v1133 = vpack.c.b16 %v1073, %v1071
        %v1134 = vpack.c.b16 %v1074, %v1072
        %v1135 = vpack.c.b16 %v1077, %v1075
        %v1136 = vpack.c.b16 %v1078, %v1076
        %v1137 = vpack.c.b16 %v1081, %v1079
        %v1138 = vpack.c.b16 %v1082, %v1080
        %v1139 = vpack.c.b16 %v1085, %v1083
        %v1140 = vpack.c.b16 %v1086, %v1084
        %v1141 = vpack.c.b16 %v1089, %v1087
        %v1142 = vpack.c.b16 %v1090, %v1088
        %v1143 = vpack.c.b16 %v1093, %v1091
        %v1144 = vpack.c.b16 %v1094, %v1092
        %v1145 = vpack.c.b16 %v1097, %v1095
        %v1146 = vpack.c.b16 %v1098, %v1096
        %v1147 = vpack.c.b16 %v1101, %v1099
        %v1148 = vpack.c.b16 %v1102, %v1100
        %v1149 = vpack.c.b16 %v1105, %v1103
        %v1150 = vpack.c.b16 %v1106, %v1104
        %v1196 = vsel %vm796, %v972, 0
        %1198 = vmatprep.subr.bf16.mxu0 %v1108
        %1199 = vmatpush1.bf16.msra.mxu0 %v1107
        %1200 = vmatprep.subr.bf16.mxu0 %v1110
        %1201 = vmatpush1.bf16.msra.mxu0 %v1109
        %1202 = vmatprep.subr.bf16.mxu0 %v1112
        %1203 = vmatpush1.bf16.msra.mxu0 %v1111
        %1204 = vmatprep.subr.bf16.mxu0 %v1114
        %1205 = vmatpush1.bf16.msra.mxu0 %v1113
        %1206 = vmatprep.subr.bf16.mxu0 %v1116
        %1207 = vmatpush1.bf16.msra.mxu0 %v1115
        %1208 = vmatprep.subr.bf16.mxu0 %v1118
        %1209 = vmatpush1.bf16.msra.mxu0 %v1117
        %1210 = vmatprep.subr.bf16.mxu0 %v1120
        %1211 = vmatpush1.bf16.msra.mxu0 %v1119
        %1212 = vmatprep.subr.bf16.mxu0 %v1122
        %1213 = vmatpush1.bf16.msra.mxu0 %v1121
        %1214 = vmatprep.subr.bf16.mxu0 %v1124
        %1215 = vmatpush1.bf16.msra.mxu0 %v1123
        %1216 = vmatprep.subr.bf16.mxu0 %v1126
        %1217 = vmatpush1.bf16.msra.mxu0 %v1125
        %1218 = vmatprep.subr.bf16.mxu0 %v1128
        %1219 = vmatpush1.bf16.msra.mxu0 %v1127
        %1220 = vmatprep.subr.bf16.mxu0 %v1130
        %1221 = vmatpush1.bf16.msra.mxu0 %v1129
        %1222 = vmatprep.subr.bf16.mxu0 %v1132
        %1223 = vmatpush1.bf16.msra.mxu0 %v1131
        %1224 = vmatprep.subr.bf16.mxu0 %v1134
        %1225 = vmatpush1.bf16.msra.mxu0 %v1133
        %1226 = vmatprep.subr.bf16.mxu0 %v1136
        %1227 = vmatpush1.bf16.msra.mxu0 %v1135
        %1228 = vmatprep.subr.bf16.mxu0 %v1138
        %1229 = vmatpush1.bf16.msra.mxu0 %v1137
        %1230 = vmatprep.mubr.bf16.mxu0 %v955
        %1231 = vmatmul.mubr.bf16.gmra.mrb[0].mxu0 %v938
        %v1232 = vpop.f32.mrb[0].mxu0
        %v1233 = vadd.f32 0.0, %v1232
        %v1234 = vpop.f32.mrb[0].mxu0
        %v1235 = vadd.f32 0.0, %v1234
        %v1236 = vpop.f32.mrb[0].mxu0
        %v1237 = vadd.f32 0.0, %v1236
        %v1238 = vpop.f32.mrb[0].mxu0
        %v1239 = vadd.f32 0.0, %v1238
        %1240 = vdwg.mxu0
        %1241 = vmatprep.subr.bf16.mxu0 %v1140
        %1242 = vmatpush1.bf16.msra.mxu0 %v1139
        %1243 = vmatprep.subr.bf16.mxu0 %v1142
        %1244 = vmatpush1.bf16.msra.mxu0 %v1141
        %1245 = vmatprep.subr.bf16.mxu0 %v1144
        %1246 = vmatpush1.bf16.msra.mxu0 %v1143
        %1247 = vmatprep.subr.bf16.mxu0 %v1146
        %1248 = vmatpush1.bf16.msra.mxu0 %v1145
        %1249 = vmatprep.subr.bf16.mxu0 %v1148
        %1250 = vmatpush1.bf16.msra.mxu0 %v1147
        %1251 = vmatprep.subr.bf16.mxu0 %v1150
        %1252 = vmatpush1.bf16.msra.mxu0 %v1149
        %1253 = vmatprep.subr.bf16.mxu0 0
        %1254 = vmatpush1.bf16.msra.mxu0 0
        %1255 = vmatprep.subr.bf16.mxu0 0
        %1256 = vmatpush1.bf16.msra.mxu0 0
        %1257 = vmatprep.subr.bf16.mxu0 0
        %1258 = vmatpush1.bf16.msra.mxu0 0
        %1259 = vmatprep.subr.bf16.mxu0 0
        %1260 = vmatpush1.bf16.msra.mxu0 0
        %1261 = vmatprep.subr.bf16.mxu0 0
        %1262 = vmatpush1.bf16.msra.mxu0 0
        %1263 = vmatprep.subr.bf16.mxu0 0
        %1264 = vmatpush1.bf16.msra.mxu0 0
        %1265 = vmatprep.subr.bf16.mxu0 0
        %1266 = vmatpush1.bf16.msra.mxu0 0
        %1267 = vmatprep.subr.bf16.mxu0 0
        %1268 = vmatpush1.bf16.msra.mxu0 0
        %1269 = vmatprep.subr.bf16.mxu0 0
        %1270 = vmatpush1.bf16.msra.mxu0 0
        %1271 = vmatprep.subr.bf16.mxu0 0
        %1272 = vmatpush1.bf16.msra.mxu0 0
        %1273 = vmatprep.mubr.bf16.mxu0 0
        %1274 = vmatmul.mubr.bf16.gmra.mrb[0].mxu0 %v1196
        %v1275 = vpop.f32.mrb[0].mxu0
        %v1276 = vadd.f32 %v1233, %v1275
        %v1277 = vpop.f32.mrb[0].mxu0
        %v1278 = vadd.f32 %v1235, %v1277
        %v1279 = vpop.f32.mrb[0].mxu0
        %v1280 = vadd.f32 %v1237, %v1279
        %v1281 = vpop.f32.mrb[0].mxu0
        %v1282 = vadd.f32 %v1239, %v1281
        %1283 = vdwg.mxu0
        %vm1290 = vcmask 1046528
        %v1291 = vrot.slane %v814, 1
        %v1292 = vrot.slane %v817, 1
        %v1293 = vsel %vm1290, %v1291, %v1292
        %v1294 = vrot.slane %v815, 1
        %v1295 = vrot.slane %v818, 1
        %v1296 = vsel %vm1290, %v1294, %v1295
        %v1297 = vrot.slane %v816, 1
        %v1298 = vrot.slane %v819, 1
        %v1299 = vsel %vm1290, %v1297, %v1298
        %v1346 = vunpack.c.l.b16 %v820
        %v1347 = vunpack.c.h.b16 %v820
        %v1348 = vunpack.c.l.b16 %v821
        %v1349 = vunpack.c.h.b16 %v821
        %v1350 = vunpack.c.l.b16 %v822
        %v1351 = vunpack.c.h.b16 %v822
        %v1352 = vunpack.c.l.b16 %v823
        %v1353 = vunpack.c.h.b16 %v823
        %v1354 = vunpack.c.l.b16 %v824
        %v1355 = vunpack.c.h.b16 %v824
        %v1356 = vunpack.c.l.b16 %v825
        %v1357 = vunpack.c.h.b16 %v825
        %v1358 = vunpack.c.l.b16 %v826
        %v1359 = vunpack.c.h.b16 %v826
        %v1360 = vunpack.c.l.b16 %v827
        %v1361 = vunpack.c.h.b16 %v827
        %v1362 = vunpack.c.l.b16 %v828
        %v1363 = vunpack.c.h.b16 %v828
        %v1364 = vunpack.c.l.b16 %v829
        %v1365 = vunpack.c.h.b16 %v829
        %v1366 = vunpack.c.l.b16 %v830
        %v1367 = vunpack.c.h.b16 %v830
        %v1368 = vunpack.c.l.b16 %v831
        %v1369 = vunpack.c.h.b16 %v831
        %v1370 = vunpack.c.l.b16 %v832
        %v1371 = vunpack.c.h.b16 %v832
        %v1372 = vunpack.c.l.b16 %v833
        %v1373 = vunpack.c.h.b16 %v833
        %v1374 = vunpack.c.l.b16 %v834
        %v1375 = vunpack.c.h.b16 %v834
        %v1376 = vunpack.c.l.b16 %v835
        %v1377 = vunpack.c.h.b16 %v835
        %v1378 = vunpack.c.l.b16 %v836
        %v1379 = vunpack.c.h.b16 %v836
        %v1380 = vunpack.c.l.b16 %v837
        %v1381 = vunpack.c.h.b16 %v837
        %v1382 = vunpack.c.l.b16 %v838
        %v1383 = vunpack.c.h.b16 %v838
        %v1384 = vunpack.c.l.b16 %v839
        %v1385 = vunpack.c.h.b16 %v839
        %v1386 = vunpack.c.l.b16 %v840
        %v1387 = vunpack.c.h.b16 %v840
        %v1388 = vunpack.c.l.b16 %v841
        %v1389 = vunpack.c.h.b16 %v841
        %v1390 = vunpack.c.l.b16 %v842
        %v1391 = vunpack.c.h.b16 %v842
        %v1392 = vunpack.c.l.b16 %v843
        %v1393 = vunpack.c.h.b16 %v843
        %v1394 = vunpack.c.l.b16 %v844
        %v1395 = vunpack.c.h.b16 %v844
        %v1396 = vunpack.c.l.b16 %v845
        %v1397 = vunpack.c.h.b16 %v845
        %v1398 = vunpack.c.l.b16 %v846
        %v1399 = vunpack.c.h.b16 %v846
        %v1400 = vunpack.c.l.b16 %v847
        %v1401 = vunpack.c.h.b16 %v847
        %v1402 = vunpack.c.l.b16 %v848
        %v1403 = vunpack.c.h.b16 %v848
        %v1404 = vunpack.c.l.b16 %v849
        %v1405 = vunpack.c.h.b16 %v849
        %v1406 = vunpack.c.l.b16 %v850
        %v1407 = vunpack.c.h.b16 %v850
        %v1408 = vunpack.c.l.b16 %v851
        %v1409 = vunpack.c.h.b16 %v851
        %v1410 = vunpack.c.l.b16 %v852
        %v1411 = vunpack.c.h.b16 %v852
        %v1412 = vunpack.c.l.b16 %v853
        %v1413 = vunpack.c.h.b16 %v853
        %v1414 = vunpack.c.l.b16 %v854
        %v1415 = vunpack.c.h.b16 %v854
        %v1416 = vunpack.c.l.b16 %v855
        %v1417 = vunpack.c.h.b16 %v855
        %v1418 = vunpack.c.l.b16 %v856
        %v1419 = vunpack.c.h.b16 %v856
        %v1420 = vunpack.c.l.b16 %v857
        %v1421 = vunpack.c.h.b16 %v857
        %v1422 = vunpack.c.l.b16 %v858
        %v1423 = vunpack.c.h.b16 %v858
        %v1424 = vunpack.c.l.b16 %v859
        %v1425 = vunpack.c.h.b16 %v859
        %v1426 = vunpack.c.l.b16 %v860
        %v1427 = vunpack.c.h.b16 %v860
        %v1428 = vunpack.c.l.b16 %v861
        %v1429 = vunpack.c.h.b16 %v861
        %v1430 = vunpack.c.l.b16 %v862
        %v1431 = vunpack.c.h.b16 %v862
        %v1432 = vunpack.c.l.b16 %v863
        %v1433 = vunpack.c.h.b16 %v863
        %v1434 = vpack.c.b16 %v1348, %v1346
        %v1435 = vpack.c.b16 %v1349, %v1347
        %v1436 = vpack.c.b16 %v1352, %v1350
        %v1437 = vpack.c.b16 %v1353, %v1351
        %v1438 = vpack.c.b16 %v1356, %v1354
        %v1439 = vpack.c.b16 %v1357, %v1355
        %v1440 = vpack.c.b16 %v1360, %v1358
        %v1441 = vpack.c.b16 %v1361, %v1359
        %v1442 = vpack.c.b16 %v1364, %v1362
        %v1443 = vpack.c.b16 %v1365, %v1363
        %v1444 = vpack.c.b16 %v1368, %v1366
        %v1445 = vpack.c.b16 %v1369, %v1367
        %v1446 = vpack.c.b16 %v1372, %v1370
        %v1447 = vpack.c.b16 %v1373, %v1371
        %v1448 = vpack.c.b16 %v1376, %v1374
        %v1449 = vpack.c.b16 %v1377, %v1375
        %v1450 = vpack.c.b16 %v1380, %v1378
        %v1451 = vpack.c.b16 %v1381, %v1379
        %v1452 = vpack.c.b16 %v1384, %v1382
        %v1453 = vpack.c.b16 %v1385, %v1383
        %v1454 = vpack.c.b16 %v1388, %v1386
        %v1455 = vpack.c.b16 %v1389, %v1387
        %v1456 = vpack.c.b16 %v1392, %v1390
        %v1457 = vpack.c.b16 %v1393, %v1391
        %v1458 = vpack.c.b16 %v1396, %v1394
        %v1459 = vpack.c.b16 %v1397, %v1395
        %v1460 = vpack.c.b16 %v1400, %v1398
        %v1461 = vpack.c.b16 %v1401, %v1399
        %v1462 = vpack.c.b16 %v1404, %v1402
        %v1463 = vpack.c.b16 %v1405, %v1403
        %v1464 = vpack.c.b16 %v1408, %v1406
        %v1465 = vpack.c.b16 %v1409, %v1407
        %v1466 = vpack.c.b16 %v1412, %v1410
        %v1467 = vpack.c.b16 %v1413, %v1411
        %v1468 = vpack.c.b16 %v1416, %v1414
        %v1469 = vpack.c.b16 %v1417, %v1415
        %v1470 = vpack.c.b16 %v1420, %v1418
        %v1471 = vpack.c.b16 %v1421, %v1419
        %v1472 = vpack.c.b16 %v1424, %v1422
        %v1473 = vpack.c.b16 %v1425, %v1423
        %v1474 = vpack.c.b16 %v1428, %v1426
        %v1475 = vpack.c.b16 %v1429, %v1427
        %v1476 = vpack.c.b16 %v1432, %v1430
        %v1477 = vpack.c.b16 %v1433, %v1431
        %v1523 = vsel %vm796, %v1299, 0
        %1525 = vmatprep.subr.bf16.mxu0 %v1435
        %1526 = vmatpush1.bf16.msra.mxu0 %v1434
        %1527 = vmatprep.subr.bf16.mxu0 %v1437
        %1528 = vmatpush1.bf16.msra.mxu0 %v1436
        %1529 = vmatprep.subr.bf16.mxu0 %v1439
        %1530 = vmatpush1.bf16.msra.mxu0 %v1438
        %1531 = vmatprep.subr.bf16.mxu0 %v1441
        %1532 = vmatpush1.bf16.msra.mxu0 %v1440
        %1533 = vmatprep.subr.bf16.mxu0 %v1443
        %1534 = vmatpush1.bf16.msra.mxu0 %v1442
        %1535 = vmatprep.subr.bf16.mxu0 %v1445
        %1536 = vmatpush1.bf16.msra.mxu0 %v1444
        %1537 = vmatprep.subr.bf16.mxu0 %v1447
        %1538 = vmatpush1.bf16.msra.mxu0 %v1446
        %1539 = vmatprep.subr.bf16.mxu0 %v1449
        %1540 = vmatpush1.bf16.msra.mxu0 %v1448
        %1541 = vmatprep.subr.bf16.mxu0 %v1451
        %1542 = vmatpush1.bf16.msra.mxu0 %v1450
        %1543 = vmatprep.subr.bf16.mxu0 %v1453
        %1544 = vmatpush1.bf16.msra.mxu0 %v1452
        %1545 = vmatprep.subr.bf16.mxu0 %v1455
        %1546 = vmatpush1.bf16.msra.mxu0 %v1454
        %1547 = vmatprep.subr.bf16.mxu0 %v1457
        %1548 = vmatpush1.bf16.msra.mxu0 %v1456
        %1549 = vmatprep.subr.bf16.mxu0 %v1459
        %1550 = vmatpush1.bf16.msra.mxu0 %v1458
        %1551 = vmatprep.subr.bf16.mxu0 %v1461
        %1552 = vmatpush1.bf16.msra.mxu0 %v1460
        %1553 = vmatprep.subr.bf16.mxu0 %v1463
        %1554 = vmatpush1.bf16.msra.mxu0 %v1462
        %1555 = vmatprep.subr.bf16.mxu0 %v1465
        %1556 = vmatpush1.bf16.msra.mxu0 %v1464
        %1557 = vmatprep.mubr.bf16.mxu0 %v1296
        %1558 = vmatmul.mubr.bf16.gmra.mrb[0].mxu0 %v1293
        %v1559 = vpop.f32.mrb[0].mxu0
        %v1560 = vadd.f32 %v1276, %v1559
        %v1561 = vpop.f32.mrb[0].mxu0
        %v1562 = vadd.f32 %v1278, %v1561
        %v1563 = vpop.f32.mrb[0].mxu0
        %v1564 = vadd.f32 %v1280, %v1563
        %v1565 = vpop.f32.mrb[0].mxu0
        %v1566 = vadd.f32 %v1282, %v1565
        %1567 = vdwg.mxu0
        %1568 = vmatprep.subr.bf16.mxu0 %v1467
        %1569 = vmatpush1.bf16.msra.mxu0 %v1466
        %1570 = vmatprep.subr.bf16.mxu0 %v1469
        %1571 = vmatpush1.bf16.msra.mxu0 %v1468
        %1572 = vmatprep.subr.bf16.mxu0 %v1471
        %1573 = vmatpush1.bf16.msra.mxu0 %v1470
        %1574 = vmatprep.subr.bf16.mxu0 %v1473
        %1575 = vmatpush1.bf16.msra.mxu0 %v1472
        %1576 = vmatprep.subr.bf16.mxu0 %v1475
        %1577 = vmatpush1.bf16.msra.mxu0 %v1474
        %1578 = vmatprep.subr.bf16.mxu0 %v1477
        %1579 = vmatpush1.bf16.msra.mxu0 %v1476
        %1580 = vmatprep.subr.bf16.mxu0 0
        %1581 = vmatpush1.bf16.msra.mxu0 0
        %1582 = vmatprep.subr.bf16.mxu0 0
        %1583 = vmatpush1.bf16.msra.mxu0 0
        %1584 = vmatprep.subr.bf16.mxu0 0
        %1585 = vmatpush1.bf16.msra.mxu0 0
        %1586 = vmatprep.subr.bf16.mxu0 0
        %1587 = vmatpush1.bf16.msra.mxu0 0
        %1588 = vmatprep.subr.bf16.mxu0 0
        %1589 = vmatpush1.bf16.msra.mxu0 0
        %1590 = vmatprep.subr.bf16.mxu0 0
        %1591 = vmatpush1.bf16.msra.mxu0 0
        %1592 = vmatprep.subr.bf16.mxu0 0
        %1593 = vmatpush1.bf16.msra.mxu0 0
        %1594 = vmatprep.subr.bf16.mxu0 0
        %1595 = vmatpush1.bf16.msra.mxu0 0
        %1596 = vmatprep.subr.bf16.mxu0 0
        %1597 = vmatpush1.bf16.msra.mxu0 0
        %1598 = vmatprep.subr.bf16.mxu0 0
        %1599 = vmatpush1.bf16.msra.mxu0 0
        %1600 = vmatprep.mubr.bf16.mxu0 0
        %1601 = vmatmul.mubr.bf16.gmra.mrb[0].mxu0 %v1523
        %v1602 = vpop.f32.mrb[0].mxu0
        %v1603 = vadd.f32 %v1560, %v1602
        %v1604 = vpop.f32.mrb[0].mxu0
        %v1605 = vadd.f32 %v1562, %v1604
        %v1606 = vpop.f32.mrb[0].mxu0
        %v1607 = vadd.f32 %v1564, %v1606
        %v1608 = vpop.f32.mrb[0].mxu0
        %v1609 = vadd.f32 %v1566, %v1608
        %1610 = vdwg.mxu0
        %v1611 = vld [vmem:[#allocation2] sm:$0xf0]
        %v1612 = vld [vmem:[#allocation2 + $0x8] sm:$0xf0]
        %v1613 = vld [vmem:[#allocation2 + $0x10] sm:$0xf0]
        %v1614 = vld [vmem:[#allocation2 + $0x30] sm:$0xf]
        %v1615 = vld [vmem:[#allocation2 + $0x38] sm:$0xf]
        %v1616 = vld [vmem:[#allocation2 + $0x40] sm:$0xf]
        %v1617 = vpack.c.bf16 %v808, %v1611
        %v1618 = vpack.c.bf16 %v809, %v1612
        %v1619 = vpack.c.bf16 %v810, %v1613
        %v1620 = vpack.c.bf16 %v1614, %v1614
        %v1621 = vpack.c.bf16 %v1615, %v1615
        %v1622 = vpack.c.bf16 %v1616, %v1616
        %s1623 = scalar_lea.vmem [#allocation3], 704
        %v1624 = vld [vmem:[%s1623] sm:$0xff]
        %v1625 = vld [vmem:[%s1623 + $0x8] sm:$0xff]
        %v1626 = vld [vmem:[%s1623 + $0x10] sm:$0xff]
        %v1627 = vld [vmem:[%s1623 + $0x18] sm:$0xff]
        %v1628 = vld [vmem:[%s1623 + $0x20] sm:$0xff]
        %v1629 = vld [vmem:[%s1623 + $0x28] sm:$0xff]
        %v1630 = vld [vmem:[%s1623 + $0x30] sm:$0xff]
        %v1631 = vld [vmem:[%s1623 + $0x38] sm:$0xff]
        %v1632 = vld [vmem:[%s1623 + $0x40] sm:$0xff]
        %v1633 = vld [vmem:[%s1623 + $0x48] sm:$0xff]
        %v1634 = vld [vmem:[%s1623 + $0x50] sm:$0xff]
        %v1635 = vld [vmem:[%s1623 + $0x58] sm:$0xff]
        %v1636 = vld [vmem:[%s1623 + $0x60] sm:$0xff]
        %v1637 = vld [vmem:[%s1623 + $0x68] sm:$0xff]
        %v1638 = vld [vmem:[%s1623 + $0x70] sm:$0xff]
        %v1639 = vld [vmem:[%s1623 + $0x78] sm:$0xff]
        %v1640 = vld [vmem:[%s1623 + $0x80] sm:$0xff]
        %v1641 = vld [vmem:[%s1623 + $0x88] sm:$0xff]
        %v1642 = vld [vmem:[%s1623 + $0x90] sm:$0xff]
        %v1643 = vld [vmem:[%s1623 + $0x98] sm:$0xff]
        %v1644 = vld [vmem:[%s1623 + $0xa0] sm:$0xff]
        %v1645 = vld [vmem:[%s1623 + $0xa8] sm:$0xff]
        %v1646 = vld [vmem:[%s1623 + $0xb0] sm:$0xff]
        %v1647 = vld [vmem:[%s1623 + $0xb8] sm:$0xff]
        %v1648 = vld [vmem:[%s1623 + $0xc0] sm:$0xff]
        %v1649 = vld [vmem:[%s1623 + $0xc8] sm:$0xff]
        %v1650 = vld [vmem:[%s1623 + $0xd0] sm:$0xff]
        %v1651 = vld [vmem:[%s1623 + $0xd8] sm:$0xff]
        %v1652 = vld [vmem:[%s1623 + $0xe0] sm:$0xff]
        %v1653 = vld [vmem:[%s1623 + $0xe8] sm:$0xff]
        %v1654 = vld [vmem:[%s1623 + $0xf0] sm:$0xff]
        %v1655 = vld [vmem:[%s1623 + $0xf8] sm:$0xff]
        %v1656 = vld [vmem:[%s1623 + $0x100] sm:$0xff]
        %v1657 = vld [vmem:[%s1623 + $0x108] sm:$0xff]
        %v1658 = vld [vmem:[%s1623 + $0x110] sm:$0xff]
        %v1659 = vld [vmem:[%s1623 + $0x118] sm:$0xff]
        %v1660 = vld [vmem:[%s1623 + $0x120] sm:$0xff]
        %v1661 = vld [vmem:[%s1623 + $0x128] sm:$0xff]
        %v1662 = vld [vmem:[%s1623 + $0x130] sm:$0xff]
        %v1663 = vld [vmem:[%s1623 + $0x138] sm:$0xff]
        %v1664 = vld [vmem:[%s1623 + $0x140] sm:$0xff]
        %v1665 = vld [vmem:[%s1623 + $0x148] sm:$0xff]
        %v1666 = vld [vmem:[%s1623 + $0x150] sm:$0xff]
        %v1667 = vld [vmem:[%s1623 + $0x158] sm:$0xff]
        %vm1674 = vcmask 1045504
        %v1675 = vrot.slane %v1617, 2
        %v1676 = vrot.slane %v1620, 2
        %v1677 = vsel %vm1674, %v1675, %v1676
        %v1678 = vrot.slane %v1618, 2
        %v1679 = vrot.slane %v1621, 2
        %v1680 = vsel %vm1674, %v1678, %v1679
        %v1681 = vrot.slane %v1619, 2
        %v1682 = vrot.slane %v1622, 2
        %v1683 = vsel %vm1674, %v1681, %v1682
        %v1730 = vunpack.c.l.b16 %v1624
        %v1731 = vunpack.c.h.b16 %v1624
        %v1732 = vunpack.c.l.b16 %v1625
        %v1733 = vunpack.c.h.b16 %v1625
        %v1734 = vunpack.c.l.b16 %v1626
        %v1735 = vunpack.c.h.b16 %v1626
        %v1736 = vunpack.c.l.b16 %v1627
        %v1737 = vunpack.c.h.b16 %v1627
        %v1738 = vunpack.c.l.b16 %v1628
        %v1739 = vunpack.c.h.b16 %v1628
        %v1740 = vunpack.c.l.b16 %v1629
        %v1741 = vunpack.c.h.b16 %v1629
        %v1742 = vunpack.c.l.b16 %v1630
        %v1743 = vunpack.c.h.b16 %v1630
        %v1744 = vunpack.c.l.b16 %v1631
        %v1745 = vunpack.c.h.b16 %v1631
        %v1746 = vunpack.c.l.b16 %v1632
        %v1747 = vunpack.c.h.b16 %v1632
        %v1748 = vunpack.c.l.b16 %v1633
        %v1749 = vunpack.c.h.b16 %v1633
        %v1750 = vunpack.c.l.b16 %v1634
        %v1751 = vunpack.c.h.b16 %v1634
        %v1752 = vunpack.c.l.b16 %v1635
        %v1753 = vunpack.c.h.b16 %v1635
        %v1754 = vunpack.c.l.b16 %v1636
        %v1755 = vunpack.c.h.b16 %v1636
        %v1756 = vunpack.c.l.b16 %v1637
        %v1757 = vunpack.c.h.b16 %v1637
        %v1758 = vunpack.c.l.b16 %v1638
        %v1759 = vunpack.c.h.b16 %v1638
        %v1760 = vunpack.c.l.b16 %v1639
        %v1761 = vunpack.c.h.b16 %v1639
        %v1762 = vunpack.c.l.b16 %v1640
        %v1763 = vunpack.c.h.b16 %v1640
        %v1764 = vunpack.c.l.b16 %v1641
        %v1765 = vunpack.c.h.b16 %v1641
        %v1766 = vunpack.c.l.b16 %v1642
        %v1767 = vunpack.c.h.b16 %v1642
        %v1768 = vunpack.c.l.b16 %v1643
        %v1769 = vunpack.c.h.b16 %v1643
        %v1770 = vunpack.c.l.b16 %v1644
        %v1771 = vunpack.c.h.b16 %v1644
        %v1772 = vunpack.c.l.b16 %v1645
        %v1773 = vunpack.c.h.b16 %v1645
        %v1774 = vunpack.c.l.b16 %v1646
        %v1775 = vunpack.c.h.b16 %v1646
        %v1776 = vunpack.c.l.b16 %v1647
        %v1777 = vunpack.c.h.b16 %v1647
        %v1778 = vunpack.c.l.b16 %v1648
        %v1779 = vunpack.c.h.b16 %v1648
        %v1780 = vunpack.c.l.b16 %v1649
        %v1781 = vunpack.c.h.b16 %v1649
        %v1782 = vunpack.c.l.b16 %v1650
        %v1783 = vunpack.c.h.b16 %v1650
        %v1784 = vunpack.c.l.b16 %v1651
        %v1785 = vunpack.c.h.b16 %v1651
        %v1786 = vunpack.c.l.b16 %v1652
        %v1787 = vunpack.c.h.b16 %v1652
        %v1788 = vunpack.c.l.b16 %v1653
        %v1789 = vunpack.c.h.b16 %v1653
        %v1790 = vunpack.c.l.b16 %v1654
        %v1791 = vunpack.c.h.b16 %v1654
        %v1792 = vunpack.c.l.b16 %v1655
        %v1793 = vunpack.c.h.b16 %v1655
        %v1794 = vunpack.c.l.b16 %v1656
        %v1795 = vunpack.c.h.b16 %v1656
        %v1796 = vunpack.c.l.b16 %v1657
        %v1797 = vunpack.c.h.b16 %v1657
        %v1798 = vunpack.c.l.b16 %v1658
        %v1799 = vunpack.c.h.b16 %v1658
        %v1800 = vunpack.c.l.b16 %v1659
        %v1801 = vunpack.c.h.b16 %v1659
        %v1802 = vunpack.c.l.b16 %v1660
        %v1803 = vunpack.c.h.b16 %v1660
        %v1804 = vunpack.c.l.b16 %v1661
        %v1805 = vunpack.c.h.b16 %v1661
        %v1806 = vunpack.c.l.b16 %v1662
        %v1807 = vunpack.c.h.b16 %v1662
        %v1808 = vunpack.c.l.b16 %v1663
        %v1809 = vunpack.c.h.b16 %v1663
        %v1810 = vunpack.c.l.b16 %v1664
        %v1811 = vunpack.c.h.b16 %v1664
        %v1812 = vunpack.c.l.b16 %v1665
        %v1813 = vunpack.c.h.b16 %v1665
        %v1814 = vunpack.c.l.b16 %v1666
        %v1815 = vunpack.c.h.b16 %v1666
        %v1816 = vunpack.c.l.b16 %v1667
        %v1817 = vunpack.c.h.b16 %v1667
        %v1818 = vpack.c.b16 %v1732, %v1730
        %v1819 = vpack.c.b16 %v1733, %v1731
        %v1820 = vpack.c.b16 %v1736, %v1734
        %v1821 = vpack.c.b16 %v1737, %v1735
        %v1822 = vpack.c.b16 %v1740, %v1738
        %v1823 = vpack.c.b16 %v1741, %v1739
        %v1824 = vpack.c.b16 %v1744, %v1742
        %v1825 = vpack.c.b16 %v1745, %v1743
        %v1826 = vpack.c.b16 %v1748, %v1746
        %v1827 = vpack.c.b16 %v1749, %v1747
        %v1828 = vpack.c.b16 %v1752, %v1750
        %v1829 = vpack.c.b16 %v1753, %v1751
        %v1830 = vpack.c.b16 %v1756, %v1754
        %v1831 = vpack.c.b16 %v1757, %v1755
        %v1832 = vpack.c.b16 %v1760, %v1758
        %v1833 = vpack.c.b16 %v1761, %v1759
        %v1834 = vpack.c.b16 %v1764, %v1762
        %v1835 = vpack.c.b16 %v1765, %v1763
        %v1836 = vpack.c.b16 %v1768, %v1766
        %v1837 = vpack.c.b16 %v1769, %v1767
        %v1838 = vpack.c.b16 %v1772, %v1770
        %v1839 = vpack.c.b16 %v1773, %v1771
        %v1840 = vpack.c.b16 %v1776, %v1774
        %v1841 = vpack.c.b16 %v1777, %v1775
        %v1842 = vpack.c.b16 %v1780, %v1778
        %v1843 = vpack.c.b16 %v1781, %v1779
        %v1844 = vpack.c.b16 %v1784, %v1782
        %v1845 = vpack.c.b16 %v1785, %v1783
        %v1846 = vpack.c.b16 %v1788, %v1786
        %v1847 = vpack.c.b16 %v1789, %v1787
        %v1848 = vpack.c.b16 %v1792, %v1790
        %v1849 = vpack.c.b16 %v1793, %v1791
        %v1850 = vpack.c.b16 %v1796, %v1794
        %v1851 = vpack.c.b16 %v1797, %v1795
        %v1852 = vpack.c.b16 %v1800, %v1798
        %v1853 = vpack.c.b16 %v1801, %v1799
        %v1854 = vpack.c.b16 %v1804, %v1802
        %v1855 = vpack.c.b16 %v1805, %v1803
        %v1856 = vpack.c.b16 %v1808, %v1806
        %v1857 = vpack.c.b16 %v1809, %v1807
        %v1858 = vpack.c.b16 %v1812, %v1810
        %v1859 = vpack.c.b16 %v1813, %v1811
        %v1860 = vpack.c.b16 %v1816, %v1814
        %v1861 = vpack.c.b16 %v1817, %v1815
        %v1907 = vsel %vm796, %v1683, 0
        %1909 = vmatprep.subr.bf16.mxu0 %v1819
        %1910 = vmatpush1.bf16.msra.mxu0 %v1818
        %1911 = vmatprep.subr.bf16.mxu0 %v1821
        %1912 = vmatpush1.bf16.msra.mxu0 %v1820
        %1913 = vmatprep.subr.bf16.mxu0 %v1823
        %1914 = vmatpush1.bf16.msra.mxu0 %v1822
        %1915 = vmatprep.subr.bf16.mxu0 %v1825
        %1916 = vmatpush1.bf16.msra.mxu0 %v1824
        %1917 = vmatprep.subr.bf16.mxu0 %v1827
        %1918 = vmatpush1.bf16.msra.mxu0 %v1826
        %1919 = vmatprep.subr.bf16.mxu0 %v1829
        %1920 = vmatpush1.bf16.msra.mxu0 %v1828
        %1921 = vmatprep.subr.bf16.mxu0 %v1831
        %1922 = vmatpush1.bf16.msra.mxu0 %v1830
        %1923 = vmatprep.subr.bf16.mxu0 %v1833
        %1924 = vmatpush1.bf16.msra.mxu0 %v1832
        %1925 = vmatprep.subr.bf16.mxu0 %v1835
        %1926 = vmatpush1.bf16.msra.mxu0 %v1834
        %1927 = vmatprep.subr.bf16.mxu0 %v1837
        %1928 = vmatpush1.bf16.msra.mxu0 %v1836
        %1929 = vmatprep.subr.bf16.mxu0 %v1839
        %1930 = vmatpush1.bf16.msra.mxu0 %v1838
        %1931 = vmatprep.subr.bf16.mxu0 %v1841
        %1932 = vmatpush1.bf16.msra.mxu0 %v1840
        %1933 = vmatprep.subr.bf16.mxu0 %v1843
        %1934 = vmatpush1.bf16.msra.mxu0 %v1842
        %1935 = vmatprep.subr.bf16.mxu0 %v1845
        %1936 = vmatpush1.bf16.msra.mxu0 %v1844
        %1937 = vmatprep.subr.bf16.mxu0 %v1847
        %1938 = vmatpush1.bf16.msra.mxu0 %v1846
        %1939 = vmatprep.subr.bf16.mxu0 %v1849
        %1940 = vmatpush1.bf16.msra.mxu0 %v1848
        %1941 = vmatprep.mubr.bf16.mxu0 %v1680
        %1942 = vmatmul.mubr.bf16.gmra.mrb[0].mxu0 %v1677
        %v1943 = vpop.f32.mrb[0].mxu0
        %v1944 = vadd.f32 0.0, %v1943
        %v1945 = vpop.f32.mrb[0].mxu0
        %v1946 = vadd.f32 0.0, %v1945
        %v1947 = vpop.f32.mrb[0].mxu0
        %v1948 = vadd.f32 0.0, %v1947
        %v1949 = vpop.f32.mrb[0].mxu0
        %v1950 = vadd.f32 0.0, %v1949
        %1951 = vdwg.mxu0
        %1952 = vmatprep.subr.bf16.mxu0 %v1851
        %1953 = vmatpush1.bf16.msra.mxu0 %v1850
        %1954 = vmatprep.subr.bf16.mxu0 %v1853
        %1955 = vmatpush1.bf16.msra.mxu0 %v1852
        %1956 = vmatprep.subr.bf16.mxu0 %v1855
        %1957 = vmatpush1.bf16.msra.mxu0 %v1854
        %1958 = vmatprep.subr.bf16.mxu0 %v1857
        %1959 = vmatpush1.bf16.msra.mxu0 %v1856
        %1960 = vmatprep.subr.bf16.mxu0 %v1859
        %1961 = vmatpush1.bf16.msra.mxu0 %v1858
        %1962 = vmatprep.subr.bf16.mxu0 %v1861
        %1963 = vmatpush1.bf16.msra.mxu0 %v1860
        %1964 = vmatprep.subr.bf16.mxu0 0
        %1965 = vmatpush1.bf16.msra.mxu0 0
        %1966 = vmatprep.subr.bf16.mxu0 0
        %1967 = vmatpush1.bf16.msra.mxu0 0
        %1968 = vmatprep.subr.bf16.mxu0 0
        %1969 = vmatpush1.bf16.msra.mxu0 0
        %1970 = vmatprep.subr.bf16.mxu0 0
        %1971 = vmatpush1.bf16.msra.mxu0 0
        %1972 = vmatprep.subr.bf16.mxu0 0
        %1973 = vmatpush1.bf16.msra.mxu0 0
        %1974 = vmatprep.subr.bf16.mxu0 0
        %1975 = vmatpush1.bf16.msra.mxu0 0
        %1976 = vmatprep.subr.bf16.mxu0 0
        %1977 = vmatpush1.bf16.msra.mxu0 0
        %1978 = vmatprep.subr.bf16.mxu0 0
        %1979 = vmatpush1.bf16.msra.mxu0 0
        %1980 = vmatprep.subr.bf16.mxu0 0
        %1981 = vmatpush1.bf16.msra.mxu0 0
        %1982 = vmatprep.subr.bf16.mxu0 0
        %1983 = vmatpush1.bf16.msra.mxu0 0
        %1984 = vmatprep.mubr.bf16.mxu0 0
        %1985 = vmatmul.mubr.bf16.gmra.mrb[0].mxu0 %v1907
        %v1986 = vpop.f32.mrb[0].mxu0
        %v1987 = vadd.f32 %v1944, %v1986
        %v1988 = vpop.f32.mrb[0].mxu0
        %v1989 = vadd.f32 %v1946, %v1988
        %v1990 = vpop.f32.mrb[0].mxu0
        %v1991 = vadd.f32 %v1948, %v1990
        %v1992 = vpop.f32.mrb[0].mxu0
        %v1993 = vadd.f32 %v1950, %v1992
        %1994 = vdwg.mxu0
        %v1995 = vadd.f32 %v1603, %v1987
        %v1996 = vadd.f32 %v1605, %v1989
        %v1997 = vadd.f32 %v1607, %v1991
        %v1998 = vadd.f32 %v1609, %v1993
        %v1999 = vld [vmem:[#allocation5] sm:$0x3]
        %v2001 = vlaneseq
        %v2002 = vshrl.u32 %v2001, 7
        %v2003 = vsub.s32 0, %v2002
        %v2004 = vrot.slane %v1999, %v2003
        %v2005 = vlaneseq
        %v2006 = vshrl.u32 %v2005, 7
        %v2007 = vsub.s32 1, %v2006
        %v2008 = vrot.slane %v1999, %v2007
        %v2011 = vadd.f32 %v1995, %v2004
        %v2012 = vadd.f32 %v1996, %v2008
        %v2013 = vadd.f32 %v1997, %v2004
        %v2014 = vadd.f32 %v1998, %v2008
        %v2015 = vmax.f32 %v2011, 0.0
        %v2016 = vmax.f32 %v2012, 0.0
        %v2017 = vmax.f32 %v2013, 0.0
        %v2018 = vmax.f32 %v2014, 0.0
        %v2019 = vadd.f32 %v2015, %v738
        %v2020 = vadd.f32 %v2016, %v739
        %v2021 = vadd.f32 %v2017, %v740
        %v2022 = vadd.f32 %v2018, %v741
        %2027 = vrot.lane.b32.xlu0 %v2019, 48
        %v2028 = vpop.permute.xlu0 %2027
        %2029 = vrot.lane.b32.xlu0 %v2020, 48
        %v2030 = vpop.permute.xlu0 %2029
        %2031 = vrot.lane.b32.xlu0 %v2021, 48
        %v2032 = vpop.permute.xlu0 %2031
        %2033 = vrot.lane.b32.xlu0 %v2022, 48
        %v2034 = vpop.permute.xlu0 %2033
        %v2035 = vsel %vm754, %v2028, %v2030
        %v2036 = vsel %vm754, %v2032, %v2034
        %v2041 = vsel %vm754, 0.0, %v2028
        %v2042 = vsel %vm754, 0.0, %v2032
        %v2043 = vsel %vm754, %v2030, 0.0
        %v2044 = vsel %vm754, %v2034, 0.0
        %v2049 = vrot.slane %v2041, 5
        %v2050 = vrot.slane %v2035, 5
        %v2051 = vrot.slane %v2043, 5
        %v2052 = vrot.slane %v2042, 5
        %v2053 = vsel %vm769, %v2049, %v2052
        %v2054 = vrot.slane %v2036, 5
        %v2055 = vsel %vm769, %v2050, %v2054
        %v2056 = vrot.slane %v2044, 5
        %v2057 = vsel %vm769, %v2051, %v2056
        %v2067 = vsel %vm769, 0.0, %v2049
        %v2068 = vsel %vm769, 0.0, %v2050
        %v2069 = vsel %vm769, 0.0, %v2051
        %v2070 = vsel %vm769, %v2052, 0.0
        %v2071 = vsel %vm769, %v2054, 0.0
        %v2072 = vsel %vm769, %v2056, 0.0
        %2073 = vst [vmem:[#allocation2] sm:$0xff] %v2067
        %2074 = vst [vmem:[#allocation2 + $0x8] sm:$0xff] %v2068
        %2075 = vst.msk [vmem:[#allocation2 + $0x10] sm:$0xff] %vm796, %v2069
        %2076 = vst [vmem:[#allocation2 + $0x18] sm:$0xff] %v2053
        %2077 = vst [vmem:[#allocation2 + $0x20] sm:$0xff] %v2055
        %2078 = vst.msk [vmem:[#allocation2 + $0x28] sm:$0xff] %vm796, %v2057
        %2079 = vst [vmem:[#allocation2 + $0x30] sm:$0x3f] %v2070
        %2080 = vst [vmem:[#allocation2 + $0x38] sm:$0x3f] %v2071
        %2081 = vst.msk [vmem:[#allocation2 + $0x40] sm:$0x3f] %vm803, %v2072
        %v2082 = vld [vmem:[#allocation2] sm:$0xfc]
        %v2083 = vld [vmem:[#allocation2 + $0x8] sm:$0xfc]
        %v2084 = vld [vmem:[#allocation2 + $0x10] sm:$0xfc]
        %v2085 = vld [vmem:[#allocation2 + $0x18] sm:$0xff]
        %v2086 = vld [vmem:[#allocation2 + $0x20] sm:$0xff]
        %v2087 = vld [vmem:[#allocation2 + $0x28] sm:$0xff]
        %v2088 = vld [vmem:[#allocation2 + $0x30] sm:$0x3]
        %v2089 = vld [vmem:[#allocation2 + $0x38] sm:$0x3]
        %v2090 = vld [vmem:[#allocation2 + $0x40] sm:$0x3]
        %v2091 = vpack.c.bf16 %v2085, %v2082
        %v2092 = vpack.c.bf16 %v2086, %v2083
        %v2093 = vpack.c.bf16 %v2087, %v2084
        %v2094 = vpack.c.bf16 %v2088, %v2088
        %v2095 = vpack.c.bf16 %v2089, %v2089
        %v2096 = vpack.c.bf16 %v2090, %v2090
        %v2097 = vld [vmem:[#allocation7] sm:$0xff]
        %v2098 = vld [vmem:[#allocation7 + $0x8] sm:$0xff]
        %v2099 = vld [vmem:[#allocation7 + $0x10] sm:$0xff]
        %v2100 = vld [vmem:[#allocation7 + $0x18] sm:$0xff]
        %v2101 = vld [vmem:[#allocation7 + $0x20] sm:$0xff]
        %v2102 = vld [vmem:[#allocation7 + $0x28] sm:$0xff]
        %v2103 = vld [vmem:[#allocation7 + $0x30] sm:$0xff]
        %v2104 = vld [vmem:[#allocation7 + $0x38] sm:$0xff]
        %v2105 = vld [vmem:[#allocation7 + $0x40] sm:$0xff]
        %v2106 = vld [vmem:[#allocation7 + $0x48] sm:$0xff]
        %v2107 = vld [vmem:[#allocation7 + $0x50] sm:$0xff]
        %v2108 = vld [vmem:[#allocation7 + $0x58] sm:$0xff]
        %v2109 = vld [vmem:[#allocation7 + $0x60] sm:$0xff]
        %v2110 = vld [vmem:[#allocation7 + $0x68] sm:$0xff]
        %v2111 = vld [vmem:[#allocation7 + $0x70] sm:$0xff]
        %v2112 = vld [vmem:[#allocation7 + $0x78] sm:$0xff]
        %v2113 = vld [vmem:[#allocation7 + $0x80] sm:$0xff]
        %v2114 = vld [vmem:[#allocation7 + $0x88] sm:$0xff]
        %v2115 = vld [vmem:[#allocation7 + $0x90] sm:$0xff]
        %v2116 = vld [vmem:[#allocation7 + $0x98] sm:$0xff]
        %v2117 = vld [vmem:[#allocation7 + $0xa0] sm:$0xff]
        %v2118 = vld [vmem:[#allocation7 + $0xa8] sm:$0xff]
        %v2119 = vld [vmem:[#allocation7 + $0xb0] sm:$0xff]
        %v2120 = vld [vmem:[#allocation7 + $0xb8] sm:$0xff]
        %v2121 = vld [vmem:[#allocation7 + $0xc0] sm:$0xff]
        %v2122 = vld [vmem:[#allocation7 + $0xc8] sm:$0xff]
        %v2123 = vld [vmem:[#allocation7 + $0xd0] sm:$0xff]
        %v2124 = vld [vmem:[#allocation7 + $0xd8] sm:$0xff]
        %v2125 = vld [vmem:[#allocation7 + $0xe0] sm:$0xff]
        %v2126 = vld [vmem:[#allocation7 + $0xe8] sm:$0xff]
        %v2127 = vld [vmem:[#allocation7 + $0xf0] sm:$0xff]
        %v2128 = vld [vmem:[#allocation7 + $0xf8] sm:$0xff]
        %v2129 = vld [vmem:[#allocation7 + $0x100] sm:$0xff]
        %v2130 = vld [vmem:[#allocation7 + $0x108] sm:$0xff]
        %v2131 = vld [vmem:[#allocation7 + $0x110] sm:$0xff]
        %v2132 = vld [vmem:[#allocation7 + $0x118] sm:$0xff]
        %v2133 = vld [vmem:[#allocation7 + $0x120] sm:$0xff]
        %v2134 = vld [vmem:[#allocation7 + $0x128] sm:$0xff]
        %v2135 = vld [vmem:[#allocation7 + $0x130] sm:$0xff]
        %v2136 = vld [vmem:[#allocation7 + $0x138] sm:$0xff]
        %v2137 = vld [vmem:[#allocation7 + $0x140] sm:$0xff]
        %v2138 = vld [vmem:[#allocation7 + $0x148] sm:$0xff]
        %v2139 = vld [vmem:[#allocation7 + $0x150] sm:$0xff]
        %v2140 = vld [vmem:[#allocation7 + $0x158] sm:$0xff]
        %v2141 = vld [vmem:[#allocation2] sm:$0xf8]
        %v2142 = vld [vmem:[#allocation2 + $0x8] sm:$0xf8]
        %v2143 = vld [vmem:[#allocation2 + $0x10] sm:$0xf8]
        %v2144 = vld [vmem:[#allocation2 + $0x30] sm:$0x7]
        %v2145 = vld [vmem:[#allocation2 + $0x38] sm:$0x7]
        %v2146 = vld [vmem:[#allocation2 + $0x40] sm:$0x7]
        %v2147 = vpack.c.bf16 %v2085, %v2141
        %v2148 = vpack.c.bf16 %v2086, %v2142
        %v2149 = vpack.c.bf16 %v2087, %v2143
        %v2150 = vpack.c.bf16 %v2144, %v2144
        %v2151 = vpack.c.bf16 %v2145, %v2145
        %v2152 = vpack.c.bf16 %v2146, %v2146
        %s2153 = scalar_lea.vmem [#allocation7], 352
        %v2154 = vld [vmem:[%s2153] sm:$0xff]
        %v2155 = vld [vmem:[%s2153 + $0x8] sm:$0xff]
        %v2156 = vld [vmem:[%s2153 + $0x10] sm:$0xff]
        %v2157 = vld [vmem:[%s2153 + $0x18] sm:$0xff]
        %v2158 = vld [vmem:[%s2153 + $0x20] sm:$0xff]
        %v2159 = vld [vmem:[%s2153 + $0x28] sm:$0xff]
        %v2160 = vld [vmem:[%s2153 + $0x30] sm:$0xff]
        %v2161 = vld [vmem:[%s2153 + $0x38] sm:$0xff]
        %v2162 = vld [vmem:[%s2153 + $0x40] sm:$0xff]
        %v2163 = vld [vmem:[%s2153 + $0x48] sm:$0xff]
        %v2164 = vld [vmem:[%s2153 + $0x50] sm:$0xff]
        %v2165 = vld [vmem:[%s2153 + $0x58] sm:$0xff]
        %v2166 = vld [vmem:[%s2153 + $0x60] sm:$0xff]
        %v2167 = vld [vmem:[%s2153 + $0x68] sm:$0xff]
        %v2168 = vld [vmem:[%s2153 + $0x70] sm:$0xff]
        %v2169 = vld [vmem:[%s2153 + $0x78] sm:$0xff]
        %v2170 = vld [vmem:[%s2153 + $0x80] sm:$0xff]
        %v2171 = vld [vmem:[%s2153 + $0x88] sm:$0xff]
        %v2172 = vld [vmem:[%s2153 + $0x90] sm:$0xff]
        %v2173 = vld [vmem:[%s2153 + $0x98] sm:$0xff]
        %v2174 = vld [vmem:[%s2153 + $0xa0] sm:$0xff]
        %v2175 = vld [vmem:[%s2153 + $0xa8] sm:$0xff]
        %v2176 = vld [vmem:[%s2153 + $0xb0] sm:$0xff]
        %v2177 = vld [vmem:[%s2153 + $0xb8] sm:$0xff]
        %v2178 = vld [vmem:[%s2153 + $0xc0] sm:$0xff]
        %v2179 = vld [vmem:[%s2153 + $0xc8] sm:$0xff]
        %v2180 = vld [vmem:[%s2153 + $0xd0] sm:$0xff]
        %v2181 = vld [vmem:[%s2153 + $0xd8] sm:$0xff]
        %v2182 = vld [vmem:[%s2153 + $0xe0] sm:$0xff]
        %v2183 = vld [vmem:[%s2153 + $0xe8] sm:$0xff]
        %v2184 = vld [vmem:[%s2153 + $0xf0] sm:$0xff]
        %v2185 = vld [vmem:[%s2153 + $0xf8] sm:$0xff]
        %v2186 = vld [vmem:[%s2153 + $0x100] sm:$0xff]
        %v2187 = vld [vmem:[%s2153 + $0x108] sm:$0xff]
        %v2188 = vld [vmem:[%s2153 + $0x110] sm:$0xff]
        %v2189 = vld [vmem:[%s2153 + $0x118] sm:$0xff]
        %v2190 = vld [vmem:[%s2153 + $0x120] sm:$0xff]
        %v2191 = vld [vmem:[%s2153 + $0x128] sm:$0xff]
        %v2192 = vld [vmem:[%s2153 + $0x130] sm:$0xff]
        %v2193 = vld [vmem:[%s2153 + $0x138] sm:$0xff]
        %v2194 = vld [vmem:[%s2153 + $0x140] sm:$0xff]
        %v2195 = vld [vmem:[%s2153 + $0x148] sm:$0xff]
        %v2196 = vld [vmem:[%s2153 + $0x150] sm:$0xff]
        %v2197 = vld [vmem:[%s2153 + $0x158] sm:$0xff]
        %v2199 = vshrl.u32 %v2147, 16
        %v2201 = vrot.slane %v2199, 1
        %v2202 = vshll.u32 %v2147, 16
        %v2204 = vrot.slane %v2202, 2
        %v2205 = vor.u32 %v2201, %v2204
        %v2207 = vshrl.u32 %v2150, 16
        %v2209 = vrot.slane %v2207, 1
        %v2210 = vshll.u32 %v2150, 16
        %v2212 = vrot.slane %v2210, 2
        %v2213 = vor.u32 %v2209, %v2212
        %v2214 = vsel %vm921, %v2205, %v2213
        %v2216 = vshrl.u32 %v2148, 16
        %v2218 = vrot.slane %v2216, 1
        %v2219 = vshll.u32 %v2148, 16
        %v2221 = vrot.slane %v2219, 2
        %v2222 = vor.u32 %v2218, %v2221
        %v2224 = vshrl.u32 %v2151, 16
        %v2226 = vrot.slane %v2224, 1
        %v2227 = vshll.u32 %v2151, 16
        %v2229 = vrot.slane %v2227, 2
        %v2230 = vor.u32 %v2226, %v2229
        %v2231 = vsel %vm921, %v2222, %v2230
        %v2233 = vshrl.u32 %v2149, 16
        %v2235 = vrot.slane %v2233, 1
        %v2236 = vshll.u32 %v2149, 16
        %v2238 = vrot.slane %v2236, 2
        %v2239 = vor.u32 %v2235, %v2238
        %v2241 = vshrl.u32 %v2152, 16
        %v2243 = vrot.slane %v2241, 1
        %v2244 = vshll.u32 %v2152, 16
        %v2246 = vrot.slane %v2244, 2
        %v2247 = vor.u32 %v2243, %v2246
        %v2248 = vsel %vm921, %v2239, %v2247
        %v2295 = vunpack.c.l.b16 %v2154
        %v2296 = vunpack.c.h.b16 %v2154
        %v2297 = vunpack.c.l.b16 %v2155
        %v2298 = vunpack.c.h.b16 %v2155
        %v2299 = vunpack.c.l.b16 %v2156
        %v2300 = vunpack.c.h.b16 %v2156
        %v2301 = vunpack.c.l.b16 %v2157
        %v2302 = vunpack.c.h.b16 %v2157
        %v2303 = vunpack.c.l.b16 %v2158
        %v2304 = vunpack.c.h.b16 %v2158
        %v2305 = vunpack.c.l.b16 %v2159
        %v2306 = vunpack.c.h.b16 %v2159
        %v2307 = vunpack.c.l.b16 %v2160
        %v2308 = vunpack.c.h.b16 %v2160
        %v2309 = vunpack.c.l.b16 %v2161
        %v2310 = vunpack.c.h.b16 %v2161
        %v2311 = vunpack.c.l.b16 %v2162
        %v2312 = vunpack.c.h.b16 %v2162
        %v2313 = vunpack.c.l.b16 %v2163
        %v2314 = vunpack.c.h.b16 %v2163
        %v2315 = vunpack.c.l.b16 %v2164
        %v2316 = vunpack.c.h.b16 %v2164
        %v2317 = vunpack.c.l.b16 %v2165
        %v2318 = vunpack.c.h.b16 %v2165
        %v2319 = vunpack.c.l.b16 %v2166
        %v2320 = vunpack.c.h.b16 %v2166
        %v2321 = vunpack.c.l.b16 %v2167
        %v2322 = vunpack.c.h.b16 %v2167
        %v2323 = vunpack.c.l.b16 %v2168
        %v2324 = vunpack.c.h.b16 %v2168
        %v2325 = vunpack.c.l.b16 %v2169
        %v2326 = vunpack.c.h.b16 %v2169
        %v2327 = vunpack.c.l.b16 %v2170
        %v2328 = vunpack.c.h.b16 %v2170
        %v2329 = vunpack.c.l.b16 %v2171
        %v2330 = vunpack.c.h.b16 %v2171
        %v2331 = vunpack.c.l.b16 %v2172
        %v2332 = vunpack.c.h.b16 %v2172
        %v2333 = vunpack.c.l.b16 %v2173
        %v2334 = vunpack.c.h.b16 %v2173
        %v2335 = vunpack.c.l.b16 %v2174
        %v2336 = vunpack.c.h.b16 %v2174
        %v2337 = vunpack.c.l.b16 %v2175
        %v2338 = vunpack.c.h.b16 %v2175
        %v2339 = vunpack.c.l.b16 %v2176
        %v2340 = vunpack.c.h.b16 %v2176
        %v2341 = vunpack.c.l.b16 %v2177
        %v2342 = vunpack.c.h.b16 %v2177
        %v2343 = vunpack.c.l.b16 %v2178
        %v2344 = vunpack.c.h.b16 %v2178
        %v2345 = vunpack.c.l.b16 %v2179
        %v2346 = vunpack.c.h.b16 %v2179
        %v2347 = vunpack.c.l.b16 %v2180
        %v2348 = vunpack.c.h.b16 %v2180
        %v2349 = vunpack.c.l.b16 %v2181
        %v2350 = vunpack.c.h.b16 %v2181
        %v2351 = vunpack.c.l.b16 %v2182
        %v2352 = vunpack.c.h.b16 %v2182
        %v2353 = vunpack.c.l.b16 %v2183
        %v2354 = vunpack.c.h.b16 %v2183
        %v2355 = vunpack.c.l.b16 %v2184
        %v2356 = vunpack.c.h.b16 %v2184
        %v2357 = vunpack.c.l.b16 %v2185
        %v2358 = vunpack.c.h.b16 %v2185
        %v2359 = vunpack.c.l.b16 %v2186
        %v2360 = vunpack.c.h.b16 %v2186
        %v2361 = vunpack.c.l.b16 %v2187
        %v2362 = vunpack.c.h.b16 %v2187
        %v2363 = vunpack.c.l.b16 %v2188
        %v2364 = vunpack.c.h.b16 %v2188
        %v2365 = vunpack.c.l.b16 %v2189
        %v2366 = vunpack.c.h.b16 %v2189
        %v2367 = vunpack.c.l.b16 %v2190
        %v2368 = vunpack.c.h.b16 %v2190
        %v2369 = vunpack.c.l.b16 %v2191
        %v2370 = vunpack.c.h.b16 %v2191
        %v2371 = vunpack.c.l.b16 %v2192
        %v2372 = vunpack.c.h.b16 %v2192
        %v2373 = vunpack.c.l.b16 %v2193
        %v2374 = vunpack.c.h.b16 %v2193
        %v2375 = vunpack.c.l.b16 %v2194
        %v2376 = vunpack.c.h.b16 %v2194
        %v2377 = vunpack.c.l.b16 %v2195
        %v2378 = vunpack.c.h.b16 %v2195
        %v2379 = vunpack.c.l.b16 %v2196
        %v2380 = vunpack.c.h.b16 %v2196
        %v2381 = vunpack.c.l.b16 %v2197
        %v2382 = vunpack.c.h.b16 %v2197
        %v2383 = vpack.c.b16 %v2297, %v2295
        %v2384 = vpack.c.b16 %v2298, %v2296
        %v2385 = vpack.c.b16 %v2301, %v2299
        %v2386 = vpack.c.b16 %v2302, %v2300
        %v2387 = vpack.c.b16 %v2305, %v2303
        %v2388 = vpack.c.b16 %v2306, %v2304
        %v2389 = vpack.c.b16 %v2309, %v2307
        %v2390 = vpack.c.b16 %v2310, %v2308
        %v2391 = vpack.c.b16 %v2313, %v2311
        %v2392 = vpack.c.b16 %v2314, %v2312
        %v2393 = vpack.c.b16 %v2317, %v2315
        %v2394 = vpack.c.b16 %v2318, %v2316
        %v2395 = vpack.c.b16 %v2321, %v2319
        %v2396 = vpack.c.b16 %v2322, %v2320
        %v2397 = vpack.c.b16 %v2325, %v2323
        %v2398 = vpack.c.b16 %v2326, %v2324
        %v2399 = vpack.c.b16 %v2329, %v2327
        %v2400 = vpack.c.b16 %v2330, %v2328
        %v2401 = vpack.c.b16 %v2333, %v2331
        %v2402 = vpack.c.b16 %v2334, %v2332
        %v2403 = vpack.c.b16 %v2337, %v2335
        %v2404 = vpack.c.b16 %v2338, %v2336
        %v2405 = vpack.c.b16 %v2341, %v2339
        %v2406 = vpack.c.b16 %v2342, %v2340
        %v2407 = vpack.c.b16 %v2345, %v2343
        %v2408 = vpack.c.b16 %v2346, %v2344
        %v2409 = vpack.c.b16 %v2349, %v2347
        %v2410 = vpack.c.b16 %v2350, %v2348
        %v2411 = vpack.c.b16 %v2353, %v2351
        %v2412 = vpack.c.b16 %v2354, %v2352
        %v2413 = vpack.c.b16 %v2357, %v2355
        %v2414 = vpack.c.b16 %v2358, %v2356
        %v2415 = vpack.c.b16 %v2361, %v2359
        %v2416 = vpack.c.b16 %v2362, %v2360
        %v2417 = vpack.c.b16 %v2365, %v2363
        %v2418 = vpack.c.b16 %v2366, %v2364
        %v2419 = vpack.c.b16 %v2369, %v2367
        %v2420 = vpack.c.b16 %v2370, %v2368
        %v2421 = vpack.c.b16 %v2373, %v2371
        %v2422 = vpack.c.b16 %v2374, %v2372
        %v2423 = vpack.c.b16 %v2377, %v2375
        %v2424 = vpack.c.b16 %v2378, %v2376
        %v2425 = vpack.c.b16 %v2381, %v2379
        %v2426 = vpack.c.b16 %v2382, %v2380
        %v2472 = vsel %vm796, %v2248, 0
        %2474 = vmatprep.subr.bf16.mxu0 %v2384
        %2475 = vmatpush1.bf16.msra.mxu0 %v2383
        %2476 = vmatprep.subr.bf16.mxu0 %v2386
        %2477 = vmatpush1.bf16.msra.mxu0 %v2385
        %2478 = vmatprep.subr.bf16.mxu0 %v2388
        %2479 = vmatpush1.bf16.msra.mxu0 %v2387
        %2480 = vmatprep.subr.bf16.mxu0 %v2390
        %2481 = vmatpush1.bf16.msra.mxu0 %v2389
        %2482 = vmatprep.subr.bf16.mxu0 %v2392
        %2483 = vmatpush1.bf16.msra.mxu0 %v2391
        %2484 = vmatprep.subr.bf16.mxu0 %v2394
        %2485 = vmatpush1.bf16.msra.mxu0 %v2393
        %2486 = vmatprep.subr.bf16.mxu0 %v2396
        %2487 = vmatpush1.bf16.msra.mxu0 %v2395
        %2488 = vmatprep.subr.bf16.mxu0 %v2398
        %2489 = vmatpush1.bf16.msra.mxu0 %v2397
        %2490 = vmatprep.subr.bf16.mxu0 %v2400
        %2491 = vmatpush1.bf16.msra.mxu0 %v2399
        %2492 = vmatprep.subr.bf16.mxu0 %v2402
        %2493 = vmatpush1.bf16.msra.mxu0 %v2401
        %2494 = vmatprep.subr.bf16.mxu0 %v2404
        %2495 = vmatpush1.bf16.msra.mxu0 %v2403
        %2496 = vmatprep.subr.bf16.mxu0 %v2406
        %2497 = vmatpush1.bf16.msra.mxu0 %v2405
        %2498 = vmatprep.subr.bf16.mxu0 %v2408
        %2499 = vmatpush1.bf16.msra.mxu0 %v2407
        %2500 = vmatprep.subr.bf16.mxu0 %v2410
        %2501 = vmatpush1.bf16.msra.mxu0 %v2409
        %2502 = vmatprep.subr.bf16.mxu0 %v2412
        %2503 = vmatpush1.bf16.msra.mxu0 %v2411
        %2504 = vmatprep.subr.bf16.mxu0 %v2414
        %2505 = vmatpush1.bf16.msra.mxu0 %v2413
        %2506 = vmatprep.mubr.bf16.mxu0 %v2231
        %2507 = vmatmul.mubr.bf16.gmra.mrb[0].mxu0 %v2214
        %v2508 = vpop.f32.mrb[0].mxu0
        %v2509 = vadd.f32 0.0, %v2508
        %v2510 = vpop.f32.mrb[0].mxu0
        %v2511 = vadd.f32 0.0, %v2510
        %v2512 = vpop.f32.mrb[0].mxu0
        %v2513 = vadd.f32 0.0, %v2512
        %v2514 = vpop.f32.mrb[0].mxu0
        %v2515 = vadd.f32 0.0, %v2514
        %2516 = vdwg.mxu0
        %2517 = vmatprep.subr.bf16.mxu0 %v2416
        %2518 = vmatpush1.bf16.msra.mxu0 %v2415
        %2519 = vmatprep.subr.bf16.mxu0 %v2418
        %2520 = vmatpush1.bf16.msra.mxu0 %v2417
        %2521 = vmatprep.subr.bf16.mxu0 %v2420
        %2522 = vmatpush1.bf16.msra.mxu0 %v2419
        %2523 = vmatprep.subr.bf16.mxu0 %v2422
        %2524 = vmatpush1.bf16.msra.mxu0 %v2421
        %2525 = vmatprep.subr.bf16.mxu0 %v2424
        %2526 = vmatpush1.bf16.msra.mxu0 %v2423
        %2527 = vmatprep.subr.bf16.mxu0 %v2426
        %2528 = vmatpush1.bf16.msra.mxu0 %v2425
        %2529 = vmatprep.subr.bf16.mxu0 0
        %2530 = vmatpush1.bf16.msra.mxu0 0
        %2531 = vmatprep.subr.bf16.mxu0 0
        %2532 = vmatpush1.bf16.msra.mxu0 0
        %2533 = vmatprep.subr.bf16.mxu0 0
        %2534 = vmatpush1.bf16.msra.mxu0 0
        %2535 = vmatprep.subr.bf16.mxu0 0
        %2536 = vmatpush1.bf16.msra.mxu0 0
        %2537 = vmatprep.subr.bf16.mxu0 0
        %2538 = vmatpush1.bf16.msra.mxu0 0
        %2539 = vmatprep.subr.bf16.mxu0 0
        %2540 = vmatpush1.bf16.msra.mxu0 0
        %2541 = vmatprep.subr.bf16.mxu0 0
        %2542 = vmatpush1.bf16.msra.mxu0 0
        %2543 = vmatprep.subr.bf16.mxu0 0
        %2544 = vmatpush1.bf16.msra.mxu0 0
        %2545 = vmatprep.subr.bf16.mxu0 0
        %2546 = vmatpush1.bf16.msra.mxu0 0
        %2547 = vmatprep.subr.bf16.mxu0 0
        %2548 = vmatpush1.bf16.msra.mxu0 0
        %2549 = vmatprep.mubr.bf16.mxu0 0
        %2550 = vmatmul.mubr.bf16.gmra.mrb[0].mxu0 %v2472
        %v2551 = vpop.f32.mrb[0].mxu0
        %v2552 = vadd.f32 %v2509, %v2551
        %v2553 = vpop.f32.mrb[0].mxu0
        %v2554 = vadd.f32 %v2511, %v2553
        %v2555 = vpop.f32.mrb[0].mxu0
        %v2556 = vadd.f32 %v2513, %v2555
        %v2557 = vpop.f32.mrb[0].mxu0
        %v2558 = vadd.f32 %v2515, %v2557
        %2559 = vdwg.mxu0
        %v2566 = vrot.slane %v2091, 1
        %v2567 = vrot.slane %v2094, 1
        %v2568 = vsel %vm1290, %v2566, %v2567
        %v2569 = vrot.slane %v2092, 1
        %v2570 = vrot.slane %v2095, 1
        %v2571 = vsel %vm1290, %v2569, %v2570
        %v2572 = vrot.slane %v2093, 1
        %v2573 = vrot.slane %v2096, 1
        %v2574 = vsel %vm1290, %v2572, %v2573
        %v2621 = vunpack.c.l.b16 %v2097
        %v2622 = vunpack.c.h.b16 %v2097
        %v2623 = vunpack.c.l.b16 %v2098
        %v2624 = vunpack.c.h.b16 %v2098
        %v2625 = vunpack.c.l.b16 %v2099
        %v2626 = vunpack.c.h.b16 %v2099
        %v2627 = vunpack.c.l.b16 %v2100
        %v2628 = vunpack.c.h.b16 %v2100
        %v2629 = vunpack.c.l.b16 %v2101
        %v2630 = vunpack.c.h.b16 %v2101
        %v2631 = vunpack.c.l.b16 %v2102
        %v2632 = vunpack.c.h.b16 %v2102
        %v2633 = vunpack.c.l.b16 %v2103
        %v2634 = vunpack.c.h.b16 %v2103
        %v2635 = vunpack.c.l.b16 %v2104
        %v2636 = vunpack.c.h.b16 %v2104
        %v2637 = vunpack.c.l.b16 %v2105
        %v2638 = vunpack.c.h.b16 %v2105
        %v2639 = vunpack.c.l.b16 %v2106
        %v2640 = vunpack.c.h.b16 %v2106
        %v2641 = vunpack.c.l.b16 %v2107
        %v2642 = vunpack.c.h.b16 %v2107
        %v2643 = vunpack.c.l.b16 %v2108
        %v2644 = vunpack.c.h.b16 %v2108
        %v2645 = vunpack.c.l.b16 %v2109
        %v2646 = vunpack.c.h.b16 %v2109
        %v2647 = vunpack.c.l.b16 %v2110
        %v2648 = vunpack.c.h.b16 %v2110
        %v2649 = vunpack.c.l.b16 %v2111
        %v2650 = vunpack.c.h.b16 %v2111
        %v2651 = vunpack.c.l.b16 %v2112
        %v2652 = vunpack.c.h.b16 %v2112
        %v2653 = vunpack.c.l.b16 %v2113
        %v2654 = vunpack.c.h.b16 %v2113
        %v2655 = vunpack.c.l.b16 %v2114
        %v2656 = vunpack.c.h.b16 %v2114
        %v2657 = vunpack.c.l.b16 %v2115
        %v2658 = vunpack.c.h.b16 %v2115
        %v2659 = vunpack.c.l.b16 %v2116
        %v2660 = vunpack.c.h.b16 %v2116
        %v2661 = vunpack.c.l.b16 %v2117
        %v2662 = vunpack.c.h.b16 %v2117
        %v2663 = vunpack.c.l.b16 %v2118
        %v2664 = vunpack.c.h.b16 %v2118
        %v2665 = vunpack.c.l.b16 %v2119
        %v2666 = vunpack.c.h.b16 %v2119
        %v2667 = vunpack.c.l.b16 %v2120
        %v2668 = vunpack.c.h.b16 %v2120
        %v2669 = vunpack.c.l.b16 %v2121
        %v2670 = vunpack.c.h.b16 %v2121
        %v2671 = vunpack.c.l.b16 %v2122
        %v2672 = vunpack.c.h.b16 %v2122
        %v2673 = vunpack.c.l.b16 %v2123
        %v2674 = vunpack.c.h.b16 %v2123
        %v2675 = vunpack.c.l.b16 %v2124
        %v2676 = vunpack.c.h.b16 %v2124
        %v2677 = vunpack.c.l.b16 %v2125
        %v2678 = vunpack.c.h.b16 %v2125
        %v2679 = vunpack.c.l.b16 %v2126
        %v2680 = vunpack.c.h.b16 %v2126
        %v2681 = vunpack.c.l.b16 %v2127
        %v2682 = vunpack.c.h.b16 %v2127
        %v2683 = vunpack.c.l.b16 %v2128
        %v2684 = vunpack.c.h.b16 %v2128
        %v2685 = vunpack.c.l.b16 %v2129
        %v2686 = vunpack.c.h.b16 %v2129
        %v2687 = vunpack.c.l.b16 %v2130
        %v2688 = vunpack.c.h.b16 %v2130
        %v2689 = vunpack.c.l.b16 %v2131
        %v2690 = vunpack.c.h.b16 %v2131
        %v2691 = vunpack.c.l.b16 %v2132
        %v2692 = vunpack.c.h.b16 %v2132
        %v2693 = vunpack.c.l.b16 %v2133
        %v2694 = vunpack.c.h.b16 %v2133
        %v2695 = vunpack.c.l.b16 %v2134
        %v2696 = vunpack.c.h.b16 %v2134
        %v2697 = vunpack.c.l.b16 %v2135
        %v2698 = vunpack.c.h.b16 %v2135
        %v2699 = vunpack.c.l.b16 %v2136
        %v2700 = vunpack.c.h.b16 %v2136
        %v2701 = vunpack.c.l.b16 %v2137
        %v2702 = vunpack.c.h.b16 %v2137
        %v2703 = vunpack.c.l.b16 %v2138
        %v2704 = vunpack.c.h.b16 %v2138
        %v2705 = vunpack.c.l.b16 %v2139
        %v2706 = vunpack.c.h.b16 %v2139
        %v2707 = vunpack.c.l.b16 %v2140
        %v2708 = vunpack.c.h.b16 %v2140
        %v2709 = vpack.c.b16 %v2623, %v2621
        %v2710 = vpack.c.b16 %v2624, %v2622
        %v2711 = vpack.c.b16 %v2627, %v2625
        %v2712 = vpack.c.b16 %v2628, %v2626
        %v2713 = vpack.c.b16 %v2631, %v2629
        %v2714 = vpack.c.b16 %v2632, %v2630
        %v2715 = vpack.c.b16 %v2635, %v2633
        %v2716 = vpack.c.b16 %v2636, %v2634
        %v2717 = vpack.c.b16 %v2639, %v2637
        %v2718 = vpack.c.b16 %v2640, %v2638
        %v2719 = vpack.c.b16 %v2643, %v2641
        %v2720 = vpack.c.b16 %v2644, %v2642
        %v2721 = vpack.c.b16 %v2647, %v2645
        %v2722 = vpack.c.b16 %v2648, %v2646
        %v2723 = vpack.c.b16 %v2651, %v2649
        %v2724 = vpack.c.b16 %v2652, %v2650
        %v2725 = vpack.c.b16 %v2655, %v2653
        %v2726 = vpack.c.b16 %v2656, %v2654
        %v2727 = vpack.c.b16 %v2659, %v2657
        %v2728 = vpack.c.b16 %v2660, %v2658
        %v2729 = vpack.c.b16 %v2663, %v2661
        %v2730 = vpack.c.b16 %v2664, %v2662
        %v2731 = vpack.c.b16 %v2667, %v2665
        %v2732 = vpack.c.b16 %v2668, %v2666
        %v2733 = vpack.c.b16 %v2671, %v2669
        %v2734 = vpack.c.b16 %v2672, %v2670
        %v2735 = vpack.c.b16 %v2675, %v2673
        %v2736 = vpack.c.b16 %v2676, %v2674
        %v2737 = vpack.c.b16 %v2679, %v2677
        %v2738 = vpack.c.b16 %v2680, %v2678
        %v2739 = vpack.c.b16 %v2683, %v2681
        %v2740 = vpack.c.b16 %v2684, %v2682
        %v2741 = vpack.c.b16 %v2687, %v2685
        %v2742 = vpack.c.b16 %v2688, %v2686
        %v2743 = vpack.c.b16 %v2691, %v2689
        %v2744 = vpack.c.b16 %v2692, %v2690
        %v2745 = vpack.c.b16 %v2695, %v2693
        %v2746 = vpack.c.b16 %v2696, %v2694
        %v2747 = vpack.c.b16 %v2699, %v2697
        %v2748 = vpack.c.b16 %v2700, %v2698
        %v2749 = vpack.c.b16 %v2703, %v2701
        %v2750 = vpack.c.b16 %v2704, %v2702
        %v2751 = vpack.c.b16 %v2707, %v2705
        %v2752 = vpack.c.b16 %v2708, %v2706
        %v2798 = vsel %vm796, %v2574, 0
        %2800 = vmatprep.subr.bf16.mxu0 %v2710
        %2801 = vmatpush1.bf16.msra.mxu0 %v2709
        %2802 = vmatprep.subr.bf16.mxu0 %v2712
        %2803 = vmatpush1.bf16.msra.mxu0 %v2711
        %2804 = vmatprep.subr.bf16.mxu0 %v2714
        %2805 = vmatpush1.bf16.msra.mxu0 %v2713
        %2806 = vmatprep.subr.bf16.mxu0 %v2716
        %2807 = vmatpush1.bf16.msra.mxu0 %v2715
        %2808 = vmatprep.subr.bf16.mxu0 %v2718
        %2809 = vmatpush1.bf16.msra.mxu0 %v2717
        %2810 = vmatprep.subr.bf16.mxu0 %v2720
        %2811 = vmatpush1.bf16.msra.mxu0 %v2719
        %2812 = vmatprep.subr.bf16.mxu0 %v2722
        %2813 = vmatpush1.bf16.msra.mxu0 %v2721
        %2814 = vmatprep.subr.bf16.mxu0 %v2724
        %2815 = vmatpush1.bf16.msra.mxu0 %v2723
        %2816 = vmatprep.subr.bf16.mxu0 %v2726
        %2817 = vmatpush1.bf16.msra.mxu0 %v2725
        %2818 = vmatprep.subr.bf16.mxu0 %v2728
        %2819 = vmatpush1.bf16.msra.mxu0 %v2727
        %2820 = vmatprep.subr.bf16.mxu0 %v2730
        %2821 = vmatpush1.bf16.msra.mxu0 %v2729
        %2822 = vmatprep.subr.bf16.mxu0 %v2732
        %2823 = vmatpush1.bf16.msra.mxu0 %v2731
        %2824 = vmatprep.subr.bf16.mxu0 %v2734
        %2825 = vmatpush1.bf16.msra.mxu0 %v2733
        %2826 = vmatprep.subr.bf16.mxu0 %v2736
        %2827 = vmatpush1.bf16.msra.mxu0 %v2735
        %2828 = vmatprep.subr.bf16.mxu0 %v2738
        %2829 = vmatpush1.bf16.msra.mxu0 %v2737
        %2830 = vmatprep.subr.bf16.mxu0 %v2740
        %2831 = vmatpush1.bf16.msra.mxu0 %v2739
        %2832 = vmatprep.mubr.bf16.mxu0 %v2571
        %2833 = vmatmul.mubr.bf16.gmra.mrb[0].mxu0 %v2568
        %v2834 = vpop.f32.mrb[0].mxu0
        %v2835 = vadd.f32 %v2552, %v2834
        %v2836 = vpop.f32.mrb[0].mxu0
        %v2837 = vadd.f32 %v2554, %v2836
        %v2838 = vpop.f32.mrb[0].mxu0
        %v2839 = vadd.f32 %v2556, %v2838
        %v2840 = vpop.f32.mrb[0].mxu0
        %v2841 = vadd.f32 %v2558, %v2840
        %2842 = vdwg.mxu0
        %2843 = vmatprep.subr.bf16.mxu0 %v2742
        %2844 = vmatpush1.bf16.msra.mxu0 %v2741
        %2845 = vmatprep.subr.bf16.mxu0 %v2744
        %2846 = vmatpush1.bf16.msra.mxu0 %v2743
        %2847 = vmatprep.subr.bf16.mxu0 %v2746
        %2848 = vmatpush1.bf16.msra.mxu0 %v2745
        %2849 = vmatprep.subr.bf16.mxu0 %v2748
        %2850 = vmatpush1.bf16.msra.mxu0 %v2747
        %2851 = vmatprep.subr.bf16.mxu0 %v2750
        %2852 = vmatpush1.bf16.msra.mxu0 %v2749
        %2853 = vmatprep.subr.bf16.mxu0 %v2752
        %2854 = vmatpush1.bf16.msra.mxu0 %v2751
        %2855 = vmatprep.subr.bf16.mxu0 0
        %2856 = vmatpush1.bf16.msra.mxu0 0
        %2857 = vmatprep.subr.bf16.mxu0 0
        %2858 = vmatpush1.bf16.msra.mxu0 0
        %2859 = vmatprep.subr.bf16.mxu0 0
        %2860 = vmatpush1.bf16.msra.mxu0 0
        %2861 = vmatprep.subr.bf16.mxu0 0
        %2862 = vmatpush1.bf16.msra.mxu0 0
        %2863 = vmatprep.subr.bf16.mxu0 0
        %2864 = vmatpush1.bf16.msra.mxu0 0
        %2865 = vmatprep.subr.bf16.mxu0 0
        %2866 = vmatpush1.bf16.msra.mxu0 0
        %2867 = vmatprep.subr.bf16.mxu0 0
        %2868 = vmatpush1.bf16.msra.mxu0 0
        %2869 = vmatprep.subr.bf16.mxu0 0
        %2870 = vmatpush1.bf16.msra.mxu0 0
        %2871 = vmatprep.subr.bf16.mxu0 0
        %2872 = vmatpush1.bf16.msra.mxu0 0
        %2873 = vmatprep.subr.bf16.mxu0 0
        %2874 = vmatpush1.bf16.msra.mxu0 0
        %2875 = vmatprep.mubr.bf16.mxu0 0
        %2876 = vmatmul.mubr.bf16.gmra.mrb[0].mxu0 %v2798
        %v2877 = vpop.f32.mrb[0].mxu0
        %v2878 = vadd.f32 %v2835, %v2877
        %v2879 = vpop.f32.mrb[0].mxu0
        %v2880 = vadd.f32 %v2837, %v2879
        %v2881 = vpop.f32.mrb[0].mxu0
        %v2882 = vadd.f32 %v2839, %v2881
        %v2883 = vpop.f32.mrb[0].mxu0
        %v2884 = vadd.f32 %v2841, %v2883
        %2885 = vdwg.mxu0
        %v2886 = vld [vmem:[#allocation2] sm:$0xf0]
        %v2887 = vld [vmem:[#allocation2 + $0x8] sm:$0xf0]
        %v2888 = vld [vmem:[#allocation2 + $0x10] sm:$0xf0]
        %v2889 = vld [vmem:[#allocation2 + $0x30] sm:$0xf]
        %v2890 = vld [vmem:[#allocation2 + $0x38] sm:$0xf]
        %v2891 = vld [vmem:[#allocation2 + $0x40] sm:$0xf]
        %v2892 = vpack.c.bf16 %v2085, %v2886
        %v2893 = vpack.c.bf16 %v2086, %v2887
        %v2894 = vpack.c.bf16 %v2087, %v2888
        %v2895 = vpack.c.bf16 %v2889, %v2889
        %v2896 = vpack.c.bf16 %v2890, %v2890
        %v2897 = vpack.c.bf16 %v2891, %v2891
        %s2898 = scalar_lea.vmem [#allocation7], 704
        %v2899 = vld [vmem:[%s2898] sm:$0xff]
        %v2900 = vld [vmem:[%s2898 + $0x8] sm:$0xff]
        %v2901 = vld [vmem:[%s2898 + $0x10] sm:$0xff]
        %v2902 = vld [vmem:[%s2898 + $0x18] sm:$0xff]
        %v2903 = vld [vmem:[%s2898 + $0x20] sm:$0xff]
        %v2904 = vld [vmem:[%s2898 + $0x28] sm:$0xff]
        %v2905 = vld [vmem:[%s2898 + $0x30] sm:$0xff]
        %v2906 = vld [vmem:[%s2898 + $0x38] sm:$0xff]
        %v2907 = vld [vmem:[%s2898 + $0x40] sm:$0xff]
        %v2908 = vld [vmem:[%s2898 + $0x48] sm:$0xff]
        %v2909 = vld [vmem:[%s2898 + $0x50] sm:$0xff]
        %v2910 = vld [vmem:[%s2898 + $0x58] sm:$0xff]
        %v2911 = vld [vmem:[%s2898 + $0x60] sm:$0xff]
        %v2912 = vld [vmem:[%s2898 + $0x68] sm:$0xff]
        %v2913 = vld [vmem:[%s2898 + $0x70] sm:$0xff]
        %v2914 = vld [vmem:[%s2898 + $0x78] sm:$0xff]
        %v2915 = vld [vmem:[%s2898 + $0x80] sm:$0xff]
        %v2916 = vld [vmem:[%s2898 + $0x88] sm:$0xff]
        %v2917 = vld [vmem:[%s2898 + $0x90] sm:$0xff]
        %v2918 = vld [vmem:[%s2898 + $0x98] sm:$0xff]
        %v2919 = vld [vmem:[%s2898 + $0xa0] sm:$0xff]
        %v2920 = vld [vmem:[%s2898 + $0xa8] sm:$0xff]
        %v2921 = vld [vmem:[%s2898 + $0xb0] sm:$0xff]
        %v2922 = vld [vmem:[%s2898 + $0xb8] sm:$0xff]
        %v2923 = vld [vmem:[%s2898 + $0xc0] sm:$0xff]
        %v2924 = vld [vmem:[%s2898 + $0xc8] sm:$0xff]
        %v2925 = vld [vmem:[%s2898 + $0xd0] sm:$0xff]
        %v2926 = vld [vmem:[%s2898 + $0xd8] sm:$0xff]
        %v2927 = vld [vmem:[%s2898 + $0xe0] sm:$0xff]
        %v2928 = vld [vmem:[%s2898 + $0xe8] sm:$0xff]
        %v2929 = vld [vmem:[%s2898 + $0xf0] sm:$0xff]
        %v2930 = vld [vmem:[%s2898 + $0xf8] sm:$0xff]
        %v2931 = vld [vmem:[%s2898 + $0x100] sm:$0xff]
        %v2932 = vld [vmem:[%s2898 + $0x108] sm:$0xff]
        %v2933 = vld [vmem:[%s2898 + $0x110] sm:$0xff]
        %v2934 = vld [vmem:[%s2898 + $0x118] sm:$0xff]
        %v2935 = vld [vmem:[%s2898 + $0x120] sm:$0xff]
        %v2936 = vld [vmem:[%s2898 + $0x128] sm:$0xff]
        %v2937 = vld [vmem:[%s2898 + $0x130] sm:$0xff]
        %v2938 = vld [vmem:[%s2898 + $0x138] sm:$0xff]
        %v2939 = vld [vmem:[%s2898 + $0x140] sm:$0xff]
        %v2940 = vld [vmem:[%s2898 + $0x148] sm:$0xff]
        %v2941 = vld [vmem:[%s2898 + $0x150] sm:$0xff]
        %v2942 = vld [vmem:[%s2898 + $0x158] sm:$0xff]
        %v2949 = vrot.slane %v2892, 2
        %v2950 = vrot.slane %v2895, 2
        %v2951 = vsel %vm1674, %v2949, %v2950
        %v2952 = vrot.slane %v2893, 2
        %v2953 = vrot.slane %v2896, 2
        %v2954 = vsel %vm1674, %v2952, %v2953
        %v2955 = vrot.slane %v2894, 2
        %v2956 = vrot.slane %v2897, 2
        %v2957 = vsel %vm1674, %v2955, %v2956
        %v3004 = vunpack.c.l.b16 %v2899
        %v3005 = vunpack.c.h.b16 %v2899
        %v3006 = vunpack.c.l.b16 %v2900
        %v3007 = vunpack.c.h.b16 %v2900
        %v3008 = vunpack.c.l.b16 %v2901
        %v3009 = vunpack.c.h.b16 %v2901
        %v3010 = vunpack.c.l.b16 %v2902
        %v3011 = vunpack.c.h.b16 %v2902
        %v3012 = vunpack.c.l.b16 %v2903
        %v3013 = vunpack.c.h.b16 %v2903
        %v3014 = vunpack.c.l.b16 %v2904
        %v3015 = vunpack.c.h.b16 %v2904
        %v3016 = vunpack.c.l.b16 %v2905
        %v3017 = vunpack.c.h.b16 %v2905
        %v3018 = vunpack.c.l.b16 %v2906
        %v3019 = vunpack.c.h.b16 %v2906
        %v3020 = vunpack.c.l.b16 %v2907
        %v3021 = vunpack.c.h.b16 %v2907
        %v3022 = vunpack.c.l.b16 %v2908
        %v3023 = vunpack.c.h.b16 %v2908
        %v3024 = vunpack.c.l.b16 %v2909
        %v3025 = vunpack.c.h.b16 %v2909
        %v3026 = vunpack.c.l.b16 %v2910
        %v3027 = vunpack.c.h.b16 %v2910
        %v3028 = vunpack.c.l.b16 %v2911
        %v3029 = vunpack.c.h.b16 %v2911
        %v3030 = vunpack.c.l.b16 %v2912
        %v3031 = vunpack.c.h.b16 %v2912
        %v3032 = vunpack.c.l.b16 %v2913
        %v3033 = vunpack.c.h.b16 %v2913
        %v3034 = vunpack.c.l.b16 %v2914
        %v3035 = vunpack.c.h.b16 %v2914
        %v3036 = vunpack.c.l.b16 %v2915
        %v3037 = vunpack.c.h.b16 %v2915
        %v3038 = vunpack.c.l.b16 %v2916
        %v3039 = vunpack.c.h.b16 %v2916
        %v3040 = vunpack.c.l.b16 %v2917
        %v3041 = vunpack.c.h.b16 %v2917
        %v3042 = vunpack.c.l.b16 %v2918
        %v3043 = vunpack.c.h.b16 %v2918
        %v3044 = vunpack.c.l.b16 %v2919
        %v3045 = vunpack.c.h.b16 %v2919
        %v3046 = vunpack.c.l.b16 %v2920
        %v3047 = vunpack.c.h.b16 %v2920
        %v3048 = vunpack.c.l.b16 %v2921
        %v3049 = vunpack.c.h.b16 %v2921
        %v3050 = vunpack.c.l.b16 %v2922
        %v3051 = vunpack.c.h.b16 %v2922
        %v3052 = vunpack.c.l.b16 %v2923
        %v3053 = vunpack.c.h.b16 %v2923
        %v3054 = vunpack.c.l.b16 %v2924
        %v3055 = vunpack.c.h.b16 %v2924
        %v3056 = vunpack.c.l.b16 %v2925
        %v3057 = vunpack.c.h.b16 %v2925
        %v3058 = vunpack.c.l.b16 %v2926
        %v3059 = vunpack.c.h.b16 %v2926
        %v3060 = vunpack.c.l.b16 %v2927
        %v3061 = vunpack.c.h.b16 %v2927
        %v3062 = vunpack.c.l.b16 %v2928
        %v3063 = vunpack.c.h.b16 %v2928
        %v3064 = vunpack.c.l.b16 %v2929
        %v3065 = vunpack.c.h.b16 %v2929
        %v3066 = vunpack.c.l.b16 %v2930
        %v3067 = vunpack.c.h.b16 %v2930
        %v3068 = vunpack.c.l.b16 %v2931
        %v3069 = vunpack.c.h.b16 %v2931
        %v3070 = vunpack.c.l.b16 %v2932
        %v3071 = vunpack.c.h.b16 %v2932
        %v3072 = vunpack.c.l.b16 %v2933
        %v3073 = vunpack.c.h.b16 %v2933
        %v3074 = vunpack.c.l.b16 %v2934
        %v3075 = vunpack.c.h.b16 %v2934
        %v3076 = vunpack.c.l.b16 %v2935
        %v3077 = vunpack.c.h.b16 %v2935
        %v3078 = vunpack.c.l.b16 %v2936
        %v3079 = vunpack.c.h.b16 %v2936
        %v3080 = vunpack.c.l.b16 %v2937
        %v3081 = vunpack.c.h.b16 %v2937
        %v3082 = vunpack.c.l.b16 %v2938
        %v3083 = vunpack.c.h.b16 %v2938
        %v3084 = vunpack.c.l.b16 %v2939
        %v3085 = vunpack.c.h.b16 %v2939
        %v3086 = vunpack.c.l.b16 %v2940
        %v3087 = vunpack.c.h.b16 %v2940
        %v3088 = vunpack.c.l.b16 %v2941
        %v3089 = vunpack.c.h.b16 %v2941
        %v3090 = vunpack.c.l.b16 %v2942
        %v3091 = vunpack.c.h.b16 %v2942
        %v3092 = vpack.c.b16 %v3006, %v3004
        %v3093 = vpack.c.b16 %v3007, %v3005
        %v3094 = vpack.c.b16 %v3010, %v3008
        %v3095 = vpack.c.b16 %v3011, %v3009
        %v3096 = vpack.c.b16 %v3014, %v3012
        %v3097 = vpack.c.b16 %v3015, %v3013
        %v3098 = vpack.c.b16 %v3018, %v3016
        %v3099 = vpack.c.b16 %v3019, %v3017
        %v3100 = vpack.c.b16 %v3022, %v3020
        %v3101 = vpack.c.b16 %v3023, %v3021
        %v3102 = vpack.c.b16 %v3026, %v3024
        %v3103 = vpack.c.b16 %v3027, %v3025
        %v3104 = vpack.c.b16 %v3030, %v3028
        %v3105 = vpack.c.b16 %v3031, %v3029
        %v3106 = vpack.c.b16 %v3034, %v3032
        %v3107 = vpack.c.b16 %v3035, %v3033
        %v3108 = vpack.c.b16 %v3038, %v3036
        %v3109 = vpack.c.b16 %v3039, %v3037
        %v3110 = vpack.c.b16 %v3042, %v3040
        %v3111 = vpack.c.b16 %v3043, %v3041
        %v3112 = vpack.c.b16 %v3046, %v3044
        %v3113 = vpack.c.b16 %v3047, %v3045
        %v3114 = vpack.c.b16 %v3050, %v3048
        %v3115 = vpack.c.b16 %v3051, %v3049
        %v3116 = vpack.c.b16 %v3054, %v3052
        %v3117 = vpack.c.b16 %v3055, %v3053
        %v3118 = vpack.c.b16 %v3058, %v3056
        %v3119 = vpack.c.b16 %v3059, %v3057
        %v3120 = vpack.c.b16 %v3062, %v3060
        %v3121 = vpack.c.b16 %v3063, %v3061
        %v3122 = vpack.c.b16 %v3066, %v3064
        %v3123 = vpack.c.b16 %v3067, %v3065
        %v3124 = vpack.c.b16 %v3070, %v3068
        %v3125 = vpack.c.b16 %v3071, %v3069
        %v3126 = vpack.c.b16 %v3074, %v3072
        %v3127 = vpack.c.b16 %v3075, %v3073
        %v3128 = vpack.c.b16 %v3078, %v3076
        %v3129 = vpack.c.b16 %v3079, %v3077
        %v3130 = vpack.c.b16 %v3082, %v3080
        %v3131 = vpack.c.b16 %v3083, %v3081
        %v3132 = vpack.c.b16 %v3086, %v3084
        %v3133 = vpack.c.b16 %v3087, %v3085
        %v3134 = vpack.c.b16 %v3090, %v3088
        %v3135 = vpack.c.b16 %v3091, %v3089
        %v3181 = vsel %vm796, %v2957, 0
        %3183 = vmatprep.subr.bf16.mxu0 %v3093
        %3184 = vmatpush1.bf16.msra.mxu0 %v3092
        %3185 = vmatprep.subr.bf16.mxu0 %v3095
        %3186 = vmatpush1.bf16.msra.mxu0 %v3094
        %3187 = vmatprep.subr.bf16.mxu0 %v3097
        %3188 = vmatpush1.bf16.msra.mxu0 %v3096
        %3189 = vmatprep.subr.bf16.mxu0 %v3099
        %3190 = vmatpush1.bf16.msra.mxu0 %v3098
        %3191 = vmatprep.subr.bf16.mxu0 %v3101
        %3192 = vmatpush1.bf16.msra.mxu0 %v3100
        %3193 = vmatprep.subr.bf16.mxu0 %v3103
        %3194 = vmatpush1.bf16.msra.mxu0 %v3102
        %3195 = vmatprep.subr.bf16.mxu0 %v3105
        %3196 = vmatpush1.bf16.msra.mxu0 %v3104
        %3197 = vmatprep.subr.bf16.mxu0 %v3107
        %3198 = vmatpush1.bf16.msra.mxu0 %v3106
        %3199 = vmatprep.subr.bf16.mxu0 %v3109
        %3200 = vmatpush1.bf16.msra.mxu0 %v3108
        %3201 = vmatprep.subr.bf16.mxu0 %v3111
        %3202 = vmatpush1.bf16.msra.mxu0 %v3110
        %3203 = vmatprep.subr.bf16.mxu0 %v3113
        %3204 = vmatpush1.bf16.msra.mxu0 %v3112
        %3205 = vmatprep.subr.bf16.mxu0 %v3115
        %3206 = vmatpush1.bf16.msra.mxu0 %v3114
        %3207 = vmatprep.subr.bf16.mxu0 %v3117
        %3208 = vmatpush1.bf16.msra.mxu0 %v3116
        %3209 = vmatprep.subr.bf16.mxu0 %v3119
        %3210 = vmatpush1.bf16.msra.mxu0 %v3118
        %3211 = vmatprep.subr.bf16.mxu0 %v3121
        %3212 = vmatpush1.bf16.msra.mxu0 %v3120
        %3213 = vmatprep.subr.bf16.mxu0 %v3123
        %3214 = vmatpush1.bf16.msra.mxu0 %v3122
        %3215 = vmatprep.mubr.bf16.mxu0 %v2954
        %3216 = vmatmul.mubr.bf16.gmra.mrb[0].mxu0 %v2951
        %v3217 = vpop.f32.mrb[0].mxu0
        %v3218 = vadd.f32 0.0, %v3217
        %v3219 = vpop.f32.mrb[0].mxu0
        %v3220 = vadd.f32 0.0, %v3219
        %v3221 = vpop.f32.mrb[0].mxu0
        %v3222 = vadd.f32 0.0, %v3221
        %v3223 = vpop.f32.mrb[0].mxu0
        %v3224 = vadd.f32 0.0, %v3223
        %3225 = vdwg.mxu0
        %3226 = vmatprep.subr.bf16.mxu0 %v3125
        %3227 = vmatpush1.bf16.msra.mxu0 %v3124
        %3228 = vmatprep.subr.bf16.mxu0 %v3127
        %3229 = vmatpush1.bf16.msra.mxu0 %v3126
        %3230 = vmatprep.subr.bf16.mxu0 %v3129
        %3231 = vmatpush1.bf16.msra.mxu0 %v3128
        %3232 = vmatprep.subr.bf16.mxu0 %v3131
        %3233 = vmatpush1.bf16.msra.mxu0 %v3130
        %3234 = vmatprep.subr.bf16.mxu0 %v3133
        %3235 = vmatpush1.bf16.msra.mxu0 %v3132
        %3236 = vmatprep.subr.bf16.mxu0 %v3135
        %3237 = vmatpush1.bf16.msra.mxu0 %v3134
        %3238 = vmatprep.subr.bf16.mxu0 0
        %3239 = vmatpush1.bf16.msra.mxu0 0
        %3240 = vmatprep.subr.bf16.mxu0 0
        %3241 = vmatpush1.bf16.msra.mxu0 0
        %3242 = vmatprep.subr.bf16.mxu0 0
        %3243 = vmatpush1.bf16.msra.mxu0 0
        %3244 = vmatprep.subr.bf16.mxu0 0
        %3245 = vmatpush1.bf16.msra.mxu0 0
        %3246 = vmatprep.subr.bf16.mxu0 0
        %3247 = vmatpush1.bf16.msra.mxu0 0
        %3248 = vmatprep.subr.bf16.mxu0 0
        %3249 = vmatpush1.bf16.msra.mxu0 0
        %3250 = vmatprep.subr.bf16.mxu0 0
        %3251 = vmatpush1.bf16.msra.mxu0 0
        %3252 = vmatprep.subr.bf16.mxu0 0
        %3253 = vmatpush1.bf16.msra.mxu0 0
        %3254 = vmatprep.subr.bf16.mxu0 0
        %3255 = vmatpush1.bf16.msra.mxu0 0
        %3256 = vmatprep.subr.bf16.mxu0 0
        %3257 = vmatpush1.bf16.msra.mxu0 0
        %3258 = vmatprep.mubr.bf16.mxu0 0
        %3259 = vmatmul.mubr.bf16.gmra.mrb[0].mxu0 %v3181
        %v3260 = vpop.f32.mrb[0].mxu0
        %v3261 = vadd.f32 %v3218, %v3260
        %v3262 = vpop.f32.mrb[0].mxu0
        %v3263 = vadd.f32 %v3220, %v3262
        %v3264 = vpop.f32.mrb[0].mxu0
        %v3265 = vadd.f32 %v3222, %v3264
        %v3266 = vpop.f32.mrb[0].mxu0
        %v3267 = vadd.f32 %v3224, %v3266
        %3268 = vdwg.mxu0
        %v3269 = vadd.f32 %v2878, %v3261
        %v3270 = vadd.f32 %v2880, %v3263
        %v3271 = vadd.f32 %v2882, %v3265
        %v3272 = vadd.f32 %v2884, %v3267
        %v3273 = vld [vmem:[#allocation8] sm:$0x3]
        %v3275 = vlaneseq
        %v3276 = vshrl.u32 %v3275, 7
        %v3277 = vsub.s32 0, %v3276
        %v3278 = vrot.slane %v3273, %v3277
        %v3279 = vlaneseq
        %v3280 = vshrl.u32 %v3279, 7
        %v3281 = vsub.s32 1, %v3280
        %v3282 = vrot.slane %v3273, %v3281
        %v3285 = vadd.f32 %v3269, %v3278
        %v3286 = vadd.f32 %v3270, %v3282
        %v3287 = vadd.f32 %v3271, %v3278
        %v3288 = vadd.f32 %v3272, %v3282
        %3293 = vrot.lane.b32.xlu0 %v3285, 48
        %v3294 = vpop.permute.xlu0 %3293
        %3295 = vrot.lane.b32.xlu0 %v3286, 48
        %v3296 = vpop.permute.xlu0 %3295
        %3297 = vrot.lane.b32.xlu0 %v3287, 48
        %v3298 = vpop.permute.xlu0 %3297
        %3299 = vrot.lane.b32.xlu0 %v3288, 48
        %v3300 = vpop.permute.xlu0 %3299
        %v3301 = vsel %vm754, %v3294, %v3296
        %v3302 = vsel %vm754, %v3298, %v3300
        %v3307 = vsel %vm754, 0.0, %v3294
        %v3308 = vsel %vm754, 0.0, %v3298
        %v3309 = vsel %vm754, %v3296, 0.0
        %v3310 = vsel %vm754, %v3300, 0.0
        %v3315 = vrot.slane %v3307, 5
        %v3316 = vrot.slane %v3301, 5
        %v3317 = vrot.slane %v3309, 5
        %v3318 = vrot.slane %v3308, 5
        %v3319 = vsel %vm769, %v3315, %v3318
        %v3320 = vrot.slane %v3302, 5
        %v3321 = vsel %vm769, %v3316, %v3320
        %v3322 = vrot.slane %v3310, 5
        %v3323 = vsel %vm769, %v3317, %v3322
        %v3333 = vsel %vm769, 0.0, %v3315
        %v3334 = vsel %vm769, 0.0, %v3316
        %v3335 = vsel %vm769, 0.0, %v3317
        %v3336 = vsel %vm769, %v3318, 0.0
        %v3337 = vsel %vm769, %v3320, 0.0
        %v3338 = vsel %vm769, %v3322, 0.0
        %3339 = vst [vmem:[#allocation2] sm:$0xff] %v3333
        %3340 = vst [vmem:[#allocation2 + $0x8] sm:$0xff] %v3334
        %3341 = vst.msk [vmem:[#allocation2 + $0x10] sm:$0xff] %vm796, %v3335
        %3342 = vst [vmem:[#allocation2 + $0x18] sm:$0xff] %v3319
        %3343 = vst [vmem:[#allocation2 + $0x20] sm:$0xff] %v3321
        %3344 = vst.msk [vmem:[#allocation2 + $0x28] sm:$0xff] %vm796, %v3323
        %3345 = vst [vmem:[#allocation2 + $0x30] sm:$0x3f] %v3336
        %3346 = vst [vmem:[#allocation2 + $0x38] sm:$0x3f] %v3337
        %3347 = vst.msk [vmem:[#allocation2 + $0x40] sm:$0x3f] %vm803, %v3338
        %v3348 = vld [vmem:[#allocation2] sm:$0xfc]
        %v3349 = vld [vmem:[#allocation2 + $0x8] sm:$0xfc]
        %v3350 = vld [vmem:[#allocation2 + $0x10] sm:$0xfc]
        %v3351 = vld [vmem:[#allocation2 + $0x18] sm:$0xff]
        %v3352 = vld [vmem:[#allocation2 + $0x20] sm:$0xff]
        %v3353 = vld [vmem:[#allocation2 + $0x28] sm:$0xff]
        %v3354 = vld [vmem:[#allocation2 + $0x30] sm:$0x3]
        %v3355 = vld [vmem:[#allocation2 + $0x38] sm:$0x3]
        %v3356 = vld [vmem:[#allocation2 + $0x40] sm:$0x3]
        %v3357 = vpack.c.bf16 %v3351, %v3348
        %v3358 = vpack.c.bf16 %v3352, %v3349
        %v3359 = vpack.c.bf16 %v3353, %v3350
        %v3360 = vpack.c.bf16 %v3354, %v3354
        %v3361 = vpack.c.bf16 %v3355, %v3355
        %v3362 = vpack.c.bf16 %v3356, %v3356
        %v3363 = vld [vmem:[#allocation10] sm:$0xff]
        %v3364 = vld [vmem:[#allocation10 + $0x8] sm:$0xff]
        %v3365 = vld [vmem:[#allocation10 + $0x10] sm:$0xff]
        %v3366 = vld [vmem:[#allocation10 + $0x18] sm:$0xff]
        %v3367 = vld [vmem:[#allocation10 + $0x20] sm:$0xff]
        %v3368 = vld [vmem:[#allocation10 + $0x28] sm:$0xff]
        %v3369 = vld [vmem:[#allocation10 + $0x30] sm:$0xff]
        %v3370 = vld [vmem:[#allocation10 + $0x38] sm:$0xff]
        %v3371 = vld [vmem:[#allocation10 + $0x40] sm:$0xff]
        %v3372 = vld [vmem:[#allocation10 + $0x48] sm:$0xff]
        %v3373 = vld [vmem:[#allocation10 + $0x50] sm:$0xff]
        %v3374 = vld [vmem:[#allocation10 + $0x58] sm:$0xff]
        %v3375 = vld [vmem:[#allocation10 + $0x60] sm:$0xff]
        %v3376 = vld [vmem:[#allocation10 + $0x68] sm:$0xff]
        %v3377 = vld [vmem:[#allocation10 + $0x70] sm:$0xff]
        %v3378 = vld [vmem:[#allocation10 + $0x78] sm:$0xff]
        %v3379 = vld [vmem:[#allocation10 + $0x80] sm:$0xff]
        %v3380 = vld [vmem:[#allocation10 + $0x88] sm:$0xff]
        %v3381 = vld [vmem:[#allocation10 + $0x90] sm:$0xff]
        %v3382 = vld [vmem:[#allocation10 + $0x98] sm:$0xff]
        %v3383 = vld [vmem:[#allocation10 + $0xa0] sm:$0xff]
        %v3384 = vld [vmem:[#allocation10 + $0xa8] sm:$0xff]
        %v3385 = vld [vmem:[#allocation10 + $0xb0] sm:$0xff]
        %v3386 = vld [vmem:[#allocation10 + $0xb8] sm:$0xff]
        %v3387 = vld [vmem:[#allocation10 + $0xc0] sm:$0xff]
        %v3388 = vld [vmem:[#allocation10 + $0xc8] sm:$0xff]
        %v3389 = vld [vmem:[#allocation10 + $0xd0] sm:$0xff]
        %v3390 = vld [vmem:[#allocation10 + $0xd8] sm:$0xff]
        %v3391 = vld [vmem:[#allocation10 + $0xe0] sm:$0xff]
        %v3392 = vld [vmem:[#allocation10 + $0xe8] sm:$0xff]
        %v3393 = vld [vmem:[#allocation10 + $0xf0] sm:$0xff]
        %v3394 = vld [vmem:[#allocation10 + $0xf8] sm:$0xff]
        %v3395 = vld [vmem:[#allocation10 + $0x100] sm:$0xff]
        %v3396 = vld [vmem:[#allocation10 + $0x108] sm:$0xff]
        %v3397 = vld [vmem:[#allocation10 + $0x110] sm:$0xff]
        %v3398 = vld [vmem:[#allocation10 + $0x118] sm:$0xff]
        %v3399 = vld [vmem:[#allocation10 + $0x120] sm:$0xff]
        %v3400 = vld [vmem:[#allocation10 + $0x128] sm:$0xff]
        %v3401 = vld [vmem:[#allocation10 + $0x130] sm:$0xff]
        %v3402 = vld [vmem:[#allocation10 + $0x138] sm:$0xff]
        %v3403 = vld [vmem:[#allocation10 + $0x140] sm:$0xff]
        %v3404 = vld [vmem:[#allocation10 + $0x148] sm:$0xff]
        %v3405 = vld [vmem:[#allocation10 + $0x150] sm:$0xff]
        %v3406 = vld [vmem:[#allocation10 + $0x158] sm:$0xff]
        %v3407 = vld [vmem:[#allocation2] sm:$0xf8]
        %v3408 = vld [vmem:[#allocation2 + $0x8] sm:$0xf8]
        %v3409 = vld [vmem:[#allocation2 + $0x10] sm:$0xf8]
        %v3410 = vld [vmem:[#allocation2 + $0x30] sm:$0x7]
        %v3411 = vld [vmem:[#allocation2 + $0x38] sm:$0x7]
        %v3412 = vld [vmem:[#allocation2 + $0x40] sm:$0x7]
        %v3413 = vpack.c.bf16 %v3351, %v3407
        %v3414 = vpack.c.bf16 %v3352, %v3408
        %v3415 = vpack.c.bf16 %v3353, %v3409
        %v3416 = vpack.c.bf16 %v3410, %v3410
        %v3417 = vpack.c.bf16 %v3411, %v3411
        %v3418 = vpack.c.bf16 %v3412, %v3412
        %s3419 = scalar_lea.vmem [#allocation10], 352
        %v3420 = vld [vmem:[%s3419] sm:$0xff]
        %v3421 = vld [vmem:[%s3419 + $0x8] sm:$0xff]
        %v3422 = vld [vmem:[%s3419 + $0x10] sm:$0xff]
        %v3423 = vld [vmem:[%s3419 + $0x18] sm:$0xff]
        %v3424 = vld [vmem:[%s3419 + $0x20] sm:$0xff]
        %v3425 = vld [vmem:[%s3419 + $0x28] sm:$0xff]
        %v3426 = vld [vmem:[%s3419 + $0x30] sm:$0xff]
        %v3427 = vld [vmem:[%s3419 + $0x38] sm:$0xff]
        %v3428 = vld [vmem:[%s3419 + $0x40] sm:$0xff]
        %v3429 = vld [vmem:[%s3419 + $0x48] sm:$0xff]
        %v3430 = vld [vmem:[%s3419 + $0x50] sm:$0xff]
        %v3431 = vld [vmem:[%s3419 + $0x58] sm:$0xff]
        %v3432 = vld [vmem:[%s3419 + $0x60] sm:$0xff]
        %v3433 = vld [vmem:[%s3419 + $0x68] sm:$0xff]
        %v3434 = vld [vmem:[%s3419 + $0x70] sm:$0xff]
        %v3435 = vld [vmem:[%s3419 + $0x78] sm:$0xff]
        %v3436 = vld [vmem:[%s3419 + $0x80] sm:$0xff]
        %v3437 = vld [vmem:[%s3419 + $0x88] sm:$0xff]
        %v3438 = vld [vmem:[%s3419 + $0x90] sm:$0xff]
        %v3439 = vld [vmem:[%s3419 + $0x98] sm:$0xff]
        %v3440 = vld [vmem:[%s3419 + $0xa0] sm:$0xff]
        %v3441 = vld [vmem:[%s3419 + $0xa8] sm:$0xff]
        %v3442 = vld [vmem:[%s3419 + $0xb0] sm:$0xff]
        %v3443 = vld [vmem:[%s3419 + $0xb8] sm:$0xff]
        %v3444 = vld [vmem:[%s3419 + $0xc0] sm:$0xff]
        %v3445 = vld [vmem:[%s3419 + $0xc8] sm:$0xff]
        %v3446 = vld [vmem:[%s3419 + $0xd0] sm:$0xff]
        %v3447 = vld [vmem:[%s3419 + $0xd8] sm:$0xff]
        %v3448 = vld [vmem:[%s3419 + $0xe0] sm:$0xff]
        %v3449 = vld [vmem:[%s3419 + $0xe8] sm:$0xff]
        %v3450 = vld [vmem:[%s3419 + $0xf0] sm:$0xff]
        %v3451 = vld [vmem:[%s3419 + $0xf8] sm:$0xff]
        %v3452 = vld [vmem:[%s3419 + $0x100] sm:$0xff]
        %v3453 = vld [vmem:[%s3419 + $0x108] sm:$0xff]
        %v3454 = vld [vmem:[%s3419 + $0x110] sm:$0xff]
        %v3455 = vld [vmem:[%s3419 + $0x118] sm:$0xff]
        %v3456 = vld [vmem:[%s3419 + $0x120] sm:$0xff]
        %v3457 = vld [vmem:[%s3419 + $0x128] sm:$0xff]
        %v3458 = vld [vmem:[%s3419 + $0x130] sm:$0xff]
        %v3459 = vld [vmem:[%s3419 + $0x138] sm:$0xff]
        %v3460 = vld [vmem:[%s3419 + $0x140] sm:$0xff]
        %v3461 = vld [vmem:[%s3419 + $0x148] sm:$0xff]
        %v3462 = vld [vmem:[%s3419 + $0x150] sm:$0xff]
        %v3463 = vld [vmem:[%s3419 + $0x158] sm:$0xff]
        %v3465 = vshrl.u32 %v3413, 16
        %v3467 = vrot.slane %v3465, 1
        %v3468 = vshll.u32 %v3413, 16
        %v3470 = vrot.slane %v3468, 2
        %v3471 = vor.u32 %v3467, %v3470
        %v3473 = vshrl.u32 %v3416, 16
        %v3475 = vrot.slane %v3473, 1
        %v3476 = vshll.u32 %v3416, 16
        %v3478 = vrot.slane %v3476, 2
        %v3479 = vor.u32 %v3475, %v3478
        %v3480 = vsel %vm921, %v3471, %v3479
        %v3482 = vshrl.u32 %v3414, 16
        %v3484 = vrot.slane %v3482, 1
        %v3485 = vshll.u32 %v3414, 16
        %v3487 = vrot.slane %v3485, 2
        %v3488 = vor.u32 %v3484, %v3487
        %v3490 = vshrl.u32 %v3417, 16
        %v3492 = vrot.slane %v3490, 1
        %v3493 = vshll.u32 %v3417, 16
        %v3495 = vrot.slane %v3493, 2
        %v3496 = vor.u32 %v3492, %v3495
        %v3497 = vsel %vm921, %v3488, %v3496
        %v3499 = vshrl.u32 %v3415, 16
        %v3501 = vrot.slane %v3499, 1
        %v3502 = vshll.u32 %v3415, 16
        %v3504 = vrot.slane %v3502, 2
        %v3505 = vor.u32 %v3501, %v3504
        %v3507 = vshrl.u32 %v3418, 16
        %v3509 = vrot.slane %v3507, 1
        %v3510 = vshll.u32 %v3418, 16
        %v3512 = vrot.slane %v3510, 2
        %v3513 = vor.u32 %v3509, %v3512
        %v3514 = vsel %vm921, %v3505, %v3513
        %v3561 = vunpack.c.l.b16 %v3420
        %v3562 = vunpack.c.h.b16 %v3420
        %v3563 = vunpack.c.l.b16 %v3421
        %v3564 = vunpack.c.h.b16 %v3421
        %v3565 = vunpack.c.l.b16 %v3422
        %v3566 = vunpack.c.h.b16 %v3422
        %v3567 = vunpack.c.l.b16 %v3423
        %v3568 = vunpack.c.h.b16 %v3423
        %v3569 = vunpack.c.l.b16 %v3424
        %v3570 = vunpack.c.h.b16 %v3424
        %v3571 = vunpack.c.l.b16 %v3425
        %v3572 = vunpack.c.h.b16 %v3425
        %v3573 = vunpack.c.l.b16 %v3426
        %v3574 = vunpack.c.h.b16 %v3426
        %v3575 = vunpack.c.l.b16 %v3427
        %v3576 = vunpack.c.h.b16 %v3427
        %v3577 = vunpack.c.l.b16 %v3428
        %v3578 = vunpack.c.h.b16 %v3428
        %v3579 = vunpack.c.l.b16 %v3429
        %v3580 = vunpack.c.h.b16 %v3429
        %v3581 = vunpack.c.l.b16 %v3430
        %v3582 = vunpack.c.h.b16 %v3430
        %v3583 = vunpack.c.l.b16 %v3431
        %v3584 = vunpack.c.h.b16 %v3431
        %v3585 = vunpack.c.l.b16 %v3432
        %v3586 = vunpack.c.h.b16 %v3432
        %v3587 = vunpack.c.l.b16 %v3433
        %v3588 = vunpack.c.h.b16 %v3433
        %v3589 = vunpack.c.l.b16 %v3434
        %v3590 = vunpack.c.h.b16 %v3434
        %v3591 = vunpack.c.l.b16 %v3435
        %v3592 = vunpack.c.h.b16 %v3435
        %v3593 = vunpack.c.l.b16 %v3436
        %v3594 = vunpack.c.h.b16 %v3436
        %v3595 = vunpack.c.l.b16 %v3437
        %v3596 = vunpack.c.h.b16 %v3437
        %v3597 = vunpack.c.l.b16 %v3438
        %v3598 = vunpack.c.h.b16 %v3438
        %v3599 = vunpack.c.l.b16 %v3439
        %v3600 = vunpack.c.h.b16 %v3439
        %v3601 = vunpack.c.l.b16 %v3440
        %v3602 = vunpack.c.h.b16 %v3440
        %v3603 = vunpack.c.l.b16 %v3441
        %v3604 = vunpack.c.h.b16 %v3441
        %v3605 = vunpack.c.l.b16 %v3442
        %v3606 = vunpack.c.h.b16 %v3442
        %v3607 = vunpack.c.l.b16 %v3443
        %v3608 = vunpack.c.h.b16 %v3443
        %v3609 = vunpack.c.l.b16 %v3444
        %v3610 = vunpack.c.h.b16 %v3444
        %v3611 = vunpack.c.l.b16 %v3445
        %v3612 = vunpack.c.h.b16 %v3445
        %v3613 = vunpack.c.l.b16 %v3446
        %v3614 = vunpack.c.h.b16 %v3446
        %v3615 = vunpack.c.l.b16 %v3447
        %v3616 = vunpack.c.h.b16 %v3447
        %v3617 = vunpack.c.l.b16 %v3448
        %v3618 = vunpack.c.h.b16 %v3448
        %v3619 = vunpack.c.l.b16 %v3449
        %v3620 = vunpack.c.h.b16 %v3449
        %v3621 = vunpack.c.l.b16 %v3450
        %v3622 = vunpack.c.h.b16 %v3450
        %v3623 = vunpack.c.l.b16 %v3451
        %v3624 = vunpack.c.h.b16 %v3451
        %v3625 = vunpack.c.l.b16 %v3452
        %v3626 = vunpack.c.h.b16 %v3452
        %v3627 = vunpack.c.l.b16 %v3453
        %v3628 = vunpack.c.h.b16 %v3453
        %v3629 = vunpack.c.l.b16 %v3454
        %v3630 = vunpack.c.h.b16 %v3454
        %v3631 = vunpack.c.l.b16 %v3455
        %v3632 = vunpack.c.h.b16 %v3455
        %v3633 = vunpack.c.l.b16 %v3456
        %v3634 = vunpack.c.h.b16 %v3456
        %v3635 = vunpack.c.l.b16 %v3457
        %v3636 = vunpack.c.h.b16 %v3457
        %v3637 = vunpack.c.l.b16 %v3458
        %v3638 = vunpack.c.h.b16 %v3458
        %v3639 = vunpack.c.l.b16 %v3459
        %v3640 = vunpack.c.h.b16 %v3459
        %v3641 = vunpack.c.l.b16 %v3460
        %v3642 = vunpack.c.h.b16 %v3460
        %v3643 = vunpack.c.l.b16 %v3461
        %v3644 = vunpack.c.h.b16 %v3461
        %v3645 = vunpack.c.l.b16 %v3462
        %v3646 = vunpack.c.h.b16 %v3462
        %v3647 = vunpack.c.l.b16 %v3463
        %v3648 = vunpack.c.h.b16 %v3463
        %v3649 = vpack.c.b16 %v3563, %v3561
        %v3650 = vpack.c.b16 %v3564, %v3562
        %v3651 = vpack.c.b16 %v3567, %v3565
        %v3652 = vpack.c.b16 %v3568, %v3566
        %v3653 = vpack.c.b16 %v3571, %v3569
        %v3654 = vpack.c.b16 %v3572, %v3570
        %v3655 = vpack.c.b16 %v3575, %v3573
        %v3656 = vpack.c.b16 %v3576, %v3574
        %v3657 = vpack.c.b16 %v3579, %v3577
        %v3658 = vpack.c.b16 %v3580, %v3578
        %v3659 = vpack.c.b16 %v3583, %v3581
        %v3660 = vpack.c.b16 %v3584, %v3582
        %v3661 = vpack.c.b16 %v3587, %v3585
        %v3662 = vpack.c.b16 %v3588, %v3586
        %v3663 = vpack.c.b16 %v3591, %v3589
        %v3664 = vpack.c.b16 %v3592, %v3590
        %v3665 = vpack.c.b16 %v3595, %v3593
        %v3666 = vpack.c.b16 %v3596, %v3594
        %v3667 = vpack.c.b16 %v3599, %v3597
        %v3668 = vpack.c.b16 %v3600, %v3598
        %v3669 = vpack.c.b16 %v3603, %v3601
        %v3670 = vpack.c.b16 %v3604, %v3602
        %v3671 = vpack.c.b16 %v3607, %v3605
        %v3672 = vpack.c.b16 %v3608, %v3606
        %v3673 = vpack.c.b16 %v3611, %v3609
        %v3674 = vpack.c.b16 %v3612, %v3610
        %v3675 = vpack.c.b16 %v3615, %v3613
        %v3676 = vpack.c.b16 %v3616, %v3614
        %v3677 = vpack.c.b16 %v3619, %v3617
        %v3678 = vpack.c.b16 %v3620, %v3618
        %v3679 = vpack.c.b16 %v3623, %v3621
        %v3680 = vpack.c.b16 %v3624, %v3622
        %v3681 = vpack.c.b16 %v3627, %v3625
        %v3682 = vpack.c.b16 %v3628, %v3626
        %v3683 = vpack.c.b16 %v3631, %v3629
        %v3684 = vpack.c.b16 %v3632, %v3630
        %v3685 = vpack.c.b16 %v3635, %v3633
        %v3686 = vpack.c.b16 %v3636, %v3634
        %v3687 = vpack.c.b16 %v3639, %v3637
        %v3688 = vpack.c.b16 %v3640, %v3638
        %v3689 = vpack.c.b16 %v3643, %v3641
        %v3690 = vpack.c.b16 %v3644, %v3642
        %v3691 = vpack.c.b16 %v3647, %v3645
        %v3692 = vpack.c.b16 %v3648, %v3646
        %v3738 = vsel %vm796, %v3514, 0
        %3740 = vmatprep.subr.bf16.mxu0 %v3650
        %3741 = vmatpush1.bf16.msra.mxu0 %v3649
        %3742 = vmatprep.subr.bf16.mxu0 %v3652
        %3743 = vmatpush1.bf16.msra.mxu0 %v3651
        %3744 = vmatprep.subr.bf16.mxu0 %v3654
        %3745 = vmatpush1.bf16.msra.mxu0 %v3653
        %3746 = vmatprep.subr.bf16.mxu0 %v3656
        %3747 = vmatpush1.bf16.msra.mxu0 %v3655
        %3748 = vmatprep.subr.bf16.mxu0 %v3658
        %3749 = vmatpush1.bf16.msra.mxu0 %v3657
        %3750 = vmatprep.subr.bf16.mxu0 %v3660
        %3751 = vmatpush1.bf16.msra.mxu0 %v3659
        %3752 = vmatprep.subr.bf16.mxu0 %v3662
        %3753 = vmatpush1.bf16.msra.mxu0 %v3661
        %3754 = vmatprep.subr.bf16.mxu0 %v3664
        %3755 = vmatpush1.bf16.msra.mxu0 %v3663
        %3756 = vmatprep.subr.bf16.mxu0 %v3666
        %3757 = vmatpush1.bf16.msra.mxu0 %v3665
        %3758 = vmatprep.subr.bf16.mxu0 %v3668
        %3759 = vmatpush1.bf16.msra.mxu0 %v3667
        %3760 = vmatprep.subr.bf16.mxu0 %v3670
        %3761 = vmatpush1.bf16.msra.mxu0 %v3669
        %3762 = vmatprep.subr.bf16.mxu0 %v3672
        %3763 = vmatpush1.bf16.msra.mxu0 %v3671
        %3764 = vmatprep.subr.bf16.mxu0 %v3674
        %3765 = vmatpush1.bf16.msra.mxu0 %v3673
        %3766 = vmatprep.subr.bf16.mxu0 %v3676
        %3767 = vmatpush1.bf16.msra.mxu0 %v3675
        %3768 = vmatprep.subr.bf16.mxu0 %v3678
        %3769 = vmatpush1.bf16.msra.mxu0 %v3677
        %3770 = vmatprep.subr.bf16.mxu0 %v3680
        %3771 = vmatpush1.bf16.msra.mxu0 %v3679
        %3772 = vmatprep.mubr.bf16.mxu0 %v3497
        %3773 = vmatmul.mubr.bf16.gmra.mrb[0].mxu0 %v3480
        %v3774 = vpop.f32.mrb[0].mxu0
        %v3775 = vadd.f32 0.0, %v3774
        %v3776 = vpop.f32.mrb[0].mxu0
        %v3777 = vadd.f32 0.0, %v3776
        %v3778 = vpop.f32.mrb[0].mxu0
        %v3779 = vadd.f32 0.0, %v3778
        %v3780 = vpop.f32.mrb[0].mxu0
        %v3781 = vadd.f32 0.0, %v3780
        %3782 = vdwg.mxu0
        %3783 = vmatprep.subr.bf16.mxu0 %v3682
        %3784 = vmatpush1.bf16.msra.mxu0 %v3681
        %3785 = vmatprep.subr.bf16.mxu0 %v3684
        %3786 = vmatpush1.bf16.msra.mxu0 %v3683
        %3787 = vmatprep.subr.bf16.mxu0 %v3686
        %3788 = vmatpush1.bf16.msra.mxu0 %v3685
        %3789 = vmatprep.subr.bf16.mxu0 %v3688
        %3790 = vmatpush1.bf16.msra.mxu0 %v3687
        %3791 = vmatprep.subr.bf16.mxu0 %v3690
        %3792 = vmatpush1.bf16.msra.mxu0 %v3689
        %3793 = vmatprep.subr.bf16.mxu0 %v3692
        %3794 = vmatpush1.bf16.msra.mxu0 %v3691
        %3795 = vmatprep.subr.bf16.mxu0 0
        %3796 = vmatpush1.bf16.msra.mxu0 0
        %3797 = vmatprep.subr.bf16.mxu0 0
        %3798 = vmatpush1.bf16.msra.mxu0 0
        %3799 = vmatprep.subr.bf16.mxu0 0
        %3800 = vmatpush1.bf16.msra.mxu0 0
        %3801 = vmatprep.subr.bf16.mxu0 0
        %3802 = vmatpush1.bf16.msra.mxu0 0
        %3803 = vmatprep.subr.bf16.mxu0 0
        %3804 = vmatpush1.bf16.msra.mxu0 0
        %3805 = vmatprep.subr.bf16.mxu0 0
        %3806 = vmatpush1.bf16.msra.mxu0 0
        %3807 = vmatprep.subr.bf16.mxu0 0
        %3808 = vmatpush1.bf16.msra.mxu0 0
        %3809 = vmatprep.subr.bf16.mxu0 0
        %3810 = vmatpush1.bf16.msra.mxu0 0
        %3811 = vmatprep.subr.bf16.mxu0 0
        %3812 = vmatpush1.bf16.msra.mxu0 0
        %3813 = vmatprep.subr.bf16.mxu0 0
        %3814 = vmatpush1.bf16.msra.mxu0 0
        %3815 = vmatprep.mubr.bf16.mxu0 0
        %3816 = vmatmul.mubr.bf16.gmra.mrb[0].mxu0 %v3738
        %v3817 = vpop.f32.mrb[0].mxu0
        %v3818 = vadd.f32 %v3775, %v3817
        %v3819 = vpop.f32.mrb[0].mxu0
        %v3820 = vadd.f32 %v3777, %v3819
        %v3821 = vpop.f32.mrb[0].mxu0
        %v3822 = vadd.f32 %v3779, %v3821
        %v3823 = vpop.f32.mrb[0].mxu0
        %v3824 = vadd.f32 %v3781, %v3823
        %3825 = vdwg.mxu0
        %v3832 = vrot.slane %v3357, 1
        %v3833 = vrot.slane %v3360, 1
        %v3834 = vsel %vm1290, %v3832, %v3833
        %v3835 = vrot.slane %v3358, 1
        %v3836 = vrot.slane %v3361, 1
        %v3837 = vsel %vm1290, %v3835, %v3836
        %v3838 = vrot.slane %v3359, 1
        %v3839 = vrot.slane %v3362, 1
        %v3840 = vsel %vm1290, %v3838, %v3839
        %v3887 = vunpack.c.l.b16 %v3363
        %v3888 = vunpack.c.h.b16 %v3363
        %v3889 = vunpack.c.l.b16 %v3364
        %v3890 = vunpack.c.h.b16 %v3364
        %v3891 = vunpack.c.l.b16 %v3365
        %v3892 = vunpack.c.h.b16 %v3365
        %v3893 = vunpack.c.l.b16 %v3366
        %v3894 = vunpack.c.h.b16 %v3366
        %v3895 = vunpack.c.l.b16 %v3367
        %v3896 = vunpack.c.h.b16 %v3367
        %v3897 = vunpack.c.l.b16 %v3368
        %v3898 = vunpack.c.h.b16 %v3368
        %v3899 = vunpack.c.l.b16 %v3369
        %v3900 = vunpack.c.h.b16 %v3369
        %v3901 = vunpack.c.l.b16 %v3370
        %v3902 = vunpack.c.h.b16 %v3370
        %v3903 = vunpack.c.l.b16 %v3371
        %v3904 = vunpack.c.h.b16 %v3371
        %v3905 = vunpack.c.l.b16 %v3372
        %v3906 = vunpack.c.h.b16 %v3372
        %v3907 = vunpack.c.l.b16 %v3373
        %v3908 = vunpack.c.h.b16 %v3373
        %v3909 = vunpack.c.l.b16 %v3374
        %v3910 = vunpack.c.h.b16 %v3374
        %v3911 = vunpack.c.l.b16 %v3375
        %v3912 = vunpack.c.h.b16 %v3375
        %v3913 = vunpack.c.l.b16 %v3376
        %v3914 = vunpack.c.h.b16 %v3376
        %v3915 = vunpack.c.l.b16 %v3377
        %v3916 = vunpack.c.h.b16 %v3377
        %v3917 = vunpack.c.l.b16 %v3378
        %v3918 = vunpack.c.h.b16 %v3378
        %v3919 = vunpack.c.l.b16 %v3379
        %v3920 = vunpack.c.h.b16 %v3379
        %v3921 = vunpack.c.l.b16 %v3380
        %v3922 = vunpack.c.h.b16 %v3380
        %v3923 = vunpack.c.l.b16 %v3381
        %v3924 = vunpack.c.h.b16 %v3381
        %v3925 = vunpack.c.l.b16 %v3382
        %v3926 = vunpack.c.h.b16 %v3382
        %v3927 = vunpack.c.l.b16 %v3383
        %v3928 = vunpack.c.h.b16 %v3383
        %v3929 = vunpack.c.l.b16 %v3384
        %v3930 = vunpack.c.h.b16 %v3384
        %v3931 = vunpack.c.l.b16 %v3385
        %v3932 = vunpack.c.h.b16 %v3385
        %v3933 = vunpack.c.l.b16 %v3386
        %v3934 = vunpack.c.h.b16 %v3386
        %v3935 = vunpack.c.l.b16 %v3387
        %v3936 = vunpack.c.h.b16 %v3387
        %v3937 = vunpack.c.l.b16 %v3388
        %v3938 = vunpack.c.h.b16 %v3388
        %v3939 = vunpack.c.l.b16 %v3389
        %v3940 = vunpack.c.h.b16 %v3389
        %v3941 = vunpack.c.l.b16 %v3390
        %v3942 = vunpack.c.h.b16 %v3390
        %v3943 = vunpack.c.l.b16 %v3391
        %v3944 = vunpack.c.h.b16 %v3391
        %v3945 = vunpack.c.l.b16 %v3392
        %v3946 = vunpack.c.h.b16 %v3392
        %v3947 = vunpack.c.l.b16 %v3393
        %v3948 = vunpack.c.h.b16 %v3393
        %v3949 = vunpack.c.l.b16 %v3394
        %v3950 = vunpack.c.h.b16 %v3394
        %v3951 = vunpack.c.l.b16 %v3395
        %v3952 = vunpack.c.h.b16 %v3395
        %v3953 = vunpack.c.l.b16 %v3396
        %v3954 = vunpack.c.h.b16 %v3396
        %v3955 = vunpack.c.l.b16 %v3397
        %v3956 = vunpack.c.h.b16 %v3397
        %v3957 = vunpack.c.l.b16 %v3398
        %v3958 = vunpack.c.h.b16 %v3398
        %v3959 = vunpack.c.l.b16 %v3399
        %v3960 = vunpack.c.h.b16 %v3399
        %v3961 = vunpack.c.l.b16 %v3400
        %v3962 = vunpack.c.h.b16 %v3400
        %v3963 = vunpack.c.l.b16 %v3401
        %v3964 = vunpack.c.h.b16 %v3401
        %v3965 = vunpack.c.l.b16 %v3402
        %v3966 = vunpack.c.h.b16 %v3402
        %v3967 = vunpack.c.l.b16 %v3403
        %v3968 = vunpack.c.h.b16 %v3403
        %v3969 = vunpack.c.l.b16 %v3404
        %v3970 = vunpack.c.h.b16 %v3404
        %v3971 = vunpack.c.l.b16 %v3405
        %v3972 = vunpack.c.h.b16 %v3405
        %v3973 = vunpack.c.l.b16 %v3406
        %v3974 = vunpack.c.h.b16 %v3406
        %v3975 = vpack.c.b16 %v3889, %v3887
        %v3976 = vpack.c.b16 %v3890, %v3888
        %v3977 = vpack.c.b16 %v3893, %v3891
        %v3978 = vpack.c.b16 %v3894, %v3892
        %v3979 = vpack.c.b16 %v3897, %v3895
        %v3980 = vpack.c.b16 %v3898, %v3896
        %v3981 = vpack.c.b16 %v3901, %v3899
        %v3982 = vpack.c.b16 %v3902, %v3900
        %v3983 = vpack.c.b16 %v3905, %v3903
        %v3984 = vpack.c.b16 %v3906, %v3904
        %v3985 = vpack.c.b16 %v3909, %v3907
        %v3986 = vpack.c.b16 %v3910, %v3908
        %v3987 = vpack.c.b16 %v3913, %v3911
        %v3988 = vpack.c.b16 %v3914, %v3912
        %v3989 = vpack.c.b16 %v3917, %v3915
        %v3990 = vpack.c.b16 %v3918, %v3916
        %v3991 = vpack.c.b16 %v3921, %v3919
        %v3992 = vpack.c.b16 %v3922, %v3920
        %v3993 = vpack.c.b16 %v3925, %v3923
        %v3994 = vpack.c.b16 %v3926, %v3924
        %v3995 = vpack.c.b16 %v3929, %v3927
        %v3996 = vpack.c.b16 %v3930, %v3928
        %v3997 = vpack.c.b16 %v3933, %v3931
        %v3998 = vpack.c.b16 %v3934, %v3932
        %v3999 = vpack.c.b16 %v3937, %v3935
        %v4000 = vpack.c.b16 %v3938, %v3936
        %v4001 = vpack.c.b16 %v3941, %v3939
        %v4002 = vpack.c.b16 %v3942, %v3940
        %v4003 = vpack.c.b16 %v3945, %v3943
        %v4004 = vpack.c.b16 %v3946, %v3944
        %v4005 = vpack.c.b16 %v3949, %v3947
        %v4006 = vpack.c.b16 %v3950, %v3948
        %v4007 = vpack.c.b16 %v3953, %v3951
        %v4008 = vpack.c.b16 %v3954, %v3952
        %v4009 = vpack.c.b16 %v3957, %v3955
        %v4010 = vpack.c.b16 %v3958, %v3956
        %v4011 = vpack.c.b16 %v3961, %v3959
        %v4012 = vpack.c.b16 %v3962, %v3960
        %v4013 = vpack.c.b16 %v3965, %v3963
        %v4014 = vpack.c.b16 %v3966, %v3964
        %v4015 = vpack.c.b16 %v3969, %v3967
        %v4016 = vpack.c.b16 %v3970, %v3968
        %v4017 = vpack.c.b16 %v3973, %v3971
        %v4018 = vpack.c.b16 %v3974, %v3972
        %v4064 = vsel %vm796, %v3840, 0
        %4066 = vmatprep.subr.bf16.mxu0 %v3976
        %4067 = vmatpush1.bf16.msra.mxu0 %v3975
        %4068 = vmatprep.subr.bf16.mxu0 %v3978
        %4069 = vmatpush1.bf16.msra.mxu0 %v3977
        %4070 = vmatprep.subr.bf16.mxu0 %v3980
        %4071 = vmatpush1.bf16.msra.mxu0 %v3979
        %4072 = vmatprep.subr.bf16.mxu0 %v3982
        %4073 = vmatpush1.bf16.msra.mxu0 %v3981
        %4074 = vmatprep.subr.bf16.mxu0 %v3984
        %4075 = vmatpush1.bf16.msra.mxu0 %v3983
        %4076 = vmatprep.subr.bf16.mxu0 %v3986
        %4077 = vmatpush1.bf16.msra.mxu0 %v3985
        %4078 = vmatprep.subr.bf16.mxu0 %v3988
        %4079 = vmatpush1.bf16.msra.mxu0 %v3987
        %4080 = vmatprep.subr.bf16.mxu0 %v3990
        %4081 = vmatpush1.bf16.msra.mxu0 %v3989
        %4082 = vmatprep.subr.bf16.mxu0 %v3992
        %4083 = vmatpush1.bf16.msra.mxu0 %v3991
        %4084 = vmatprep.subr.bf16.mxu0 %v3994
        %4085 = vmatpush1.bf16.msra.mxu0 %v3993
        %4086 = vmatprep.subr.bf16.mxu0 %v3996
        %4087 = vmatpush1.bf16.msra.mxu0 %v3995
        %4088 = vmatprep.subr.bf16.mxu0 %v3998
        %4089 = vmatpush1.bf16.msra.mxu0 %v3997
        %4090 = vmatprep.subr.bf16.mxu0 %v4000
        %4091 = vmatpush1.bf16.msra.mxu0 %v3999
        %4092 = vmatprep.subr.bf16.mxu0 %v4002
        %4093 = vmatpush1.bf16.msra.mxu0 %v4001
        %4094 = vmatprep.subr.bf16.mxu0 %v4004
        %4095 = vmatpush1.bf16.msra.mxu0 %v4003
        %4096 = vmatprep.subr.bf16.mxu0 %v4006
        %4097 = vmatpush1.bf16.msra.mxu0 %v4005
        %4098 = vmatprep.mubr.bf16.mxu0 %v3837
        %4099 = vmatmul.mubr.bf16.gmra.mrb[0].mxu0 %v3834
        %v4100 = vpop.f32.mrb[0].mxu0
        %v4101 = vadd.f32 %v3818, %v4100
        %v4102 = vpop.f32.mrb[0].mxu0
        %v4103 = vadd.f32 %v3820, %v4102
        %v4104 = vpop.f32.mrb[0].mxu0
        %v4105 = vadd.f32 %v3822, %v4104
        %v4106 = vpop.f32.mrb[0].mxu0
        %v4107 = vadd.f32 %v3824, %v4106
        %4108 = vdwg.mxu0
        %4109 = vmatprep.subr.bf16.mxu0 %v4008
        %4110 = vmatpush1.bf16.msra.mxu0 %v4007
        %4111 = vmatprep.subr.bf16.mxu0 %v4010
        %4112 = vmatpush1.bf16.msra.mxu0 %v4009
        %4113 = vmatprep.subr.bf16.mxu0 %v4012
        %4114 = vmatpush1.bf16.msra.mxu0 %v4011
        %4115 = vmatprep.subr.bf16.mxu0 %v4014
        %4116 = vmatpush1.bf16.msra.mxu0 %v4013
        %4117 = vmatprep.subr.bf16.mxu0 %v4016
        %4118 = vmatpush1.bf16.msra.mxu0 %v4015
        %4119 = vmatprep.subr.bf16.mxu0 %v4018
        %4120 = vmatpush1.bf16.msra.mxu0 %v4017
        %4121 = vmatprep.subr.bf16.mxu0 0
        %4122 = vmatpush1.bf16.msra.mxu0 0
        %4123 = vmatprep.subr.bf16.mxu0 0
        %4124 = vmatpush1.bf16.msra.mxu0 0
        %4125 = vmatprep.subr.bf16.mxu0 0
        %4126 = vmatpush1.bf16.msra.mxu0 0
        %4127 = vmatprep.subr.bf16.mxu0 0
        %4128 = vmatpush1.bf16.msra.mxu0 0
        %4129 = vmatprep.subr.bf16.mxu0 0
        %4130 = vmatpush1.bf16.msra.mxu0 0
        %4131 = vmatprep.subr.bf16.mxu0 0
        %4132 = vmatpush1.bf16.msra.mxu0 0
        %4133 = vmatprep.subr.bf16.mxu0 0
        %4134 = vmatpush1.bf16.msra.mxu0 0
        %4135 = vmatprep.subr.bf16.mxu0 0
        %4136 = vmatpush1.bf16.msra.mxu0 0
        %4137 = vmatprep.subr.bf16.mxu0 0
        %4138 = vmatpush1.bf16.msra.mxu0 0
        %4139 = vmatprep.subr.bf16.mxu0 0
        %4140 = vmatpush1.bf16.msra.mxu0 0
        %4141 = vmatprep.mubr.bf16.mxu0 0
        %4142 = vmatmul.mubr.bf16.gmra.mrb[0].mxu0 %v4064
        %v4143 = vpop.f32.mrb[0].mxu0
        %v4144 = vadd.f32 %v4101, %v4143
        %v4145 = vpop.f32.mrb[0].mxu0
        %v4146 = vadd.f32 %v4103, %v4145
        %v4147 = vpop.f32.mrb[0].mxu0
        %v4148 = vadd.f32 %v4105, %v4147
        %v4149 = vpop.f32.mrb[0].mxu0
        %v4150 = vadd.f32 %v4107, %v4149
        %4151 = vdwg.mxu0
        %v4152 = vld [vmem:[#allocation2] sm:$0xf0]
        %v4153 = vld [vmem:[#allocation2 + $0x8] sm:$0xf0]
        %v4154 = vld [vmem:[#allocation2 + $0x10] sm:$0xf0]
        %v4155 = vld [vmem:[#allocation2 + $0x30] sm:$0xf]
        %v4156 = vld [vmem:[#allocation2 + $0x38] sm:$0xf]
        %v4157 = vld [vmem:[#allocation2 + $0x40] sm:$0xf]
        %v4158 = vpack.c.bf16 %v3351, %v4152
        %v4159 = vpack.c.bf16 %v3352, %v4153
        %v4160 = vpack.c.bf16 %v3353, %v4154
        %v4161 = vpack.c.bf16 %v4155, %v4155
        %v4162 = vpack.c.bf16 %v4156, %v4156
        %v4163 = vpack.c.bf16 %v4157, %v4157
        %s4164 = scalar_lea.vmem [#allocation10], 704
        %v4165 = vld [vmem:[%s4164] sm:$0xff]
        %v4166 = vld [vmem:[%s4164 + $0x8] sm:$0xff]
        %v4167 = vld [vmem:[%s4164 + $0x10] sm:$0xff]
        %v4168 = vld [vmem:[%s4164 + $0x18] sm:$0xff]
        %v4169 = vld [vmem:[%s4164 + $0x20] sm:$0xff]
        %v4170 = vld [vmem:[%s4164 + $0x28] sm:$0xff]
        %v4171 = vld [vmem:[%s4164 + $0x30] sm:$0xff]
        %v4172 = vld [vmem:[%s4164 + $0x38] sm:$0xff]
        %v4173 = vld [vmem:[%s4164 + $0x40] sm:$0xff]
        %v4174 = vld [vmem:[%s4164 + $0x48] sm:$0xff]
        %v4175 = vld [vmem:[%s4164 + $0x50] sm:$0xff]
        %v4176 = vld [vmem:[%s4164 + $0x58] sm:$0xff]
        %v4177 = vld [vmem:[%s4164 + $0x60] sm:$0xff]
        %v4178 = vld [vmem:[%s4164 + $0x68] sm:$0xff]
        %v4179 = vld [vmem:[%s4164 + $0x70] sm:$0xff]
        %v4180 = vld [vmem:[%s4164 + $0x78] sm:$0xff]
        %v4181 = vld [vmem:[%s4164 + $0x80] sm:$0xff]
        %v4182 = vld [vmem:[%s4164 + $0x88] sm:$0xff]
        %v4183 = vld [vmem:[%s4164 + $0x90] sm:$0xff]
        %v4184 = vld [vmem:[%s4164 + $0x98] sm:$0xff]
        %v4185 = vld [vmem:[%s4164 + $0xa0] sm:$0xff]
        %v4186 = vld [vmem:[%s4164 + $0xa8] sm:$0xff]
        %v4187 = vld [vmem:[%s4164 + $0xb0] sm:$0xff]
        %v4188 = vld [vmem:[%s4164 + $0xb8] sm:$0xff]
        %v4189 = vld [vmem:[%s4164 + $0xc0] sm:$0xff]
        %v4190 = vld [vmem:[%s4164 + $0xc8] sm:$0xff]
        %v4191 = vld [vmem:[%s4164 + $0xd0] sm:$0xff]
        %v4192 = vld [vmem:[%s4164 + $0xd8] sm:$0xff]
        %v4193 = vld [vmem:[%s4164 + $0xe0] sm:$0xff]
        %v4194 = vld [vmem:[%s4164 + $0xe8] sm:$0xff]
        %v4195 = vld [vmem:[%s4164 + $0xf0] sm:$0xff]
        %v4196 = vld [vmem:[%s4164 + $0xf8] sm:$0xff]
        %v4197 = vld [vmem:[%s4164 + $0x100] sm:$0xff]
        %v4198 = vld [vmem:[%s4164 + $0x108] sm:$0xff]
        %v4199 = vld [vmem:[%s4164 + $0x110] sm:$0xff]
        %v4200 = vld [vmem:[%s4164 + $0x118] sm:$0xff]
        %v4201 = vld [vmem:[%s4164 + $0x120] sm:$0xff]
        %v4202 = vld [vmem:[%s4164 + $0x128] sm:$0xff]
        %v4203 = vld [vmem:[%s4164 + $0x130] sm:$0xff]
        %v4204 = vld [vmem:[%s4164 + $0x138] sm:$0xff]
        %v4205 = vld [vmem:[%s4164 + $0x140] sm:$0xff]
        %v4206 = vld [vmem:[%s4164 + $0x148] sm:$0xff]
        %v4207 = vld [vmem:[%s4164 + $0x150] sm:$0xff]
        %v4208 = vld [vmem:[%s4164 + $0x158] sm:$0xff]
        %v4215 = vrot.slane %v4158, 2
        %v4216 = vrot.slane %v4161, 2
        %v4217 = vsel %vm1674, %v4215, %v4216
        %v4218 = vrot.slane %v4159, 2
        %v4219 = vrot.slane %v4162, 2
        %v4220 = vsel %vm1674, %v4218, %v4219
        %v4221 = vrot.slane %v4160, 2
        %v4222 = vrot.slane %v4163, 2
        %v4223 = vsel %vm1674, %v4221, %v4222
        %v4270 = vunpack.c.l.b16 %v4165
        %v4271 = vunpack.c.h.b16 %v4165
        %v4272 = vunpack.c.l.b16 %v4166
        %v4273 = vunpack.c.h.b16 %v4166
        %v4274 = vunpack.c.l.b16 %v4167
        %v4275 = vunpack.c.h.b16 %v4167
        %v4276 = vunpack.c.l.b16 %v4168
        %v4277 = vunpack.c.h.b16 %v4168
        %v4278 = vunpack.c.l.b16 %v4169
        %v4279 = vunpack.c.h.b16 %v4169
        %v4280 = vunpack.c.l.b16 %v4170
        %v4281 = vunpack.c.h.b16 %v4170
        %v4282 = vunpack.c.l.b16 %v4171
        %v4283 = vunpack.c.h.b16 %v4171
        %v4284 = vunpack.c.l.b16 %v4172
        %v4285 = vunpack.c.h.b16 %v4172
        %v4286 = vunpack.c.l.b16 %v4173
        %v4287 = vunpack.c.h.b16 %v4173
        %v4288 = vunpack.c.l.b16 %v4174
        %v4289 = vunpack.c.h.b16 %v4174
        %v4290 = vunpack.c.l.b16 %v4175
        %v4291 = vunpack.c.h.b16 %v4175
        %v4292 = vunpack.c.l.b16 %v4176
        %v4293 = vunpack.c.h.b16 %v4176
        %v4294 = vunpack.c.l.b16 %v4177
        %v4295 = vunpack.c.h.b16 %v4177
        %v4296 = vunpack.c.l.b16 %v4178
        %v4297 = vunpack.c.h.b16 %v4178
        %v4298 = vunpack.c.l.b16 %v4179
        %v4299 = vunpack.c.h.b16 %v4179
        %v4300 = vunpack.c.l.b16 %v4180
        %v4301 = vunpack.c.h.b16 %v4180
        %v4302 = vunpack.c.l.b16 %v4181
        %v4303 = vunpack.c.h.b16 %v4181
        %v4304 = vunpack.c.l.b16 %v4182
        %v4305 = vunpack.c.h.b16 %v4182
        %v4306 = vunpack.c.l.b16 %v4183
        %v4307 = vunpack.c.h.b16 %v4183
        %v4308 = vunpack.c.l.b16 %v4184
        %v4309 = vunpack.c.h.b16 %v4184
        %v4310 = vunpack.c.l.b16 %v4185
        %v4311 = vunpack.c.h.b16 %v4185
        %v4312 = vunpack.c.l.b16 %v4186
        %v4313 = vunpack.c.h.b16 %v4186
        %v4314 = vunpack.c.l.b16 %v4187
        %v4315 = vunpack.c.h.b16 %v4187
        %v4316 = vunpack.c.l.b16 %v4188
        %v4317 = vunpack.c.h.b16 %v4188
        %v4318 = vunpack.c.l.b16 %v4189
        %v4319 = vunpack.c.h.b16 %v4189
        %v4320 = vunpack.c.l.b16 %v4190
        %v4321 = vunpack.c.h.b16 %v4190
        %v4322 = vunpack.c.l.b16 %v4191
        %v4323 = vunpack.c.h.b16 %v4191
        %v4324 = vunpack.c.l.b16 %v4192
        %v4325 = vunpack.c.h.b16 %v4192
        %v4326 = vunpack.c.l.b16 %v4193
        %v4327 = vunpack.c.h.b16 %v4193
        %v4328 = vunpack.c.l.b16 %v4194
        %v4329 = vunpack.c.h.b16 %v4194
        %v4330 = vunpack.c.l.b16 %v4195
        %v4331 = vunpack.c.h.b16 %v4195
        %v4332 = vunpack.c.l.b16 %v4196
        %v4333 = vunpack.c.h.b16 %v4196
        %v4334 = vunpack.c.l.b16 %v4197
        %v4335 = vunpack.c.h.b16 %v4197
        %v4336 = vunpack.c.l.b16 %v4198
        %v4337 = vunpack.c.h.b16 %v4198
        %v4338 = vunpack.c.l.b16 %v4199
        %v4339 = vunpack.c.h.b16 %v4199
        %v4340 = vunpack.c.l.b16 %v4200
        %v4341 = vunpack.c.h.b16 %v4200
        %v4342 = vunpack.c.l.b16 %v4201
        %v4343 = vunpack.c.h.b16 %v4201
        %v4344 = vunpack.c.l.b16 %v4202
        %v4345 = vunpack.c.h.b16 %v4202
        %v4346 = vunpack.c.l.b16 %v4203
        %v4347 = vunpack.c.h.b16 %v4203
        %v4348 = vunpack.c.l.b16 %v4204
        %v4349 = vunpack.c.h.b16 %v4204
        %v4350 = vunpack.c.l.b16 %v4205
        %v4351 = vunpack.c.h.b16 %v4205
        %v4352 = vunpack.c.l.b16 %v4206
        %v4353 = vunpack.c.h.b16 %v4206
        %v4354 = vunpack.c.l.b16 %v4207
        %v4355 = vunpack.c.h.b16 %v4207
        %v4356 = vunpack.c.l.b16 %v4208
        %v4357 = vunpack.c.h.b16 %v4208
        %v4358 = vpack.c.b16 %v4272, %v4270
        %v4359 = vpack.c.b16 %v4273, %v4271
        %v4360 = vpack.c.b16 %v4276, %v4274
        %v4361 = vpack.c.b16 %v4277, %v4275
        %v4362 = vpack.c.b16 %v4280, %v4278
        %v4363 = vpack.c.b16 %v4281, %v4279
        %v4364 = vpack.c.b16 %v4284, %v4282
        %v4365 = vpack.c.b16 %v4285, %v4283
        %v4366 = vpack.c.b16 %v4288, %v4286
        %v4367 = vpack.c.b16 %v4289, %v4287
        %v4368 = vpack.c.b16 %v4292, %v4290
        %v4369 = vpack.c.b16 %v4293, %v4291
        %v4370 = vpack.c.b16 %v4296, %v4294
        %v4371 = vpack.c.b16 %v4297, %v4295
        %v4372 = vpack.c.b16 %v4300, %v4298
        %v4373 = vpack.c.b16 %v4301, %v4299
        %v4374 = vpack.c.b16 %v4304, %v4302
        %v4375 = vpack.c.b16 %v4305, %v4303
        %v4376 = vpack.c.b16 %v4308, %v4306
        %v4377 = vpack.c.b16 %v4309, %v4307
        %v4378 = vpack.c.b16 %v4312, %v4310
        %v4379 = vpack.c.b16 %v4313, %v4311
        %v4380 = vpack.c.b16 %v4316, %v4314
        %v4381 = vpack.c.b16 %v4317, %v4315
        %v4382 = vpack.c.b16 %v4320, %v4318
        %v4383 = vpack.c.b16 %v4321, %v4319
        %v4384 = vpack.c.b16 %v4324, %v4322
        %v4385 = vpack.c.b16 %v4325, %v4323
        %v4386 = vpack.c.b16 %v4328, %v4326
        %v4387 = vpack.c.b16 %v4329, %v4327
        %v4388 = vpack.c.b16 %v4332, %v4330
        %v4389 = vpack.c.b16 %v4333, %v4331
        %v4390 = vpack.c.b16 %v4336, %v4334
        %v4391 = vpack.c.b16 %v4337, %v4335
        %v4392 = vpack.c.b16 %v4340, %v4338
        %v4393 = vpack.c.b16 %v4341, %v4339
        %v4394 = vpack.c.b16 %v4344, %v4342
        %v4395 = vpack.c.b16 %v4345, %v4343
        %v4396 = vpack.c.b16 %v4348, %v4346
        %v4397 = vpack.c.b16 %v4349, %v4347
        %v4398 = vpack.c.b16 %v4352, %v4350
        %v4399 = vpack.c.b16 %v4353, %v4351
        %v4400 = vpack.c.b16 %v4356, %v4354
        %v4401 = vpack.c.b16 %v4357, %v4355
        %v4447 = vsel %vm796, %v4223, 0
        %4449 = vmatprep.subr.bf16.mxu0 %v4359
        %4450 = vmatpush1.bf16.msra.mxu0 %v4358
        %4451 = vmatprep.subr.bf16.mxu0 %v4361
        %4452 = vmatpush1.bf16.msra.mxu0 %v4360
        %4453 = vmatprep.subr.bf16.mxu0 %v4363
        %4454 = vmatpush1.bf16.msra.mxu0 %v4362
        %4455 = vmatprep.subr.bf16.mxu0 %v4365
        %4456 = vmatpush1.bf16.msra.mxu0 %v4364
        %4457 = vmatprep.subr.bf16.mxu0 %v4367
        %4458 = vmatpush1.bf16.msra.mxu0 %v4366
        %4459 = vmatprep.subr.bf16.mxu0 %v4369
        %4460 = vmatpush1.bf16.msra.mxu0 %v4368
        %4461 = vmatprep.subr.bf16.mxu0 %v4371
        %4462 = vmatpush1.bf16.msra.mxu0 %v4370
        %4463 = vmatprep.subr.bf16.mxu0 %v4373
        %4464 = vmatpush1.bf16.msra.mxu0 %v4372
        %4465 = vmatprep.subr.bf16.mxu0 %v4375
        %4466 = vmatpush1.bf16.msra.mxu0 %v4374
        %4467 = vmatprep.subr.bf16.mxu0 %v4377
        %4468 = vmatpush1.bf16.msra.mxu0 %v4376
        %4469 = vmatprep.subr.bf16.mxu0 %v4379
        %4470 = vmatpush1.bf16.msra.mxu0 %v4378
        %4471 = vmatprep.subr.bf16.mxu0 %v4381
        %4472 = vmatpush1.bf16.msra.mxu0 %v4380
        %4473 = vmatprep.subr.bf16.mxu0 %v4383
        %4474 = vmatpush1.bf16.msra.mxu0 %v4382
        %4475 = vmatprep.subr.bf16.mxu0 %v4385
        %4476 = vmatpush1.bf16.msra.mxu0 %v4384
        %4477 = vmatprep.subr.bf16.mxu0 %v4387
        %4478 = vmatpush1.bf16.msra.mxu0 %v4386
        %4479 = vmatprep.subr.bf16.mxu0 %v4389
        %4480 = vmatpush1.bf16.msra.mxu0 %v4388
        %4481 = vmatprep.mubr.bf16.mxu0 %v4220
        %4482 = vmatmul.mubr.bf16.gmra.mrb[0].mxu0 %v4217
        %v4483 = vpop.f32.mrb[0].mxu0
        %v4484 = vadd.f32 0.0, %v4483
        %v4485 = vpop.f32.mrb[0].mxu0
        %v4486 = vadd.f32 0.0, %v4485
        %v4487 = vpop.f32.mrb[0].mxu0
        %v4488 = vadd.f32 0.0, %v4487
        %v4489 = vpop.f32.mrb[0].mxu0
        %v4490 = vadd.f32 0.0, %v4489
        %4491 = vdwg.mxu0
        %4492 = vmatprep.subr.bf16.mxu0 %v4391
        %4493 = vmatpush1.bf16.msra.mxu0 %v4390
        %4494 = vmatprep.subr.bf16.mxu0 %v4393
        %4495 = vmatpush1.bf16.msra.mxu0 %v4392
        %4496 = vmatprep.subr.bf16.mxu0 %v4395
        %4497 = vmatpush1.bf16.msra.mxu0 %v4394
        %4498 = vmatprep.subr.bf16.mxu0 %v4397
        %4499 = vmatpush1.bf16.msra.mxu0 %v4396
        %4500 = vmatprep.subr.bf16.mxu0 %v4399
        %4501 = vmatpush1.bf16.msra.mxu0 %v4398
        %4502 = vmatprep.subr.bf16.mxu0 %v4401
        %4503 = vmatpush1.bf16.msra.mxu0 %v4400
        %4504 = vmatprep.subr.bf16.mxu0 0
        %4505 = vmatpush1.bf16.msra.mxu0 0
        %4506 = vmatprep.subr.bf16.mxu0 0
        %4507 = vmatpush1.bf16.msra.mxu0 0
        %4508 = vmatprep.subr.bf16.mxu0 0
        %4509 = vmatpush1.bf16.msra.mxu0 0
        %4510 = vmatprep.subr.bf16.mxu0 0
        %4511 = vmatpush1.bf16.msra.mxu0 0
        %4512 = vmatprep.subr.bf16.mxu0 0
        %4513 = vmatpush1.bf16.msra.mxu0 0
        %4514 = vmatprep.subr.bf16.mxu0 0
        %4515 = vmatpush1.bf16.msra.mxu0 0
        %4516 = vmatprep.subr.bf16.mxu0 0
        %4517 = vmatpush1.bf16.msra.mxu0 0
        %4518 = vmatprep.subr.bf16.mxu0 0
        %4519 = vmatpush1.bf16.msra.mxu0 0
        %4520 = vmatprep.subr.bf16.mxu0 0
        %4521 = vmatpush1.bf16.msra.mxu0 0
        %4522 = vmatprep.subr.bf16.mxu0 0
        %4523 = vmatpush1.bf16.msra.mxu0 0
        %4524 = vmatprep.mubr.bf16.mxu0 0
        %4525 = vmatmul.mubr.bf16.gmra.mrb[0].mxu0 %v4447
        %v4526 = vpop.f32.mrb[0].mxu0
        %v4527 = vadd.f32 %v4484, %v4526
        %v4528 = vpop.f32.mrb[0].mxu0
        %v4529 = vadd.f32 %v4486, %v4528
        %v4530 = vpop.f32.mrb[0].mxu0
        %v4531 = vadd.f32 %v4488, %v4530
        %v4532 = vpop.f32.mrb[0].mxu0
        %v4533 = vadd.f32 %v4490, %v4532
        %4534 = vdwg.mxu0
        %v4535 = vadd.f32 %v4144, %v4527
        %v4536 = vadd.f32 %v4146, %v4529
        %v4537 = vadd.f32 %v4148, %v4531
        %v4538 = vadd.f32 %v4150, %v4533
        %v4539 = vld [vmem:[#allocation11] sm:$0x3]
        %v4541 = vlaneseq
        %v4542 = vshrl.u32 %v4541, 7
        %v4543 = vsub.s32 0, %v4542
        %v4544 = vrot.slane %v4539, %v4543
        %v4545 = vlaneseq
        %v4546 = vshrl.u32 %v4545, 7
        %v4547 = vsub.s32 1, %v4546
        %v4548 = vrot.slane %v4539, %v4547
        %v4551 = vadd.f32 %v4535, %v4544
        %v4552 = vadd.f32 %v4536, %v4548
        %v4553 = vadd.f32 %v4537, %v4544
        %v4554 = vadd.f32 %v4538, %v4548
        %v4555 = vmax.f32 %v4551, 0.0
        %v4556 = vmax.f32 %v4552, 0.0
        %v4557 = vmax.f32 %v4553, 0.0
        %v4558 = vmax.f32 %v4554, 0.0
        %v4559 = vld [vmem:[#allocation2] sm:$0xfe]
        %v4560 = vld [vmem:[#allocation2 + $0x8] sm:$0xfe]
        %v4561 = vld [vmem:[#allocation2 + $0x10] sm:$0xfe]
        %v4562 = vld [vmem:[#allocation2 + $0x30] sm:$0x1]
        %v4563 = vld [vmem:[#allocation2 + $0x38] sm:$0x1]
        %v4564 = vld [vmem:[#allocation2 + $0x40] sm:$0x1]
        %v4565 = vpack.c.bf16 %v3351, %v4559
        %v4566 = vpack.c.bf16 %v3352, %v4560
        %v4567 = vpack.c.bf16 %v3353, %v4561
        %v4568 = vpack.c.bf16 %v4562, %v4562
        %v4569 = vpack.c.bf16 %v4563, %v4563
        %v4570 = vpack.c.bf16 %v4564, %v4564
        %v4571 = vld [vmem:[#allocation13] sm:$0xff]
        %v4572 = vld [vmem:[#allocation13 + $0x8] sm:$0xff]
        %v4573 = vld [vmem:[#allocation13 + $0x10] sm:$0xff]
        %v4574 = vld [vmem:[#allocation13 + $0x18] sm:$0xff]
        %v4575 = vld [vmem:[#allocation13 + $0x20] sm:$0xff]
        %v4576 = vld [vmem:[#allocation13 + $0x28] sm:$0xff]
        %v4577 = vld [vmem:[#allocation13 + $0x30] sm:$0xff]
        %v4578 = vld [vmem:[#allocation13 + $0x38] sm:$0xff]
        %v4579 = vld [vmem:[#allocation13 + $0x40] sm:$0xff]
        %v4580 = vld [vmem:[#allocation13 + $0x48] sm:$0xff]
        %v4581 = vld [vmem:[#allocation13 + $0x50] sm:$0xff]
        %v4582 = vld [vmem:[#allocation13 + $0x58] sm:$0xff]
        %v4583 = vld [vmem:[#allocation13 + $0x60] sm:$0xff]
        %v4584 = vld [vmem:[#allocation13 + $0x68] sm:$0xff]
        %v4585 = vld [vmem:[#allocation13 + $0x70] sm:$0xff]
        %v4586 = vld [vmem:[#allocation13 + $0x78] sm:$0xff]
        %v4587 = vld [vmem:[#allocation13 + $0x80] sm:$0xff]
        %v4588 = vld [vmem:[#allocation13 + $0x88] sm:$0xff]
        %v4589 = vld [vmem:[#allocation13 + $0x90] sm:$0xff]
        %v4590 = vld [vmem:[#allocation13 + $0x98] sm:$0xff]
        %v4591 = vld [vmem:[#allocation13 + $0xa0] sm:$0xff]
        %v4592 = vld [vmem:[#allocation13 + $0xa8] sm:$0xff]
        %v4593 = vld [vmem:[#allocation13 + $0xb0] sm:$0xff]
        %v4594 = vld [vmem:[#allocation13 + $0xb8] sm:$0xff]
        %v4595 = vld [vmem:[#allocation13 + $0xc0] sm:$0xff]
        %v4596 = vld [vmem:[#allocation13 + $0xc8] sm:$0xff]
        %v4597 = vld [vmem:[#allocation13 + $0xd0] sm:$0xff]
        %v4598 = vld [vmem:[#allocation13 + $0xd8] sm:$0xff]
        %v4599 = vld [vmem:[#allocation13 + $0xe0] sm:$0xff]
        %v4600 = vld [vmem:[#allocation13 + $0xe8] sm:$0xff]
        %v4601 = vld [vmem:[#allocation13 + $0xf0] sm:$0xff]
        %v4602 = vld [vmem:[#allocation13 + $0xf8] sm:$0xff]
        %v4603 = vld [vmem:[#allocation13 + $0x100] sm:$0xff]
        %v4604 = vld [vmem:[#allocation13 + $0x108] sm:$0xff]
        %v4605 = vld [vmem:[#allocation13 + $0x110] sm:$0xff]
        %v4606 = vld [vmem:[#allocation13 + $0x118] sm:$0xff]
        %v4607 = vld [vmem:[#allocation13 + $0x120] sm:$0xff]
        %v4608 = vld [vmem:[#allocation13 + $0x128] sm:$0xff]
        %v4609 = vld [vmem:[#allocation13 + $0x130] sm:$0xff]
        %v4610 = vld [vmem:[#allocation13 + $0x138] sm:$0xff]
        %v4611 = vld [vmem:[#allocation13 + $0x140] sm:$0xff]
        %v4612 = vld [vmem:[#allocation13 + $0x148] sm:$0xff]
        %v4613 = vld [vmem:[#allocation13 + $0x150] sm:$0xff]
        %v4614 = vld [vmem:[#allocation13 + $0x158] sm:$0xff]
        %s4615 = scalar_lea.vmem [#allocation13], 352
        %v4616 = vld [vmem:[%s4615] sm:$0xff]
        %v4617 = vld [vmem:[%s4615 + $0x8] sm:$0xff]
        %v4618 = vld [vmem:[%s4615 + $0x10] sm:$0xff]
        %v4619 = vld [vmem:[%s4615 + $0x18] sm:$0xff]
        %v4620 = vld [vmem:[%s4615 + $0x20] sm:$0xff]
        %v4621 = vld [vmem:[%s4615 + $0x28] sm:$0xff]
        %v4622 = vld [vmem:[%s4615 + $0x30] sm:$0xff]
        %v4623 = vld [vmem:[%s4615 + $0x38] sm:$0xff]
        %v4624 = vld [vmem:[%s4615 + $0x40] sm:$0xff]
        %v4625 = vld [vmem:[%s4615 + $0x48] sm:$0xff]
        %v4626 = vld [vmem:[%s4615 + $0x50] sm:$0xff]
        %v4627 = vld [vmem:[%s4615 + $0x58] sm:$0xff]
        %v4628 = vld [vmem:[%s4615 + $0x60] sm:$0xff]
        %v4629 = vld [vmem:[%s4615 + $0x68] sm:$0xff]
        %v4630 = vld [vmem:[%s4615 + $0x70] sm:$0xff]
        %v4631 = vld [vmem:[%s4615 + $0x78] sm:$0xff]
        %v4632 = vld [vmem:[%s4615 + $0x80] sm:$0xff]
        %v4633 = vld [vmem:[%s4615 + $0x88] sm:$0xff]
        %v4634 = vld [vmem:[%s4615 + $0x90] sm:$0xff]
        %v4635 = vld [vmem:[%s4615 + $0x98] sm:$0xff]
        %v4636 = vld [vmem:[%s4615 + $0xa0] sm:$0xff]
        %v4637 = vld [vmem:[%s4615 + $0xa8] sm:$0xff]
        %v4638 = vld [vmem:[%s4615 + $0xb0] sm:$0xff]
        %v4639 = vld [vmem:[%s4615 + $0xb8] sm:$0xff]
        %v4640 = vld [vmem:[%s4615 + $0xc0] sm:$0xff]
        %v4641 = vld [vmem:[%s4615 + $0xc8] sm:$0xff]
        %v4642 = vld [vmem:[%s4615 + $0xd0] sm:$0xff]
        %v4643 = vld [vmem:[%s4615 + $0xd8] sm:$0xff]
        %v4644 = vld [vmem:[%s4615 + $0xe0] sm:$0xff]
        %v4645 = vld [vmem:[%s4615 + $0xe8] sm:$0xff]
        %v4646 = vld [vmem:[%s4615 + $0xf0] sm:$0xff]
        %v4647 = vld [vmem:[%s4615 + $0xf8] sm:$0xff]
        %v4648 = vld [vmem:[%s4615 + $0x100] sm:$0xff]
        %v4649 = vld [vmem:[%s4615 + $0x108] sm:$0xff]
        %v4650 = vld [vmem:[%s4615 + $0x110] sm:$0xff]
        %v4651 = vld [vmem:[%s4615 + $0x118] sm:$0xff]
        %v4652 = vld [vmem:[%s4615 + $0x120] sm:$0xff]
        %v4653 = vld [vmem:[%s4615 + $0x128] sm:$0xff]
        %v4654 = vld [vmem:[%s4615 + $0x130] sm:$0xff]
        %v4655 = vld [vmem:[%s4615 + $0x138] sm:$0xff]
        %v4656 = vld [vmem:[%s4615 + $0x140] sm:$0xff]
        %v4657 = vld [vmem:[%s4615 + $0x148] sm:$0xff]
        %v4658 = vld [vmem:[%s4615 + $0x150] sm:$0xff]
        %v4659 = vld [vmem:[%s4615 + $0x158] sm:$0xff]
        %v4704 = vunpack.c.l.b16 %v4616
        %v4705 = vunpack.c.h.b16 %v4616
        %v4706 = vunpack.c.l.b16 %v4617
        %v4707 = vunpack.c.h.b16 %v4617
        %v4708 = vunpack.c.l.b16 %v4618
        %v4709 = vunpack.c.h.b16 %v4618
        %v4710 = vunpack.c.l.b16 %v4619
        %v4711 = vunpack.c.h.b16 %v4619
        %v4712 = vunpack.c.l.b16 %v4620
        %v4713 = vunpack.c.h.b16 %v4620
        %v4714 = vunpack.c.l.b16 %v4621
        %v4715 = vunpack.c.h.b16 %v4621
        %v4716 = vunpack.c.l.b16 %v4622
        %v4717 = vunpack.c.h.b16 %v4622
        %v4718 = vunpack.c.l.b16 %v4623
        %v4719 = vunpack.c.h.b16 %v4623
        %v4720 = vunpack.c.l.b16 %v4624
        %v4721 = vunpack.c.h.b16 %v4624
        %v4722 = vunpack.c.l.b16 %v4625
        %v4723 = vunpack.c.h.b16 %v4625
        %v4724 = vunpack.c.l.b16 %v4626
        %v4725 = vunpack.c.h.b16 %v4626
        %v4726 = vunpack.c.l.b16 %v4627
        %v4727 = vunpack.c.h.b16 %v4627
        %v4728 = vunpack.c.l.b16 %v4628
        %v4729 = vunpack.c.h.b16 %v4628
        %v4730 = vunpack.c.l.b16 %v4629
        %v4731 = vunpack.c.h.b16 %v4629
        %v4732 = vunpack.c.l.b16 %v4630
        %v4733 = vunpack.c.h.b16 %v4630
        %v4734 = vunpack.c.l.b16 %v4631
        %v4735 = vunpack.c.h.b16 %v4631
        %v4736 = vunpack.c.l.b16 %v4632
        %v4737 = vunpack.c.h.b16 %v4632
        %v4738 = vunpack.c.l.b16 %v4633
        %v4739 = vunpack.c.h.b16 %v4633
        %v4740 = vunpack.c.l.b16 %v4634
        %v4741 = vunpack.c.h.b16 %v4634
        %v4742 = vunpack.c.l.b16 %v4635
        %v4743 = vunpack.c.h.b16 %v4635
        %v4744 = vunpack.c.l.b16 %v4636
        %v4745 = vunpack.c.h.b16 %v4636
        %v4746 = vunpack.c.l.b16 %v4637
        %v4747 = vunpack.c.h.b16 %v4637
        %v4748 = vunpack.c.l.b16 %v4638
        %v4749 = vunpack.c.h.b16 %v4638
        %v4750 = vunpack.c.l.b16 %v4639
        %v4751 = vunpack.c.h.b16 %v4639
        %v4752 = vunpack.c.l.b16 %v4640
        %v4753 = vunpack.c.h.b16 %v4640
        %v4754 = vunpack.c.l.b16 %v4641
        %v4755 = vunpack.c.h.b16 %v4641
        %v4756 = vunpack.c.l.b16 %v4642
        %v4757 = vunpack.c.h.b16 %v4642
        %v4758 = vunpack.c.l.b16 %v4643
        %v4759 = vunpack.c.h.b16 %v4643
        %v4760 = vunpack.c.l.b16 %v4644
        %v4761 = vunpack.c.h.b16 %v4644
        %v4762 = vunpack.c.l.b16 %v4645
        %v4763 = vunpack.c.h.b16 %v4645
        %v4764 = vunpack.c.l.b16 %v4646
        %v4765 = vunpack.c.h.b16 %v4646
        %v4766 = vunpack.c.l.b16 %v4647
        %v4767 = vunpack.c.h.b16 %v4647
        %v4768 = vunpack.c.l.b16 %v4648
        %v4769 = vunpack.c.h.b16 %v4648
        %v4770 = vunpack.c.l.b16 %v4649
        %v4771 = vunpack.c.h.b16 %v4649
        %v4772 = vunpack.c.l.b16 %v4650
        %v4773 = vunpack.c.h.b16 %v4650
        %v4774 = vunpack.c.l.b16 %v4651
        %v4775 = vunpack.c.h.b16 %v4651
        %v4776 = vunpack.c.l.b16 %v4652
        %v4777 = vunpack.c.h.b16 %v4652
        %v4778 = vunpack.c.l.b16 %v4653
        %v4779 = vunpack.c.h.b16 %v4653
        %v4780 = vunpack.c.l.b16 %v4654
        %v4781 = vunpack.c.h.b16 %v4654
        %v4782 = vunpack.c.l.b16 %v4655
        %v4783 = vunpack.c.h.b16 %v4655
        %v4784 = vunpack.c.l.b16 %v4656
        %v4785 = vunpack.c.h.b16 %v4656
        %v4786 = vunpack.c.l.b16 %v4657
        %v4787 = vunpack.c.h.b16 %v4657
        %v4788 = vunpack.c.l.b16 %v4658
        %v4789 = vunpack.c.h.b16 %v4658
        %v4790 = vunpack.c.l.b16 %v4659
        %v4791 = vunpack.c.h.b16 %v4659
        %v4792 = vpack.c.b16 %v4706, %v4704
        %v4793 = vpack.c.b16 %v4707, %v4705
        %v4794 = vpack.c.b16 %v4710, %v4708
        %v4795 = vpack.c.b16 %v4711, %v4709
        %v4796 = vpack.c.b16 %v4714, %v4712
        %v4797 = vpack.c.b16 %v4715, %v4713
        %v4798 = vpack.c.b16 %v4718, %v4716
        %v4799 = vpack.c.b16 %v4719, %v4717
        %v4800 = vpack.c.b16 %v4722, %v4720
        %v4801 = vpack.c.b16 %v4723, %v4721
        %v4802 = vpack.c.b16 %v4726, %v4724
        %v4803 = vpack.c.b16 %v4727, %v4725
        %v4804 = vpack.c.b16 %v4730, %v4728
        %v4805 = vpack.c.b16 %v4731, %v4729
        %v4806 = vpack.c.b16 %v4734, %v4732
        %v4807 = vpack.c.b16 %v4735, %v4733
        %v4808 = vpack.c.b16 %v4738, %v4736
        %v4809 = vpack.c.b16 %v4739, %v4737
        %v4810 = vpack.c.b16 %v4742, %v4740
        %v4811 = vpack.c.b16 %v4743, %v4741
        %v4812 = vpack.c.b16 %v4746, %v4744
        %v4813 = vpack.c.b16 %v4747, %v4745
        %v4814 = vpack.c.b16 %v4750, %v4748
        %v4815 = vpack.c.b16 %v4751, %v4749
        %v4816 = vpack.c.b16 %v4754, %v4752
        %v4817 = vpack.c.b16 %v4755, %v4753
        %v4818 = vpack.c.b16 %v4758, %v4756
        %v4819 = vpack.c.b16 %v4759, %v4757
        %v4820 = vpack.c.b16 %v4762, %v4760
        %v4821 = vpack.c.b16 %v4763, %v4761
        %v4822 = vpack.c.b16 %v4766, %v4764
        %v4823 = vpack.c.b16 %v4767, %v4765
        %v4824 = vpack.c.b16 %v4770, %v4768
        %v4825 = vpack.c.b16 %v4771, %v4769
        %v4826 = vpack.c.b16 %v4774, %v4772
        %v4827 = vpack.c.b16 %v4775, %v4773
        %v4828 = vpack.c.b16 %v4778, %v4776
        %v4829 = vpack.c.b16 %v4779, %v4777
        %v4830 = vpack.c.b16 %v4782, %v4780
        %v4831 = vpack.c.b16 %v4783, %v4781
        %v4832 = vpack.c.b16 %v4786, %v4784
        %v4833 = vpack.c.b16 %v4787, %v4785
        %v4834 = vpack.c.b16 %v4790, %v4788
        %v4835 = vpack.c.b16 %v4791, %v4789
        %4880 = vmatprep.subr.bf16.mxu0 %v4793
        %4881 = vmatpush1.bf16.msra.mxu0 %v4792
        %4882 = vmatprep.subr.bf16.mxu0 %v4795
        %4883 = vmatpush1.bf16.msra.mxu0 %v4794
        %4884 = vmatprep.subr.bf16.mxu0 %v4797
        %4885 = vmatpush1.bf16.msra.mxu0 %v4796
        %4886 = vmatprep.subr.bf16.mxu0 %v4799
        %4887 = vmatpush1.bf16.msra.mxu0 %v4798
        %4888 = vmatprep.subr.bf16.mxu0 %v4801
        %4889 = vmatpush1.bf16.msra.mxu0 %v4800
        %4890 = vmatprep.subr.bf16.mxu0 %v4803
        %4891 = vmatpush1.bf16.msra.mxu0 %v4802
        %4892 = vmatprep.subr.bf16.mxu0 %v4805
        %4893 = vmatpush1.bf16.msra.mxu0 %v4804
        %4894 = vmatprep.subr.bf16.mxu0 %v4807
        %4895 = vmatpush1.bf16.msra.mxu0 %v4806
        %4896 = vmatprep.subr.bf16.mxu0 %v4809
        %4897 = vmatpush1.bf16.msra.mxu0 %v4808
        %4898 = vmatprep.subr.bf16.mxu0 %v4811
        %4899 = vmatpush1.bf16.msra.mxu0 %v4810
        %4900 = vmatprep.subr.bf16.mxu0 %v4813
        %4901 = vmatpush1.bf16.msra.mxu0 %v4812
        %4902 = vmatprep.subr.bf16.mxu0 %v4815
        %4903 = vmatpush1.bf16.msra.mxu0 %v4814
        %4904 = vmatprep.subr.bf16.mxu0 %v4817
        %4905 = vmatpush1.bf16.msra.mxu0 %v4816
        %4906 = vmatprep.subr.bf16.mxu0 %v4819
        %4907 = vmatpush1.bf16.msra.mxu0 %v4818
        %4908 = vmatprep.subr.bf16.mxu0 %v4821
        %4909 = vmatpush1.bf16.msra.mxu0 %v4820
        %4910 = vmatprep.subr.bf16.mxu0 %v4823
        %4911 = vmatpush1.bf16.msra.mxu0 %v4822
        %4912 = vmatprep.mubr.bf16.mxu0 %v3837
        %4913 = vmatmul.mubr.bf16.gmra.mrb[0].mxu0 %v3834
        %v4914 = vpop.f32.mrb[0].mxu0
        %v4915 = vadd.f32 0.0, %v4914
        %v4916 = vpop.f32.mrb[0].mxu0
        %v4917 = vadd.f32 0.0, %v4916
        %v4918 = vpop.f32.mrb[0].mxu0
        %v4919 = vadd.f32 0.0, %v4918
        %v4920 = vpop.f32.mrb[0].mxu0
        %v4921 = vadd.f32 0.0, %v4920
        %4922 = vdwg.mxu0
        %4923 = vmatprep.subr.bf16.mxu0 %v4825
        %4924 = vmatpush1.bf16.msra.mxu0 %v4824
        %4925 = vmatprep.subr.bf16.mxu0 %v4827
        %4926 = vmatpush1.bf16.msra.mxu0 %v4826
        %4927 = vmatprep.subr.bf16.mxu0 %v4829
        %4928 = vmatpush1.bf16.msra.mxu0 %v4828
        %4929 = vmatprep.subr.bf16.mxu0 %v4831
        %4930 = vmatpush1.bf16.msra.mxu0 %v4830
        %4931 = vmatprep.subr.bf16.mxu0 %v4833
        %4932 = vmatpush1.bf16.msra.mxu0 %v4832
        %4933 = vmatprep.subr.bf16.mxu0 %v4835
        %4934 = vmatpush1.bf16.msra.mxu0 %v4834
        %4935 = vmatprep.subr.bf16.mxu0 0
        %4936 = vmatpush1.bf16.msra.mxu0 0
        %4937 = vmatprep.subr.bf16.mxu0 0
        %4938 = vmatpush1.bf16.msra.mxu0 0
        %4939 = vmatprep.subr.bf16.mxu0 0
        %4940 = vmatpush1.bf16.msra.mxu0 0
        %4941 = vmatprep.subr.bf16.mxu0 0
        %4942 = vmatpush1.bf16.msra.mxu0 0
        %4943 = vmatprep.subr.bf16.mxu0 0
        %4944 = vmatpush1.bf16.msra.mxu0 0
        %4945 = vmatprep.subr.bf16.mxu0 0
        %4946 = vmatpush1.bf16.msra.mxu0 0
        %4947 = vmatprep.subr.bf16.mxu0 0
        %4948 = vmatpush1.bf16.msra.mxu0 0
        %4949 = vmatprep.subr.bf16.mxu0 0
        %4950 = vmatpush1.bf16.msra.mxu0 0
        %4951 = vmatprep.subr.bf16.mxu0 0
        %4952 = vmatpush1.bf16.msra.mxu0 0
        %4953 = vmatprep.subr.bf16.mxu0 0
        %4954 = vmatpush1.bf16.msra.mxu0 0
        %4955 = vmatprep.mubr.bf16.mxu0 0
        %4956 = vmatmul.mubr.bf16.gmra.mrb[0].mxu0 %v4064
        %v4957 = vpop.f32.mrb[0].mxu0
        %v4958 = vadd.f32 %v4915, %v4957
        %v4959 = vpop.f32.mrb[0].mxu0
        %v4960 = vadd.f32 %v4917, %v4959
        %v4961 = vpop.f32.mrb[0].mxu0
        %v4962 = vadd.f32 %v4919, %v4961
        %v4963 = vpop.f32.mrb[0].mxu0
        %v4964 = vadd.f32 %v4921, %v4963
        %4965 = vdwg.mxu0
        %vm4966 = vsmask.f32 7424
        %v4968 = vshrl.u32 %v4565, 16
        %v4970 = vshll.u32 %v4565, 16
        %v4972 = vrot.slane %v4970, 1
        %v4973 = vor.u32 %v4968, %v4972
        %v4975 = vshll.u32 %v4568, 16
        %v4977 = vrot.slane %v4975, 1
        %v4978 = vsel %vm4966, %v4973, %v4977
        %v4980 = vshrl.u32 %v4566, 16
        %v4982 = vshll.u32 %v4566, 16
        %v4984 = vrot.slane %v4982, 1
        %v4985 = vor.u32 %v4980, %v4984
        %v4987 = vshll.u32 %v4569, 16
        %v4989 = vrot.slane %v4987, 1
        %v4990 = vsel %vm4966, %v4985, %v4989
        %v4992 = vshrl.u32 %v4567, 16
        %v4994 = vshll.u32 %v4567, 16
        %v4996 = vrot.slane %v4994, 1
        %v4997 = vor.u32 %v4992, %v4996
        %v4999 = vshll.u32 %v4570, 16
        %v5001 = vrot.slane %v4999, 1
        %v5002 = vsel %vm4966, %v4997, %v5001
        %v5049 = vunpack.c.l.b16 %v4571
        %v5050 = vunpack.c.h.b16 %v4571
        %v5051 = vunpack.c.l.b16 %v4572
        %v5052 = vunpack.c.h.b16 %v4572
        %v5053 = vunpack.c.l.b16 %v4573
        %v5054 = vunpack.c.h.b16 %v4573
        %v5055 = vunpack.c.l.b16 %v4574
        %v5056 = vunpack.c.h.b16 %v4574
        %v5057 = vunpack.c.l.b16 %v4575
        %v5058 = vunpack.c.h.b16 %v4575
        %v5059 = vunpack.c.l.b16 %v4576
        %v5060 = vunpack.c.h.b16 %v4576
        %v5061 = vunpack.c.l.b16 %v4577
        %v5062 = vunpack.c.h.b16 %v4577
        %v5063 = vunpack.c.l.b16 %v4578
        %v5064 = vunpack.c.h.b16 %v4578
        %v5065 = vunpack.c.l.b16 %v4579
        %v5066 = vunpack.c.h.b16 %v4579
        %v5067 = vunpack.c.l.b16 %v4580
        %v5068 = vunpack.c.h.b16 %v4580
        %v5069 = vunpack.c.l.b16 %v4581
        %v5070 = vunpack.c.h.b16 %v4581
        %v5071 = vunpack.c.l.b16 %v4582
        %v5072 = vunpack.c.h.b16 %v4582
        %v5073 = vunpack.c.l.b16 %v4583
        %v5074 = vunpack.c.h.b16 %v4583
        %v5075 = vunpack.c.l.b16 %v4584
        %v5076 = vunpack.c.h.b16 %v4584
        %v5077 = vunpack.c.l.b16 %v4585
        %v5078 = vunpack.c.h.b16 %v4585
        %v5079 = vunpack.c.l.b16 %v4586
        %v5080 = vunpack.c.h.b16 %v4586
        %v5081 = vunpack.c.l.b16 %v4587
        %v5082 = vunpack.c.h.b16 %v4587
        %v5083 = vunpack.c.l.b16 %v4588
        %v5084 = vunpack.c.h.b16 %v4588
        %v5085 = vunpack.c.l.b16 %v4589
        %v5086 = vunpack.c.h.b16 %v4589
        %v5087 = vunpack.c.l.b16 %v4590
        %v5088 = vunpack.c.h.b16 %v4590
        %v5089 = vunpack.c.l.b16 %v4591
        %v5090 = vunpack.c.h.b16 %v4591
        %v5091 = vunpack.c.l.b16 %v4592
        %v5092 = vunpack.c.h.b16 %v4592
        %v5093 = vunpack.c.l.b16 %v4593
        %v5094 = vunpack.c.h.b16 %v4593
        %v5095 = vunpack.c.l.b16 %v4594
        %v5096 = vunpack.c.h.b16 %v4594
        %v5097 = vunpack.c.l.b16 %v4595
        %v5098 = vunpack.c.h.b16 %v4595
        %v5099 = vunpack.c.l.b16 %v4596
        %v5100 = vunpack.c.h.b16 %v4596
        %v5101 = vunpack.c.l.b16 %v4597
        %v5102 = vunpack.c.h.b16 %v4597
        %v5103 = vunpack.c.l.b16 %v4598
        %v5104 = vunpack.c.h.b16 %v4598
        %v5105 = vunpack.c.l.b16 %v4599
        %v5106 = vunpack.c.h.b16 %v4599
        %v5107 = vunpack.c.l.b16 %v4600
        %v5108 = vunpack.c.h.b16 %v4600
        %v5109 = vunpack.c.l.b16 %v4601
        %v5110 = vunpack.c.h.b16 %v4601
        %v5111 = vunpack.c.l.b16 %v4602
        %v5112 = vunpack.c.h.b16 %v4602
        %v5113 = vunpack.c.l.b16 %v4603
        %v5114 = vunpack.c.h.b16 %v4603
        %v5115 = vunpack.c.l.b16 %v4604
        %v5116 = vunpack.c.h.b16 %v4604
        %v5117 = vunpack.c.l.b16 %v4605
        %v5118 = vunpack.c.h.b16 %v4605
        %v5119 = vunpack.c.l.b16 %v4606
        %v5120 = vunpack.c.h.b16 %v4606
        %v5121 = vunpack.c.l.b16 %v4607
        %v5122 = vunpack.c.h.b16 %v4607
        %v5123 = vunpack.c.l.b16 %v4608
        %v5124 = vunpack.c.h.b16 %v4608
        %v5125 = vunpack.c.l.b16 %v4609
        %v5126 = vunpack.c.h.b16 %v4609
        %v5127 = vunpack.c.l.b16 %v4610
        %v5128 = vunpack.c.h.b16 %v4610
        %v5129 = vunpack.c.l.b16 %v4611
        %v5130 = vunpack.c.h.b16 %v4611
        %v5131 = vunpack.c.l.b16 %v4612
        %v5132 = vunpack.c.h.b16 %v4612
        %v5133 = vunpack.c.l.b16 %v4613
        %v5134 = vunpack.c.h.b16 %v4613
        %v5135 = vunpack.c.l.b16 %v4614
        %v5136 = vunpack.c.h.b16 %v4614
        %v5137 = vpack.c.b16 %v5051, %v5049
        %v5138 = vpack.c.b16 %v5052, %v5050
        %v5139 = vpack.c.b16 %v5055, %v5053
        %v5140 = vpack.c.b16 %v5056, %v5054
        %v5141 = vpack.c.b16 %v5059, %v5057
        %v5142 = vpack.c.b16 %v5060, %v5058
        %v5143 = vpack.c.b16 %v5063, %v5061
        %v5144 = vpack.c.b16 %v5064, %v5062
        %v5145 = vpack.c.b16 %v5067, %v5065
        %v5146 = vpack.c.b16 %v5068, %v5066
        %v5147 = vpack.c.b16 %v5071, %v5069
        %v5148 = vpack.c.b16 %v5072, %v5070
        %v5149 = vpack.c.b16 %v5075, %v5073
        %v5150 = vpack.c.b16 %v5076, %v5074
        %v5151 = vpack.c.b16 %v5079, %v5077
        %v5152 = vpack.c.b16 %v5080, %v5078
        %v5153 = vpack.c.b16 %v5083, %v5081
        %v5154 = vpack.c.b16 %v5084, %v5082
        %v5155 = vpack.c.b16 %v5087, %v5085
        %v5156 = vpack.c.b16 %v5088, %v5086
        %v5157 = vpack.c.b16 %v5091, %v5089
        %v5158 = vpack.c.b16 %v5092, %v5090
        %v5159 = vpack.c.b16 %v5095, %v5093
        %v5160 = vpack.c.b16 %v5096, %v5094
        %v5161 = vpack.c.b16 %v5099, %v5097
        %v5162 = vpack.c.b16 %v5100, %v5098
        %v5163 = vpack.c.b16 %v5103, %v5101
        %v5164 = vpack.c.b16 %v5104, %v5102
        %v5165 = vpack.c.b16 %v5107, %v5105
        %v5166 = vpack.c.b16 %v5108, %v5106
        %v5167 = vpack.c.b16 %v5111, %v5109
        %v5168 = vpack.c.b16 %v5112, %v5110
        %v5169 = vpack.c.b16 %v5115, %v5113
        %v5170 = vpack.c.b16 %v5116, %v5114
        %v5171 = vpack.c.b16 %v5119, %v5117
        %v5172 = vpack.c.b16 %v5120, %v5118
        %v5173 = vpack.c.b16 %v5123, %v5121
        %v5174 = vpack.c.b16 %v5124, %v5122
        %v5175 = vpack.c.b16 %v5127, %v5125
        %v5176 = vpack.c.b16 %v5128, %v5126
        %v5177 = vpack.c.b16 %v5131, %v5129
        %v5178 = vpack.c.b16 %v5132, %v5130
        %v5179 = vpack.c.b16 %v5135, %v5133
        %v5180 = vpack.c.b16 %v5136, %v5134
        %v5226 = vsel %vm796, %v5002, 0
        %5228 = vmatprep.subr.bf16.mxu0 %v5138
        %5229 = vmatpush1.bf16.msra.mxu0 %v5137
        %5230 = vmatprep.subr.bf16.mxu0 %v5140
        %5231 = vmatpush1.bf16.msra.mxu0 %v5139
        %5232 = vmatprep.subr.bf16.mxu0 %v5142
        %5233 = vmatpush1.bf16.msra.mxu0 %v5141
        %5234 = vmatprep.subr.bf16.mxu0 %v5144
        %5235 = vmatpush1.bf16.msra.mxu0 %v5143
        %5236 = vmatprep.subr.bf16.mxu0 %v5146
        %5237 = vmatpush1.bf16.msra.mxu0 %v5145
        %5238 = vmatprep.subr.bf16.mxu0 %v5148
        %5239 = vmatpush1.bf16.msra.mxu0 %v5147
        %5240 = vmatprep.subr.bf16.mxu0 %v5150
        %5241 = vmatpush1.bf16.msra.mxu0 %v5149
        %5242 = vmatprep.subr.bf16.mxu0 %v5152
        %5243 = vmatpush1.bf16.msra.mxu0 %v5151
        %5244 = vmatprep.subr.bf16.mxu0 %v5154
        %5245 = vmatpush1.bf16.msra.mxu0 %v5153
        %5246 = vmatprep.subr.bf16.mxu0 %v5156
        %5247 = vmatpush1.bf16.msra.mxu0 %v5155
        %5248 = vmatprep.subr.bf16.mxu0 %v5158
        %5249 = vmatpush1.bf16.msra.mxu0 %v5157
        %5250 = vmatprep.subr.bf16.mxu0 %v5160
        %5251 = vmatpush1.bf16.msra.mxu0 %v5159
        %5252 = vmatprep.subr.bf16.mxu0 %v5162
        %5253 = vmatpush1.bf16.msra.mxu0 %v5161
        %5254 = vmatprep.subr.bf16.mxu0 %v5164
        %5255 = vmatpush1.bf16.msra.mxu0 %v5163
        %5256 = vmatprep.subr.bf16.mxu0 %v5166
        %5257 = vmatpush1.bf16.msra.mxu0 %v5165
        %5258 = vmatprep.subr.bf16.mxu0 %v5168
        %5259 = vmatpush1.bf16.msra.mxu0 %v5167
        %5260 = vmatprep.mubr.bf16.mxu0 %v4990
        %5261 = vmatmul.mubr.bf16.gmra.mrb[0].mxu0 %v4978
        %v5262 = vpop.f32.mrb[0].mxu0
        %v5263 = vadd.f32 %v4958, %v5262
        %v5264 = vpop.f32.mrb[0].mxu0
        %v5265 = vadd.f32 %v4960, %v5264
        %v5266 = vpop.f32.mrb[0].mxu0
        %v5267 = vadd.f32 %v4962, %v5266
        %v5268 = vpop.f32.mrb[0].mxu0
        %v5269 = vadd.f32 %v4964, %v5268
        %5270 = vdwg.mxu0
        %5271 = vmatprep.subr.bf16.mxu0 %v5170
        %5272 = vmatpush1.bf16.msra.mxu0 %v5169
        %5273 = vmatprep.subr.bf16.mxu0 %v5172
        %5274 = vmatpush1.bf16.msra.mxu0 %v5171
        %5275 = vmatprep.subr.bf16.mxu0 %v5174
        %5276 = vmatpush1.bf16.msra.mxu0 %v5173
        %5277 = vmatprep.subr.bf16.mxu0 %v5176
        %5278 = vmatpush1.bf16.msra.mxu0 %v5175
        %5279 = vmatprep.subr.bf16.mxu0 %v5178
        %5280 = vmatpush1.bf16.msra.mxu0 %v5177
        %5281 = vmatprep.subr.bf16.mxu0 %v5180
        %5282 = vmatpush1.bf16.msra.mxu0 %v5179
        %5283 = vmatprep.subr.bf16.mxu0 0
        %5284 = vmatpush1.bf16.msra.mxu0 0
        %5285 = vmatprep.subr.bf16.mxu0 0
        %5286 = vmatpush1.bf16.msra.mxu0 0
        %5287 = vmatprep.subr.bf16.mxu0 0
        %5288 = vmatpush1.bf16.msra.mxu0 0
        %5289 = vmatprep.subr.bf16.mxu0 0
        %5290 = vmatpush1.bf16.msra.mxu0 0
        %5291 = vmatprep.subr.bf16.mxu0 0
        %5292 = vmatpush1.bf16.msra.mxu0 0
        %5293 = vmatprep.subr.bf16.mxu0 0
        %5294 = vmatpush1.bf16.msra.mxu0 0
        %5295 = vmatprep.subr.bf16.mxu0 0
        %5296 = vmatpush1.bf16.msra.mxu0 0
        %5297 = vmatprep.subr.bf16.mxu0 0
        %5298 = vmatpush1.bf16.msra.mxu0 0
        %5299 = vmatprep.subr.bf16.mxu0 0
        %5300 = vmatpush1.bf16.msra.mxu0 0
        %5301 = vmatprep.subr.bf16.mxu0 0
        %5302 = vmatpush1.bf16.msra.mxu0 0
        %5303 = vmatprep.mubr.bf16.mxu0 0
        %5304 = vmatmul.mubr.bf16.gmra.mrb[0].mxu0 %v5226
        %v5305 = vpop.f32.mrb[0].mxu0
        %v5306 = vadd.f32 %v5263, %v5305
        %v5307 = vpop.f32.mrb[0].mxu0
        %v5308 = vadd.f32 %v5265, %v5307
        %v5309 = vpop.f32.mrb[0].mxu0
        %v5310 = vadd.f32 %v5267, %v5309
        %v5311 = vpop.f32.mrb[0].mxu0
        %v5312 = vadd.f32 %v5269, %v5311
        %5313 = vdwg.mxu0
        %s5314 = scalar_lea.vmem [#allocation13], 704
        %v5315 = vld [vmem:[%s5314] sm:$0xff]
        %v5316 = vld [vmem:[%s5314 + $0x8] sm:$0xff]
        %v5317 = vld [vmem:[%s5314 + $0x10] sm:$0xff]
        %v5318 = vld [vmem:[%s5314 + $0x18] sm:$0xff]
        %v5319 = vld [vmem:[%s5314 + $0x20] sm:$0xff]
        %v5320 = vld [vmem:[%s5314 + $0x28] sm:$0xff]
        %v5321 = vld [vmem:[%s5314 + $0x30] sm:$0xff]
        %v5322 = vld [vmem:[%s5314 + $0x38] sm:$0xff]
        %v5323 = vld [vmem:[%s5314 + $0x40] sm:$0xff]
        %v5324 = vld [vmem:[%s5314 + $0x48] sm:$0xff]
        %v5325 = vld [vmem:[%s5314 + $0x50] sm:$0xff]
        %v5326 = vld [vmem:[%s5314 + $0x58] sm:$0xff]
        %v5327 = vld [vmem:[%s5314 + $0x60] sm:$0xff]
        %v5328 = vld [vmem:[%s5314 + $0x68] sm:$0xff]
        %v5329 = vld [vmem:[%s5314 + $0x70] sm:$0xff]
        %v5330 = vld [vmem:[%s5314 + $0x78] sm:$0xff]
        %v5331 = vld [vmem:[%s5314 + $0x80] sm:$0xff]
        %v5332 = vld [vmem:[%s5314 + $0x88] sm:$0xff]
        %v5333 = vld [vmem:[%s5314 + $0x90] sm:$0xff]
        %v5334 = vld [vmem:[%s5314 + $0x98] sm:$0xff]
        %v5335 = vld [vmem:[%s5314 + $0xa0] sm:$0xff]
        %v5336 = vld [vmem:[%s5314 + $0xa8] sm:$0xff]
        %v5337 = vld [vmem:[%s5314 + $0xb0] sm:$0xff]
        %v5338 = vld [vmem:[%s5314 + $0xb8] sm:$0xff]
        %v5339 = vld [vmem:[%s5314 + $0xc0] sm:$0xff]
        %v5340 = vld [vmem:[%s5314 + $0xc8] sm:$0xff]
        %v5341 = vld [vmem:[%s5314 + $0xd0] sm:$0xff]
        %v5342 = vld [vmem:[%s5314 + $0xd8] sm:$0xff]
        %v5343 = vld [vmem:[%s5314 + $0xe0] sm:$0xff]
        %v5344 = vld [vmem:[%s5314 + $0xe8] sm:$0xff]
        %v5345 = vld [vmem:[%s5314 + $0xf0] sm:$0xff]
        %v5346 = vld [vmem:[%s5314 + $0xf8] sm:$0xff]
        %v5347 = vld [vmem:[%s5314 + $0x100] sm:$0xff]
        %v5348 = vld [vmem:[%s5314 + $0x108] sm:$0xff]
        %v5349 = vld [vmem:[%s5314 + $0x110] sm:$0xff]
        %v5350 = vld [vmem:[%s5314 + $0x118] sm:$0xff]
        %v5351 = vld [vmem:[%s5314 + $0x120] sm:$0xff]
        %v5352 = vld [vmem:[%s5314 + $0x128] sm:$0xff]
        %v5353 = vld [vmem:[%s5314 + $0x130] sm:$0xff]
        %v5354 = vld [vmem:[%s5314 + $0x138] sm:$0xff]
        %v5355 = vld [vmem:[%s5314 + $0x140] sm:$0xff]
        %v5356 = vld [vmem:[%s5314 + $0x148] sm:$0xff]
        %v5357 = vld [vmem:[%s5314 + $0x150] sm:$0xff]
        %v5358 = vld [vmem:[%s5314 + $0x158] sm:$0xff]
        %v5403 = vunpack.c.l.b16 %v5315
        %v5404 = vunpack.c.h.b16 %v5315
        %v5405 = vunpack.c.l.b16 %v5316
        %v5406 = vunpack.c.h.b16 %v5316
        %v5407 = vunpack.c.l.b16 %v5317
        %v5408 = vunpack.c.h.b16 %v5317
        %v5409 = vunpack.c.l.b16 %v5318
        %v5410 = vunpack.c.h.b16 %v5318
        %v5411 = vunpack.c.l.b16 %v5319
        %v5412 = vunpack.c.h.b16 %v5319
        %v5413 = vunpack.c.l.b16 %v5320
        %v5414 = vunpack.c.h.b16 %v5320
        %v5415 = vunpack.c.l.b16 %v5321
        %v5416 = vunpack.c.h.b16 %v5321
        %v5417 = vunpack.c.l.b16 %v5322
        %v5418 = vunpack.c.h.b16 %v5322
        %v5419 = vunpack.c.l.b16 %v5323
        %v5420 = vunpack.c.h.b16 %v5323
        %v5421 = vunpack.c.l.b16 %v5324
        %v5422 = vunpack.c.h.b16 %v5324
        %v5423 = vunpack.c.l.b16 %v5325
        %v5424 = vunpack.c.h.b16 %v5325
        %v5425 = vunpack.c.l.b16 %v5326
        %v5426 = vunpack.c.h.b16 %v5326
        %v5427 = vunpack.c.l.b16 %v5327
        %v5428 = vunpack.c.h.b16 %v5327
        %v5429 = vunpack.c.l.b16 %v5328
        %v5430 = vunpack.c.h.b16 %v5328
        %v5431 = vunpack.c.l.b16 %v5329
        %v5432 = vunpack.c.h.b16 %v5329
        %v5433 = vunpack.c.l.b16 %v5330
        %v5434 = vunpack.c.h.b16 %v5330
        %v5435 = vunpack.c.l.b16 %v5331
        %v5436 = vunpack.c.h.b16 %v5331
        %v5437 = vunpack.c.l.b16 %v5332
        %v5438 = vunpack.c.h.b16 %v5332
        %v5439 = vunpack.c.l.b16 %v5333
        %v5440 = vunpack.c.h.b16 %v5333
        %v5441 = vunpack.c.l.b16 %v5334
        %v5442 = vunpack.c.h.b16 %v5334
        %v5443 = vunpack.c.l.b16 %v5335
        %v5444 = vunpack.c.h.b16 %v5335
        %v5445 = vunpack.c.l.b16 %v5336
        %v5446 = vunpack.c.h.b16 %v5336
        %v5447 = vunpack.c.l.b16 %v5337
        %v5448 = vunpack.c.h.b16 %v5337
        %v5449 = vunpack.c.l.b16 %v5338
        %v5450 = vunpack.c.h.b16 %v5338
        %v5451 = vunpack.c.l.b16 %v5339
        %v5452 = vunpack.c.h.b16 %v5339
        %v5453 = vunpack.c.l.b16 %v5340
        %v5454 = vunpack.c.h.b16 %v5340
        %v5455 = vunpack.c.l.b16 %v5341
        %v5456 = vunpack.c.h.b16 %v5341
        %v5457 = vunpack.c.l.b16 %v5342
        %v5458 = vunpack.c.h.b16 %v5342
        %v5459 = vunpack.c.l.b16 %v5343
        %v5460 = vunpack.c.h.b16 %v5343
        %v5461 = vunpack.c.l.b16 %v5344
        %v5462 = vunpack.c.h.b16 %v5344
        %v5463 = vunpack.c.l.b16 %v5345
        %v5464 = vunpack.c.h.b16 %v5345
        %v5465 = vunpack.c.l.b16 %v5346
        %v5466 = vunpack.c.h.b16 %v5346
        %v5467 = vunpack.c.l.b16 %v5347
        %v5468 = vunpack.c.h.b16 %v5347
        %v5469 = vunpack.c.l.b16 %v5348
        %v5470 = vunpack.c.h.b16 %v5348
        %v5471 = vunpack.c.l.b16 %v5349
        %v5472 = vunpack.c.h.b16 %v5349
        %v5473 = vunpack.c.l.b16 %v5350
        %v5474 = vunpack.c.h.b16 %v5350
        %v5475 = vunpack.c.l.b16 %v5351
        %v5476 = vunpack.c.h.b16 %v5351
        %v5477 = vunpack.c.l.b16 %v5352
        %v5478 = vunpack.c.h.b16 %v5352
        %v5479 = vunpack.c.l.b16 %v5353
        %v5480 = vunpack.c.h.b16 %v5353
        %v5481 = vunpack.c.l.b16 %v5354
        %v5482 = vunpack.c.h.b16 %v5354
        %v5483 = vunpack.c.l.b16 %v5355
        %v5484 = vunpack.c.h.b16 %v5355
        %v5485 = vunpack.c.l.b16 %v5356
        %v5486 = vunpack.c.h.b16 %v5356
        %v5487 = vunpack.c.l.b16 %v5357
        %v5488 = vunpack.c.h.b16 %v5357
        %v5489 = vunpack.c.l.b16 %v5358
        %v5490 = vunpack.c.h.b16 %v5358
        %v5491 = vpack.c.b16 %v5405, %v5403
        %v5492 = vpack.c.b16 %v5406, %v5404
        %v5493 = vpack.c.b16 %v5409, %v5407
        %v5494 = vpack.c.b16 %v5410, %v5408
        %v5495 = vpack.c.b16 %v5413, %v5411
        %v5496 = vpack.c.b16 %v5414, %v5412
        %v5497 = vpack.c.b16 %v5417, %v5415
        %v5498 = vpack.c.b16 %v5418, %v5416
        %v5499 = vpack.c.b16 %v5421, %v5419
        %v5500 = vpack.c.b16 %v5422, %v5420
        %v5501 = vpack.c.b16 %v5425, %v5423
        %v5502 = vpack.c.b16 %v5426, %v5424
        %v5503 = vpack.c.b16 %v5429, %v5427
        %v5504 = vpack.c.b16 %v5430, %v5428
        %v5505 = vpack.c.b16 %v5433, %v5431
        %v5506 = vpack.c.b16 %v5434, %v5432
        %v5507 = vpack.c.b16 %v5437, %v5435
        %v5508 = vpack.c.b16 %v5438, %v5436
        %v5509 = vpack.c.b16 %v5441, %v5439
        %v5510 = vpack.c.b16 %v5442, %v5440
        %v5511 = vpack.c.b16 %v5445, %v5443
        %v5512 = vpack.c.b16 %v5446, %v5444
        %v5513 = vpack.c.b16 %v5449, %v5447
        %v5514 = vpack.c.b16 %v5450, %v5448
        %v5515 = vpack.c.b16 %v5453, %v5451
        %v5516 = vpack.c.b16 %v5454, %v5452
        %v5517 = vpack.c.b16 %v5457, %v5455
        %v5518 = vpack.c.b16 %v5458, %v5456
        %v5519 = vpack.c.b16 %v5461, %v5459
        %v5520 = vpack.c.b16 %v5462, %v5460
        %v5521 = vpack.c.b16 %v5465, %v5463
        %v5522 = vpack.c.b16 %v5466, %v5464
        %v5523 = vpack.c.b16 %v5469, %v5467
        %v5524 = vpack.c.b16 %v5470, %v5468
        %v5525 = vpack.c.b16 %v5473, %v5471
        %v5526 = vpack.c.b16 %v5474, %v5472
        %v5527 = vpack.c.b16 %v5477, %v5475
        %v5528 = vpack.c.b16 %v5478, %v5476
        %v5529 = vpack.c.b16 %v5481, %v5479
        %v5530 = vpack.c.b16 %v5482, %v5480
        %v5531 = vpack.c.b16 %v5485, %v5483
        %v5532 = vpack.c.b16 %v5486, %v5484
        %v5533 = vpack.c.b16 %v5489, %v5487
        %v5534 = vpack.c.b16 %v5490, %v5488
        %5579 = vmatprep.subr.bf16.mxu0 %v5492
        %5580 = vmatpush1.bf16.msra.mxu0 %v5491
        %5581 = vmatprep.subr.bf16.mxu0 %v5494
        %5582 = vmatpush1.bf16.msra.mxu0 %v5493
        %5583 = vmatprep.subr.bf16.mxu0 %v5496
        %5584 = vmatpush1.bf16.msra.mxu0 %v5495
        %5585 = vmatprep.subr.bf16.mxu0 %v5498
        %5586 = vmatpush1.bf16.msra.mxu0 %v5497
        %5587 = vmatprep.subr.bf16.mxu0 %v5500
        %5588 = vmatpush1.bf16.msra.mxu0 %v5499
        %5589 = vmatprep.subr.bf16.mxu0 %v5502
        %5590 = vmatpush1.bf16.msra.mxu0 %v5501
        %5591 = vmatprep.subr.bf16.mxu0 %v5504
        %5592 = vmatpush1.bf16.msra.mxu0 %v5503
        %5593 = vmatprep.subr.bf16.mxu0 %v5506
        %5594 = vmatpush1.bf16.msra.mxu0 %v5505
        %5595 = vmatprep.subr.bf16.mxu0 %v5508
        %5596 = vmatpush1.bf16.msra.mxu0 %v5507
        %5597 = vmatprep.subr.bf16.mxu0 %v5510
        %5598 = vmatpush1.bf16.msra.mxu0 %v5509
        %5599 = vmatprep.subr.bf16.mxu0 %v5512
        %5600 = vmatpush1.bf16.msra.mxu0 %v5511
        %5601 = vmatprep.subr.bf16.mxu0 %v5514
        %5602 = vmatpush1.bf16.msra.mxu0 %v5513
        %5603 = vmatprep.subr.bf16.mxu0 %v5516
        %5604 = vmatpush1.bf16.msra.mxu0 %v5515
        %5605 = vmatprep.subr.bf16.mxu0 %v5518
        %5606 = vmatpush1.bf16.msra.mxu0 %v5517
        %5607 = vmatprep.subr.bf16.mxu0 %v5520
        %5608 = vmatpush1.bf16.msra.mxu0 %v5519
        %5609 = vmatprep.subr.bf16.mxu0 %v5522
        %5610 = vmatpush1.bf16.msra.mxu0 %v5521
        %5611 = vmatprep.mubr.bf16.mxu0 %v3497
        %5612 = vmatmul.mubr.bf16.gmra.mrb[0].mxu0 %v3480
        %v5613 = vpop.f32.mrb[0].mxu0
        %v5614 = vadd.f32 0.0, %v5613
        %v5615 = vpop.f32.mrb[0].mxu0
        %v5616 = vadd.f32 0.0, %v5615
        %v5617 = vpop.f32.mrb[0].mxu0
        %v5618 = vadd.f32 0.0, %v5617
        %v5619 = vpop.f32.mrb[0].mxu0
        %v5620 = vadd.f32 0.0, %v5619
        %5621 = vdwg.mxu0
        %5622 = vmatprep.subr.bf16.mxu0 %v5524
        %5623 = vmatpush1.bf16.msra.mxu0 %v5523
        %5624 = vmatprep.subr.bf16.mxu0 %v5526
        %5625 = vmatpush1.bf16.msra.mxu0 %v5525
        %5626 = vmatprep.subr.bf16.mxu0 %v5528
        %5627 = vmatpush1.bf16.msra.mxu0 %v5527
        %5628 = vmatprep.subr.bf16.mxu0 %v5530
        %5629 = vmatpush1.bf16.msra.mxu0 %v5529
        %5630 = vmatprep.subr.bf16.mxu0 %v5532
        %5631 = vmatpush1.bf16.msra.mxu0 %v5531
        %5632 = vmatprep.subr.bf16.mxu0 %v5534
        %5633 = vmatpush1.bf16.msra.mxu0 %v5533
        %5634 = vmatprep.subr.bf16.mxu0 0
        %5635 = vmatpush1.bf16.msra.mxu0 0
        %5636 = vmatprep.subr.bf16.mxu0 0
        %5637 = vmatpush1.bf16.msra.mxu0 0
        %5638 = vmatprep.subr.bf16.mxu0 0
        %5639 = vmatpush1.bf16.msra.mxu0 0
        %5640 = vmatprep.subr.bf16.mxu0 0
        %5641 = vmatpush1.bf16.msra.mxu0 0
        %5642 = vmatprep.subr.bf16.mxu0 0
        %5643 = vmatpush1.bf16.msra.mxu0 0
        %5644 = vmatprep.subr.bf16.mxu0 0
        %5645 = vmatpush1.bf16.msra.mxu0 0
        %5646 = vmatprep.subr.bf16.mxu0 0
        %5647 = vmatpush1.bf16.msra.mxu0 0
        %5648 = vmatprep.subr.bf16.mxu0 0
        %5649 = vmatpush1.bf16.msra.mxu0 0
        %5650 = vmatprep.subr.bf16.mxu0 0
        %5651 = vmatpush1.bf16.msra.mxu0 0
        %5652 = vmatprep.subr.bf16.mxu0 0
        %5653 = vmatpush1.bf16.msra.mxu0 0
        %5654 = vmatprep.mubr.bf16.mxu0 0
        %5655 = vmatmul.mubr.bf16.gmra.mrb[0].mxu0 %v3738
        %v5656 = vpop.f32.mrb[0].mxu0
        %v5657 = vadd.f32 %v5614, %v5656
        %v5658 = vpop.f32.mrb[0].mxu0
        %v5659 = vadd.f32 %v5616, %v5658
        %v5660 = vpop.f32.mrb[0].mxu0
        %v5661 = vadd.f32 %v5618, %v5660
        %v5662 = vpop.f32.mrb[0].mxu0
        %v5663 = vadd.f32 %v5620, %v5662
        %5664 = vdwg.mxu0
        %v5665 = vadd.f32 %v5306, %v5657
        %v5666 = vadd.f32 %v5308, %v5659
        %v5667 = vadd.f32 %v5310, %v5661
        %v5668 = vadd.f32 %v5312, %v5663
        %s5669 = scalar_lea.vmem [#allocation13], 1056
        %v5670 = vld [vmem:[%s5669] sm:$0xff]
        %v5671 = vld [vmem:[%s5669 + $0x8] sm:$0xff]
        %v5672 = vld [vmem:[%s5669 + $0x10] sm:$0xff]
        %v5673 = vld [vmem:[%s5669 + $0x18] sm:$0xff]
        %v5674 = vld [vmem:[%s5669 + $0x20] sm:$0xff]
        %v5675 = vld [vmem:[%s5669 + $0x28] sm:$0xff]
        %v5676 = vld [vmem:[%s5669 + $0x30] sm:$0xff]
        %v5677 = vld [vmem:[%s5669 + $0x38] sm:$0xff]
        %v5678 = vld [vmem:[%s5669 + $0x40] sm:$0xff]
        %v5679 = vld [vmem:[%s5669 + $0x48] sm:$0xff]
        %v5680 = vld [vmem:[%s5669 + $0x50] sm:$0xff]
        %v5681 = vld [vmem:[%s5669 + $0x58] sm:$0xff]
        %v5682 = vld [vmem:[%s5669 + $0x60] sm:$0xff]
        %v5683 = vld [vmem:[%s5669 + $0x68] sm:$0xff]
        %v5684 = vld [vmem:[%s5669 + $0x70] sm:$0xff]
        %v5685 = vld [vmem:[%s5669 + $0x78] sm:$0xff]
        %v5686 = vld [vmem:[%s5669 + $0x80] sm:$0xff]
        %v5687 = vld [vmem:[%s5669 + $0x88] sm:$0xff]
        %v5688 = vld [vmem:[%s5669 + $0x90] sm:$0xff]
        %v5689 = vld [vmem:[%s5669 + $0x98] sm:$0xff]
        %v5690 = vld [vmem:[%s5669 + $0xa0] sm:$0xff]
        %v5691 = vld [vmem:[%s5669 + $0xa8] sm:$0xff]
        %v5692 = vld [vmem:[%s5669 + $0xb0] sm:$0xff]
        %v5693 = vld [vmem:[%s5669 + $0xb8] sm:$0xff]
        %v5694 = vld [vmem:[%s5669 + $0xc0] sm:$0xff]
        %v5695 = vld [vmem:[%s5669 + $0xc8] sm:$0xff]
        %v5696 = vld [vmem:[%s5669 + $0xd0] sm:$0xff]
        %v5697 = vld [vmem:[%s5669 + $0xd8] sm:$0xff]
        %v5698 = vld [vmem:[%s5669 + $0xe0] sm:$0xff]
        %v5699 = vld [vmem:[%s5669 + $0xe8] sm:$0xff]
        %v5700 = vld [vmem:[%s5669 + $0xf0] sm:$0xff]
        %v5701 = vld [vmem:[%s5669 + $0xf8] sm:$0xff]
        %v5702 = vld [vmem:[%s5669 + $0x100] sm:$0xff]
        %v5703 = vld [vmem:[%s5669 + $0x108] sm:$0xff]
        %v5704 = vld [vmem:[%s5669 + $0x110] sm:$0xff]
        %v5705 = vld [vmem:[%s5669 + $0x118] sm:$0xff]
        %v5706 = vld [vmem:[%s5669 + $0x120] sm:$0xff]
        %v5707 = vld [vmem:[%s5669 + $0x128] sm:$0xff]
        %v5708 = vld [vmem:[%s5669 + $0x130] sm:$0xff]
        %v5709 = vld [vmem:[%s5669 + $0x138] sm:$0xff]
        %v5710 = vld [vmem:[%s5669 + $0x140] sm:$0xff]
        %v5711 = vld [vmem:[%s5669 + $0x148] sm:$0xff]
        %v5712 = vld [vmem:[%s5669 + $0x150] sm:$0xff]
        %v5713 = vld [vmem:[%s5669 + $0x158] sm:$0xff]
        %v5758 = vunpack.c.l.b16 %v5670
        %v5759 = vunpack.c.h.b16 %v5670
        %v5760 = vunpack.c.l.b16 %v5671
        %v5761 = vunpack.c.h.b16 %v5671
        %v5762 = vunpack.c.l.b16 %v5672
        %v5763 = vunpack.c.h.b16 %v5672
        %v5764 = vunpack.c.l.b16 %v5673
        %v5765 = vunpack.c.h.b16 %v5673
        %v5766 = vunpack.c.l.b16 %v5674
        %v5767 = vunpack.c.h.b16 %v5674
        %v5768 = vunpack.c.l.b16 %v5675
        %v5769 = vunpack.c.h.b16 %v5675
        %v5770 = vunpack.c.l.b16 %v5676
        %v5771 = vunpack.c.h.b16 %v5676
        %v5772 = vunpack.c.l.b16 %v5677
        %v5773 = vunpack.c.h.b16 %v5677
        %v5774 = vunpack.c.l.b16 %v5678
        %v5775 = vunpack.c.h.b16 %v5678
        %v5776 = vunpack.c.l.b16 %v5679
        %v5777 = vunpack.c.h.b16 %v5679
        %v5778 = vunpack.c.l.b16 %v5680
        %v5779 = vunpack.c.h.b16 %v5680
        %v5780 = vunpack.c.l.b16 %v5681
        %v5781 = vunpack.c.h.b16 %v5681
        %v5782 = vunpack.c.l.b16 %v5682
        %v5783 = vunpack.c.h.b16 %v5682
        %v5784 = vunpack.c.l.b16 %v5683
        %v5785 = vunpack.c.h.b16 %v5683
        %v5786 = vunpack.c.l.b16 %v5684
        %v5787 = vunpack.c.h.b16 %v5684
        %v5788 = vunpack.c.l.b16 %v5685
        %v5789 = vunpack.c.h.b16 %v5685
        %v5790 = vunpack.c.l.b16 %v5686
        %v5791 = vunpack.c.h.b16 %v5686
        %v5792 = vunpack.c.l.b16 %v5687
        %v5793 = vunpack.c.h.b16 %v5687
        %v5794 = vunpack.c.l.b16 %v5688
        %v5795 = vunpack.c.h.b16 %v5688
        %v5796 = vunpack.c.l.b16 %v5689
        %v5797 = vunpack.c.h.b16 %v5689
        %v5798 = vunpack.c.l.b16 %v5690
        %v5799 = vunpack.c.h.b16 %v5690
        %v5800 = vunpack.c.l.b16 %v5691
        %v5801 = vunpack.c.h.b16 %v5691
        %v5802 = vunpack.c.l.b16 %v5692
        %v5803 = vunpack.c.h.b16 %v5692
        %v5804 = vunpack.c.l.b16 %v5693
        %v5805 = vunpack.c.h.b16 %v5693
        %v5806 = vunpack.c.l.b16 %v5694
        %v5807 = vunpack.c.h.b16 %v5694
        %v5808 = vunpack.c.l.b16 %v5695
        %v5809 = vunpack.c.h.b16 %v5695
        %v5810 = vunpack.c.l.b16 %v5696
        %v5811 = vunpack.c.h.b16 %v5696
        %v5812 = vunpack.c.l.b16 %v5697
        %v5813 = vunpack.c.h.b16 %v5697
        %v5814 = vunpack.c.l.b16 %v5698
        %v5815 = vunpack.c.h.b16 %v5698
        %v5816 = vunpack.c.l.b16 %v5699
        %v5817 = vunpack.c.h.b16 %v5699
        %v5818 = vunpack.c.l.b16 %v5700
        %v5819 = vunpack.c.h.b16 %v5700
        %v5820 = vunpack.c.l.b16 %v5701
        %v5821 = vunpack.c.h.b16 %v5701
        %v5822 = vunpack.c.l.b16 %v5702
        %v5823 = vunpack.c.h.b16 %v5702
        %v5824 = vunpack.c.l.b16 %v5703
        %v5825 = vunpack.c.h.b16 %v5703
        %v5826 = vunpack.c.l.b16 %v5704
        %v5827 = vunpack.c.h.b16 %v5704
        %v5828 = vunpack.c.l.b16 %v5705
        %v5829 = vunpack.c.h.b16 %v5705
        %v5830 = vunpack.c.l.b16 %v5706
        %v5831 = vunpack.c.h.b16 %v5706
        %v5832 = vunpack.c.l.b16 %v5707
        %v5833 = vunpack.c.h.b16 %v5707
        %v5834 = vunpack.c.l.b16 %v5708
        %v5835 = vunpack.c.h.b16 %v5708
        %v5836 = vunpack.c.l.b16 %v5709
        %v5837 = vunpack.c.h.b16 %v5709
        %v5838 = vunpack.c.l.b16 %v5710
        %v5839 = vunpack.c.h.b16 %v5710
        %v5840 = vunpack.c.l.b16 %v5711
        %v5841 = vunpack.c.h.b16 %v5711
        %v5842 = vunpack.c.l.b16 %v5712
        %v5843 = vunpack.c.h.b16 %v5712
        %v5844 = vunpack.c.l.b16 %v5713
        %v5845 = vunpack.c.h.b16 %v5713
        %v5846 = vpack.c.b16 %v5760, %v5758
        %v5847 = vpack.c.b16 %v5761, %v5759
        %v5848 = vpack.c.b16 %v5764, %v5762
        %v5849 = vpack.c.b16 %v5765, %v5763
        %v5850 = vpack.c.b16 %v5768, %v5766
        %v5851 = vpack.c.b16 %v5769, %v5767
        %v5852 = vpack.c.b16 %v5772, %v5770
        %v5853 = vpack.c.b16 %v5773, %v5771
        %v5854 = vpack.c.b16 %v5776, %v5774
        %v5855 = vpack.c.b16 %v5777, %v5775
        %v5856 = vpack.c.b16 %v5780, %v5778
        %v5857 = vpack.c.b16 %v5781, %v5779
        %v5858 = vpack.c.b16 %v5784, %v5782
        %v5859 = vpack.c.b16 %v5785, %v5783
        %v5860 = vpack.c.b16 %v5788, %v5786
        %v5861 = vpack.c.b16 %v5789, %v5787
        %v5862 = vpack.c.b16 %v5792, %v5790
        %v5863 = vpack.c.b16 %v5793, %v5791
        %v5864 = vpack.c.b16 %v5796, %v5794
        %v5865 = vpack.c.b16 %v5797, %v5795
        %v5866 = vpack.c.b16 %v5800, %v5798
        %v5867 = vpack.c.b16 %v5801, %v5799
        %v5868 = vpack.c.b16 %v5804, %v5802
        %v5869 = vpack.c.b16 %v5805, %v5803
        %v5870 = vpack.c.b16 %v5808, %v5806
        %v5871 = vpack.c.b16 %v5809, %v5807
        %v5872 = vpack.c.b16 %v5812, %v5810
        %v5873 = vpack.c.b16 %v5813, %v5811
        %v5874 = vpack.c.b16 %v5816, %v5814
        %v5875 = vpack.c.b16 %v5817, %v5815
        %v5876 = vpack.c.b16 %v5820, %v5818
        %v5877 = vpack.c.b16 %v5821, %v5819
        %v5878 = vpack.c.b16 %v5824, %v5822
        %v5879 = vpack.c.b16 %v5825, %v5823
        %v5880 = vpack.c.b16 %v5828, %v5826
        %v5881 = vpack.c.b16 %v5829, %v5827
        %v5882 = vpack.c.b16 %v5832, %v5830
        %v5883 = vpack.c.b16 %v5833, %v5831
        %v5884 = vpack.c.b16 %v5836, %v5834
        %v5885 = vpack.c.b16 %v5837, %v5835
        %v5886 = vpack.c.b16 %v5840, %v5838
        %v5887 = vpack.c.b16 %v5841, %v5839
        %v5888 = vpack.c.b16 %v5844, %v5842
        %v5889 = vpack.c.b16 %v5845, %v5843
        %5934 = vmatprep.subr.bf16.mxu0 %v5847
        %5935 = vmatpush1.bf16.msra.mxu0 %v5846
        %5936 = vmatprep.subr.bf16.mxu0 %v5849
        %5937 = vmatpush1.bf16.msra.mxu0 %v5848
        %5938 = vmatprep.subr.bf16.mxu0 %v5851
        %5939 = vmatpush1.bf16.msra.mxu0 %v5850
        %5940 = vmatprep.subr.bf16.mxu0 %v5853
        %5941 = vmatpush1.bf16.msra.mxu0 %v5852
        %5942 = vmatprep.subr.bf16.mxu0 %v5855
        %5943 = vmatpush1.bf16.msra.mxu0 %v5854
        %5944 = vmatprep.subr.bf16.mxu0 %v5857
        %5945 = vmatpush1.bf16.msra.mxu0 %v5856
        %5946 = vmatprep.subr.bf16.mxu0 %v5859
        %5947 = vmatpush1.bf16.msra.mxu0 %v5858
        %5948 = vmatprep.subr.bf16.mxu0 %v5861
        %5949 = vmatpush1.bf16.msra.mxu0 %v5860
        %5950 = vmatprep.subr.bf16.mxu0 %v5863
        %5951 = vmatpush1.bf16.msra.mxu0 %v5862
        %5952 = vmatprep.subr.bf16.mxu0 %v5865
        %5953 = vmatpush1.bf16.msra.mxu0 %v5864
        %5954 = vmatprep.subr.bf16.mxu0 %v5867
        %5955 = vmatpush1.bf16.msra.mxu0 %v5866
        %5956 = vmatprep.subr.bf16.mxu0 %v5869
        %5957 = vmatpush1.bf16.msra.mxu0 %v5868
        %5958 = vmatprep.subr.bf16.mxu0 %v5871
        %5959 = vmatpush1.bf16.msra.mxu0 %v5870
        %5960 = vmatprep.subr.bf16.mxu0 %v5873
        %5961 = vmatpush1.bf16.msra.mxu0 %v5872
        %5962 = vmatprep.subr.bf16.mxu0 %v5875
        %5963 = vmatpush1.bf16.msra.mxu0 %v5874
        %5964 = vmatprep.subr.bf16.mxu0 %v5877
        %5965 = vmatpush1.bf16.msra.mxu0 %v5876
        %5966 = vmatprep.mubr.bf16.mxu0 %v4220
        %5967 = vmatmul.mubr.bf16.gmra.mrb[0].mxu0 %v4217
        %v5968 = vpop.f32.mrb[0].mxu0
        %v5969 = vadd.f32 0.0, %v5968
        %v5970 = vpop.f32.mrb[0].mxu0
        %v5971 = vadd.f32 0.0, %v5970
        %v5972 = vpop.f32.mrb[0].mxu0
        %v5973 = vadd.f32 0.0, %v5972
        %v5974 = vpop.f32.mrb[0].mxu0
        %v5975 = vadd.f32 0.0, %v5974
        %5976 = vdwg.mxu0
        %5977 = vmatprep.subr.bf16.mxu0 %v5879
        %5978 = vmatpush1.bf16.msra.mxu0 %v5878
        %5979 = vmatprep.subr.bf16.mxu0 %v5881
        %5980 = vmatpush1.bf16.msra.mxu0 %v5880
        %5981 = vmatprep.subr.bf16.mxu0 %v5883
        %5982 = vmatpush1.bf16.msra.mxu0 %v5882
        %5983 = vmatprep.subr.bf16.mxu0 %v5885
        %5984 = vmatpush1.bf16.msra.mxu0 %v5884
        %5985 = vmatprep.subr.bf16.mxu0 %v5887
        %5986 = vmatpush1.bf16.msra.mxu0 %v5886
        %5987 = vmatprep.subr.bf16.mxu0 %v5889
        %5988 = vmatpush1.bf16.msra.mxu0 %v5888
        %5989 = vmatprep.subr.bf16.mxu0 0
        %5990 = vmatpush1.bf16.msra.mxu0 0
        %5991 = vmatprep.subr.bf16.mxu0 0
        %5992 = vmatpush1.bf16.msra.mxu0 0
        %5993 = vmatprep.subr.bf16.mxu0 0
        %5994 = vmatpush1.bf16.msra.mxu0 0
        %5995 = vmatprep.subr.bf16.mxu0 0
        %5996 = vmatpush1.bf16.msra.mxu0 0
        %5997 = vmatprep.subr.bf16.mxu0 0
        %5998 = vmatpush1.bf16.msra.mxu0 0
        %5999 = vmatprep.subr.bf16.mxu0 0
        %6000 = vmatpush1.bf16.msra.mxu0 0
        %6001 = vmatprep.subr.bf16.mxu0 0
        %6002 = vmatpush1.bf16.msra.mxu0 0
        %6003 = vmatprep.subr.bf16.mxu0 0
        %6004 = vmatpush1.bf16.msra.mxu0 0
        %6005 = vmatprep.subr.bf16.mxu0 0
        %6006 = vmatpush1.bf16.msra.mxu0 0
        %6007 = vmatprep.subr.bf16.mxu0 0
        %6008 = vmatpush1.bf16.msra.mxu0 0
        %6009 = vmatprep.mubr.bf16.mxu0 0
        %6010 = vmatmul.mubr.bf16.gmra.mrb[0].mxu0 %v4447
        %v6011 = vpop.f32.mrb[0].mxu0
        %v6012 = vadd.f32 %v5969, %v6011
        %v6013 = vpop.f32.mrb[0].mxu0
        %v6014 = vadd.f32 %v5971, %v6013
        %v6015 = vpop.f32.mrb[0].mxu0
        %v6016 = vadd.f32 %v5973, %v6015
        %v6017 = vpop.f32.mrb[0].mxu0
        %v6018 = vadd.f32 %v5975, %v6017
        %6019 = vdwg.mxu0
        %v6020 = vadd.f32 %v5665, %v6012
        %v6021 = vadd.f32 %v5666, %v6014
        %v6022 = vadd.f32 %v5667, %v6016
        %v6023 = vadd.f32 %v5668, %v6018
        %v6024 = vld [vmem:[#allocation2] sm:$0xe0]
        %v6025 = vld [vmem:[#allocation2 + $0x8] sm:$0xe0]
        %v6026 = vld [vmem:[#allocation2 + $0x10] sm:$0xe0]
        %v6027 = vld [vmem:[#allocation2 + $0x30] sm:$0x1f]
        %v6028 = vld [vmem:[#allocation2 + $0x38] sm:$0x1f]
        %v6029 = vld [vmem:[#allocation2 + $0x40] sm:$0x1f]
        %v6030 = vpack.c.bf16 %v3351, %v6024
        %v6031 = vpack.c.bf16 %v3352, %v6025
        %v6032 = vpack.c.bf16 %v3353, %v6026
        %v6033 = vpack.c.bf16 %v6027, %v6027
        %v6034 = vpack.c.bf16 %v6028, %v6028
        %v6035 = vpack.c.bf16 %v6029, %v6029
        %s6036 = scalar_lea.vmem [#allocation13], 1408
        %v6037 = vld [vmem:[%s6036] sm:$0xff]
        %v6038 = vld [vmem:[%s6036 + $0x8] sm:$0xff]
        %v6039 = vld [vmem:[%s6036 + $0x10] sm:$0xff]
        %v6040 = vld [vmem:[%s6036 + $0x18] sm:$0xff]
        %v6041 = vld [vmem:[%s6036 + $0x20] sm:$0xff]
        %v6042 = vld [vmem:[%s6036 + $0x28] sm:$0xff]
        %v6043 = vld [vmem:[%s6036 + $0x30] sm:$0xff]
        %v6044 = vld [vmem:[%s6036 + $0x38] sm:$0xff]
        %v6045 = vld [vmem:[%s6036 + $0x40] sm:$0xff]
        %v6046 = vld [vmem:[%s6036 + $0x48] sm:$0xff]
        %v6047 = vld [vmem:[%s6036 + $0x50] sm:$0xff]
        %v6048 = vld [vmem:[%s6036 + $0x58] sm:$0xff]
        %v6049 = vld [vmem:[%s6036 + $0x60] sm:$0xff]
        %v6050 = vld [vmem:[%s6036 + $0x68] sm:$0xff]
        %v6051 = vld [vmem:[%s6036 + $0x70] sm:$0xff]
        %v6052 = vld [vmem:[%s6036 + $0x78] sm:$0xff]
        %v6053 = vld [vmem:[%s6036 + $0x80] sm:$0xff]
        %v6054 = vld [vmem:[%s6036 + $0x88] sm:$0xff]
        %v6055 = vld [vmem:[%s6036 + $0x90] sm:$0xff]
        %v6056 = vld [vmem:[%s6036 + $0x98] sm:$0xff]
        %v6057 = vld [vmem:[%s6036 + $0xa0] sm:$0xff]
        %v6058 = vld [vmem:[%s6036 + $0xa8] sm:$0xff]
        %v6059 = vld [vmem:[%s6036 + $0xb0] sm:$0xff]
        %v6060 = vld [vmem:[%s6036 + $0xb8] sm:$0xff]
        %v6061 = vld [vmem:[%s6036 + $0xc0] sm:$0xff]
        %v6062 = vld [vmem:[%s6036 + $0xc8] sm:$0xff]
        %v6063 = vld [vmem:[%s6036 + $0xd0] sm:$0xff]
        %v6064 = vld [vmem:[%s6036 + $0xd8] sm:$0xff]
        %v6065 = vld [vmem:[%s6036 + $0xe0] sm:$0xff]
        %v6066 = vld [vmem:[%s6036 + $0xe8] sm:$0xff]
        %v6067 = vld [vmem:[%s6036 + $0xf0] sm:$0xff]
        %v6068 = vld [vmem:[%s6036 + $0xf8] sm:$0xff]
        %v6069 = vld [vmem:[%s6036 + $0x100] sm:$0xff]
        %v6070 = vld [vmem:[%s6036 + $0x108] sm:$0xff]
        %v6071 = vld [vmem:[%s6036 + $0x110] sm:$0xff]
        %v6072 = vld [vmem:[%s6036 + $0x118] sm:$0xff]
        %v6073 = vld [vmem:[%s6036 + $0x120] sm:$0xff]
        %v6074 = vld [vmem:[%s6036 + $0x128] sm:$0xff]
        %v6075 = vld [vmem:[%s6036 + $0x130] sm:$0xff]
        %v6076 = vld [vmem:[%s6036 + $0x138] sm:$0xff]
        %v6077 = vld [vmem:[%s6036 + $0x140] sm:$0xff]
        %v6078 = vld [vmem:[%s6036 + $0x148] sm:$0xff]
        %v6079 = vld [vmem:[%s6036 + $0x150] sm:$0xff]
        %v6080 = vld [vmem:[%s6036 + $0x158] sm:$0xff]
        %vm6081 = vsmask.f32 5376
        %v6083 = vshrl.u32 %v6030, 16
        %v6085 = vrot.slane %v6083, 2
        %v6086 = vshll.u32 %v6030, 16
        %v6088 = vrot.slane %v6086, 3
        %v6089 = vor.u32 %v6085, %v6088
        %v6091 = vshrl.u32 %v6033, 16
        %v6093 = vrot.slane %v6091, 2
        %v6094 = vshll.u32 %v6033, 16
        %v6096 = vrot.slane %v6094, 3
        %v6097 = vor.u32 %v6093, %v6096
        %v6098 = vsel %vm6081, %v6089, %v6097
        %v6100 = vshrl.u32 %v6031, 16
        %v6102 = vrot.slane %v6100, 2
        %v6103 = vshll.u32 %v6031, 16
        %v6105 = vrot.slane %v6103, 3
        %v6106 = vor.u32 %v6102, %v6105
        %v6108 = vshrl.u32 %v6034, 16
        %v6110 = vrot.slane %v6108, 2
        %v6111 = vshll.u32 %v6034, 16
        %v6113 = vrot.slane %v6111, 3
        %v6114 = vor.u32 %v6110, %v6113
        %v6115 = vsel %vm6081, %v6106, %v6114
        %v6117 = vshrl.u32 %v6032, 16
        %v6119 = vrot.slane %v6117, 2
        %v6120 = vshll.u32 %v6032, 16
        %v6122 = vrot.slane %v6120, 3
        %v6123 = vor.u32 %v6119, %v6122
        %v6125 = vshrl.u32 %v6035, 16
        %v6127 = vrot.slane %v6125, 2
        %v6128 = vshll.u32 %v6035, 16
        %v6130 = vrot.slane %v6128, 3
        %v6131 = vor.u32 %v6127, %v6130
        %v6132 = vsel %vm6081, %v6123, %v6131
        %v6179 = vunpack.c.l.b16 %v6037
        %v6180 = vunpack.c.h.b16 %v6037
        %v6181 = vunpack.c.l.b16 %v6038
        %v6182 = vunpack.c.h.b16 %v6038
        %v6183 = vunpack.c.l.b16 %v6039
        %v6184 = vunpack.c.h.b16 %v6039
        %v6185 = vunpack.c.l.b16 %v6040
        %v6186 = vunpack.c.h.b16 %v6040
        %v6187 = vunpack.c.l.b16 %v6041
        %v6188 = vunpack.c.h.b16 %v6041
        %v6189 = vunpack.c.l.b16 %v6042
        %v6190 = vunpack.c.h.b16 %v6042
        %v6191 = vunpack.c.l.b16 %v6043
        %v6192 = vunpack.c.h.b16 %v6043
        %v6193 = vunpack.c.l.b16 %v6044
        %v6194 = vunpack.c.h.b16 %v6044
        %v6195 = vunpack.c.l.b16 %v6045
        %v6196 = vunpack.c.h.b16 %v6045
        %v6197 = vunpack.c.l.b16 %v6046
        %v6198 = vunpack.c.h.b16 %v6046
        %v6199 = vunpack.c.l.b16 %v6047
        %v6200 = vunpack.c.h.b16 %v6047
        %v6201 = vunpack.c.l.b16 %v6048
        %v6202 = vunpack.c.h.b16 %v6048
        %v6203 = vunpack.c.l.b16 %v6049
        %v6204 = vunpack.c.h.b16 %v6049
        %v6205 = vunpack.c.l.b16 %v6050
        %v6206 = vunpack.c.h.b16 %v6050
        %v6207 = vunpack.c.l.b16 %v6051
        %v6208 = vunpack.c.h.b16 %v6051
        %v6209 = vunpack.c.l.b16 %v6052
        %v6210 = vunpack.c.h.b16 %v6052
        %v6211 = vunpack.c.l.b16 %v6053
        %v6212 = vunpack.c.h.b16 %v6053
        %v6213 = vunpack.c.l.b16 %v6054
        %v6214 = vunpack.c.h.b16 %v6054
        %v6215 = vunpack.c.l.b16 %v6055
        %v6216 = vunpack.c.h.b16 %v6055
        %v6217 = vunpack.c.l.b16 %v6056
        %v6218 = vunpack.c.h.b16 %v6056
        %v6219 = vunpack.c.l.b16 %v6057
        %v6220 = vunpack.c.h.b16 %v6057
        %v6221 = vunpack.c.l.b16 %v6058
        %v6222 = vunpack.c.h.b16 %v6058
        %v6223 = vunpack.c.l.b16 %v6059
        %v6224 = vunpack.c.h.b16 %v6059
        %v6225 = vunpack.c.l.b16 %v6060
        %v6226 = vunpack.c.h.b16 %v6060
        %v6227 = vunpack.c.l.b16 %v6061
        %v6228 = vunpack.c.h.b16 %v6061
        %v6229 = vunpack.c.l.b16 %v6062
        %v6230 = vunpack.c.h.b16 %v6062
        %v6231 = vunpack.c.l.b16 %v6063
        %v6232 = vunpack.c.h.b16 %v6063
        %v6233 = vunpack.c.l.b16 %v6064
        %v6234 = vunpack.c.h.b16 %v6064
        %v6235 = vunpack.c.l.b16 %v6065
        %v6236 = vunpack.c.h.b16 %v6065
        %v6237 = vunpack.c.l.b16 %v6066
        %v6238 = vunpack.c.h.b16 %v6066
        %v6239 = vunpack.c.l.b16 %v6067
        %v6240 = vunpack.c.h.b16 %v6067
        %v6241 = vunpack.c.l.b16 %v6068
        %v6242 = vunpack.c.h.b16 %v6068
        %v6243 = vunpack.c.l.b16 %v6069
        %v6244 = vunpack.c.h.b16 %v6069
        %v6245 = vunpack.c.l.b16 %v6070
        %v6246 = vunpack.c.h.b16 %v6070
        %v6247 = vunpack.c.l.b16 %v6071
        %v6248 = vunpack.c.h.b16 %v6071
        %v6249 = vunpack.c.l.b16 %v6072
        %v6250 = vunpack.c.h.b16 %v6072
        %v6251 = vunpack.c.l.b16 %v6073
        %v6252 = vunpack.c.h.b16 %v6073
        %v6253 = vunpack.c.l.b16 %v6074
        %v6254 = vunpack.c.h.b16 %v6074
        %v6255 = vunpack.c.l.b16 %v6075
        %v6256 = vunpack.c.h.b16 %v6075
        %v6257 = vunpack.c.l.b16 %v6076
        %v6258 = vunpack.c.h.b16 %v6076
        %v6259 = vunpack.c.l.b16 %v6077
        %v6260 = vunpack.c.h.b16 %v6077
        %v6261 = vunpack.c.l.b16 %v6078
        %v6262 = vunpack.c.h.b16 %v6078
        %v6263 = vunpack.c.l.b16 %v6079
        %v6264 = vunpack.c.h.b16 %v6079
        %v6265 = vunpack.c.l.b16 %v6080
        %v6266 = vunpack.c.h.b16 %v6080
        %v6267 = vpack.c.b16 %v6181, %v6179
        %v6268 = vpack.c.b16 %v6182, %v6180
        %v6269 = vpack.c.b16 %v6185, %v6183
        %v6270 = vpack.c.b16 %v6186, %v6184
        %v6271 = vpack.c.b16 %v6189, %v6187
        %v6272 = vpack.c.b16 %v6190, %v6188
        %v6273 = vpack.c.b16 %v6193, %v6191
        %v6274 = vpack.c.b16 %v6194, %v6192
        %v6275 = vpack.c.b16 %v6197, %v6195
        %v6276 = vpack.c.b16 %v6198, %v6196
        %v6277 = vpack.c.b16 %v6201, %v6199
        %v6278 = vpack.c.b16 %v6202, %v6200
        %v6279 = vpack.c.b16 %v6205, %v6203
        %v6280 = vpack.c.b16 %v6206, %v6204
        %v6281 = vpack.c.b16 %v6209, %v6207
        %v6282 = vpack.c.b16 %v6210, %v6208
        %v6283 = vpack.c.b16 %v6213, %v6211
        %v6284 = vpack.c.b16 %v6214, %v6212
        %v6285 = vpack.c.b16 %v6217, %v6215
        %v6286 = vpack.c.b16 %v6218, %v6216
        %v6287 = vpack.c.b16 %v6221, %v6219
        %v6288 = vpack.c.b16 %v6222, %v6220
        %v6289 = vpack.c.b16 %v6225, %v6223
        %v6290 = vpack.c.b16 %v6226, %v6224
        %v6291 = vpack.c.b16 %v6229, %v6227
        %v6292 = vpack.c.b16 %v6230, %v6228
        %v6293 = vpack.c.b16 %v6233, %v6231
        %v6294 = vpack.c.b16 %v6234, %v6232
        %v6295 = vpack.c.b16 %v6237, %v6235
        %v6296 = vpack.c.b16 %v6238, %v6236
        %v6297 = vpack.c.b16 %v6241, %v6239
        %v6298 = vpack.c.b16 %v6242, %v6240
        %v6299 = vpack.c.b16 %v6245, %v6243
        %v6300 = vpack.c.b16 %v6246, %v6244
        %v6301 = vpack.c.b16 %v6249, %v6247
        %v6302 = vpack.c.b16 %v6250, %v6248
        %v6303 = vpack.c.b16 %v6253, %v6251
        %v6304 = vpack.c.b16 %v6254, %v6252
        %v6305 = vpack.c.b16 %v6257, %v6255
        %v6306 = vpack.c.b16 %v6258, %v6256
        %v6307 = vpack.c.b16 %v6261, %v6259
        %v6308 = vpack.c.b16 %v6262, %v6260
        %v6309 = vpack.c.b16 %v6265, %v6263
        %v6310 = vpack.c.b16 %v6266, %v6264
        %v6356 = vsel %vm796, %v6132, 0
        %6358 = vmatprep.subr.bf16.mxu0 %v6268
        %6359 = vmatpush1.bf16.msra.mxu0 %v6267
        %6360 = vmatprep.subr.bf16.mxu0 %v6270
        %6361 = vmatpush1.bf16.msra.mxu0 %v6269
        %6362 = vmatprep.subr.bf16.mxu0 %v6272
        %6363 = vmatpush1.bf16.msra.mxu0 %v6271
        %6364 = vmatprep.subr.bf16.mxu0 %v6274
        %6365 = vmatpush1.bf16.msra.mxu0 %v6273
        %6366 = vmatprep.subr.bf16.mxu0 %v6276
        %6367 = vmatpush1.bf16.msra.mxu0 %v6275
        %6368 = vmatprep.subr.bf16.mxu0 %v6278
        %6369 = vmatpush1.bf16.msra.mxu0 %v6277
        %6370 = vmatprep.subr.bf16.mxu0 %v6280
        %6371 = vmatpush1.bf16.msra.mxu0 %v6279
        %6372 = vmatprep.subr.bf16.mxu0 %v6282
        %6373 = vmatpush1.bf16.msra.mxu0 %v6281
        %6374 = vmatprep.subr.bf16.mxu0 %v6284
        %6375 = vmatpush1.bf16.msra.mxu0 %v6283
        %6376 = vmatprep.subr.bf16.mxu0 %v6286
        %6377 = vmatpush1.bf16.msra.mxu0 %v6285
        %6378 = vmatprep.subr.bf16.mxu0 %v6288
        %6379 = vmatpush1.bf16.msra.mxu0 %v6287
        %6380 = vmatprep.subr.bf16.mxu0 %v6290
        %6381 = vmatpush1.bf16.msra.mxu0 %v6289
        %6382 = vmatprep.subr.bf16.mxu0 %v6292
        %6383 = vmatpush1.bf16.msra.mxu0 %v6291
        %6384 = vmatprep.subr.bf16.mxu0 %v6294
        %6385 = vmatpush1.bf16.msra.mxu0 %v6293
        %6386 = vmatprep.subr.bf16.mxu0 %v6296
        %6387 = vmatpush1.bf16.msra.mxu0 %v6295
        %6388 = vmatprep.subr.bf16.mxu0 %v6298
        %6389 = vmatpush1.bf16.msra.mxu0 %v6297
        %6390 = vmatprep.mubr.bf16.mxu0 %v6115
        %6391 = vmatmul.mubr.bf16.gmra.mrb[0].mxu0 %v6098
        %v6392 = vpop.f32.mrb[0].mxu0
        %v6393 = vadd.f32 0.0, %v6392
        %v6394 = vpop.f32.mrb[0].mxu0
        %v6395 = vadd.f32 0.0, %v6394
        %v6396 = vpop.f32.mrb[0].mxu0
        %v6397 = vadd.f32 0.0, %v6396
        %v6398 = vpop.f32.mrb[0].mxu0
        %v6399 = vadd.f32 0.0, %v6398
        %6400 = vdwg.mxu0
        %6401 = vmatprep.subr.bf16.mxu0 %v6300
        %6402 = vmatpush1.bf16.msra.mxu0 %v6299
        %6403 = vmatprep.subr.bf16.mxu0 %v6302
        %6404 = vmatpush1.bf16.msra.mxu0 %v6301
        %6405 = vmatprep.subr.bf16.mxu0 %v6304
        %6406 = vmatpush1.bf16.msra.mxu0 %v6303
        %6407 = vmatprep.subr.bf16.mxu0 %v6306
        %6408 = vmatpush1.bf16.msra.mxu0 %v6305
        %6409 = vmatprep.subr.bf16.mxu0 %v6308
        %6410 = vmatpush1.bf16.msra.mxu0 %v6307
        %6411 = vmatprep.subr.bf16.mxu0 %v6310
        %6412 = vmatpush1.bf16.msra.mxu0 %v6309
        %6413 = vmatprep.subr.bf16.mxu0 0
        %6414 = vmatpush1.bf16.msra.mxu0 0
        %6415 = vmatprep.subr.bf16.mxu0 0
        %6416 = vmatpush1.bf16.msra.mxu0 0
        %6417 = vmatprep.subr.bf16.mxu0 0
        %6418 = vmatpush1.bf16.msra.mxu0 0
        %6419 = vmatprep.subr.bf16.mxu0 0
        %6420 = vmatpush1.bf16.msra.mxu0 0
        %6421 = vmatprep.subr.bf16.mxu0 0
        %6422 = vmatpush1.bf16.msra.mxu0 0
        %6423 = vmatprep.subr.bf16.mxu0 0
        %6424 = vmatpush1.bf16.msra.mxu0 0
        %6425 = vmatprep.subr.bf16.mxu0 0
        %6426 = vmatpush1.bf16.msra.mxu0 0
        %6427 = vmatprep.subr.bf16.mxu0 0
        %6428 = vmatpush1.bf16.msra.mxu0 0
        %6429 = vmatprep.subr.bf16.mxu0 0
        %6430 = vmatpush1.bf16.msra.mxu0 0
        %6431 = vmatprep.subr.bf16.mxu0 0
        %6432 = vmatpush1.bf16.msra.mxu0 0
        %6433 = vmatprep.mubr.bf16.mxu0 0
        %6434 = vmatmul.mubr.bf16.gmra.mrb[0].mxu0 %v6356
        %v6435 = vpop.f32.mrb[0].mxu0
        %v6436 = vadd.f32 %v6393, %v6435
        %v6437 = vpop.f32.mrb[0].mxu0
        %v6438 = vadd.f32 %v6395, %v6437
        %v6439 = vpop.f32.mrb[0].mxu0
        %v6440 = vadd.f32 %v6397, %v6439
        %v6441 = vpop.f32.mrb[0].mxu0
        %v6442 = vadd.f32 %v6399, %v6441
        %6443 = vdwg.mxu0
        %v6444 = vadd.f32 %v6020, %v6436
        %v6445 = vadd.f32 %v6021, %v6438
        %v6446 = vadd.f32 %v6022, %v6440
        %v6447 = vadd.f32 %v6023, %v6442
        %v6448 = vld [vmem:[#allocation14] sm:$0x3]
        %v6450 = vlaneseq
        %v6451 = vshrl.u32 %v6450, 7
        %v6452 = vsub.s32 0, %v6451
        %v6453 = vrot.slane %v6448, %v6452
        %v6454 = vlaneseq
        %v6455 = vshrl.u32 %v6454, 7
        %v6456 = vsub.s32 1, %v6455
        %v6457 = vrot.slane %v6448, %v6456
        %v6460 = vadd.f32 %v6444, %v6453
        %v6461 = vadd.f32 %v6445, %v6457
        %v6462 = vadd.f32 %v6446, %v6453
        %v6463 = vadd.f32 %v6447, %v6457
        %v6464 = vmax.f32 %v6460, 0.0
        %v6465 = vmax.f32 %v6461, 0.0
        %v6466 = vmax.f32 %v6462, 0.0
        %v6467 = vmax.f32 %v6463, 0.0
        %v6468 = vld [vmem:[#allocation2] sm:$0xff]
        %v6469 = vld [vmem:[#allocation2 + $0x8] sm:$0xff]
        %v6470 = vld [vmem:[#allocation2 + $0x10] sm:$0xff]
        %v6471 = vld [vmem:[#allocation2 + $0x18] sm:$0xff]
        %v6472 = vld [vmem:[#allocation2 + $0x20] sm:$0xff]
        %v6473 = vld [vmem:[#allocation2 + $0x28] sm:$0xff]
        %v6474 = vpack.c.bf16 %v6471, %v6468
        %v6475 = vpack.c.bf16 %v6472, %v6469
        %v6476 = vpack.c.bf16 %v6473, %v6470
        %v6477 = vld [vmem:[#allocation16] sm:$0xff]
        %v6478 = vld [vmem:[#allocation16 + $0x8] sm:$0xff]
        %v6479 = vld [vmem:[#allocation16 + $0x10] sm:$0xff]
        %v6480 = vld [vmem:[#allocation16 + $0x18] sm:$0xff]
        %v6481 = vld [vmem:[#allocation16 + $0x20] sm:$0xff]
        %v6482 = vld [vmem:[#allocation16 + $0x28] sm:$0xff]
        %v6483 = vld [vmem:[#allocation16 + $0x30] sm:$0xff]
        %v6484 = vld [vmem:[#allocation16 + $0x38] sm:$0xff]
        %v6485 = vld [vmem:[#allocation16 + $0x40] sm:$0xff]
        %v6486 = vld [vmem:[#allocation16 + $0x48] sm:$0xff]
        %v6487 = vld [vmem:[#allocation16 + $0x50] sm:$0xff]
        %v6488 = vld [vmem:[#allocation16 + $0x58] sm:$0xff]
        %v6489 = vld [vmem:[#allocation16 + $0x60] sm:$0xff]
        %v6490 = vld [vmem:[#allocation16 + $0x68] sm:$0xff]
        %v6491 = vld [vmem:[#allocation16 + $0x70] sm:$0xff]
        %v6492 = vld [vmem:[#allocation16 + $0x78] sm:$0xff]
        %v6493 = vld [vmem:[#allocation16 + $0x80] sm:$0xff]
        %v6494 = vld [vmem:[#allocation16 + $0x88] sm:$0xff]
        %v6495 = vld [vmem:[#allocation16 + $0x90] sm:$0xff]
        %v6496 = vld [vmem:[#allocation16 + $0x98] sm:$0xff]
        %v6497 = vld [vmem:[#allocation16 + $0xa0] sm:$0xff]
        %v6498 = vld [vmem:[#allocation16 + $0xa8] sm:$0xff]
        %v6499 = vld [vmem:[#allocation16 + $0xb0] sm:$0xff]
        %v6500 = vld [vmem:[#allocation16 + $0xb8] sm:$0xff]
        %v6501 = vld [vmem:[#allocation16 + $0xc0] sm:$0xff]
        %v6502 = vld [vmem:[#allocation16 + $0xc8] sm:$0xff]
        %v6503 = vld [vmem:[#allocation16 + $0xd0] sm:$0xff]
        %v6504 = vld [vmem:[#allocation16 + $0xd8] sm:$0xff]
        %v6505 = vld [vmem:[#allocation16 + $0xe0] sm:$0xff]
        %v6506 = vld [vmem:[#allocation16 + $0xe8] sm:$0xff]
        %v6507 = vld [vmem:[#allocation16 + $0xf0] sm:$0xff]
        %v6508 = vld [vmem:[#allocation16 + $0xf8] sm:$0xff]
        %v6509 = vld [vmem:[#allocation16 + $0x100] sm:$0xff]
        %v6510 = vld [vmem:[#allocation16 + $0x108] sm:$0xff]
        %v6511 = vld [vmem:[#allocation16 + $0x110] sm:$0xff]
        %v6512 = vld [vmem:[#allocation16 + $0x118] sm:$0xff]
        %v6513 = vld [vmem:[#allocation16 + $0x120] sm:$0xff]
        %v6514 = vld [vmem:[#allocation16 + $0x128] sm:$0xff]
        %v6515 = vld [vmem:[#allocation16 + $0x130] sm:$0xff]
        %v6516 = vld [vmem:[#allocation16 + $0x138] sm:$0xff]
        %v6517 = vld [vmem:[#allocation16 + $0x140] sm:$0xff]
        %v6518 = vld [vmem:[#allocation16 + $0x148] sm:$0xff]
        %v6519 = vld [vmem:[#allocation16 + $0x150] sm:$0xff]
        %v6520 = vld [vmem:[#allocation16 + $0x158] sm:$0xff]
        %s6521 = scalar_lea.vmem [#allocation16], 352
        %v6522 = vld [vmem:[%s6521] sm:$0xff]
        %v6523 = vld [vmem:[%s6521 + $0x8] sm:$0xff]
        %v6524 = vld [vmem:[%s6521 + $0x10] sm:$0xff]
        %v6525 = vld [vmem:[%s6521 + $0x18] sm:$0xff]
        %v6526 = vld [vmem:[%s6521 + $0x20] sm:$0xff]
        %v6527 = vld [vmem:[%s6521 + $0x28] sm:$0xff]
        %v6528 = vld [vmem:[%s6521 + $0x30] sm:$0xff]
        %v6529 = vld [vmem:[%s6521 + $0x38] sm:$0xff]
        %v6530 = vld [vmem:[%s6521 + $0x40] sm:$0xff]
        %v6531 = vld [vmem:[%s6521 + $0x48] sm:$0xff]
        %v6532 = vld [vmem:[%s6521 + $0x50] sm:$0xff]
        %v6533 = vld [vmem:[%s6521 + $0x58] sm:$0xff]
        %v6534 = vld [vmem:[%s6521 + $0x60] sm:$0xff]
        %v6535 = vld [vmem:[%s6521 + $0x68] sm:$0xff]
        %v6536 = vld [vmem:[%s6521 + $0x70] sm:$0xff]
        %v6537 = vld [vmem:[%s6521 + $0x78] sm:$0xff]
        %v6538 = vld [vmem:[%s6521 + $0x80] sm:$0xff]
        %v6539 = vld [vmem:[%s6521 + $0x88] sm:$0xff]
        %v6540 = vld [vmem:[%s6521 + $0x90] sm:$0xff]
        %v6541 = vld [vmem:[%s6521 + $0x98] sm:$0xff]
        %v6542 = vld [vmem:[%s6521 + $0xa0] sm:$0xff]
        %v6543 = vld [vmem:[%s6521 + $0xa8] sm:$0xff]
        %v6544 = vld [vmem:[%s6521 + $0xb0] sm:$0xff]
        %v6545 = vld [vmem:[%s6521 + $0xb8] sm:$0xff]
        %v6546 = vld [vmem:[%s6521 + $0xc0] sm:$0xff]
        %v6547 = vld [vmem:[%s6521 + $0xc8] sm:$0xff]
        %v6548 = vld [vmem:[%s6521 + $0xd0] sm:$0xff]
        %v6549 = vld [vmem:[%s6521 + $0xd8] sm:$0xff]
        %v6550 = vld [vmem:[%s6521 + $0xe0] sm:$0xff]
        %v6551 = vld [vmem:[%s6521 + $0xe8] sm:$0xff]
        %v6552 = vld [vmem:[%s6521 + $0xf0] sm:$0xff]
        %v6553 = vld [vmem:[%s6521 + $0xf8] sm:$0xff]
        %v6554 = vld [vmem:[%s6521 + $0x100] sm:$0xff]
        %v6555 = vld [vmem:[%s6521 + $0x108] sm:$0xff]
        %v6556 = vld [vmem:[%s6521 + $0x110] sm:$0xff]
        %v6557 = vld [vmem:[%s6521 + $0x118] sm:$0xff]
        %v6558 = vld [vmem:[%s6521 + $0x120] sm:$0xff]
        %v6559 = vld [vmem:[%s6521 + $0x128] sm:$0xff]
        %v6560 = vld [vmem:[%s6521 + $0x130] sm:$0xff]
        %v6561 = vld [vmem:[%s6521 + $0x138] sm:$0xff]
        %v6562 = vld [vmem:[%s6521 + $0x140] sm:$0xff]
        %v6563 = vld [vmem:[%s6521 + $0x148] sm:$0xff]
        %v6564 = vld [vmem:[%s6521 + $0x150] sm:$0xff]
        %v6565 = vld [vmem:[%s6521 + $0x158] sm:$0xff]
        %v6610 = vunpack.c.l.b16 %v6522
        %v6611 = vunpack.c.h.b16 %v6522
        %v6612 = vunpack.c.l.b16 %v6523
        %v6613 = vunpack.c.h.b16 %v6523
        %v6614 = vunpack.c.l.b16 %v6524
        %v6615 = vunpack.c.h.b16 %v6524
        %v6616 = vunpack.c.l.b16 %v6525
        %v6617 = vunpack.c.h.b16 %v6525
        %v6618 = vunpack.c.l.b16 %v6526
        %v6619 = vunpack.c.h.b16 %v6526
        %v6620 = vunpack.c.l.b16 %v6527
        %v6621 = vunpack.c.h.b16 %v6527
        %v6622 = vunpack.c.l.b16 %v6528
        %v6623 = vunpack.c.h.b16 %v6528
        %v6624 = vunpack.c.l.b16 %v6529
        %v6625 = vunpack.c.h.b16 %v6529
        %v6626 = vunpack.c.l.b16 %v6530
        %v6627 = vunpack.c.h.b16 %v6530
        %v6628 = vunpack.c.l.b16 %v6531
        %v6629 = vunpack.c.h.b16 %v6531
        %v6630 = vunpack.c.l.b16 %v6532
        %v6631 = vunpack.c.h.b16 %v6532
        %v6632 = vunpack.c.l.b16 %v6533
        %v6633 = vunpack.c.h.b16 %v6533
        %v6634 = vunpack.c.l.b16 %v6534
        %v6635 = vunpack.c.h.b16 %v6534
        %v6636 = vunpack.c.l.b16 %v6535
        %v6637 = vunpack.c.h.b16 %v6535
        %v6638 = vunpack.c.l.b16 %v6536
        %v6639 = vunpack.c.h.b16 %v6536
        %v6640 = vunpack.c.l.b16 %v6537
        %v6641 = vunpack.c.h.b16 %v6537
        %v6642 = vunpack.c.l.b16 %v6538
        %v6643 = vunpack.c.h.b16 %v6538
        %v6644 = vunpack.c.l.b16 %v6539
        %v6645 = vunpack.c.h.b16 %v6539
        %v6646 = vunpack.c.l.b16 %v6540
        %v6647 = vunpack.c.h.b16 %v6540
        %v6648 = vunpack.c.l.b16 %v6541
        %v6649 = vunpack.c.h.b16 %v6541
        %v6650 = vunpack.c.l.b16 %v6542
        %v6651 = vunpack.c.h.b16 %v6542
        %v6652 = vunpack.c.l.b16 %v6543
        %v6653 = vunpack.c.h.b16 %v6543
        %v6654 = vunpack.c.l.b16 %v6544
        %v6655 = vunpack.c.h.b16 %v6544
        %v6656 = vunpack.c.l.b16 %v6545
        %v6657 = vunpack.c.h.b16 %v6545
        %v6658 = vunpack.c.l.b16 %v6546
        %v6659 = vunpack.c.h.b16 %v6546
        %v6660 = vunpack.c.l.b16 %v6547
        %v6661 = vunpack.c.h.b16 %v6547
        %v6662 = vunpack.c.l.b16 %v6548
        %v6663 = vunpack.c.h.b16 %v6548
        %v6664 = vunpack.c.l.b16 %v6549
        %v6665 = vunpack.c.h.b16 %v6549
        %v6666 = vunpack.c.l.b16 %v6550
        %v6667 = vunpack.c.h.b16 %v6550
        %v6668 = vunpack.c.l.b16 %v6551
        %v6669 = vunpack.c.h.b16 %v6551
        %v6670 = vunpack.c.l.b16 %v6552
        %v6671 = vunpack.c.h.b16 %v6552
        %v6672 = vunpack.c.l.b16 %v6553
        %v6673 = vunpack.c.h.b16 %v6553
        %v6674 = vunpack.c.l.b16 %v6554
        %v6675 = vunpack.c.h.b16 %v6554
        %v6676 = vunpack.c.l.b16 %v6555
        %v6677 = vunpack.c.h.b16 %v6555
        %v6678 = vunpack.c.l.b16 %v6556
        %v6679 = vunpack.c.h.b16 %v6556
        %v6680 = vunpack.c.l.b16 %v6557
        %v6681 = vunpack.c.h.b16 %v6557
        %v6682 = vunpack.c.l.b16 %v6558
        %v6683 = vunpack.c.h.b16 %v6558
        %v6684 = vunpack.c.l.b16 %v6559
        %v6685 = vunpack.c.h.b16 %v6559
        %v6686 = vunpack.c.l.b16 %v6560
        %v6687 = vunpack.c.h.b16 %v6560
        %v6688 = vunpack.c.l.b16 %v6561
        %v6689 = vunpack.c.h.b16 %v6561
        %v6690 = vunpack.c.l.b16 %v6562
        %v6691 = vunpack.c.h.b16 %v6562
        %v6692 = vunpack.c.l.b16 %v6563
        %v6693 = vunpack.c.h.b16 %v6563
        %v6694 = vunpack.c.l.b16 %v6564
        %v6695 = vunpack.c.h.b16 %v6564
        %v6696 = vunpack.c.l.b16 %v6565
        %v6697 = vunpack.c.h.b16 %v6565
        %v6698 = vpack.c.b16 %v6612, %v6610
        %v6699 = vpack.c.b16 %v6613, %v6611
        %v6700 = vpack.c.b16 %v6616, %v6614
        %v6701 = vpack.c.b16 %v6617, %v6615
        %v6702 = vpack.c.b16 %v6620, %v6618
        %v6703 = vpack.c.b16 %v6621, %v6619
        %v6704 = vpack.c.b16 %v6624, %v6622
        %v6705 = vpack.c.b16 %v6625, %v6623
        %v6706 = vpack.c.b16 %v6628, %v6626
        %v6707 = vpack.c.b16 %v6629, %v6627
        %v6708 = vpack.c.b16 %v6632, %v6630
        %v6709 = vpack.c.b16 %v6633, %v6631
        %v6710 = vpack.c.b16 %v6636, %v6634
        %v6711 = vpack.c.b16 %v6637, %v6635
        %v6712 = vpack.c.b16 %v6640, %v6638
        %v6713 = vpack.c.b16 %v6641, %v6639
        %v6714 = vpack.c.b16 %v6644, %v6642
        %v6715 = vpack.c.b16 %v6645, %v6643
        %v6716 = vpack.c.b16 %v6648, %v6646
        %v6717 = vpack.c.b16 %v6649, %v6647
        %v6718 = vpack.c.b16 %v6652, %v6650
        %v6719 = vpack.c.b16 %v6653, %v6651
        %v6720 = vpack.c.b16 %v6656, %v6654
        %v6721 = vpack.c.b16 %v6657, %v6655
        %v6722 = vpack.c.b16 %v6660, %v6658
        %v6723 = vpack.c.b16 %v6661, %v6659
        %v6724 = vpack.c.b16 %v6664, %v6662
        %v6725 = vpack.c.b16 %v6665, %v6663
        %v6726 = vpack.c.b16 %v6668, %v6666
        %v6727 = vpack.c.b16 %v6669, %v6667
        %v6728 = vpack.c.b16 %v6672, %v6670
        %v6729 = vpack.c.b16 %v6673, %v6671
        %v6730 = vpack.c.b16 %v6676, %v6674
        %v6731 = vpack.c.b16 %v6677, %v6675
        %v6732 = vpack.c.b16 %v6680, %v6678
        %v6733 = vpack.c.b16 %v6681, %v6679
        %v6734 = vpack.c.b16 %v6684, %v6682
        %v6735 = vpack.c.b16 %v6685, %v6683
        %v6736 = vpack.c.b16 %v6688, %v6686
        %v6737 = vpack.c.b16 %v6689, %v6687
        %v6738 = vpack.c.b16 %v6692, %v6690
        %v6739 = vpack.c.b16 %v6693, %v6691
        %v6740 = vpack.c.b16 %v6696, %v6694
        %v6741 = vpack.c.b16 %v6697, %v6695
        %6786 = vmatprep.subr.bf16.mxu0 %v6699
        %6787 = vmatpush1.bf16.msra.mxu0 %v6698
        %6788 = vmatprep.subr.bf16.mxu0 %v6701
        %6789 = vmatpush1.bf16.msra.mxu0 %v6700
        %6790 = vmatprep.subr.bf16.mxu0 %v6703
        %6791 = vmatpush1.bf16.msra.mxu0 %v6702
        %6792 = vmatprep.subr.bf16.mxu0 %v6705
        %6793 = vmatpush1.bf16.msra.mxu0 %v6704
        %6794 = vmatprep.subr.bf16.mxu0 %v6707
        %6795 = vmatpush1.bf16.msra.mxu0 %v6706
        %6796 = vmatprep.subr.bf16.mxu0 %v6709
        %6797 = vmatpush1.bf16.msra.mxu0 %v6708
        %6798 = vmatprep.subr.bf16.mxu0 %v6711
        %6799 = vmatpush1.bf16.msra.mxu0 %v6710
        %6800 = vmatprep.subr.bf16.mxu0 %v6713
        %6801 = vmatpush1.bf16.msra.mxu0 %v6712
        %6802 = vmatprep.subr.bf16.mxu0 %v6715
        %6803 = vmatpush1.bf16.msra.mxu0 %v6714
        %6804 = vmatprep.subr.bf16.mxu0 %v6717
        %6805 = vmatpush1.bf16.msra.mxu0 %v6716
        %6806 = vmatprep.subr.bf16.mxu0 %v6719
        %6807 = vmatpush1.bf16.msra.mxu0 %v6718
        %6808 = vmatprep.subr.bf16.mxu0 %v6721
        %6809 = vmatpush1.bf16.msra.mxu0 %v6720
        %6810 = vmatprep.subr.bf16.mxu0 %v6723
        %6811 = vmatpush1.bf16.msra.mxu0 %v6722
        %6812 = vmatprep.subr.bf16.mxu0 %v6725
        %6813 = vmatpush1.bf16.msra.mxu0 %v6724
        %6814 = vmatprep.subr.bf16.mxu0 %v6727
        %6815 = vmatpush1.bf16.msra.mxu0 %v6726
        %6816 = vmatprep.subr.bf16.mxu0 %v6729
        %6817 = vmatpush1.bf16.msra.mxu0 %v6728
        %6818 = vmatprep.mubr.bf16.mxu0 %v4990
        %6819 = vmatmul.mubr.bf16.gmra.mrb[0].mxu0 %v4978
        %v6820 = vpop.f32.mrb[0].mxu0
        %v6821 = vadd.f32 0.0, %v6820
        %v6822 = vpop.f32.mrb[0].mxu0
        %v6823 = vadd.f32 0.0, %v6822
        %v6824 = vpop.f32.mrb[0].mxu0
        %v6825 = vadd.f32 0.0, %v6824
        %v6826 = vpop.f32.mrb[0].mxu0
        %v6827 = vadd.f32 0.0, %v6826
        %6828 = vdwg.mxu0
        %6829 = vmatprep.subr.bf16.mxu0 %v6731
        %6830 = vmatpush1.bf16.msra.mxu0 %v6730
        %6831 = vmatprep.subr.bf16.mxu0 %v6733
        %6832 = vmatpush1.bf16.msra.mxu0 %v6732
        %6833 = vmatprep.subr.bf16.mxu0 %v6735
        %6834 = vmatpush1.bf16.msra.mxu0 %v6734
        %6835 = vmatprep.subr.bf16.mxu0 %v6737
        %6836 = vmatpush1.bf16.msra.mxu0 %v6736
        %6837 = vmatprep.subr.bf16.mxu0 %v6739
        %6838 = vmatpush1.bf16.msra.mxu0 %v6738
        %6839 = vmatprep.subr.bf16.mxu0 %v6741
        %6840 = vmatpush1.bf16.msra.mxu0 %v6740
        %6841 = vmatprep.subr.bf16.mxu0 0
        %6842 = vmatpush1.bf16.msra.mxu0 0
        %6843 = vmatprep.subr.bf16.mxu0 0
        %6844 = vmatpush1.bf16.msra.mxu0 0
        %6845 = vmatprep.subr.bf16.mxu0 0
        %6846 = vmatpush1.bf16.msra.mxu0 0
        %6847 = vmatprep.subr.bf16.mxu0 0
        %6848 = vmatpush1.bf16.msra.mxu0 0
        %6849 = vmatprep.subr.bf16.mxu0 0
        %6850 = vmatpush1.bf16.msra.mxu0 0
        %6851 = vmatprep.subr.bf16.mxu0 0
        %6852 = vmatpush1.bf16.msra.mxu0 0
        %6853 = vmatprep.subr.bf16.mxu0 0
        %6854 = vmatpush1.bf16.msra.mxu0 0
        %6855 = vmatprep.subr.bf16.mxu0 0
        %6856 = vmatpush1.bf16.msra.mxu0 0
        %6857 = vmatprep.subr.bf16.mxu0 0
        %6858 = vmatpush1.bf16.msra.mxu0 0
        %6859 = vmatprep.subr.bf16.mxu0 0
        %6860 = vmatpush1.bf16.msra.mxu0 0
        %6861 = vmatprep.mubr.bf16.mxu0 0
        %6862 = vmatmul.mubr.bf16.gmra.mrb[0].mxu0 %v5226
        %v6863 = vpop.f32.mrb[0].mxu0
        %v6864 = vadd.f32 %v6821, %v6863
        %v6865 = vpop.f32.mrb[0].mxu0
        %v6866 = vadd.f32 %v6823, %v6865
        %v6867 = vpop.f32.mrb[0].mxu0
        %v6868 = vadd.f32 %v6825, %v6867
        %v6869 = vpop.f32.mrb[0].mxu0
        %v6870 = vadd.f32 %v6827, %v6869
        %6871 = vdwg.mxu0
        %v6916 = vunpack.c.l.b16 %v6477
        %v6917 = vunpack.c.h.b16 %v6477
        %v6918 = vunpack.c.l.b16 %v6478
        %v6919 = vunpack.c.h.b16 %v6478
        %v6920 = vunpack.c.l.b16 %v6479
        %v6921 = vunpack.c.h.b16 %v6479
        %v6922 = vunpack.c.l.b16 %v6480
        %v6923 = vunpack.c.h.b16 %v6480
        %v6924 = vunpack.c.l.b16 %v6481
        %v6925 = vunpack.c.h.b16 %v6481
        %v6926 = vunpack.c.l.b16 %v6482
        %v6927 = vunpack.c.h.b16 %v6482
        %v6928 = vunpack.c.l.b16 %v6483
        %v6929 = vunpack.c.h.b16 %v6483
        %v6930 = vunpack.c.l.b16 %v6484
        %v6931 = vunpack.c.h.b16 %v6484
        %v6932 = vunpack.c.l.b16 %v6485
        %v6933 = vunpack.c.h.b16 %v6485
        %v6934 = vunpack.c.l.b16 %v6486
        %v6935 = vunpack.c.h.b16 %v6486
        %v6936 = vunpack.c.l.b16 %v6487
        %v6937 = vunpack.c.h.b16 %v6487
        %v6938 = vunpack.c.l.b16 %v6488
        %v6939 = vunpack.c.h.b16 %v6488
        %v6940 = vunpack.c.l.b16 %v6489
        %v6941 = vunpack.c.h.b16 %v6489
        %v6942 = vunpack.c.l.b16 %v6490
        %v6943 = vunpack.c.h.b16 %v6490
        %v6944 = vunpack.c.l.b16 %v6491
        %v6945 = vunpack.c.h.b16 %v6491
        %v6946 = vunpack.c.l.b16 %v6492
        %v6947 = vunpack.c.h.b16 %v6492
        %v6948 = vunpack.c.l.b16 %v6493
        %v6949 = vunpack.c.h.b16 %v6493
        %v6950 = vunpack.c.l.b16 %v6494
        %v6951 = vunpack.c.h.b16 %v6494
        %v6952 = vunpack.c.l.b16 %v6495
        %v6953 = vunpack.c.h.b16 %v6495
        %v6954 = vunpack.c.l.b16 %v6496
        %v6955 = vunpack.c.h.b16 %v6496
        %v6956 = vunpack.c.l.b16 %v6497
        %v6957 = vunpack.c.h.b16 %v6497
        %v6958 = vunpack.c.l.b16 %v6498
        %v6959 = vunpack.c.h.b16 %v6498
        %v6960 = vunpack.c.l.b16 %v6499
        %v6961 = vunpack.c.h.b16 %v6499
        %v6962 = vunpack.c.l.b16 %v6500
        %v6963 = vunpack.c.h.b16 %v6500
        %v6964 = vunpack.c.l.b16 %v6501
        %v6965 = vunpack.c.h.b16 %v6501
        %v6966 = vunpack.c.l.b16 %v6502
        %v6967 = vunpack.c.h.b16 %v6502
        %v6968 = vunpack.c.l.b16 %v6503
        %v6969 = vunpack.c.h.b16 %v6503
        %v6970 = vunpack.c.l.b16 %v6504
        %v6971 = vunpack.c.h.b16 %v6504
        %v6972 = vunpack.c.l.b16 %v6505
        %v6973 = vunpack.c.h.b16 %v6505
        %v6974 = vunpack.c.l.b16 %v6506
        %v6975 = vunpack.c.h.b16 %v6506
        %v6976 = vunpack.c.l.b16 %v6507
        %v6977 = vunpack.c.h.b16 %v6507
        %v6978 = vunpack.c.l.b16 %v6508
        %v6979 = vunpack.c.h.b16 %v6508
        %v6980 = vunpack.c.l.b16 %v6509
        %v6981 = vunpack.c.h.b16 %v6509
        %v6982 = vunpack.c.l.b16 %v6510
        %v6983 = vunpack.c.h.b16 %v6510
        %v6984 = vunpack.c.l.b16 %v6511
        %v6985 = vunpack.c.h.b16 %v6511
        %v6986 = vunpack.c.l.b16 %v6512
        %v6987 = vunpack.c.h.b16 %v6512
        %v6988 = vunpack.c.l.b16 %v6513
        %v6989 = vunpack.c.h.b16 %v6513
        %v6990 = vunpack.c.l.b16 %v6514
        %v6991 = vunpack.c.h.b16 %v6514
        %v6992 = vunpack.c.l.b16 %v6515
        %v6993 = vunpack.c.h.b16 %v6515
        %v6994 = vunpack.c.l.b16 %v6516
        %v6995 = vunpack.c.h.b16 %v6516
        %v6996 = vunpack.c.l.b16 %v6517
        %v6997 = vunpack.c.h.b16 %v6517
        %v6998 = vunpack.c.l.b16 %v6518
        %v6999 = vunpack.c.h.b16 %v6518
        %v7000 = vunpack.c.l.b16 %v6519
        %v7001 = vunpack.c.h.b16 %v6519
        %v7002 = vunpack.c.l.b16 %v6520
        %v7003 = vunpack.c.h.b16 %v6520
        %v7004 = vpack.c.b16 %v6918, %v6916
        %v7005 = vpack.c.b16 %v6919, %v6917
        %v7006 = vpack.c.b16 %v6922, %v6920
        %v7007 = vpack.c.b16 %v6923, %v6921
        %v7008 = vpack.c.b16 %v6926, %v6924
        %v7009 = vpack.c.b16 %v6927, %v6925
        %v7010 = vpack.c.b16 %v6930, %v6928
        %v7011 = vpack.c.b16 %v6931, %v6929
        %v7012 = vpack.c.b16 %v6934, %v6932
        %v7013 = vpack.c.b16 %v6935, %v6933
        %v7014 = vpack.c.b16 %v6938, %v6936
        %v7015 = vpack.c.b16 %v6939, %v6937
        %v7016 = vpack.c.b16 %v6942, %v6940
        %v7017 = vpack.c.b16 %v6943, %v6941
        %v7018 = vpack.c.b16 %v6946, %v6944
        %v7019 = vpack.c.b16 %v6947, %v6945
        %v7020 = vpack.c.b16 %v6950, %v6948
        %v7021 = vpack.c.b16 %v6951, %v6949
        %v7022 = vpack.c.b16 %v6954, %v6952
        %v7023 = vpack.c.b16 %v6955, %v6953
        %v7024 = vpack.c.b16 %v6958, %v6956
        %v7025 = vpack.c.b16 %v6959, %v6957
        %v7026 = vpack.c.b16 %v6962, %v6960
        %v7027 = vpack.c.b16 %v6963, %v6961
        %v7028 = vpack.c.b16 %v6966, %v6964
        %v7029 = vpack.c.b16 %v6967, %v6965
        %v7030 = vpack.c.b16 %v6970, %v6968
        %v7031 = vpack.c.b16 %v6971, %v6969
        %v7032 = vpack.c.b16 %v6974, %v6972
        %v7033 = vpack.c.b16 %v6975, %v6973
        %v7034 = vpack.c.b16 %v6978, %v6976
        %v7035 = vpack.c.b16 %v6979, %v6977
        %v7036 = vpack.c.b16 %v6982, %v6980
        %v7037 = vpack.c.b16 %v6983, %v6981
        %v7038 = vpack.c.b16 %v6986, %v6984
        %v7039 = vpack.c.b16 %v6987, %v6985
        %v7040 = vpack.c.b16 %v6990, %v6988
        %v7041 = vpack.c.b16 %v6991, %v6989
        %v7042 = vpack.c.b16 %v6994, %v6992
        %v7043 = vpack.c.b16 %v6995, %v6993
        %v7044 = vpack.c.b16 %v6998, %v6996
        %v7045 = vpack.c.b16 %v6999, %v6997
        %v7046 = vpack.c.b16 %v7002, %v7000
        %v7047 = vpack.c.b16 %v7003, %v7001
        %v7093 = vsel %vm796, %v6476, 0
        %7095 = vmatprep.subr.bf16.mxu0 %v7005
        %7096 = vmatpush1.bf16.msra.mxu0 %v7004
        %7097 = vmatprep.subr.bf16.mxu0 %v7007
        %7098 = vmatpush1.bf16.msra.mxu0 %v7006
        %7099 = vmatprep.subr.bf16.mxu0 %v7009
        %7100 = vmatpush1.bf16.msra.mxu0 %v7008
        %7101 = vmatprep.subr.bf16.mxu0 %v7011
        %7102 = vmatpush1.bf16.msra.mxu0 %v7010
        %7103 = vmatprep.subr.bf16.mxu0 %v7013
        %7104 = vmatpush1.bf16.msra.mxu0 %v7012
        %7105 = vmatprep.subr.bf16.mxu0 %v7015
        %7106 = vmatpush1.bf16.msra.mxu0 %v7014
        %7107 = vmatprep.subr.bf16.mxu0 %v7017
        %7108 = vmatpush1.bf16.msra.mxu0 %v7016
        %7109 = vmatprep.subr.bf16.mxu0 %v7019
        %7110 = vmatpush1.bf16.msra.mxu0 %v7018
        %7111 = vmatprep.subr.bf16.mxu0 %v7021
        %7112 = vmatpush1.bf16.msra.mxu0 %v7020
        %7113 = vmatprep.subr.bf16.mxu0 %v7023
        %7114 = vmatpush1.bf16.msra.mxu0 %v7022
        %7115 = vmatprep.subr.bf16.mxu0 %v7025
        %7116 = vmatpush1.bf16.msra.mxu0 %v7024
        %7117 = vmatprep.subr.bf16.mxu0 %v7027
        %7118 = vmatpush1.bf16.msra.mxu0 %v7026
        %7119 = vmatprep.subr.bf16.mxu0 %v7029
        %7120 = vmatpush1.bf16.msra.mxu0 %v7028
        %7121 = vmatprep.subr.bf16.mxu0 %v7031
        %7122 = vmatpush1.bf16.msra.mxu0 %v7030
        %7123 = vmatprep.subr.bf16.mxu0 %v7033
        %7124 = vmatpush1.bf16.msra.mxu0 %v7032
        %7125 = vmatprep.subr.bf16.mxu0 %v7035
        %7126 = vmatpush1.bf16.msra.mxu0 %v7034
        %7127 = vmatprep.mubr.bf16.mxu0 %v6475
        %7128 = vmatmul.mubr.bf16.gmra.mrb[0].mxu0 %v6474
        %v7129 = vpop.f32.mrb[0].mxu0
        %v7130 = vadd.f32 %v6864, %v7129
        %v7131 = vpop.f32.mrb[0].mxu0
        %v7132 = vadd.f32 %v6866, %v7131
        %v7133 = vpop.f32.mrb[0].mxu0
        %v7134 = vadd.f32 %v6868, %v7133
        %v7135 = vpop.f32.mrb[0].mxu0
        %v7136 = vadd.f32 %v6870, %v7135
        %7137 = vdwg.mxu0
        %7138 = vmatprep.subr.bf16.mxu0 %v7037
        %7139 = vmatpush1.bf16.msra.mxu0 %v7036
        %7140 = vmatprep.subr.bf16.mxu0 %v7039
        %7141 = vmatpush1.bf16.msra.mxu0 %v7038
        %7142 = vmatprep.subr.bf16.mxu0 %v7041
        %7143 = vmatpush1.bf16.msra.mxu0 %v7040
        %7144 = vmatprep.subr.bf16.mxu0 %v7043
        %7145 = vmatpush1.bf16.msra.mxu0 %v7042
        %7146 = vmatprep.subr.bf16.mxu0 %v7045
        %7147 = vmatpush1.bf16.msra.mxu0 %v7044
        %7148 = vmatprep.subr.bf16.mxu0 %v7047
        %7149 = vmatpush1.bf16.msra.mxu0 %v7046
        %7150 = vmatprep.subr.bf16.mxu0 0
        %7151 = vmatpush1.bf16.msra.mxu0 0
        %7152 = vmatprep.subr.bf16.mxu0 0
        %7153 = vmatpush1.bf16.msra.mxu0 0
        %7154 = vmatprep.subr.bf16.mxu0 0
        %7155 = vmatpush1.bf16.msra.mxu0 0
        %7156 = vmatprep.subr.bf16.mxu0 0
        %7157 = vmatpush1.bf16.msra.mxu0 0
        %7158 = vmatprep.subr.bf16.mxu0 0
        %7159 = vmatpush1.bf16.msra.mxu0 0
        %7160 = vmatprep.subr.bf16.mxu0 0
        %7161 = vmatpush1.bf16.msra.mxu0 0
        %7162 = vmatprep.subr.bf16.mxu0 0
        %7163 = vmatpush1.bf16.msra.mxu0 0
        %7164 = vmatprep.subr.bf16.mxu0 0
        %7165 = vmatpush1.bf16.msra.mxu0 0
        %7166 = vmatprep.subr.bf16.mxu0 0
        %7167 = vmatpush1.bf16.msra.mxu0 0
        %7168 = vmatprep.subr.bf16.mxu0 0
        %7169 = vmatpush1.bf16.msra.mxu0 0
        %7170 = vmatprep.mubr.bf16.mxu0 0
        %7171 = vmatmul.mubr.bf16.gmra.mrb[0].mxu0 %v7093
        %v7172 = vpop.f32.mrb[0].mxu0
        %v7173 = vadd.f32 %v7130, %v7172
        %v7174 = vpop.f32.mrb[0].mxu0
        %v7175 = vadd.f32 %v7132, %v7174
        %v7176 = vpop.f32.mrb[0].mxu0
        %v7177 = vadd.f32 %v7134, %v7176
        %v7178 = vpop.f32.mrb[0].mxu0
        %v7179 = vadd.f32 %v7136, %v7178
        %7180 = vdwg.mxu0
        %s7181 = scalar_lea.vmem [#allocation16], 704
        %v7182 = vld [vmem:[%s7181] sm:$0xff]
        %v7183 = vld [vmem:[%s7181 + $0x8] sm:$0xff]
        %v7184 = vld [vmem:[%s7181 + $0x10] sm:$0xff]
        %v7185 = vld [vmem:[%s7181 + $0x18] sm:$0xff]
        %v7186 = vld [vmem:[%s7181 + $0x20] sm:$0xff]
        %v7187 = vld [vmem:[%s7181 + $0x28] sm:$0xff]
        %v7188 = vld [vmem:[%s7181 + $0x30] sm:$0xff]
        %v7189 = vld [vmem:[%s7181 + $0x38] sm:$0xff]
        %v7190 = vld [vmem:[%s7181 + $0x40] sm:$0xff]
        %v7191 = vld [vmem:[%s7181 + $0x48] sm:$0xff]
        %v7192 = vld [vmem:[%s7181 + $0x50] sm:$0xff]
        %v7193 = vld [vmem:[%s7181 + $0x58] sm:$0xff]
        %v7194 = vld [vmem:[%s7181 + $0x60] sm:$0xff]
        %v7195 = vld [vmem:[%s7181 + $0x68] sm:$0xff]
        %v7196 = vld [vmem:[%s7181 + $0x70] sm:$0xff]
        %v7197 = vld [vmem:[%s7181 + $0x78] sm:$0xff]
        %v7198 = vld [vmem:[%s7181 + $0x80] sm:$0xff]
        %v7199 = vld [vmem:[%s7181 + $0x88] sm:$0xff]
        %v7200 = vld [vmem:[%s7181 + $0x90] sm:$0xff]
        %v7201 = vld [vmem:[%s7181 + $0x98] sm:$0xff]
        %v7202 = vld [vmem:[%s7181 + $0xa0] sm:$0xff]
        %v7203 = vld [vmem:[%s7181 + $0xa8] sm:$0xff]
        %v7204 = vld [vmem:[%s7181 + $0xb0] sm:$0xff]
        %v7205 = vld [vmem:[%s7181 + $0xb8] sm:$0xff]
        %v7206 = vld [vmem:[%s7181 + $0xc0] sm:$0xff]
        %v7207 = vld [vmem:[%s7181 + $0xc8] sm:$0xff]
        %v7208 = vld [vmem:[%s7181 + $0xd0] sm:$0xff]
        %v7209 = vld [vmem:[%s7181 + $0xd8] sm:$0xff]
        %v7210 = vld [vmem:[%s7181 + $0xe0] sm:$0xff]
        %v7211 = vld [vmem:[%s7181 + $0xe8] sm:$0xff]
        %v7212 = vld [vmem:[%s7181 + $0xf0] sm:$0xff]
        %v7213 = vld [vmem:[%s7181 + $0xf8] sm:$0xff]
        %v7214 = vld [vmem:[%s7181 + $0x100] sm:$0xff]
        %v7215 = vld [vmem:[%s7181 + $0x108] sm:$0xff]
        %v7216 = vld [vmem:[%s7181 + $0x110] sm:$0xff]
        %v7217 = vld [vmem:[%s7181 + $0x118] sm:$0xff]
        %v7218 = vld [vmem:[%s7181 + $0x120] sm:$0xff]
        %v7219 = vld [vmem:[%s7181 + $0x128] sm:$0xff]
        %v7220 = vld [vmem:[%s7181 + $0x130] sm:$0xff]
        %v7221 = vld [vmem:[%s7181 + $0x138] sm:$0xff]
        %v7222 = vld [vmem:[%s7181 + $0x140] sm:$0xff]
        %v7223 = vld [vmem:[%s7181 + $0x148] sm:$0xff]
        %v7224 = vld [vmem:[%s7181 + $0x150] sm:$0xff]
        %v7225 = vld [vmem:[%s7181 + $0x158] sm:$0xff]
        %v7270 = vunpack.c.l.b16 %v7182
        %v7271 = vunpack.c.h.b16 %v7182
        %v7272 = vunpack.c.l.b16 %v7183
        %v7273 = vunpack.c.h.b16 %v7183
        %v7274 = vunpack.c.l.b16 %v7184
        %v7275 = vunpack.c.h.b16 %v7184
        %v7276 = vunpack.c.l.b16 %v7185
        %v7277 = vunpack.c.h.b16 %v7185
        %v7278 = vunpack.c.l.b16 %v7186
        %v7279 = vunpack.c.h.b16 %v7186
        %v7280 = vunpack.c.l.b16 %v7187
        %v7281 = vunpack.c.h.b16 %v7187
        %v7282 = vunpack.c.l.b16 %v7188
        %v7283 = vunpack.c.h.b16 %v7188
        %v7284 = vunpack.c.l.b16 %v7189
        %v7285 = vunpack.c.h.b16 %v7189
        %v7286 = vunpack.c.l.b16 %v7190
        %v7287 = vunpack.c.h.b16 %v7190
        %v7288 = vunpack.c.l.b16 %v7191
        %v7289 = vunpack.c.h.b16 %v7191
        %v7290 = vunpack.c.l.b16 %v7192
        %v7291 = vunpack.c.h.b16 %v7192
        %v7292 = vunpack.c.l.b16 %v7193
        %v7293 = vunpack.c.h.b16 %v7193
        %v7294 = vunpack.c.l.b16 %v7194
        %v7295 = vunpack.c.h.b16 %v7194
        %v7296 = vunpack.c.l.b16 %v7195
        %v7297 = vunpack.c.h.b16 %v7195
        %v7298 = vunpack.c.l.b16 %v7196
        %v7299 = vunpack.c.h.b16 %v7196
        %v7300 = vunpack.c.l.b16 %v7197
        %v7301 = vunpack.c.h.b16 %v7197
        %v7302 = vunpack.c.l.b16 %v7198
        %v7303 = vunpack.c.h.b16 %v7198
        %v7304 = vunpack.c.l.b16 %v7199
        %v7305 = vunpack.c.h.b16 %v7199
        %v7306 = vunpack.c.l.b16 %v7200
        %v7307 = vunpack.c.h.b16 %v7200
        %v7308 = vunpack.c.l.b16 %v7201
        %v7309 = vunpack.c.h.b16 %v7201
        %v7310 = vunpack.c.l.b16 %v7202
        %v7311 = vunpack.c.h.b16 %v7202
        %v7312 = vunpack.c.l.b16 %v7203
        %v7313 = vunpack.c.h.b16 %v7203
        %v7314 = vunpack.c.l.b16 %v7204
        %v7315 = vunpack.c.h.b16 %v7204
        %v7316 = vunpack.c.l.b16 %v7205
        %v7317 = vunpack.c.h.b16 %v7205
        %v7318 = vunpack.c.l.b16 %v7206
        %v7319 = vunpack.c.h.b16 %v7206
        %v7320 = vunpack.c.l.b16 %v7207
        %v7321 = vunpack.c.h.b16 %v7207
        %v7322 = vunpack.c.l.b16 %v7208
        %v7323 = vunpack.c.h.b16 %v7208
        %v7324 = vunpack.c.l.b16 %v7209
        %v7325 = vunpack.c.h.b16 %v7209
        %v7326 = vunpack.c.l.b16 %v7210
        %v7327 = vunpack.c.h.b16 %v7210
        %v7328 = vunpack.c.l.b16 %v7211
        %v7329 = vunpack.c.h.b16 %v7211
        %v7330 = vunpack.c.l.b16 %v7212
        %v7331 = vunpack.c.h.b16 %v7212
        %v7332 = vunpack.c.l.b16 %v7213
        %v7333 = vunpack.c.h.b16 %v7213
        %v7334 = vunpack.c.l.b16 %v7214
        %v7335 = vunpack.c.h.b16 %v7214
        %v7336 = vunpack.c.l.b16 %v7215
        %v7337 = vunpack.c.h.b16 %v7215
        %v7338 = vunpack.c.l.b16 %v7216
        %v7339 = vunpack.c.h.b16 %v7216
        %v7340 = vunpack.c.l.b16 %v7217
        %v7341 = vunpack.c.h.b16 %v7217
        %v7342 = vunpack.c.l.b16 %v7218
        %v7343 = vunpack.c.h.b16 %v7218
        %v7344 = vunpack.c.l.b16 %v7219
        %v7345 = vunpack.c.h.b16 %v7219
        %v7346 = vunpack.c.l.b16 %v7220
        %v7347 = vunpack.c.h.b16 %v7220
        %v7348 = vunpack.c.l.b16 %v7221
        %v7349 = vunpack.c.h.b16 %v7221
        %v7350 = vunpack.c.l.b16 %v7222
        %v7351 = vunpack.c.h.b16 %v7222
        %v7352 = vunpack.c.l.b16 %v7223
        %v7353 = vunpack.c.h.b16 %v7223
        %v7354 = vunpack.c.l.b16 %v7224
        %v7355 = vunpack.c.h.b16 %v7224
        %v7356 = vunpack.c.l.b16 %v7225
        %v7357 = vunpack.c.h.b16 %v7225
        %v7358 = vpack.c.b16 %v7272, %v7270
        %v7359 = vpack.c.b16 %v7273, %v7271
        %v7360 = vpack.c.b16 %v7276, %v7274
        %v7361 = vpack.c.b16 %v7277, %v7275
        %v7362 = vpack.c.b16 %v7280, %v7278
        %v7363 = vpack.c.b16 %v7281, %v7279
        %v7364 = vpack.c.b16 %v7284, %v7282
        %v7365 = vpack.c.b16 %v7285, %v7283
        %v7366 = vpack.c.b16 %v7288, %v7286
        %v7367 = vpack.c.b16 %v7289, %v7287
        %v7368 = vpack.c.b16 %v7292, %v7290
        %v7369 = vpack.c.b16 %v7293, %v7291
        %v7370 = vpack.c.b16 %v7296, %v7294
        %v7371 = vpack.c.b16 %v7297, %v7295
        %v7372 = vpack.c.b16 %v7300, %v7298
        %v7373 = vpack.c.b16 %v7301, %v7299
        %v7374 = vpack.c.b16 %v7304, %v7302
        %v7375 = vpack.c.b16 %v7305, %v7303
        %v7376 = vpack.c.b16 %v7308, %v7306
        %v7377 = vpack.c.b16 %v7309, %v7307
        %v7378 = vpack.c.b16 %v7312, %v7310
        %v7379 = vpack.c.b16 %v7313, %v7311
        %v7380 = vpack.c.b16 %v7316, %v7314
        %v7381 = vpack.c.b16 %v7317, %v7315
        %v7382 = vpack.c.b16 %v7320, %v7318
        %v7383 = vpack.c.b16 %v7321, %v7319
        %v7384 = vpack.c.b16 %v7324, %v7322
        %v7385 = vpack.c.b16 %v7325, %v7323
        %v7386 = vpack.c.b16 %v7328, %v7326
        %v7387 = vpack.c.b16 %v7329, %v7327
        %v7388 = vpack.c.b16 %v7332, %v7330
        %v7389 = vpack.c.b16 %v7333, %v7331
        %v7390 = vpack.c.b16 %v7336, %v7334
        %v7391 = vpack.c.b16 %v7337, %v7335
        %v7392 = vpack.c.b16 %v7340, %v7338
        %v7393 = vpack.c.b16 %v7341, %v7339
        %v7394 = vpack.c.b16 %v7344, %v7342
        %v7395 = vpack.c.b16 %v7345, %v7343
        %v7396 = vpack.c.b16 %v7348, %v7346
        %v7397 = vpack.c.b16 %v7349, %v7347
        %v7398 = vpack.c.b16 %v7352, %v7350
        %v7399 = vpack.c.b16 %v7353, %v7351
        %v7400 = vpack.c.b16 %v7356, %v7354
        %v7401 = vpack.c.b16 %v7357, %v7355
        %7446 = vmatprep.subr.bf16.mxu0 %v7359
        %7447 = vmatpush1.bf16.msra.mxu0 %v7358
        %7448 = vmatprep.subr.bf16.mxu0 %v7361
        %7449 = vmatpush1.bf16.msra.mxu0 %v7360
        %7450 = vmatprep.subr.bf16.mxu0 %v7363
        %7451 = vmatpush1.bf16.msra.mxu0 %v7362
        %7452 = vmatprep.subr.bf16.mxu0 %v7365
        %7453 = vmatpush1.bf16.msra.mxu0 %v7364
        %7454 = vmatprep.subr.bf16.mxu0 %v7367
        %7455 = vmatpush1.bf16.msra.mxu0 %v7366
        %7456 = vmatprep.subr.bf16.mxu0 %v7369
        %7457 = vmatpush1.bf16.msra.mxu0 %v7368
        %7458 = vmatprep.subr.bf16.mxu0 %v7371
        %7459 = vmatpush1.bf16.msra.mxu0 %v7370
        %7460 = vmatprep.subr.bf16.mxu0 %v7373
        %7461 = vmatpush1.bf16.msra.mxu0 %v7372
        %7462 = vmatprep.subr.bf16.mxu0 %v7375
        %7463 = vmatpush1.bf16.msra.mxu0 %v7374
        %7464 = vmatprep.subr.bf16.mxu0 %v7377
        %7465 = vmatpush1.bf16.msra.mxu0 %v7376
        %7466 = vmatprep.subr.bf16.mxu0 %v7379
        %7467 = vmatpush1.bf16.msra.mxu0 %v7378
        %7468 = vmatprep.subr.bf16.mxu0 %v7381
        %7469 = vmatpush1.bf16.msra.mxu0 %v7380
        %7470 = vmatprep.subr.bf16.mxu0 %v7383
        %7471 = vmatpush1.bf16.msra.mxu0 %v7382
        %7472 = vmatprep.subr.bf16.mxu0 %v7385
        %7473 = vmatpush1.bf16.msra.mxu0 %v7384
        %7474 = vmatprep.subr.bf16.mxu0 %v7387
        %7475 = vmatpush1.bf16.msra.mxu0 %v7386
        %7476 = vmatprep.subr.bf16.mxu0 %v7389
        %7477 = vmatpush1.bf16.msra.mxu0 %v7388
        %7478 = vmatprep.mubr.bf16.mxu0 %v3837
        %7479 = vmatmul.mubr.bf16.gmra.mrb[0].mxu0 %v3834
        %v7480 = vpop.f32.mrb[0].mxu0
        %v7481 = vadd.f32 0.0, %v7480
        %v7482 = vpop.f32.mrb[0].mxu0
        %v7483 = vadd.f32 0.0, %v7482
        %v7484 = vpop.f32.mrb[0].mxu0
        %v7485 = vadd.f32 0.0, %v7484
        %v7486 = vpop.f32.mrb[0].mxu0
        %v7487 = vadd.f32 0.0, %v7486
        %7488 = vdwg.mxu0
        %7489 = vmatprep.subr.bf16.mxu0 %v7391
        %7490 = vmatpush1.bf16.msra.mxu0 %v7390
        %7491 = vmatprep.subr.bf16.mxu0 %v7393
        %7492 = vmatpush1.bf16.msra.mxu0 %v7392
        %7493 = vmatprep.subr.bf16.mxu0 %v7395
        %7494 = vmatpush1.bf16.msra.mxu0 %v7394
        %7495 = vmatprep.subr.bf16.mxu0 %v7397
        %7496 = vmatpush1.bf16.msra.mxu0 %v7396
        %7497 = vmatprep.subr.bf16.mxu0 %v7399
        %7498 = vmatpush1.bf16.msra.mxu0 %v7398
        %7499 = vmatprep.subr.bf16.mxu0 %v7401
        %7500 = vmatpush1.bf16.msra.mxu0 %v7400
        %7501 = vmatprep.subr.bf16.mxu0 0
        %7502 = vmatpush1.bf16.msra.mxu0 0
        %7503 = vmatprep.subr.bf16.mxu0 0
        %7504 = vmatpush1.bf16.msra.mxu0 0
        %7505 = vmatprep.subr.bf16.mxu0 0
        %7506 = vmatpush1.bf16.msra.mxu0 0
        %7507 = vmatprep.subr.bf16.mxu0 0
        %7508 = vmatpush1.bf16.msra.mxu0 0
        %7509 = vmatprep.subr.bf16.mxu0 0
        %7510 = vmatpush1.bf16.msra.mxu0 0
        %7511 = vmatprep.subr.bf16.mxu0 0
        %7512 = vmatpush1.bf16.msra.mxu0 0
        %7513 = vmatprep.subr.bf16.mxu0 0
        %7514 = vmatpush1.bf16.msra.mxu0 0
        %7515 = vmatprep.subr.bf16.mxu0 0
        %7516 = vmatpush1.bf16.msra.mxu0 0
        %7517 = vmatprep.subr.bf16.mxu0 0
        %7518 = vmatpush1.bf16.msra.mxu0 0
        %7519 = vmatprep.subr.bf16.mxu0 0
        %7520 = vmatpush1.bf16.msra.mxu0 0
        %7521 = vmatprep.mubr.bf16.mxu0 0
        %7522 = vmatmul.mubr.bf16.gmra.mrb[0].mxu0 %v4064
        %v7523 = vpop.f32.mrb[0].mxu0
        %v7524 = vadd.f32 %v7481, %v7523
        %v7525 = vpop.f32.mrb[0].mxu0
        %v7526 = vadd.f32 %v7483, %v7525
        %v7527 = vpop.f32.mrb[0].mxu0
        %v7528 = vadd.f32 %v7485, %v7527
        %v7529 = vpop.f32.mrb[0].mxu0
        %v7530 = vadd.f32 %v7487, %v7529
        %7531 = vdwg.mxu0
        %v7532 = vadd.f32 %v7173, %v7524
        %v7533 = vadd.f32 %v7175, %v7526
        %v7534 = vadd.f32 %v7177, %v7528
        %v7535 = vadd.f32 %v7179, %v7530
        %s7536 = scalar_lea.vmem [#allocation16], 1056
        %v7537 = vld [vmem:[%s7536] sm:$0xff]
        %v7538 = vld [vmem:[%s7536 + $0x8] sm:$0xff]
        %v7539 = vld [vmem:[%s7536 + $0x10] sm:$0xff]
        %v7540 = vld [vmem:[%s7536 + $0x18] sm:$0xff]
        %v7541 = vld [vmem:[%s7536 + $0x20] sm:$0xff]
        %v7542 = vld [vmem:[%s7536 + $0x28] sm:$0xff]
        %v7543 = vld [vmem:[%s7536 + $0x30] sm:$0xff]
        %v7544 = vld [vmem:[%s7536 + $0x38] sm:$0xff]
        %v7545 = vld [vmem:[%s7536 + $0x40] sm:$0xff]
        %v7546 = vld [vmem:[%s7536 + $0x48] sm:$0xff]
        %v7547 = vld [vmem:[%s7536 + $0x50] sm:$0xff]
        %v7548 = vld [vmem:[%s7536 + $0x58] sm:$0xff]
        %v7549 = vld [vmem:[%s7536 + $0x60] sm:$0xff]
        %v7550 = vld [vmem:[%s7536 + $0x68] sm:$0xff]
        %v7551 = vld [vmem:[%s7536 + $0x70] sm:$0xff]
        %v7552 = vld [vmem:[%s7536 + $0x78] sm:$0xff]
        %v7553 = vld [vmem:[%s7536 + $0x80] sm:$0xff]
        %v7554 = vld [vmem:[%s7536 + $0x88] sm:$0xff]
        %v7555 = vld [vmem:[%s7536 + $0x90] sm:$0xff]
        %v7556 = vld [vmem:[%s7536 + $0x98] sm:$0xff]
        %v7557 = vld [vmem:[%s7536 + $0xa0] sm:$0xff]
        %v7558 = vld [vmem:[%s7536 + $0xa8] sm:$0xff]
        %v7559 = vld [vmem:[%s7536 + $0xb0] sm:$0xff]
        %v7560 = vld [vmem:[%s7536 + $0xb8] sm:$0xff]
        %v7561 = vld [vmem:[%s7536 + $0xc0] sm:$0xff]
        %v7562 = vld [vmem:[%s7536 + $0xc8] sm:$0xff]
        %v7563 = vld [vmem:[%s7536 + $0xd0] sm:$0xff]
        %v7564 = vld [vmem:[%s7536 + $0xd8] sm:$0xff]
        %v7565 = vld [vmem:[%s7536 + $0xe0] sm:$0xff]
        %v7566 = vld [vmem:[%s7536 + $0xe8] sm:$0xff]
        %v7567 = vld [vmem:[%s7536 + $0xf0] sm:$0xff]
        %v7568 = vld [vmem:[%s7536 + $0xf8] sm:$0xff]
        %v7569 = vld [vmem:[%s7536 + $0x100] sm:$0xff]
        %v7570 = vld [vmem:[%s7536 + $0x108] sm:$0xff]
        %v7571 = vld [vmem:[%s7536 + $0x110] sm:$0xff]
        %v7572 = vld [vmem:[%s7536 + $0x118] sm:$0xff]
        %v7573 = vld [vmem:[%s7536 + $0x120] sm:$0xff]
        %v7574 = vld [vmem:[%s7536 + $0x128] sm:$0xff]
        %v7575 = vld [vmem:[%s7536 + $0x130] sm:$0xff]
        %v7576 = vld [vmem:[%s7536 + $0x138] sm:$0xff]
        %v7577 = vld [vmem:[%s7536 + $0x140] sm:$0xff]
        %v7578 = vld [vmem:[%s7536 + $0x148] sm:$0xff]
        %v7579 = vld [vmem:[%s7536 + $0x150] sm:$0xff]
        %v7580 = vld [vmem:[%s7536 + $0x158] sm:$0xff]
        %v7625 = vunpack.c.l.b16 %v7537
        %v7626 = vunpack.c.h.b16 %v7537
        %v7627 = vunpack.c.l.b16 %v7538
        %v7628 = vunpack.c.h.b16 %v7538
        %v7629 = vunpack.c.l.b16 %v7539
        %v7630 = vunpack.c.h.b16 %v7539
        %v7631 = vunpack.c.l.b16 %v7540
        %v7632 = vunpack.c.h.b16 %v7540
        %v7633 = vunpack.c.l.b16 %v7541
        %v7634 = vunpack.c.h.b16 %v7541
        %v7635 = vunpack.c.l.b16 %v7542
        %v7636 = vunpack.c.h.b16 %v7542
        %v7637 = vunpack.c.l.b16 %v7543
        %v7638 = vunpack.c.h.b16 %v7543
        %v7639 = vunpack.c.l.b16 %v7544
        %v7640 = vunpack.c.h.b16 %v7544
        %v7641 = vunpack.c.l.b16 %v7545
        %v7642 = vunpack.c.h.b16 %v7545
        %v7643 = vunpack.c.l.b16 %v7546
        %v7644 = vunpack.c.h.b16 %v7546
        %v7645 = vunpack.c.l.b16 %v7547
        %v7646 = vunpack.c.h.b16 %v7547
        %v7647 = vunpack.c.l.b16 %v7548
        %v7648 = vunpack.c.h.b16 %v7548
        %v7649 = vunpack.c.l.b16 %v7549
        %v7650 = vunpack.c.h.b16 %v7549
        %v7651 = vunpack.c.l.b16 %v7550
        %v7652 = vunpack.c.h.b16 %v7550
        %v7653 = vunpack.c.l.b16 %v7551
        %v7654 = vunpack.c.h.b16 %v7551
        %v7655 = vunpack.c.l.b16 %v7552
        %v7656 = vunpack.c.h.b16 %v7552
        %v7657 = vunpack.c.l.b16 %v7553
        %v7658 = vunpack.c.h.b16 %v7553
        %v7659 = vunpack.c.l.b16 %v7554
        %v7660 = vunpack.c.h.b16 %v7554
        %v7661 = vunpack.c.l.b16 %v7555
        %v7662 = vunpack.c.h.b16 %v7555
        %v7663 = vunpack.c.l.b16 %v7556
        %v7664 = vunpack.c.h.b16 %v7556
        %v7665 = vunpack.c.l.b16 %v7557
        %v7666 = vunpack.c.h.b16 %v7557
        %v7667 = vunpack.c.l.b16 %v7558
        %v7668 = vunpack.c.h.b16 %v7558
        %v7669 = vunpack.c.l.b16 %v7559
        %v7670 = vunpack.c.h.b16 %v7559
        %v7671 = vunpack.c.l.b16 %v7560
        %v7672 = vunpack.c.h.b16 %v7560
        %v7673 = vunpack.c.l.b16 %v7561
        %v7674 = vunpack.c.h.b16 %v7561
        %v7675 = vunpack.c.l.b16 %v7562
        %v7676 = vunpack.c.h.b16 %v7562
        %v7677 = vunpack.c.l.b16 %v7563
        %v7678 = vunpack.c.h.b16 %v7563
        %v7679 = vunpack.c.l.b16 %v7564
        %v7680 = vunpack.c.h.b16 %v7564
        %v7681 = vunpack.c.l.b16 %v7565
        %v7682 = vunpack.c.h.b16 %v7565
        %v7683 = vunpack.c.l.b16 %v7566
        %v7684 = vunpack.c.h.b16 %v7566
        %v7685 = vunpack.c.l.b16 %v7567
        %v7686 = vunpack.c.h.b16 %v7567
        %v7687 = vunpack.c.l.b16 %v7568
        %v7688 = vunpack.c.h.b16 %v7568
        %v7689 = vunpack.c.l.b16 %v7569
        %v7690 = vunpack.c.h.b16 %v7569
        %v7691 = vunpack.c.l.b16 %v7570
        %v7692 = vunpack.c.h.b16 %v7570
        %v7693 = vunpack.c.l.b16 %v7571
        %v7694 = vunpack.c.h.b16 %v7571
        %v7695 = vunpack.c.l.b16 %v7572
        %v7696 = vunpack.c.h.b16 %v7572
        %v7697 = vunpack.c.l.b16 %v7573
        %v7698 = vunpack.c.h.b16 %v7573
        %v7699 = vunpack.c.l.b16 %v7574
        %v7700 = vunpack.c.h.b16 %v7574
        %v7701 = vunpack.c.l.b16 %v7575
        %v7702 = vunpack.c.h.b16 %v7575
        %v7703 = vunpack.c.l.b16 %v7576
        %v7704 = vunpack.c.h.b16 %v7576
        %v7705 = vunpack.c.l.b16 %v7577
        %v7706 = vunpack.c.h.b16 %v7577
        %v7707 = vunpack.c.l.b16 %v7578
        %v7708 = vunpack.c.h.b16 %v7578
        %v7709 = vunpack.c.l.b16 %v7579
        %v7710 = vunpack.c.h.b16 %v7579
        %v7711 = vunpack.c.l.b16 %v7580
        %v7712 = vunpack.c.h.b16 %v7580
        %v7713 = vpack.c.b16 %v7627, %v7625
        %v7714 = vpack.c.b16 %v7628, %v7626
        %v7715 = vpack.c.b16 %v7631, %v7629
        %v7716 = vpack.c.b16 %v7632, %v7630
        %v7717 = vpack.c.b16 %v7635, %v7633
        %v7718 = vpack.c.b16 %v7636, %v7634
        %v7719 = vpack.c.b16 %v7639, %v7637
        %v7720 = vpack.c.b16 %v7640, %v7638
        %v7721 = vpack.c.b16 %v7643, %v7641
        %v7722 = vpack.c.b16 %v7644, %v7642
        %v7723 = vpack.c.b16 %v7647, %v7645
        %v7724 = vpack.c.b16 %v7648, %v7646
        %v7725 = vpack.c.b16 %v7651, %v7649
        %v7726 = vpack.c.b16 %v7652, %v7650
        %v7727 = vpack.c.b16 %v7655, %v7653
        %v7728 = vpack.c.b16 %v7656, %v7654
        %v7729 = vpack.c.b16 %v7659, %v7657
        %v7730 = vpack.c.b16 %v7660, %v7658
        %v7731 = vpack.c.b16 %v7663, %v7661
        %v7732 = vpack.c.b16 %v7664, %v7662
        %v7733 = vpack.c.b16 %v7667, %v7665
        %v7734 = vpack.c.b16 %v7668, %v7666
        %v7735 = vpack.c.b16 %v7671, %v7669
        %v7736 = vpack.c.b16 %v7672, %v7670
        %v7737 = vpack.c.b16 %v7675, %v7673
        %v7738 = vpack.c.b16 %v7676, %v7674
        %v7739 = vpack.c.b16 %v7679, %v7677
        %v7740 = vpack.c.b16 %v7680, %v7678
        %v7741 = vpack.c.b16 %v7683, %v7681
        %v7742 = vpack.c.b16 %v7684, %v7682
        %v7743 = vpack.c.b16 %v7687, %v7685
        %v7744 = vpack.c.b16 %v7688, %v7686
        %v7745 = vpack.c.b16 %v7691, %v7689
        %v7746 = vpack.c.b16 %v7692, %v7690
        %v7747 = vpack.c.b16 %v7695, %v7693
        %v7748 = vpack.c.b16 %v7696, %v7694
        %v7749 = vpack.c.b16 %v7699, %v7697
        %v7750 = vpack.c.b16 %v7700, %v7698
        %v7751 = vpack.c.b16 %v7703, %v7701
        %v7752 = vpack.c.b16 %v7704, %v7702
        %v7753 = vpack.c.b16 %v7707, %v7705
        %v7754 = vpack.c.b16 %v7708, %v7706
        %v7755 = vpack.c.b16 %v7711, %v7709
        %v7756 = vpack.c.b16 %v7712, %v7710
        %7801 = vmatprep.subr.bf16.mxu0 %v7714
        %7802 = vmatpush1.bf16.msra.mxu0 %v7713
        %7803 = vmatprep.subr.bf16.mxu0 %v7716
        %7804 = vmatpush1.bf16.msra.mxu0 %v7715
        %7805 = vmatprep.subr.bf16.mxu0 %v7718
        %7806 = vmatpush1.bf16.msra.mxu0 %v7717
        %7807 = vmatprep.subr.bf16.mxu0 %v7720
        %7808 = vmatpush1.bf16.msra.mxu0 %v7719
        %7809 = vmatprep.subr.bf16.mxu0 %v7722
        %7810 = vmatpush1.bf16.msra.mxu0 %v7721
        %7811 = vmatprep.subr.bf16.mxu0 %v7724
        %7812 = vmatpush1.bf16.msra.mxu0 %v7723
        %7813 = vmatprep.subr.bf16.mxu0 %v7726
        %7814 = vmatpush1.bf16.msra.mxu0 %v7725
        %7815 = vmatprep.subr.bf16.mxu0 %v7728
        %7816 = vmatpush1.bf16.msra.mxu0 %v7727
        %7817 = vmatprep.subr.bf16.mxu0 %v7730
        %7818 = vmatpush1.bf16.msra.mxu0 %v7729
        %7819 = vmatprep.subr.bf16.mxu0 %v7732
        %7820 = vmatpush1.bf16.msra.mxu0 %v7731
        %7821 = vmatprep.subr.bf16.mxu0 %v7734
        %7822 = vmatpush1.bf16.msra.mxu0 %v7733
        %7823 = vmatprep.subr.bf16.mxu0 %v7736
        %7824 = vmatpush1.bf16.msra.mxu0 %v7735
        %7825 = vmatprep.subr.bf16.mxu0 %v7738
        %7826 = vmatpush1.bf16.msra.mxu0 %v7737
        %7827 = vmatprep.subr.bf16.mxu0 %v7740
        %7828 = vmatpush1.bf16.msra.mxu0 %v7739
        %7829 = vmatprep.subr.bf16.mxu0 %v7742
        %7830 = vmatpush1.bf16.msra.mxu0 %v7741
        %7831 = vmatprep.subr.bf16.mxu0 %v7744
        %7832 = vmatpush1.bf16.msra.mxu0 %v7743
        %7833 = vmatprep.mubr.bf16.mxu0 %v3497
        %7834 = vmatmul.mubr.bf16.gmra.mrb[0].mxu0 %v3480
        %v7835 = vpop.f32.mrb[0].mxu0
        %v7836 = vadd.f32 0.0, %v7835
        %v7837 = vpop.f32.mrb[0].mxu0
        %v7838 = vadd.f32 0.0, %v7837
        %v7839 = vpop.f32.mrb[0].mxu0
        %v7840 = vadd.f32 0.0, %v7839
        %v7841 = vpop.f32.mrb[0].mxu0
        %v7842 = vadd.f32 0.0, %v7841
        %7843 = vdwg.mxu0
        %7844 = vmatprep.subr.bf16.mxu0 %v7746
        %7845 = vmatpush1.bf16.msra.mxu0 %v7745
        %7846 = vmatprep.subr.bf16.mxu0 %v7748
        %7847 = vmatpush1.bf16.msra.mxu0 %v7747
        %7848 = vmatprep.subr.bf16.mxu0 %v7750
        %7849 = vmatpush1.bf16.msra.mxu0 %v7749
        %7850 = vmatprep.subr.bf16.mxu0 %v7752
        %7851 = vmatpush1.bf16.msra.mxu0 %v7751
        %7852 = vmatprep.subr.bf16.mxu0 %v7754
        %7853 = vmatpush1.bf16.msra.mxu0 %v7753
        %7854 = vmatprep.subr.bf16.mxu0 %v7756
        %7855 = vmatpush1.bf16.msra.mxu0 %v7755
        %7856 = vmatprep.subr.bf16.mxu0 0
        %7857 = vmatpush1.bf16.msra.mxu0 0
        %7858 = vmatprep.subr.bf16.mxu0 0
        %7859 = vmatpush1.bf16.msra.mxu0 0
        %7860 = vmatprep.subr.bf16.mxu0 0
        %7861 = vmatpush1.bf16.msra.mxu0 0
        %7862 = vmatprep.subr.bf16.mxu0 0
        %7863 = vmatpush1.bf16.msra.mxu0 0
        %7864 = vmatprep.subr.bf16.mxu0 0
        %7865 = vmatpush1.bf16.msra.mxu0 0
        %7866 = vmatprep.subr.bf16.mxu0 0
        %7867 = vmatpush1.bf16.msra.mxu0 0
        %7868 = vmatprep.subr.bf16.mxu0 0
        %7869 = vmatpush1.bf16.msra.mxu0 0
        %7870 = vmatprep.subr.bf16.mxu0 0
        %7871 = vmatpush1.bf16.msra.mxu0 0
        %7872 = vmatprep.subr.bf16.mxu0 0
        %7873 = vmatpush1.bf16.msra.mxu0 0
        %7874 = vmatprep.subr.bf16.mxu0 0
        %7875 = vmatpush1.bf16.msra.mxu0 0
        %7876 = vmatprep.mubr.bf16.mxu0 0
        %7877 = vmatmul.mubr.bf16.gmra.mrb[0].mxu0 %v3738
        %v7878 = vpop.f32.mrb[0].mxu0
        %v7879 = vadd.f32 %v7836, %v7878
        %v7880 = vpop.f32.mrb[0].mxu0
        %v7881 = vadd.f32 %v7838, %v7880
        %v7882 = vpop.f32.mrb[0].mxu0
        %v7883 = vadd.f32 %v7840, %v7882
        %v7884 = vpop.f32.mrb[0].mxu0
        %v7885 = vadd.f32 %v7842, %v7884
        %7886 = vdwg.mxu0
        %v7887 = vadd.f32 %v7532, %v7879
        %v7888 = vadd.f32 %v7533, %v7881
        %v7889 = vadd.f32 %v7534, %v7883
        %v7890 = vadd.f32 %v7535, %v7885
        %s7891 = scalar_lea.vmem [#allocation16], 1408
        %v7892 = vld [vmem:[%s7891] sm:$0xff]
        %v7893 = vld [vmem:[%s7891 + $0x8] sm:$0xff]
        %v7894 = vld [vmem:[%s7891 + $0x10] sm:$0xff]
        %v7895 = vld [vmem:[%s7891 + $0x18] sm:$0xff]
        %v7896 = vld [vmem:[%s7891 + $0x20] sm:$0xff]
        %v7897 = vld [vmem:[%s7891 + $0x28] sm:$0xff]
        %v7898 = vld [vmem:[%s7891 + $0x30] sm:$0xff]
        %v7899 = vld [vmem:[%s7891 + $0x38] sm:$0xff]
        %v7900 = vld [vmem:[%s7891 + $0x40] sm:$0xff]
        %v7901 = vld [vmem:[%s7891 + $0x48] sm:$0xff]
        %v7902 = vld [vmem:[%s7891 + $0x50] sm:$0xff]
        %v7903 = vld [vmem:[%s7891 + $0x58] sm:$0xff]
        %v7904 = vld [vmem:[%s7891 + $0x60] sm:$0xff]
        %v7905 = vld [vmem:[%s7891 + $0x68] sm:$0xff]
        %v7906 = vld [vmem:[%s7891 + $0x70] sm:$0xff]
        %v7907 = vld [vmem:[%s7891 + $0x78] sm:$0xff]
        %v7908 = vld [vmem:[%s7891 + $0x80] sm:$0xff]
        %v7909 = vld [vmem:[%s7891 + $0x88] sm:$0xff]
        %v7910 = vld [vmem:[%s7891 + $0x90] sm:$0xff]
        %v7911 = vld [vmem:[%s7891 + $0x98] sm:$0xff]
        %v7912 = vld [vmem:[%s7891 + $0xa0] sm:$0xff]
        %v7913 = vld [vmem:[%s7891 + $0xa8] sm:$0xff]
        %v7914 = vld [vmem:[%s7891 + $0xb0] sm:$0xff]
        %v7915 = vld [vmem:[%s7891 + $0xb8] sm:$0xff]
        %v7916 = vld [vmem:[%s7891 + $0xc0] sm:$0xff]
        %v7917 = vld [vmem:[%s7891 + $0xc8] sm:$0xff]
        %v7918 = vld [vmem:[%s7891 + $0xd0] sm:$0xff]
        %v7919 = vld [vmem:[%s7891 + $0xd8] sm:$0xff]
        %v7920 = vld [vmem:[%s7891 + $0xe0] sm:$0xff]
        %v7921 = vld [vmem:[%s7891 + $0xe8] sm:$0xff]
        %v7922 = vld [vmem:[%s7891 + $0xf0] sm:$0xff]
        %v7923 = vld [vmem:[%s7891 + $0xf8] sm:$0xff]
        %v7924 = vld [vmem:[%s7891 + $0x100] sm:$0xff]
        %v7925 = vld [vmem:[%s7891 + $0x108] sm:$0xff]
        %v7926 = vld [vmem:[%s7891 + $0x110] sm:$0xff]
        %v7927 = vld [vmem:[%s7891 + $0x118] sm:$0xff]
        %v7928 = vld [vmem:[%s7891 + $0x120] sm:$0xff]
        %v7929 = vld [vmem:[%s7891 + $0x128] sm:$0xff]
        %v7930 = vld [vmem:[%s7891 + $0x130] sm:$0xff]
        %v7931 = vld [vmem:[%s7891 + $0x138] sm:$0xff]
        %v7932 = vld [vmem:[%s7891 + $0x140] sm:$0xff]
        %v7933 = vld [vmem:[%s7891 + $0x148] sm:$0xff]
        %v7934 = vld [vmem:[%s7891 + $0x150] sm:$0xff]
        %v7935 = vld [vmem:[%s7891 + $0x158] sm:$0xff]
        %v7980 = vunpack.c.l.b16 %v7892
        %v7981 = vunpack.c.h.b16 %v7892
        %v7982 = vunpack.c.l.b16 %v7893
        %v7983 = vunpack.c.h.b16 %v7893
        %v7984 = vunpack.c.l.b16 %v7894
        %v7985 = vunpack.c.h.b16 %v7894
        %v7986 = vunpack.c.l.b16 %v7895
        %v7987 = vunpack.c.h.b16 %v7895
        %v7988 = vunpack.c.l.b16 %v7896
        %v7989 = vunpack.c.h.b16 %v7896
        %v7990 = vunpack.c.l.b16 %v7897
        %v7991 = vunpack.c.h.b16 %v7897
        %v7992 = vunpack.c.l.b16 %v7898
        %v7993 = vunpack.c.h.b16 %v7898
        %v7994 = vunpack.c.l.b16 %v7899
        %v7995 = vunpack.c.h.b16 %v7899
        %v7996 = vunpack.c.l.b16 %v7900
        %v7997 = vunpack.c.h.b16 %v7900
        %v7998 = vunpack.c.l.b16 %v7901
        %v7999 = vunpack.c.h.b16 %v7901
        %v8000 = vunpack.c.l.b16 %v7902
        %v8001 = vunpack.c.h.b16 %v7902
        %v8002 = vunpack.c.l.b16 %v7903
        %v8003 = vunpack.c.h.b16 %v7903
        %v8004 = vunpack.c.l.b16 %v7904
        %v8005 = vunpack.c.h.b16 %v7904
        %v8006 = vunpack.c.l.b16 %v7905
        %v8007 = vunpack.c.h.b16 %v7905
        %v8008 = vunpack.c.l.b16 %v7906
        %v8009 = vunpack.c.h.b16 %v7906
        %v8010 = vunpack.c.l.b16 %v7907
        %v8011 = vunpack.c.h.b16 %v7907
        %v8012 = vunpack.c.l.b16 %v7908
        %v8013 = vunpack.c.h.b16 %v7908
        %v8014 = vunpack.c.l.b16 %v7909
        %v8015 = vunpack.c.h.b16 %v7909
        %v8016 = vunpack.c.l.b16 %v7910
        %v8017 = vunpack.c.h.b16 %v7910
        %v8018 = vunpack.c.l.b16 %v7911
        %v8019 = vunpack.c.h.b16 %v7911
        %v8020 = vunpack.c.l.b16 %v7912
        %v8021 = vunpack.c.h.b16 %v7912
        %v8022 = vunpack.c.l.b16 %v7913
        %v8023 = vunpack.c.h.b16 %v7913
        %v8024 = vunpack.c.l.b16 %v7914
        %v8025 = vunpack.c.h.b16 %v7914
        %v8026 = vunpack.c.l.b16 %v7915
        %v8027 = vunpack.c.h.b16 %v7915
        %v8028 = vunpack.c.l.b16 %v7916
        %v8029 = vunpack.c.h.b16 %v7916
        %v8030 = vunpack.c.l.b16 %v7917
        %v8031 = vunpack.c.h.b16 %v7917
        %v8032 = vunpack.c.l.b16 %v7918
        %v8033 = vunpack.c.h.b16 %v7918
        %v8034 = vunpack.c.l.b16 %v7919
        %v8035 = vunpack.c.h.b16 %v7919
        %v8036 = vunpack.c.l.b16 %v7920
        %v8037 = vunpack.c.h.b16 %v7920
        %v8038 = vunpack.c.l.b16 %v7921
        %v8039 = vunpack.c.h.b16 %v7921
        %v8040 = vunpack.c.l.b16 %v7922
        %v8041 = vunpack.c.h.b16 %v7922
        %v8042 = vunpack.c.l.b16 %v7923
        %v8043 = vunpack.c.h.b16 %v7923
        %v8044 = vunpack.c.l.b16 %v7924
        %v8045 = vunpack.c.h.b16 %v7924
        %v8046 = vunpack.c.l.b16 %v7925
        %v8047 = vunpack.c.h.b16 %v7925
        %v8048 = vunpack.c.l.b16 %v7926
        %v8049 = vunpack.c.h.b16 %v7926
        %v8050 = vunpack.c.l.b16 %v7927
        %v8051 = vunpack.c.h.b16 %v7927
        %v8052 = vunpack.c.l.b16 %v7928
        %v8053 = vunpack.c.h.b16 %v7928
        %v8054 = vunpack.c.l.b16 %v7929
        %v8055 = vunpack.c.h.b16 %v7929
        %v8056 = vunpack.c.l.b16 %v7930
        %v8057 = vunpack.c.h.b16 %v7930
        %v8058 = vunpack.c.l.b16 %v7931
        %v8059 = vunpack.c.h.b16 %v7931
        %v8060 = vunpack.c.l.b16 %v7932
        %v8061 = vunpack.c.h.b16 %v7932
        %v8062 = vunpack.c.l.b16 %v7933
        %v8063 = vunpack.c.h.b16 %v7933
        %v8064 = vunpack.c.l.b16 %v7934
        %v8065 = vunpack.c.h.b16 %v7934
        %v8066 = vunpack.c.l.b16 %v7935
        %v8067 = vunpack.c.h.b16 %v7935
        %v8068 = vpack.c.b16 %v7982, %v7980
        %v8069 = vpack.c.b16 %v7983, %v7981
        %v8070 = vpack.c.b16 %v7986, %v7984
        %v8071 = vpack.c.b16 %v7987, %v7985
        %v8072 = vpack.c.b16 %v7990, %v7988
        %v8073 = vpack.c.b16 %v7991, %v7989
        %v8074 = vpack.c.b16 %v7994, %v7992
        %v8075 = vpack.c.b16 %v7995, %v7993
        %v8076 = vpack.c.b16 %v7998, %v7996
        %v8077 = vpack.c.b16 %v7999, %v7997
        %v8078 = vpack.c.b16 %v8002, %v8000
        %v8079 = vpack.c.b16 %v8003, %v8001
        %v8080 = vpack.c.b16 %v8006, %v8004
        %v8081 = vpack.c.b16 %v8007, %v8005
        %v8082 = vpack.c.b16 %v8010, %v8008
        %v8083 = vpack.c.b16 %v8011, %v8009
        %v8084 = vpack.c.b16 %v8014, %v8012
        %v8085 = vpack.c.b16 %v8015, %v8013
        %v8086 = vpack.c.b16 %v8018, %v8016
        %v8087 = vpack.c.b16 %v8019, %v8017
        %v8088 = vpack.c.b16 %v8022, %v8020
        %v8089 = vpack.c.b16 %v8023, %v8021
        %v8090 = vpack.c.b16 %v8026, %v8024
        %v8091 = vpack.c.b16 %v8027, %v8025
        %v8092 = vpack.c.b16 %v8030, %v8028
        %v8093 = vpack.c.b16 %v8031, %v8029
        %v8094 = vpack.c.b16 %v8034, %v8032
        %v8095 = vpack.c.b16 %v8035, %v8033
        %v8096 = vpack.c.b16 %v8038, %v8036
        %v8097 = vpack.c.b16 %v8039, %v8037
        %v8098 = vpack.c.b16 %v8042, %v8040
        %v8099 = vpack.c.b16 %v8043, %v8041
        %v8100 = vpack.c.b16 %v8046, %v8044
        %v8101 = vpack.c.b16 %v8047, %v8045
        %v8102 = vpack.c.b16 %v8050, %v8048
        %v8103 = vpack.c.b16 %v8051, %v8049
        %v8104 = vpack.c.b16 %v8054, %v8052
        %v8105 = vpack.c.b16 %v8055, %v8053
        %v8106 = vpack.c.b16 %v8058, %v8056
        %v8107 = vpack.c.b16 %v8059, %v8057
        %v8108 = vpack.c.b16 %v8062, %v8060
        %v8109 = vpack.c.b16 %v8063, %v8061
        %v8110 = vpack.c.b16 %v8066, %v8064
        %v8111 = vpack.c.b16 %v8067, %v8065
        %8156 = vmatprep.subr.bf16.mxu0 %v8069
        %8157 = vmatpush1.bf16.msra.mxu0 %v8068
        %8158 = vmatprep.subr.bf16.mxu0 %v8071
        %8159 = vmatpush1.bf16.msra.mxu0 %v8070
        %8160 = vmatprep.subr.bf16.mxu0 %v8073
        %8161 = vmatpush1.bf16.msra.mxu0 %v8072
        %8162 = vmatprep.subr.bf16.mxu0 %v8075
        %8163 = vmatpush1.bf16.msra.mxu0 %v8074
        %8164 = vmatprep.subr.bf16.mxu0 %v8077
        %8165 = vmatpush1.bf16.msra.mxu0 %v8076
        %8166 = vmatprep.subr.bf16.mxu0 %v8079
        %8167 = vmatpush1.bf16.msra.mxu0 %v8078
        %8168 = vmatprep.subr.bf16.mxu0 %v8081
        %8169 = vmatpush1.bf16.msra.mxu0 %v8080
        %8170 = vmatprep.subr.bf16.mxu0 %v8083
        %8171 = vmatpush1.bf16.msra.mxu0 %v8082
        %8172 = vmatprep.subr.bf16.mxu0 %v8085
        %8173 = vmatpush1.bf16.msra.mxu0 %v8084
        %8174 = vmatprep.subr.bf16.mxu0 %v8087
        %8175 = vmatpush1.bf16.msra.mxu0 %v8086
        %8176 = vmatprep.subr.bf16.mxu0 %v8089
        %8177 = vmatpush1.bf16.msra.mxu0 %v8088
        %8178 = vmatprep.subr.bf16.mxu0 %v8091
        %8179 = vmatpush1.bf16.msra.mxu0 %v8090
        %8180 = vmatprep.subr.bf16.mxu0 %v8093
        %8181 = vmatpush1.bf16.msra.mxu0 %v8092
        %8182 = vmatprep.subr.bf16.mxu0 %v8095
        %8183 = vmatpush1.bf16.msra.mxu0 %v8094
        %8184 = vmatprep.subr.bf16.mxu0 %v8097
        %8185 = vmatpush1.bf16.msra.mxu0 %v8096
        %8186 = vmatprep.subr.bf16.mxu0 %v8099
        %8187 = vmatpush1.bf16.msra.mxu0 %v8098
        %8188 = vmatprep.mubr.bf16.mxu0 %v4220
        %8189 = vmatmul.mubr.bf16.gmra.mrb[0].mxu0 %v4217
        %v8190 = vpop.f32.mrb[0].mxu0
        %v8191 = vadd.f32 0.0, %v8190
        %v8192 = vpop.f32.mrb[0].mxu0
        %v8193 = vadd.f32 0.0, %v8192
        %v8194 = vpop.f32.mrb[0].mxu0
        %v8195 = vadd.f32 0.0, %v8194
        %v8196 = vpop.f32.mrb[0].mxu0
        %v8197 = vadd.f32 0.0, %v8196
        %8198 = vdwg.mxu0
        %8199 = vmatprep.subr.bf16.mxu0 %v8101
        %8200 = vmatpush1.bf16.msra.mxu0 %v8100
        %8201 = vmatprep.subr.bf16.mxu0 %v8103
        %8202 = vmatpush1.bf16.msra.mxu0 %v8102
        %8203 = vmatprep.subr.bf16.mxu0 %v8105
        %8204 = vmatpush1.bf16.msra.mxu0 %v8104
        %8205 = vmatprep.subr.bf16.mxu0 %v8107
        %8206 = vmatpush1.bf16.msra.mxu0 %v8106
        %8207 = vmatprep.subr.bf16.mxu0 %v8109
        %8208 = vmatpush1.bf16.msra.mxu0 %v8108
        %8209 = vmatprep.subr.bf16.mxu0 %v8111
        %8210 = vmatpush1.bf16.msra.mxu0 %v8110
        %8211 = vmatprep.subr.bf16.mxu0 0
        %8212 = vmatpush1.bf16.msra.mxu0 0
        %8213 = vmatprep.subr.bf16.mxu0 0
        %8214 = vmatpush1.bf16.msra.mxu0 0
        %8215 = vmatprep.subr.bf16.mxu0 0
        %8216 = vmatpush1.bf16.msra.mxu0 0
        %8217 = vmatprep.subr.bf16.mxu0 0
        %8218 = vmatpush1.bf16.msra.mxu0 0
        %8219 = vmatprep.subr.bf16.mxu0 0
        %8220 = vmatpush1.bf16.msra.mxu0 0
        %8221 = vmatprep.subr.bf16.mxu0 0
        %8222 = vmatpush1.bf16.msra.mxu0 0
        %8223 = vmatprep.subr.bf16.mxu0 0
        %8224 = vmatpush1.bf16.msra.mxu0 0
        %8225 = vmatprep.subr.bf16.mxu0 0
        %8226 = vmatpush1.bf16.msra.mxu0 0
        %8227 = vmatprep.subr.bf16.mxu0 0
        %8228 = vmatpush1.bf16.msra.mxu0 0
        %8229 = vmatprep.subr.bf16.mxu0 0
        %8230 = vmatpush1.bf16.msra.mxu0 0
        %8231 = vmatprep.mubr.bf16.mxu0 0
        %8232 = vmatmul.mubr.bf16.gmra.mrb[0].mxu0 %v4447
        %v8233 = vpop.f32.mrb[0].mxu0
        %v8234 = vadd.f32 %v8191, %v8233
        %v8235 = vpop.f32.mrb[0].mxu0
        %v8236 = vadd.f32 %v8193, %v8235
        %v8237 = vpop.f32.mrb[0].mxu0
        %v8238 = vadd.f32 %v8195, %v8237
        %v8239 = vpop.f32.mrb[0].mxu0
        %v8240 = vadd.f32 %v8197, %v8239
        %8241 = vdwg.mxu0
        %v8242 = vadd.f32 %v7887, %v8234
        %v8243 = vadd.f32 %v7888, %v8236
        %v8244 = vadd.f32 %v7889, %v8238
        %v8245 = vadd.f32 %v7890, %v8240
        %s8246 = scalar_lea.vmem [#allocation16], 1760
        %v8247 = vld [vmem:[%s8246] sm:$0xff]
        %v8248 = vld [vmem:[%s8246 + $0x8] sm:$0xff]
        %v8249 = vld [vmem:[%s8246 + $0x10] sm:$0xff]
        %v8250 = vld [vmem:[%s8246 + $0x18] sm:$0xff]
        %v8251 = vld [vmem:[%s8246 + $0x20] sm:$0xff]
        %v8252 = vld [vmem:[%s8246 + $0x28] sm:$0xff]
        %v8253 = vld [vmem:[%s8246 + $0x30] sm:$0xff]
        %v8254 = vld [vmem:[%s8246 + $0x38] sm:$0xff]
        %v8255 = vld [vmem:[%s8246 + $0x40] sm:$0xff]
        %v8256 = vld [vmem:[%s8246 + $0x48] sm:$0xff]
        %v8257 = vld [vmem:[%s8246 + $0x50] sm:$0xff]
        %v8258 = vld [vmem:[%s8246 + $0x58] sm:$0xff]
        %v8259 = vld [vmem:[%s8246 + $0x60] sm:$0xff]
        %v8260 = vld [vmem:[%s8246 + $0x68] sm:$0xff]
        %v8261 = vld [vmem:[%s8246 + $0x70] sm:$0xff]
        %v8262 = vld [vmem:[%s8246 + $0x78] sm:$0xff]
        %v8263 = vld [vmem:[%s8246 + $0x80] sm:$0xff]
        %v8264 = vld [vmem:[%s8246 + $0x88] sm:$0xff]
        %v8265 = vld [vmem:[%s8246 + $0x90] sm:$0xff]
        %v8266 = vld [vmem:[%s8246 + $0x98] sm:$0xff]
        %v8267 = vld [vmem:[%s8246 + $0xa0] sm:$0xff]
        %v8268 = vld [vmem:[%s8246 + $0xa8] sm:$0xff]
        %v8269 = vld [vmem:[%s8246 + $0xb0] sm:$0xff]
        %v8270 = vld [vmem:[%s8246 + $0xb8] sm:$0xff]
        %v8271 = vld [vmem:[%s8246 + $0xc0] sm:$0xff]
        %v8272 = vld [vmem:[%s8246 + $0xc8] sm:$0xff]
        %v8273 = vld [vmem:[%s8246 + $0xd0] sm:$0xff]
        %v8274 = vld [vmem:[%s8246 + $0xd8] sm:$0xff]
        %v8275 = vld [vmem:[%s8246 + $0xe0] sm:$0xff]
        %v8276 = vld [vmem:[%s8246 + $0xe8] sm:$0xff]
        %v8277 = vld [vmem:[%s8246 + $0xf0] sm:$0xff]
        %v8278 = vld [vmem:[%s8246 + $0xf8] sm:$0xff]
        %v8279 = vld [vmem:[%s8246 + $0x100] sm:$0xff]
        %v8280 = vld [vmem:[%s8246 + $0x108] sm:$0xff]
        %v8281 = vld [vmem:[%s8246 + $0x110] sm:$0xff]
        %v8282 = vld [vmem:[%s8246 + $0x118] sm:$0xff]
        %v8283 = vld [vmem:[%s8246 + $0x120] sm:$0xff]
        %v8284 = vld [vmem:[%s8246 + $0x128] sm:$0xff]
        %v8285 = vld [vmem:[%s8246 + $0x130] sm:$0xff]
        %v8286 = vld [vmem:[%s8246 + $0x138] sm:$0xff]
        %v8287 = vld [vmem:[%s8246 + $0x140] sm:$0xff]
        %v8288 = vld [vmem:[%s8246 + $0x148] sm:$0xff]
        %v8289 = vld [vmem:[%s8246 + $0x150] sm:$0xff]
        %v8290 = vld [vmem:[%s8246 + $0x158] sm:$0xff]
        %v8335 = vunpack.c.l.b16 %v8247
        %v8336 = vunpack.c.h.b16 %v8247
        %v8337 = vunpack.c.l.b16 %v8248
        %v8338 = vunpack.c.h.b16 %v8248
        %v8339 = vunpack.c.l.b16 %v8249
        %v8340 = vunpack.c.h.b16 %v8249
        %v8341 = vunpack.c.l.b16 %v8250
        %v8342 = vunpack.c.h.b16 %v8250
        %v8343 = vunpack.c.l.b16 %v8251
        %v8344 = vunpack.c.h.b16 %v8251
        %v8345 = vunpack.c.l.b16 %v8252
        %v8346 = vunpack.c.h.b16 %v8252
        %v8347 = vunpack.c.l.b16 %v8253
        %v8348 = vunpack.c.h.b16 %v8253
        %v8349 = vunpack.c.l.b16 %v8254
        %v8350 = vunpack.c.h.b16 %v8254
        %v8351 = vunpack.c.l.b16 %v8255
        %v8352 = vunpack.c.h.b16 %v8255
        %v8353 = vunpack.c.l.b16 %v8256
        %v8354 = vunpack.c.h.b16 %v8256
        %v8355 = vunpack.c.l.b16 %v8257
        %v8356 = vunpack.c.h.b16 %v8257
        %v8357 = vunpack.c.l.b16 %v8258
        %v8358 = vunpack.c.h.b16 %v8258
        %v8359 = vunpack.c.l.b16 %v8259
        %v8360 = vunpack.c.h.b16 %v8259
        %v8361 = vunpack.c.l.b16 %v8260
        %v8362 = vunpack.c.h.b16 %v8260
        %v8363 = vunpack.c.l.b16 %v8261
        %v8364 = vunpack.c.h.b16 %v8261
        %v8365 = vunpack.c.l.b16 %v8262
        %v8366 = vunpack.c.h.b16 %v8262
        %v8367 = vunpack.c.l.b16 %v8263
        %v8368 = vunpack.c.h.b16 %v8263
        %v8369 = vunpack.c.l.b16 %v8264
        %v8370 = vunpack.c.h.b16 %v8264
        %v8371 = vunpack.c.l.b16 %v8265
        %v8372 = vunpack.c.h.b16 %v8265
        %v8373 = vunpack.c.l.b16 %v8266
        %v8374 = vunpack.c.h.b16 %v8266
        %v8375 = vunpack.c.l.b16 %v8267
        %v8376 = vunpack.c.h.b16 %v8267
        %v8377 = vunpack.c.l.b16 %v8268
        %v8378 = vunpack.c.h.b16 %v8268
        %v8379 = vunpack.c.l.b16 %v8269
        %v8380 = vunpack.c.h.b16 %v8269
        %v8381 = vunpack.c.l.b16 %v8270
        %v8382 = vunpack.c.h.b16 %v8270
        %v8383 = vunpack.c.l.b16 %v8271
        %v8384 = vunpack.c.h.b16 %v8271
        %v8385 = vunpack.c.l.b16 %v8272
        %v8386 = vunpack.c.h.b16 %v8272
        %v8387 = vunpack.c.l.b16 %v8273
        %v8388 = vunpack.c.h.b16 %v8273
        %v8389 = vunpack.c.l.b16 %v8274
        %v8390 = vunpack.c.h.b16 %v8274
        %v8391 = vunpack.c.l.b16 %v8275
        %v8392 = vunpack.c.h.b16 %v8275
        %v8393 = vunpack.c.l.b16 %v8276
        %v8394 = vunpack.c.h.b16 %v8276
        %v8395 = vunpack.c.l.b16 %v8277
        %v8396 = vunpack.c.h.b16 %v8277
        %v8397 = vunpack.c.l.b16 %v8278
        %v8398 = vunpack.c.h.b16 %v8278
        %v8399 = vunpack.c.l.b16 %v8279
        %v8400 = vunpack.c.h.b16 %v8279
        %v8401 = vunpack.c.l.b16 %v8280
        %v8402 = vunpack.c.h.b16 %v8280
        %v8403 = vunpack.c.l.b16 %v8281
        %v8404 = vunpack.c.h.b16 %v8281
        %v8405 = vunpack.c.l.b16 %v8282
        %v8406 = vunpack.c.h.b16 %v8282
        %v8407 = vunpack.c.l.b16 %v8283
        %v8408 = vunpack.c.h.b16 %v8283
        %v8409 = vunpack.c.l.b16 %v8284
        %v8410 = vunpack.c.h.b16 %v8284
        %v8411 = vunpack.c.l.b16 %v8285
        %v8412 = vunpack.c.h.b16 %v8285
        %v8413 = vunpack.c.l.b16 %v8286
        %v8414 = vunpack.c.h.b16 %v8286
        %v8415 = vunpack.c.l.b16 %v8287
        %v8416 = vunpack.c.h.b16 %v8287
        %v8417 = vunpack.c.l.b16 %v8288
        %v8418 = vunpack.c.h.b16 %v8288
        %v8419 = vunpack.c.l.b16 %v8289
        %v8420 = vunpack.c.h.b16 %v8289
        %v8421 = vunpack.c.l.b16 %v8290
        %v8422 = vunpack.c.h.b16 %v8290
        %v8423 = vpack.c.b16 %v8337, %v8335
        %v8424 = vpack.c.b16 %v8338, %v8336
        %v8425 = vpack.c.b16 %v8341, %v8339
        %v8426 = vpack.c.b16 %v8342, %v8340
        %v8427 = vpack.c.b16 %v8345, %v8343
        %v8428 = vpack.c.b16 %v8346, %v8344
        %v8429 = vpack.c.b16 %v8349, %v8347
        %v8430 = vpack.c.b16 %v8350, %v8348
        %v8431 = vpack.c.b16 %v8353, %v8351
        %v8432 = vpack.c.b16 %v8354, %v8352
        %v8433 = vpack.c.b16 %v8357, %v8355
        %v8434 = vpack.c.b16 %v8358, %v8356
        %v8435 = vpack.c.b16 %v8361, %v8359
        %v8436 = vpack.c.b16 %v8362, %v8360
        %v8437 = vpack.c.b16 %v8365, %v8363
        %v8438 = vpack.c.b16 %v8366, %v8364
        %v8439 = vpack.c.b16 %v8369, %v8367
        %v8440 = vpack.c.b16 %v8370, %v8368
        %v8441 = vpack.c.b16 %v8373, %v8371
        %v8442 = vpack.c.b16 %v8374, %v8372
        %v8443 = vpack.c.b16 %v8377, %v8375
        %v8444 = vpack.c.b16 %v8378, %v8376
        %v8445 = vpack.c.b16 %v8381, %v8379
        %v8446 = vpack.c.b16 %v8382, %v8380
        %v8447 = vpack.c.b16 %v8385, %v8383
        %v8448 = vpack.c.b16 %v8386, %v8384
        %v8449 = vpack.c.b16 %v8389, %v8387
        %v8450 = vpack.c.b16 %v8390, %v8388
        %v8451 = vpack.c.b16 %v8393, %v8391
        %v8452 = vpack.c.b16 %v8394, %v8392
        %v8453 = vpack.c.b16 %v8397, %v8395
        %v8454 = vpack.c.b16 %v8398, %v8396
        %v8455 = vpack.c.b16 %v8401, %v8399
        %v8456 = vpack.c.b16 %v8402, %v8400
        %v8457 = vpack.c.b16 %v8405, %v8403
        %v8458 = vpack.c.b16 %v8406, %v8404
        %v8459 = vpack.c.b16 %v8409, %v8407
        %v8460 = vpack.c.b16 %v8410, %v8408
        %v8461 = vpack.c.b16 %v8413, %v8411
        %v8462 = vpack.c.b16 %v8414, %v8412
        %v8463 = vpack.c.b16 %v8417, %v8415
        %v8464 = vpack.c.b16 %v8418, %v8416
        %v8465 = vpack.c.b16 %v8421, %v8419
        %v8466 = vpack.c.b16 %v8422, %v8420
        %8511 = vmatprep.subr.bf16.mxu0 %v8424
        %8512 = vmatpush1.bf16.msra.mxu0 %v8423
        %8513 = vmatprep.subr.bf16.mxu0 %v8426
        %8514 = vmatpush1.bf16.msra.mxu0 %v8425
        %8515 = vmatprep.subr.bf16.mxu0 %v8428
        %8516 = vmatpush1.bf16.msra.mxu0 %v8427
        %8517 = vmatprep.subr.bf16.mxu0 %v8430
        %8518 = vmatpush1.bf16.msra.mxu0 %v8429
        %8519 = vmatprep.subr.bf16.mxu0 %v8432
        %8520 = vmatpush1.bf16.msra.mxu0 %v8431
        %8521 = vmatprep.subr.bf16.mxu0 %v8434
        %8522 = vmatpush1.bf16.msra.mxu0 %v8433
        %8523 = vmatprep.subr.bf16.mxu0 %v8436
        %8524 = vmatpush1.bf16.msra.mxu0 %v8435
        %8525 = vmatprep.subr.bf16.mxu0 %v8438
        %8526 = vmatpush1.bf16.msra.mxu0 %v8437
        %8527 = vmatprep.subr.bf16.mxu0 %v8440
        %8528 = vmatpush1.bf16.msra.mxu0 %v8439
        %8529 = vmatprep.subr.bf16.mxu0 %v8442
        %8530 = vmatpush1.bf16.msra.mxu0 %v8441
        %8531 = vmatprep.subr.bf16.mxu0 %v8444
        %8532 = vmatpush1.bf16.msra.mxu0 %v8443
        %8533 = vmatprep.subr.bf16.mxu0 %v8446
        %8534 = vmatpush1.bf16.msra.mxu0 %v8445
        %8535 = vmatprep.subr.bf16.mxu0 %v8448
        %8536 = vmatpush1.bf16.msra.mxu0 %v8447
        %8537 = vmatprep.subr.bf16.mxu0 %v8450
        %8538 = vmatpush1.bf16.msra.mxu0 %v8449
        %8539 = vmatprep.subr.bf16.mxu0 %v8452
        %8540 = vmatpush1.bf16.msra.mxu0 %v8451
        %8541 = vmatprep.subr.bf16.mxu0 %v8454
        %8542 = vmatpush1.bf16.msra.mxu0 %v8453
        %8543 = vmatprep.mubr.bf16.mxu0 %v6115
        %8544 = vmatmul.mubr.bf16.gmra.mrb[0].mxu0 %v6098
        %v8545 = vpop.f32.mrb[0].mxu0
        %v8546 = vadd.f32 0.0, %v8545
        %v8547 = vpop.f32.mrb[0].mxu0
        %v8548 = vadd.f32 0.0, %v8547
        %v8549 = vpop.f32.mrb[0].mxu0
        %v8550 = vadd.f32 0.0, %v8549
        %v8551 = vpop.f32.mrb[0].mxu0
        %v8552 = vadd.f32 0.0, %v8551
        %8553 = vdwg.mxu0
        %8554 = vmatprep.subr.bf16.mxu0 %v8456
        %8555 = vmatpush1.bf16.msra.mxu0 %v8455
        %8556 = vmatprep.subr.bf16.mxu0 %v8458
        %8557 = vmatpush1.bf16.msra.mxu0 %v8457
        %8558 = vmatprep.subr.bf16.mxu0 %v8460
        %8559 = vmatpush1.bf16.msra.mxu0 %v8459
        %8560 = vmatprep.subr.bf16.mxu0 %v8462
        %8561 = vmatpush1.bf16.msra.mxu0 %v8461
        %8562 = vmatprep.subr.bf16.mxu0 %v8464
        %8563 = vmatpush1.bf16.msra.mxu0 %v8463
        %8564 = vmatprep.subr.bf16.mxu0 %v8466
        %8565 = vmatpush1.bf16.msra.mxu0 %v8465
        %8566 = vmatprep.subr.bf16.mxu0 0
        %8567 = vmatpush1.bf16.msra.mxu0 0
        %8568 = vmatprep.subr.bf16.mxu0 0
        %8569 = vmatpush1.bf16.msra.mxu0 0
        %8570 = vmatprep.subr.bf16.mxu0 0
        %8571 = vmatpush1.bf16.msra.mxu0 0
        %8572 = vmatprep.subr.bf16.mxu0 0
        %8573 = vmatpush1.bf16.msra.mxu0 0
        %8574 = vmatprep.subr.bf16.mxu0 0
        %8575 = vmatpush1.bf16.msra.mxu0 0
        %8576 = vmatprep.subr.bf16.mxu0 0
        %8577 = vmatpush1.bf16.msra.mxu0 0
        %8578 = vmatprep.subr.bf16.mxu0 0
        %8579 = vmatpush1.bf16.msra.mxu0 0
        %8580 = vmatprep.subr.bf16.mxu0 0
        %8581 = vmatpush1.bf16.msra.mxu0 0
        %8582 = vmatprep.subr.bf16.mxu0 0
        %8583 = vmatpush1.bf16.msra.mxu0 0
        %8584 = vmatprep.subr.bf16.mxu0 0
        %8585 = vmatpush1.bf16.msra.mxu0 0
        %8586 = vmatprep.mubr.bf16.mxu0 0
        %8587 = vmatmul.mubr.bf16.gmra.mrb[0].mxu0 %v6356
        %v8588 = vpop.f32.mrb[0].mxu0
        %v8589 = vadd.f32 %v8546, %v8588
        %v8590 = vpop.f32.mrb[0].mxu0
        %v8591 = vadd.f32 %v8548, %v8590
        %v8592 = vpop.f32.mrb[0].mxu0
        %v8593 = vadd.f32 %v8550, %v8592
        %v8594 = vpop.f32.mrb[0].mxu0
        %v8595 = vadd.f32 %v8552, %v8594
        %8596 = vdwg.mxu0
        %v8597 = vadd.f32 %v8242, %v8589
        %v8598 = vadd.f32 %v8243, %v8591
        %v8599 = vadd.f32 %v8244, %v8593
        %v8600 = vadd.f32 %v8245, %v8595
        %v8601 = vld [vmem:[#allocation2] sm:$0xc0]
        %v8602 = vld [vmem:[#allocation2 + $0x8] sm:$0xc0]
        %v8603 = vld [vmem:[#allocation2 + $0x10] sm:$0xc0]
        %v8604 = vld [vmem:[#allocation2 + $0x30] sm:$0x3f]
        %v8605 = vld [vmem:[#allocation2 + $0x38] sm:$0x3f]
        %v8606 = vld [vmem:[#allocation2 + $0x40] sm:$0x3f]
        %v8607 = vpack.c.bf16 %v3351, %v8601
        %v8608 = vpack.c.bf16 %v3352, %v8602
        %v8609 = vpack.c.bf16 %v3353, %v8603
        %v8610 = vpack.c.bf16 %v8604, %v8604
        %v8611 = vpack.c.bf16 %v8605, %v8605
        %v8612 = vpack.c.bf16 %v8606, %v8606
        %s8613 = scalar_lea.vmem [#allocation16], 2112
        %v8614 = vld [vmem:[%s8613] sm:$0xff]
        %v8615 = vld [vmem:[%s8613 + $0x8] sm:$0xff]
        %v8616 = vld [vmem:[%s8613 + $0x10] sm:$0xff]
        %v8617 = vld [vmem:[%s8613 + $0x18] sm:$0xff]
        %v8618 = vld [vmem:[%s8613 + $0x20] sm:$0xff]
        %v8619 = vld [vmem:[%s8613 + $0x28] sm:$0xff]
        %v8620 = vld [vmem:[%s8613 + $0x30] sm:$0xff]
        %v8621 = vld [vmem:[%s8613 + $0x38] sm:$0xff]
        %v8622 = vld [vmem:[%s8613 + $0x40] sm:$0xff]
        %v8623 = vld [vmem:[%s8613 + $0x48] sm:$0xff]
        %v8624 = vld [vmem:[%s8613 + $0x50] sm:$0xff]
        %v8625 = vld [vmem:[%s8613 + $0x58] sm:$0xff]
        %v8626 = vld [vmem:[%s8613 + $0x60] sm:$0xff]
        %v8627 = vld [vmem:[%s8613 + $0x68] sm:$0xff]
        %v8628 = vld [vmem:[%s8613 + $0x70] sm:$0xff]
        %v8629 = vld [vmem:[%s8613 + $0x78] sm:$0xff]
        %v8630 = vld [vmem:[%s8613 + $0x80] sm:$0xff]
        %v8631 = vld [vmem:[%s8613 + $0x88] sm:$0xff]
        %v8632 = vld [vmem:[%s8613 + $0x90] sm:$0xff]
        %v8633 = vld [vmem:[%s8613 + $0x98] sm:$0xff]
        %v8634 = vld [vmem:[%s8613 + $0xa0] sm:$0xff]
        %v8635 = vld [vmem:[%s8613 + $0xa8] sm:$0xff]
        %v8636 = vld [vmem:[%s8613 + $0xb0] sm:$0xff]
        %v8637 = vld [vmem:[%s8613 + $0xb8] sm:$0xff]
        %v8638 = vld [vmem:[%s8613 + $0xc0] sm:$0xff]
        %v8639 = vld [vmem:[%s8613 + $0xc8] sm:$0xff]
        %v8640 = vld [vmem:[%s8613 + $0xd0] sm:$0xff]
        %v8641 = vld [vmem:[%s8613 + $0xd8] sm:$0xff]
        %v8642 = vld [vmem:[%s8613 + $0xe0] sm:$0xff]
        %v8643 = vld [vmem:[%s8613 + $0xe8] sm:$0xff]
        %v8644 = vld [vmem:[%s8613 + $0xf0] sm:$0xff]
        %v8645 = vld [vmem:[%s8613 + $0xf8] sm:$0xff]
        %v8646 = vld [vmem:[%s8613 + $0x100] sm:$0xff]
        %v8647 = vld [vmem:[%s8613 + $0x108] sm:$0xff]
        %v8648 = vld [vmem:[%s8613 + $0x110] sm:$0xff]
        %v8649 = vld [vmem:[%s8613 + $0x118] sm:$0xff]
        %v8650 = vld [vmem:[%s8613 + $0x120] sm:$0xff]
        %v8651 = vld [vmem:[%s8613 + $0x128] sm:$0xff]
        %v8652 = vld [vmem:[%s8613 + $0x130] sm:$0xff]
        %v8653 = vld [vmem:[%s8613 + $0x138] sm:$0xff]
        %v8654 = vld [vmem:[%s8613 + $0x140] sm:$0xff]
        %v8655 = vld [vmem:[%s8613 + $0x148] sm:$0xff]
        %v8656 = vld [vmem:[%s8613 + $0x150] sm:$0xff]
        %v8657 = vld [vmem:[%s8613 + $0x158] sm:$0xff]
        %vm8664 = vcmask 1044480
        %v8665 = vrot.slane %v8607, 3
        %v8666 = vrot.slane %v8610, 3
        %v8667 = vsel %vm8664, %v8665, %v8666
        %v8668 = vrot.slane %v8608, 3
        %v8669 = vrot.slane %v8611, 3
        %v8670 = vsel %vm8664, %v8668, %v8669
        %v8671 = vrot.slane %v8609, 3
        %v8672 = vrot.slane %v8612, 3
        %v8673 = vsel %vm8664, %v8671, %v8672
        %v8720 = vunpack.c.l.b16 %v8614
        %v8721 = vunpack.c.h.b16 %v8614
        %v8722 = vunpack.c.l.b16 %v8615
        %v8723 = vunpack.c.h.b16 %v8615
        %v8724 = vunpack.c.l.b16 %v8616
        %v8725 = vunpack.c.h.b16 %v8616
        %v8726 = vunpack.c.l.b16 %v8617
        %v8727 = vunpack.c.h.b16 %v8617
        %v8728 = vunpack.c.l.b16 %v8618
        %v8729 = vunpack.c.h.b16 %v8618
        %v8730 = vunpack.c.l.b16 %v8619
        %v8731 = vunpack.c.h.b16 %v8619
        %v8732 = vunpack.c.l.b16 %v8620
        %v8733 = vunpack.c.h.b16 %v8620
        %v8734 = vunpack.c.l.b16 %v8621
        %v8735 = vunpack.c.h.b16 %v8621
        %v8736 = vunpack.c.l.b16 %v8622
        %v8737 = vunpack.c.h.b16 %v8622
        %v8738 = vunpack.c.l.b16 %v8623
        %v8739 = vunpack.c.h.b16 %v8623
        %v8740 = vunpack.c.l.b16 %v8624
        %v8741 = vunpack.c.h.b16 %v8624
        %v8742 = vunpack.c.l.b16 %v8625
        %v8743 = vunpack.c.h.b16 %v8625
        %v8744 = vunpack.c.l.b16 %v8626
        %v8745 = vunpack.c.h.b16 %v8626
        %v8746 = vunpack.c.l.b16 %v8627
        %v8747 = vunpack.c.h.b16 %v8627
        %v8748 = vunpack.c.l.b16 %v8628
        %v8749 = vunpack.c.h.b16 %v8628
        %v8750 = vunpack.c.l.b16 %v8629
        %v8751 = vunpack.c.h.b16 %v8629
        %v8752 = vunpack.c.l.b16 %v8630
        %v8753 = vunpack.c.h.b16 %v8630
        %v8754 = vunpack.c.l.b16 %v8631
        %v8755 = vunpack.c.h.b16 %v8631
        %v8756 = vunpack.c.l.b16 %v8632
        %v8757 = vunpack.c.h.b16 %v8632
        %v8758 = vunpack.c.l.b16 %v8633
        %v8759 = vunpack.c.h.b16 %v8633
        %v8760 = vunpack.c.l.b16 %v8634
        %v8761 = vunpack.c.h.b16 %v8634
        %v8762 = vunpack.c.l.b16 %v8635
        %v8763 = vunpack.c.h.b16 %v8635
        %v8764 = vunpack.c.l.b16 %v8636
        %v8765 = vunpack.c.h.b16 %v8636
        %v8766 = vunpack.c.l.b16 %v8637
        %v8767 = vunpack.c.h.b16 %v8637
        %v8768 = vunpack.c.l.b16 %v8638
        %v8769 = vunpack.c.h.b16 %v8638
        %v8770 = vunpack.c.l.b16 %v8639
        %v8771 = vunpack.c.h.b16 %v8639
        %v8772 = vunpack.c.l.b16 %v8640
        %v8773 = vunpack.c.h.b16 %v8640
        %v8774 = vunpack.c.l.b16 %v8641
        %v8775 = vunpack.c.h.b16 %v8641
        %v8776 = vunpack.c.l.b16 %v8642
        %v8777 = vunpack.c.h.b16 %v8642
        %v8778 = vunpack.c.l.b16 %v8643
        %v8779 = vunpack.c.h.b16 %v8643
        %v8780 = vunpack.c.l.b16 %v8644
        %v8781 = vunpack.c.h.b16 %v8644
        %v8782 = vunpack.c.l.b16 %v8645
        %v8783 = vunpack.c.h.b16 %v8645
        %v8784 = vunpack.c.l.b16 %v8646
        %v8785 = vunpack.c.h.b16 %v8646
        %v8786 = vunpack.c.l.b16 %v8647
        %v8787 = vunpack.c.h.b16 %v8647
        %v8788 = vunpack.c.l.b16 %v8648
        %v8789 = vunpack.c.h.b16 %v8648
        %v8790 = vunpack.c.l.b16 %v8649
        %v8791 = vunpack.c.h.b16 %v8649
        %v8792 = vunpack.c.l.b16 %v8650
        %v8793 = vunpack.c.h.b16 %v8650
        %v8794 = vunpack.c.l.b16 %v8651
        %v8795 = vunpack.c.h.b16 %v8651
        %v8796 = vunpack.c.l.b16 %v8652
        %v8797 = vunpack.c.h.b16 %v8652
        %v8798 = vunpack.c.l.b16 %v8653
        %v8799 = vunpack.c.h.b16 %v8653
        %v8800 = vunpack.c.l.b16 %v8654
        %v8801 = vunpack.c.h.b16 %v8654
        %v8802 = vunpack.c.l.b16 %v8655
        %v8803 = vunpack.c.h.b16 %v8655
        %v8804 = vunpack.c.l.b16 %v8656
        %v8805 = vunpack.c.h.b16 %v8656
        %v8806 = vunpack.c.l.b16 %v8657
        %v8807 = vunpack.c.h.b16 %v8657
        %v8808 = vpack.c.b16 %v8722, %v8720
        %v8809 = vpack.c.b16 %v8723, %v8721
        %v8810 = vpack.c.b16 %v8726, %v8724
        %v8811 = vpack.c.b16 %v8727, %v8725
        %v8812 = vpack.c.b16 %v8730, %v8728
        %v8813 = vpack.c.b16 %v8731, %v8729
        %v8814 = vpack.c.b16 %v8734, %v8732
        %v8815 = vpack.c.b16 %v8735, %v8733
        %v8816 = vpack.c.b16 %v8738, %v8736
        %v8817 = vpack.c.b16 %v8739, %v8737
        %v8818 = vpack.c.b16 %v8742, %v8740
        %v8819 = vpack.c.b16 %v8743, %v8741
        %v8820 = vpack.c.b16 %v8746, %v8744
        %v8821 = vpack.c.b16 %v8747, %v8745
        %v8822 = vpack.c.b16 %v8750, %v8748
        %v8823 = vpack.c.b16 %v8751, %v8749
        %v8824 = vpack.c.b16 %v8754, %v8752
        %v8825 = vpack.c.b16 %v8755, %v8753
        %v8826 = vpack.c.b16 %v8758, %v8756
        %v8827 = vpack.c.b16 %v8759, %v8757
        %v8828 = vpack.c.b16 %v8762, %v8760
        %v8829 = vpack.c.b16 %v8763, %v8761
        %v8830 = vpack.c.b16 %v8766, %v8764
        %v8831 = vpack.c.b16 %v8767, %v8765
        %v8832 = vpack.c.b16 %v8770, %v8768
        %v8833 = vpack.c.b16 %v8771, %v8769
        %v8834 = vpack.c.b16 %v8774, %v8772
        %v8835 = vpack.c.b16 %v8775, %v8773
        %v8836 = vpack.c.b16 %v8778, %v8776
        %v8837 = vpack.c.b16 %v8779, %v8777
        %v8838 = vpack.c.b16 %v8782, %v8780
        %v8839 = vpack.c.b16 %v8783, %v8781
        %v8840 = vpack.c.b16 %v8786, %v8784
        %v8841 = vpack.c.b16 %v8787, %v8785
        %v8842 = vpack.c.b16 %v8790, %v8788
        %v8843 = vpack.c.b16 %v8791, %v8789
        %v8844 = vpack.c.b16 %v8794, %v8792
        %v8845 = vpack.c.b16 %v8795, %v8793
        %v8846 = vpack.c.b16 %v8798, %v8796
        %v8847 = vpack.c.b16 %v8799, %v8797
        %v8848 = vpack.c.b16 %v8802, %v8800
        %v8849 = vpack.c.b16 %v8803, %v8801
        %v8850 = vpack.c.b16 %v8806, %v8804
        %v8851 = vpack.c.b16 %v8807, %v8805
        %v8897 = vsel %vm796, %v8673, 0
        %8899 = vmatprep.subr.bf16.mxu0 %v8809
        %8900 = vmatpush1.bf16.msra.mxu0 %v8808
        %8901 = vmatprep.subr.bf16.mxu0 %v8811
        %8902 = vmatpush1.bf16.msra.mxu0 %v8810
        %8903 = vmatprep.subr.bf16.mxu0 %v8813
        %8904 = vmatpush1.bf16.msra.mxu0 %v8812
        %8905 = vmatprep.subr.bf16.mxu0 %v8815
        %8906 = vmatpush1.bf16.msra.mxu0 %v8814
        %8907 = vmatprep.subr.bf16.mxu0 %v8817
        %8908 = vmatpush1.bf16.msra.mxu0 %v8816
        %8909 = vmatprep.subr.bf16.mxu0 %v8819
        %8910 = vmatpush1.bf16.msra.mxu0 %v8818
        %8911 = vmatprep.subr.bf16.mxu0 %v8821
        %8912 = vmatpush1.bf16.msra.mxu0 %v8820
        %8913 = vmatprep.subr.bf16.mxu0 %v8823
        %8914 = vmatpush1.bf16.msra.mxu0 %v8822
        %8915 = vmatprep.subr.bf16.mxu0 %v8825
        %8916 = vmatpush1.bf16.msra.mxu0 %v8824
        %8917 = vmatprep.subr.bf16.mxu0 %v8827
        %8918 = vmatpush1.bf16.msra.mxu0 %v8826
        %8919 = vmatprep.subr.bf16.mxu0 %v8829
        %8920 = vmatpush1.bf16.msra.mxu0 %v8828
        %8921 = vmatprep.subr.bf16.mxu0 %v8831
        %8922 = vmatpush1.bf16.msra.mxu0 %v8830
        %8923 = vmatprep.subr.bf16.mxu0 %v8833
        %8924 = vmatpush1.bf16.msra.mxu0 %v8832
        %8925 = vmatprep.subr.bf16.mxu0 %v8835
        %8926 = vmatpush1.bf16.msra.mxu0 %v8834
        %8927 = vmatprep.subr.bf16.mxu0 %v8837
        %8928 = vmatpush1.bf16.msra.mxu0 %v8836
        %8929 = vmatprep.subr.bf16.mxu0 %v8839
        %8930 = vmatpush1.bf16.msra.mxu0 %v8838
        %8931 = vmatprep.mubr.bf16.mxu0 %v8670
        %8932 = vmatmul.mubr.bf16.gmra.mrb[0].mxu0 %v8667
        %v8933 = vpop.f32.mrb[0].mxu0
        %v8934 = vadd.f32 0.0, %v8933
        %v8935 = vpop.f32.mrb[0].mxu0
        %v8936 = vadd.f32 0.0, %v8935
        %v8937 = vpop.f32.mrb[0].mxu0
        %v8938 = vadd.f32 0.0, %v8937
        %v8939 = vpop.f32.mrb[0].mxu0
        %v8940 = vadd.f32 0.0, %v8939
        %8941 = vdwg.mxu0
        %8942 = vmatprep.subr.bf16.mxu0 %v8841
        %8943 = vmatpush1.bf16.msra.mxu0 %v8840
        %8944 = vmatprep.subr.bf16.mxu0 %v8843
        %8945 = vmatpush1.bf16.msra.mxu0 %v8842
        %8946 = vmatprep.subr.bf16.mxu0 %v8845
        %8947 = vmatpush1.bf16.msra.mxu0 %v8844
        %8948 = vmatprep.subr.bf16.mxu0 %v8847
        %8949 = vmatpush1.bf16.msra.mxu0 %v8846
        %8950 = vmatprep.subr.bf16.mxu0 %v8849
        %8951 = vmatpush1.bf16.msra.mxu0 %v8848
        %8952 = vmatprep.subr.bf16.mxu0 %v8851
        %8953 = vmatpush1.bf16.msra.mxu0 %v8850
        %8954 = vmatprep.subr.bf16.mxu0 0
        %8955 = vmatpush1.bf16.msra.mxu0 0
        %8956 = vmatprep.subr.bf16.mxu0 0
        %8957 = vmatpush1.bf16.msra.mxu0 0
        %8958 = vmatprep.subr.bf16.mxu0 0
        %8959 = vmatpush1.bf16.msra.mxu0 0
        %8960 = vmatprep.subr.bf16.mxu0 0
        %8961 = vmatpush1.bf16.msra.mxu0 0
        %8962 = vmatprep.subr.bf16.mxu0 0
        %8963 = vmatpush1.bf16.msra.mxu0 0
        %8964 = vmatprep.subr.bf16.mxu0 0
        %8965 = vmatpush1.bf16.msra.mxu0 0
        %8966 = vmatprep.subr.bf16.mxu0 0
        %8967 = vmatpush1.bf16.msra.mxu0 0
        %8968 = vmatprep.subr.bf16.mxu0 0
        %8969 = vmatpush1.bf16.msra.mxu0 0
        %8970 = vmatprep.subr.bf16.mxu0 0
        %8971 = vmatpush1.bf16.msra.mxu0 0
        %8972 = vmatprep.subr.bf16.mxu0 0
        %8973 = vmatpush1.bf16.msra.mxu0 0
        %8974 = vmatprep.mubr.bf16.mxu0 0
        %8975 = vmatmul.mubr.bf16.gmra.mrb[0].mxu0 %v8897
        %v8976 = vpop.f32.mrb[0].mxu0
        %v8977 = vadd.f32 %v8934, %v8976
        %v8978 = vpop.f32.mrb[0].mxu0
        %v8979 = vadd.f32 %v8936, %v8978
        %v8980 = vpop.f32.mrb[0].mxu0
        %v8981 = vadd.f32 %v8938, %v8980
        %v8982 = vpop.f32.mrb[0].mxu0
        %v8983 = vadd.f32 %v8940, %v8982
        %8984 = vdwg.mxu0
        %v8985 = vadd.f32 %v8597, %v8977
        %v8986 = vadd.f32 %v8598, %v8979
        %v8987 = vadd.f32 %v8599, %v8981
        %v8988 = vadd.f32 %v8600, %v8983
        %v8989 = vld [vmem:[#allocation17] sm:$0x3]
        %v8991 = vlaneseq
        %v8992 = vshrl.u32 %v8991, 7
        %v8993 = vsub.s32 0, %v8992
        %v8994 = vrot.slane %v8989, %v8993
        %v8995 = vlaneseq
        %v8996 = vshrl.u32 %v8995, 7
        %v8997 = vsub.s32 1, %v8996
        %v8998 = vrot.slane %v8989, %v8997
        %v9001 = vadd.f32 %v8985, %v8994
        %v9002 = vadd.f32 %v8986, %v8998
        %v9003 = vadd.f32 %v8987, %v8994
        %v9004 = vadd.f32 %v8988, %v8998
        %v9005 = vmax.f32 %v9001, 0.0
        %v9006 = vmax.f32 %v9002, 0.0
        %v9007 = vmax.f32 %v9003, 0.0
        %v9008 = vmax.f32 %v9004, 0.0
        %v9009 = vadd.f32 %v4555, %v4557
        %v9010 = vrot.slane %v9009, 4
        %v9011 = vadd.f32 %v9009, %v9010
        %v9012 = vrot.slane %v9011, 2
        %v9013 = vadd.f32 %v9011, %v9012
        %v9014 = vrot.slane %v9013, 1
        %v9015 = vadd.f32 %v9013, %v9014
        %v9016 = vadd.f32 %v4556, %v4558
        %v9017 = vrot.slane %v9016, 4
        %v9018 = vadd.f32 %v9016, %v9017
        %v9019 = vrot.slane %v9018, 2
        %v9020 = vadd.f32 %v9018, %v9019
        %v9021 = vrot.slane %v9020, 1
        %v9022 = vadd.f32 %v9020, %v9021
        %v9023 = vadd.f32 %v6464, %v6466
        %v9024 = vrot.slane %v9023, 4
        %v9025 = vadd.f32 %v9023, %v9024
        %v9026 = vrot.slane %v9025, 2
        %v9027 = vadd.f32 %v9025, %v9026
        %v9028 = vrot.slane %v9027, 1
        %v9029 = vadd.f32 %v9027, %v9028
        %v9030 = vadd.f32 %v6465, %v6467
        %v9031 = vrot.slane %v9030, 4
        %v9032 = vadd.f32 %v9030, %v9031
        %v9033 = vrot.slane %v9032, 2
        %v9034 = vadd.f32 %v9032, %v9033
        %v9035 = vrot.slane %v9034, 1
        %v9036 = vadd.f32 %v9034, %v9035
        %v9037 = vadd.f32 %v9005, %v9007
        %v9038 = vrot.slane %v9037, 4
        %v9039 = vadd.f32 %v9037, %v9038
        %v9040 = vrot.slane %v9039, 2
        %v9041 = vadd.f32 %v9039, %v9040
        %v9042 = vrot.slane %v9041, 1
        %v9043 = vadd.f32 %v9041, %v9042
        %v9044 = vadd.f32 %v9006, %v9008
        %v9045 = vrot.slane %v9044, 4
        %v9046 = vadd.f32 %v9044, %v9045
        %v9047 = vrot.slane %v9046, 2
        %v9048 = vadd.f32 %v9046, %v9047
        %v9049 = vrot.slane %v9048, 1
        %v9050 = vadd.f32 %v9048, %v9049
        %vm9051 = vcmask 1040384
        %v9052 = vsel %vm9051, %v9015, %v9029
        %v9053 = vsel %vm9051, %v9022, %v9036
        %vm9054 = vcmask 1041408
        %v9055 = vsel %vm9054, %v9052, %v9043
        %v9056 = vsel %vm9054, %v9053, %v9050
        %v9057 = vld [vmem:[%s15] sm:$0xff]
        %v9058 = vld [vmem:[%s15 + $0x8] sm:$0xff]
        %v9059 = vld [vmem:[%s15 + $0x10] sm:$0xff]
        %v9060 = vld [vmem:[%s15 + $0x18] sm:$0xff]
        %v9061 = vld [vmem:[%s15 + $0x20] sm:$0xff]
        %v9062 = vld [vmem:[%s15 + $0x28] sm:$0xff]
        %v9063 = vld [vmem:[%s15 + $0x30] sm:$0xff]
        %v9064 = vld [vmem:[%s15 + $0x38] sm:$0xff]
        %v9065 = vld [vmem:[%s15 + $0x40] sm:$0xff]
        %v9066 = vld [vmem:[%s15 + $0x48] sm:$0xff]
        %v9067 = vld [vmem:[%s15 + $0x50] sm:$0xff]
        %v9068 = vld [vmem:[%s15 + $0x58] sm:$0xff]
        %v9069 = vld [vmem:[%s15 + $0x60] sm:$0xff]
        %v9070 = vld [vmem:[%s15 + $0x68] sm:$0xff]
        %v9071 = vld [vmem:[%s15 + $0x70] sm:$0xff]
        %v9072 = vld [vmem:[%s15 + $0x78] sm:$0xff]
        %v9073 = vld [vmem:[%s15 + $0x80] sm:$0xff]
        %v9074 = vld [vmem:[%s15 + $0x88] sm:$0xff]
        %v9075 = vld [vmem:[%s15 + $0x90] sm:$0xff]
        %v9076 = vld [vmem:[%s15 + $0x98] sm:$0xff]
        %v9077 = vld [vmem:[%s15 + $0xa0] sm:$0xff]
        %v9078 = vld [vmem:[%s15 + $0xa8] sm:$0xff]
        %v9079 = vld [vmem:[%s15 + $0xb0] sm:$0xff]
        %v9080 = vld [vmem:[%s15 + $0xb8] sm:$0xff]
        %v9081 = vld [vmem:[%s15 + $0xc0] sm:$0xff]
        %v9082 = vld [vmem:[%s15 + $0xc8] sm:$0xff]
        %v9083 = vld [vmem:[%s15 + $0xd0] sm:$0xff]
        %v9084 = vld [vmem:[%s15 + $0xd8] sm:$0xff]
        %v9085 = vld [vmem:[%s15 + $0xe0] sm:$0xff]
        %v9086 = vld [vmem:[%s15 + $0xe8] sm:$0xff]
        %v9087 = vld [vmem:[%s15 + $0xf0] sm:$0xff]
        %v9088 = vld [vmem:[%s15 + $0xf8] sm:$0xff]
        %9089 = vmatprep.subr.mxu0 0.0
        %9090 = vmatpush1.msra.mxu0 %v9057
        %9091 = vmatprep.subr.mxu0 0.0
        %9092 = vmatpush1.msra.mxu0 %v9058
        %9093 = vmatprep.subr.mxu0 0.0
        %9094 = vmatpush1.msra.mxu0 %v9059
        %9095 = vmatprep.subr.mxu0 0.0
        %9096 = vmatpush1.msra.mxu0 %v9060
        %9097 = vmatprep.subr.mxu0 0.0
        %9098 = vmatpush1.msra.mxu0 %v9061
        %9099 = vmatprep.subr.mxu0 0.0
        %9100 = vmatpush1.msra.mxu0 %v9062
        %9101 = vmatprep.subr.mxu0 0.0
        %9102 = vmatpush1.msra.mxu0 %v9063
        %9103 = vmatprep.subr.mxu0 0.0
        %9104 = vmatpush1.msra.mxu0 %v9064
        %9105 = vmatprep.subr.mxu0 0.0
        %9106 = vmatpush1.msra.mxu0 %v9065
        %9107 = vmatprep.subr.mxu0 0.0
        %9108 = vmatpush1.msra.mxu0 %v9066
        %9109 = vmatprep.subr.mxu0 0.0
        %9110 = vmatpush1.msra.mxu0 %v9067
        %9111 = vmatprep.subr.mxu0 0.0
        %9112 = vmatpush1.msra.mxu0 %v9068
        %9113 = vmatprep.subr.mxu0 0.0
        %9114 = vmatpush1.msra.mxu0 %v9069
        %9115 = vmatprep.subr.mxu0 0.0
        %9116 = vmatpush1.msra.mxu0 %v9070
        %9117 = vmatprep.subr.mxu0 0.0
        %9118 = vmatpush1.msra.mxu0 %v9071
        %9119 = vmatprep.subr.mxu0 0.0
        %9120 = vmatpush1.msra.mxu0 %v9072
        %9121 = vmatprep.subr.mxu0 0.0
        %9122 = vmatpush1.msra.mxu0 %v9073
        %9123 = vmatprep.subr.mxu0 0.0
        %9124 = vmatpush1.msra.mxu0 %v9074
        %9125 = vmatprep.subr.mxu0 0.0
        %9126 = vmatpush1.msra.mxu0 %v9075
        %9127 = vmatprep.subr.mxu0 0.0
        %9128 = vmatpush1.msra.mxu0 %v9076
        %9129 = vmatprep.subr.mxu0 0.0
        %9130 = vmatpush1.msra.mxu0 %v9077
        %9131 = vmatprep.subr.mxu0 0.0
        %9132 = vmatpush1.msra.mxu0 %v9078
        %9133 = vmatprep.subr.mxu0 0.0
        %9134 = vmatpush1.msra.mxu0 %v9079
        %9135 = vmatprep.subr.mxu0 0.0
        %9136 = vmatpush1.msra.mxu0 %v9080
        %9137 = vmatprep.subr.mxu0 0.0
        %9138 = vmatpush1.msra.mxu0 %v9081
        %9139 = vmatprep.subr.mxu0 0.0
        %9140 = vmatpush1.msra.mxu0 %v9082
        %9141 = vmatprep.subr.mxu0 0.0
        %9142 = vmatpush1.msra.mxu0 %v9083
        %9143 = vmatprep.subr.mxu0 0.0
        %9144 = vmatpush1.msra.mxu0 %v9084
        %9145 = vmatprep.subr.mxu0 0.0
        %9146 = vmatpush1.msra.mxu0 %v9085
        %9147 = vmatprep.subr.mxu0 0.0
        %9148 = vmatpush1.msra.mxu0 %v9086
        %9149 = vmatprep.subr.mxu0 0.0
        %9150 = vmatpush1.msra.mxu0 %v9087
        %9151 = vmatprep.subr.mxu0 0.0
        %9152 = vmatpush1.msra.mxu0 %v9088
        %9153 = vmatprep.mubr.f32.mxu0 %v9056
        %9154 = vmatmul.mubr.f32.gmra.mrb[0].mxu0 %v9055
        %v9155 = vpop.f32.mrb[0].mxu0
        %v9156 = vadd.f32 0.0, %v9155
        %v9157 = vpop.f32.mrb[0].mxu0
        %9158 = vdwg.mxu0
        %v9159 = vmul.f32 %v9156, 0.00390625
        %v9160 = vld [vmem:[%s11] sm:$0xff]
        %v9161 = vld [vmem:[%s11 + $0x8] sm:$0xff]
        %v9162 = vld [vmem:[#allocation19] sm:$0x1]
        %v9164 = vlaneseq
        %v9165 = vshrl.u32 %v9164, 7
        %v9166 = vsub.s32 0, %v9165
        %v9167 = vrot.slane %v9162, %v9166
        %vm9169 = vcmask 130048
        %v9171 = vsel %vm9169, %v9159, 0
        %9173 = vmatprep.subr.mxu0 0.0
        %9174 = vmatpush1.msra.mxu0 %v9160
        %9175 = vmatprep.subr.mxu0 0.0
        %9176 = vmatpush1.msra.mxu0 %v9161
        %9177 = vmatprep.subr.mxu0 0.0
        %9178 = vmatpush1.msra.mxu0 0.0
        %9179 = vmatprep.subr.mxu0 0.0
        %9180 = vmatpush1.msra.mxu0 0.0
        %9181 = vmatprep.subr.mxu0 0.0
        %9182 = vmatpush1.msra.mxu0 0.0
        %9183 = vmatprep.subr.mxu0 0.0
        %9184 = vmatpush1.msra.mxu0 0.0
        %9185 = vmatprep.subr.mxu0 0.0
        %9186 = vmatpush1.msra.mxu0 0.0
        %9187 = vmatprep.subr.mxu0 0.0
        %9188 = vmatpush1.msra.mxu0 0.0
        %9189 = vmatprep.subr.mxu0 0.0
        %9190 = vmatpush1.msra.mxu0 0.0
        %9191 = vmatprep.subr.mxu0 0.0
        %9192 = vmatpush1.msra.mxu0 0.0
        %9193 = vmatprep.subr.mxu0 0.0
        %9194 = vmatpush1.msra.mxu0 0.0
        %9195 = vmatprep.subr.mxu0 0.0
        %9196 = vmatpush1.msra.mxu0 0.0
        %9197 = vmatprep.subr.mxu0 0.0
        %9198 = vmatpush1.msra.mxu0 0.0
        %9199 = vmatprep.subr.mxu0 0.0
        %9200 = vmatpush1.msra.mxu0 0.0
        %9201 = vmatprep.subr.mxu0 0.0
        %9202 = vmatpush1.msra.mxu0 0.0
        %9203 = vmatprep.subr.mxu0 0.0
        %9204 = vmatpush1.msra.mxu0 0.0
        %9205 = vmatprep.subr.mxu0 0.0
        %9206 = vmatpush1.msra.mxu0 0.0
        %9207 = vmatprep.subr.mxu0 0.0
        %9208 = vmatpush1.msra.mxu0 0.0
        %9209 = vmatprep.subr.mxu0 0.0
        %9210 = vmatpush1.msra.mxu0 0.0
        %9211 = vmatprep.subr.mxu0 0.0
        %9212 = vmatpush1.msra.mxu0 0.0
        %9213 = vmatprep.subr.mxu0 0.0
        %9214 = vmatpush1.msra.mxu0 0.0
        %9215 = vmatprep.subr.mxu0 0.0
        %9216 = vmatpush1.msra.mxu0 0.0
        %9217 = vmatprep.subr.mxu0 0.0
        %9218 = vmatpush1.msra.mxu0 0.0
        %9219 = vmatprep.subr.mxu0 0.0
        %9220 = vmatpush1.msra.mxu0 0.0
        %9221 = vmatprep.subr.mxu0 0.0
        %9222 = vmatpush1.msra.mxu0 0.0
        %9223 = vmatprep.subr.mxu0 0.0
        %9224 = vmatpush1.msra.mxu0 0.0
        %9225 = vmatprep.subr.mxu0 0.0
        %9226 = vmatpush1.msra.mxu0 0.0
        %9227 = vmatprep.subr.mxu0 0.0
        %9228 = vmatpush1.msra.mxu0 0.0
        %9229 = vmatprep.subr.mxu0 0.0
        %9230 = vmatpush1.msra.mxu0 0.0
        %9231 = vmatprep.subr.mxu0 0.0
        %9232 = vmatpush1.msra.mxu0 0.0
        %9233 = vmatprep.subr.mxu0 0.0
        %9234 = vmatpush1.msra.mxu0 0.0
        %9235 = vmatprep.subr.mxu0 0.0
        %9236 = vmatpush1.msra.mxu0 0.0
        %9237 = vmatprep.mubr.f32.mxu0 0.0
        %9238 = vmatmul.mubr.f32.gmra.mrb[0].mxu0 %v9171
        %v9239 = vpop.f32.mrb[0].mxu0
        %v9240 = vadd.f32 %v9167, %v9239
        %v9241 = vpop.f32.mrb[0].mxu0
        %9242 = vdwg.mxu0
        %v9243 = vmax.f32 %v9240, 0.0
        %v9244 = vld [vmem:[#allocation20] sm:$0x3]
        %v9245 = vld [vmem:[#allocation22] sm:$0x1]
        %v9247 = vlaneseq
        %v9248 = vshrl.u32 %v9247, 7
        %v9249 = vsub.s32 0, %v9248
        %v9250 = vrot.slane %v9245, %v9249
        %vm9252 = vcmask 15360
        %v9254 = vsel %vm9252, %v9243, 0
        %v9257 = vsel %vm9054, %v9244, 0
        %9259 = vmatprep.subr.mxu0 0.0
        %9260 = vmatpush1.msra.mxu0 %v9257
        %9261 = vmatprep.subr.mxu0 0.0
        %9262 = vmatpush1.msra.mxu0 0.0
        %9263 = vmatprep.subr.mxu0 0.0
        %9264 = vmatpush1.msra.mxu0 0.0
        %9265 = vmatprep.subr.mxu0 0.0
        %9266 = vmatpush1.msra.mxu0 0.0
        %9267 = vmatprep.subr.mxu0 0.0
        %9268 = vmatpush1.msra.mxu0 0.0
        %9269 = vmatprep.subr.mxu0 0.0
        %9270 = vmatpush1.msra.mxu0 0.0
        %9271 = vmatprep.subr.mxu0 0.0
        %9272 = vmatpush1.msra.mxu0 0.0
        %9273 = vmatprep.subr.mxu0 0.0
        %9274 = vmatpush1.msra.mxu0 0.0
        %9275 = vmatprep.subr.mxu0 0.0
        %9276 = vmatpush1.msra.mxu0 0.0
        %9277 = vmatprep.subr.mxu0 0.0
        %9278 = vmatpush1.msra.mxu0 0.0
        %9279 = vmatprep.subr.mxu0 0.0
        %9280 = vmatpush1.msra.mxu0 0.0
        %9281 = vmatprep.subr.mxu0 0.0
        %9282 = vmatpush1.msra.mxu0 0.0
        %9283 = vmatprep.subr.mxu0 0.0
        %9284 = vmatpush1.msra.mxu0 0.0
        %9285 = vmatprep.subr.mxu0 0.0
        %9286 = vmatpush1.msra.mxu0 0.0
        %9287 = vmatprep.subr.mxu0 0.0
        %9288 = vmatpush1.msra.mxu0 0.0
        %9289 = vmatprep.subr.mxu0 0.0
        %9290 = vmatpush1.msra.mxu0 0.0
        %9291 = vmatprep.subr.mxu0 0.0
        %9292 = vmatpush1.msra.mxu0 0.0
        %9293 = vmatprep.subr.mxu0 0.0
        %9294 = vmatpush1.msra.mxu0 0.0
        %9295 = vmatprep.subr.mxu0 0.0
        %9296 = vmatpush1.msra.mxu0 0.0
        %9297 = vmatprep.subr.mxu0 0.0
        %9298 = vmatpush1.msra.mxu0 0.0
        %9299 = vmatprep.subr.mxu0 0.0
        %9300 = vmatpush1.msra.mxu0 0.0
        %9301 = vmatprep.subr.mxu0 0.0
        %9302 = vmatpush1.msra.mxu0 0.0
        %9303 = vmatprep.subr.mxu0 0.0
        %9304 = vmatpush1.msra.mxu0 0.0
        %9305 = vmatprep.subr.mxu0 0.0
        %9306 = vmatpush1.msra.mxu0 0.0
        %9307 = vmatprep.subr.mxu0 0.0
        %9308 = vmatpush1.msra.mxu0 0.0
        %9309 = vmatprep.subr.mxu0 0.0
        %9310 = vmatpush1.msra.mxu0 0.0
        %9311 = vmatprep.subr.mxu0 0.0
        %9312 = vmatpush1.msra.mxu0 0.0
        %9313 = vmatprep.subr.mxu0 0.0
        %9314 = vmatpush1.msra.mxu0 0.0
        %9315 = vmatprep.subr.mxu0 0.0
        %9316 = vmatpush1.msra.mxu0 0.0
        %9317 = vmatprep.subr.mxu0 0.0
        %9318 = vmatpush1.msra.mxu0 0.0
        %9319 = vmatprep.subr.mxu0 0.0
        %9320 = vmatpush1.msra.mxu0 0.0
        %9321 = vmatprep.subr.mxu0 0.0
        %9322 = vmatpush1.msra.mxu0 0.0
        %9323 = vmatprep.mubr.f32.mxu0 0.0
        %9324 = vmatmul.mubr.f32.gmra.mrb[0].mxu0 %v9254
        %v9325 = vpop.f32.mrb[0].mxu0
        %v9326 = vadd.f32 %v9250, %v9325
        %v9327 = vpop.f32.mrb[0].mxu0
        %9328 = vdwg.mxu0
        %v9329 = vsub.f32 0.0, %v9326
        %v9330 = vmul.f32 %v9329, 1.442695
        %v9331 = vpow.pop %v9330
        %v9332 = vadd.f32 %v9331, 1.0
        %v9333 = vrcp.pop %v9332
        %v9334 = vmul.f32 1.0, %v9333
        %v9335 = vld [vmem:[#allocation23] sm:$0xff]
        %v9336 = vld [vmem:[#allocation23 + $0x8] sm:$0xff]
        %v9337 = vld [vmem:[#allocation23 + $0x10] sm:$0xff]
        %v9338 = vld [vmem:[#allocation23 + $0x18] sm:$0xff]
        %v9340 = vsel %vm9169, %v9334, 0
        %9342 = vmatprep.subr.mxu0 %v9336
        %9343 = vmatpush1.msra.mxu0 %v9335
        %9344 = vmatprep.subr.mxu0 %v9338
        %9345 = vmatpush1.msra.mxu0 %v9337
        %9346 = vmatprep.subr.mxu0 0.0
        %9347 = vmatpush1.msra.mxu0 0.0
        %9348 = vmatprep.subr.mxu0 0.0
        %9349 = vmatpush1.msra.mxu0 0.0
        %9350 = vmatprep.subr.mxu0 0.0
        %9351 = vmatpush1.msra.mxu0 0.0
        %9352 = vmatprep.subr.mxu0 0.0
        %9353 = vmatpush1.msra.mxu0 0.0
        %9354 = vmatprep.subr.mxu0 0.0
        %9355 = vmatpush1.msra.mxu0 0.0
        %9356 = vmatprep.subr.mxu0 0.0
        %9357 = vmatpush1.msra.mxu0 0.0
        %9358 = vmatprep.subr.mxu0 0.0
        %9359 = vmatpush1.msra.mxu0 0.0
        %9360 = vmatprep.subr.mxu0 0.0
        %9361 = vmatpush1.msra.mxu0 0.0
        %9362 = vmatprep.subr.mxu0 0.0
        %9363 = vmatpush1.msra.mxu0 0.0
        %9364 = vmatprep.subr.mxu0 0.0
        %9365 = vmatpush1.msra.mxu0 0.0
        %9366 = vmatprep.subr.mxu0 0.0
        %9367 = vmatpush1.msra.mxu0 0.0
        %9368 = vmatprep.subr.mxu0 0.0
        %9369 = vmatpush1.msra.mxu0 0.0
        %9370 = vmatprep.subr.mxu0 0.0
        %9371 = vmatpush1.msra.mxu0 0.0
        %9372 = vmatprep.subr.mxu0 0.0
        %9373 = vmatpush1.msra.mxu0 0.0
        %9374 = vmatprep.subr.mxu0 0.0
        %9375 = vmatpush1.msra.mxu0 0.0
        %9376 = vmatprep.subr.mxu0 0.0
        %9377 = vmatpush1.msra.mxu0 0.0
        %9378 = vmatprep.subr.mxu0 0.0
        %9379 = vmatpush1.msra.mxu0 0.0
        %9380 = vmatprep.subr.mxu0 0.0
        %9381 = vmatpush1.msra.mxu0 0.0
        %9382 = vmatprep.subr.mxu0 0.0
        %9383 = vmatpush1.msra.mxu0 0.0
        %9384 = vmatprep.subr.mxu0 0.0
        %9385 = vmatpush1.msra.mxu0 0.0
        %9386 = vmatprep.subr.mxu0 0.0
        %9387 = vmatpush1.msra.mxu0 0.0
        %9388 = vmatprep.subr.mxu0 0.0
        %9389 = vmatpush1.msra.mxu0 0.0
        %9390 = vmatprep.subr.mxu0 0.0
        %9391 = vmatpush1.msra.mxu0 0.0
        %9392 = vmatprep.subr.mxu0 0.0
        %9393 = vmatpush1.msra.mxu0 0.0
        %9394 = vmatprep.subr.mxu0 0.0
        %9395 = vmatpush1.msra.mxu0 0.0
        %9396 = vmatprep.subr.mxu0 0.0
        %9397 = vmatpush1.msra.mxu0 0.0
        %9398 = vmatprep.subr.mxu0 0.0
        %9399 = vmatpush1.msra.mxu0 0.0
        %9400 = vmatprep.subr.mxu0 0.0
        %9401 = vmatpush1.msra.mxu0 0.0
        %9402 = vmatprep.subr.mxu0 0.0
        %9403 = vmatpush1.msra.mxu0 0.0
        %9404 = vmatprep.subr.mxu0 0.0
        %9405 = vmatpush1.msra.mxu0 0.0
        %9406 = vmatprep.mubr.f32.mxu0 0.0
        %9407 = vmatmul.mubr.f32.gmra.mrb[0].mxu0 %v9340
        %v9408 = vpop.f32.mrb[0].mxu0
        %v9409 = vadd.f32 0.0, %v9408
        %v9410 = vpop.f32.mrb[0].mxu0
        %v9411 = vadd.f32 0.0, %v9410
        %9412 = vdwg.mxu0
        %v9413 = vlaneseq
        %v9414 = vshrl.u32 %v9413, 7
        %v9415 = vsub.s32 0, %v9414
        %v9416 = vrot.slane %v9409, %v9415
        %v9417 = vlaneseq
        %v9418 = vshrl.u32 %v9417, 7
        %v9419 = vsub.s32 0, %v9418
        %v9420 = vrot.slane %v9411, %v9419
        %v9421 = vmul.f32 %v4555, %v9416
        %v9422 = vmul.f32 %v4556, %v9420
        %v9423 = vmul.f32 %v4557, %v9416
        %v9424 = vmul.f32 %v4558, %v9420
        %v9425 = vlaneseq
        %v9426 = vshrl.u32 %v9425, 7
        %v9427 = vsub.s32 1, %v9426
        %v9428 = vrot.slane %v9409, %v9427
        %v9429 = vlaneseq
        %v9430 = vshrl.u32 %v9429, 7
        %v9431 = vsub.s32 1, %v9430
        %v9432 = vrot.slane %v9411, %v9431
        %v9433 = vmul.f32 %v6464, %v9428
        %v9434 = vmul.f32 %v6465, %v9432
        %v9435 = vmul.f32 %v6466, %v9428
        %v9436 = vmul.f32 %v6467, %v9432
        %v9437 = vadd.f32 %v9421, %v9433
        %v9438 = vadd.f32 %v9422, %v9434
        %v9439 = vadd.f32 %v9423, %v9435
        %v9440 = vadd.f32 %v9424, %v9436
        %v9441 = vlaneseq
        %v9442 = vshrl.u32 %v9441, 7
        %v9443 = vsub.s32 2, %v9442
        %v9444 = vrot.slane %v9409, %v9443
        %v9445 = vlaneseq
        %v9446 = vshrl.u32 %v9445, 7
        %v9447 = vsub.s32 2, %v9446
        %v9448 = vrot.slane %v9411, %v9447
        %v9449 = vmul.f32 %v9005, %v9444
        %v9450 = vmul.f32 %v9006, %v9448
        %v9451 = vmul.f32 %v9007, %v9444
        %v9452 = vmul.f32 %v9008, %v9448
        %v9453 = vadd.f32 %v9437, %v9449
        %v9454 = vadd.f32 %v9438, %v9450
        %v9455 = vadd.f32 %v9439, %v9451
        %v9456 = vadd.f32 %v9440, %v9452
        %v9457 = vadd.f32 %v9453, %v738
        %v9458 = vadd.f32 %v9454, %v739
        %v9459 = vadd.f32 %v9455, %v740
        %v9460 = vadd.f32 %v9456, %v741
        %9461 = vst [vmem:[%s736] sm:$0xff] %v9457
        %9462 = vst [vmem:[%s736 + $0x8] sm:$0xff] %v9458
        %9463 = vst [vmem:[%s736 + $0x10] sm:$0xff] %v9459
        %9464 = vst [vmem:[%s736 + $0x18] sm:$0xff] %v9460
        %p9465 = scmp.lt.s32.totalorder %s36, 1
        %s9466 = scalar_select %p9465, %s36, 1
        %s9467 = smul.addr %s9466, 4
        %s9468 = smul.addr %s9467, 8
        %s9469 = scalar_lea.vmem %s17, %s9468
        // Predicated region
        $region145: #{block_forward.1} parent=87 // pred_check
          %p9470 = pneg %p416
        $region146: #{block_forward.1} parent=87 // pred_check_branch
          %9472 = sbr.rel (%p9470) target = $region148
        $region147: #{block_forward.1} parent=87 // pred_region
          _
        $region148: #{block_forward.1} parent=87 // pred_fallthru
          _
      $region88: #{block_forward.1} parent=5 // pred_fallthru
        _
      %p9473 = scmp.le.s32.totalorder 2, %s31
      // Predicated region
      $region149: #{block_forward.1} parent=5 // pred_check
        %p9474 = pneg %p9473
      $region150: #{block_forward.1} parent=5 // pred_check_branch
        %9476 = sbr.rel (%p9474) target = $region152
      $region151: #{block_forward.1} parent=5 // pred_region
        %s9477 = ssub.s32 %s31, 2
        // Predicated region
        $region153: #{block_forward.1} parent=151 // pred_check
          %p9478 = pneg %p422
        $region154: #{block_forward.1} parent=151 // pred_check_branch
          %9480 = sbr.rel (%p9478) target = $region156
        $region155: #{block_forward.1} parent=151 // pred_region
          %p9481 = scmp.lt.s32.totalorder %s37, 1
          %s9482 = scalar_select %p9481, %s37, 1
          %s9483 = smul.addr %s9482, 4
          %s9484 = smul.addr %s9483, 8
          %s9485 = scalar_lea.vmem %s17, %s9484
        $region156: #{block_forward.1} parent=151 // pred_fallthru
          _
      $region152: #{block_forward.1} parent=5 // pred_fallthru
        _
    $region6: #{block_forward.1} parent=1 // loop_footer
      %s35 = sadd.s32 1, %s31
    $region7: #{block_forward.1} parent=1 // loop_footer_branch
      %30 = sbr.rel target = $region3
    $region8: #{block_forward.1} parent=1 // loop_exit
      _
    %9486 = vsyncpa [#allocation4], 1
    %s9487 = scalar_lea.sflag [#allocation4], 1
    %9488 = vsyncpa %s9487, 1
    %9489 = vsyncpa [#allocation6], 1
    %9490 = vsyncpa [#allocation9], 1
    %9491 = vsyncpa [#allocation12], 1
    %9492 = vsyncpa [#allocation15], 1
    %9493 = vsyncpa [#allocation18], 1
    %9494 = vsyncpa [#allocation21], 1
    %9495 = vsyncpa [#allocation24], 1

</llo_original>
